<compile_context>
chip_gen: v7x
topology: tpu7x:2x2x1
jax: 0.10.0
libtpu: 0.0.40
codegen_flags: <defaults>
</compile_context>

<pallas_src>
import math

import jax
import jax.numpy as jnp
from jax.experimental import pallas as pl
from jax.experimental.pallas import tpu as pltpu

_SQRT1_2 = 0.7071067811865476


# ---------------------------------------------------------------------------
# GELU (exact/erf form, A&S 7.1.26 rational approximation -> f32 accurate)
# ---------------------------------------------------------------------------
def _erf_approx(x):
    a1, a2, a3, a4, a5 = (0.254829592, -0.284496736, 1.421413741,
                          -1.453152027, 1.061405429)
    p = 0.3275911
    ax = jnp.abs(x)
    t = 1.0 / (1.0 + p * ax)
    poly = ((((a5 * t + a4) * t + a3) * t + a2) * t + a1) * t
    y = 1.0 - poly * jnp.exp(-ax * ax)         # exp runs on the EUP slot
    return jnp.where(x >= 0, y, -y)


def _gelu(x):
    return 0.5 * x * (1.0 + _erf_approx(x * _SQRT1_2))


# ---------------------------------------------------------------------------
# In-kernel helpers (operate on (L, C) jnp values living in VMEM)
# ---------------------------------------------------------------------------
def _shift_rows(x, off):
    """result[i] = x[i + off], zero outside [0, L).  XLU roll + edge mask."""
    L = x.shape[0]
    if off == 0:
        return x
    rolled = pltpu.roll(x, shift=(-off) % L, axis=0)   # rolled[i] = x[(i+off)%L]
    idx = jax.lax.broadcasted_iota(jnp.int32, x.shape, 0)
    if off > 0:
        mask = idx < (L - off)
    else:
        mask = idx >= (-off)
    return jnp.where(mask, rolled, jnp.zeros_like(rolled))


def _conv1d(x, w, b, *, apply_gelu):
    """Conv1d(kernel K, padding='same').  x:(L,Cin), w:(K,Cin,Cout), b:(1,Cout)."""
    L = x.shape[0]
    K, cin, cout = w.shape
    pad = K // 2
    acc = jnp.zeros((L, cout), jnp.float32)
    if cin <= 4:
        # Tiny contraction dim (conv_1, Cin=3): keep it on the VPU as FMAs.
        for k in range(K):
            sh = _shift_rows(x, k - pad)
            for ci in range(cin):
                acc = acc + sh[:, ci:ci + 1] * w[k, ci:ci + 1, :]
    else:
        for k in range(K):
            sh = _shift_rows(x, k - pad)
            acc = acc + jnp.dot(sh, w[k], preferred_element_type=jnp.float32)
    acc = acc + b
    if apply_gelu:
        acc = _gelu(acc)
    return acc


def _convnext_block(x, p, *, eps=1e-5):
    """depthwise conv(7,'same') -> LayerNorm(C) -> 1x1 -> GELU -> 1x1 -> +res."""
    L, C = x.shape
    wdw = p["w_dw"]                                    # (7, C)
    acc = jnp.zeros((L, C), jnp.float32)
    for k in range(7):
        sh = _shift_rows(x, k - 3)
        acc = acc + sh * wdw[k:k + 1, :]
    y = acc + p["b_dw"]

    # LayerNorm over channels (biased variance, eps=1e-5)
    mean = jnp.mean(y, axis=-1, keepdims=True)
    var = jnp.mean(jnp.square(y - mean), axis=-1, keepdims=True)
    yn = (y - mean) * jax.lax.rsqrt(var + eps)
    yn = yn * p["gamma"] + p["beta"]

    h = _gelu(jnp.dot(yn, p["w1"], preferred_element_type=jnp.float32) + p["b1"])
    z = jnp.dot(h, p["w2"], preferred_element_type=jnp.float32) + p["b2"]
    return z + x


# ---------------------------------------------------------------------------
# Fully fused network kernel
# ---------------------------------------------------------------------------
def _make_fused_kernel(treedef):
    def kernel(x_ref, *refs):
        o_ref = refs[-1]
        params = jax.tree_util.tree_unflatten(
            treedef, [r[...] for r in refs[:-1]])

        y = x_ref[...].astype(jnp.float32)             # (L, 3)

        w, b = params["conv_1"]; y = _conv1d(y, w, b, apply_gelu=False)
        y = _convnext_block(y, params["block_16"])
        w, b = params["conv_2"]; y = _conv1d(y, w, b, apply_gelu=True)
        y = _convnext_block(y, params["block_24"])
        w, b = params["conv_3"]; y = _conv1d(y, w, b, apply_gelu=True)
        y = _convnext_block(y, params["block_32"])
        w, b = params["conv_4"]; y = _conv1d(y, w, b, apply_gelu=True)
        y = _convnext_block(y, params["block_48"])
        w, b = params["conv_5"]; y = _conv1d(y, w, b, apply_gelu=True)
        y = _convnext_block(y, params["block_64"])
        w, b = params["conv_6"]; y = _conv1d(y, w, b, apply_gelu=True)   # (L, 1)

        pooled = jnp.mean(y, axis=0, keepdims=True)    # (1, 1)  AdaptiveAvgPool1d(1)
        o_ref[...] = jnp.broadcast_to(pooled, o_ref.shape).astype(o_ref.dtype)

    return kernel


def modified_convnext_forward(x, params):
    """x: (B, L, 3) channels-last (the torch module's input before its permute)."""
    B, L, cin = x.shape
    assert L % 8 == 0, "L must be a multiple of 8 (sublane tile) for roll-based shifts"
    # TODO(synk): for very long sequences, add an L-tile grid axis with a
    # 21-element receptive-field halo and an explicit vmem_limit_bytes.

    flat, treedef = jax.tree_util.tree_flatten(params)

    in_specs = [pl.BlockSpec((None, L, cin), lambda i: (i, 0, 0))]
    for a in flat:                                      # whole (tiny) weight arrays
        zeros = (0,) * a.ndim
        in_specs.append(pl.BlockSpec(a.shape, lambda i, z=zeros: z))

    out = pl.pallas_call(
        _make_fused_kernel(treedef),
        out_shape=jax.ShapeDtypeStruct((B, 8, 128), jnp.float32),   # lane-dense store
        grid=(B,),
        in_specs=in_specs,
        out_specs=pl.BlockSpec((None, 8, 128), lambda i: (i, 0, 0)),
        compiler_params=pltpu.CompilerParams(
            dimension_semantics=("parallel",)),
    )(x, *flat)
    return out[:, 0, :1]                                # (B, 1)


# ---------------------------------------------------------------------------
# Deterministic parameter initialization (PyTorch default-style uniform bounds)
# ---------------------------------------------------------------------------
def _uniform(key, shape, bound):
    return jax.random.uniform(key, shape, jnp.float32, -bound, bound)


def init_conv1d_params(key, cin, cout, k):
    bound = 1.0 / math.sqrt(cin * k)
    kw, kb = jax.random.split(key)
    return _uniform(kw, (k, cin, cout), bound), _uniform(kb, (1, cout), bound)


def init_convnext_params(key, cin, cout):
    hid = int(1.5 * cout)
    ks = jax.random.split(key, 6)
    bound_dw = 1.0 / math.sqrt(7.0)          # groups=cin -> fan_in = 1 * 7
    bound1 = 1.0 / math.sqrt(cin)
    bound2 = 1.0 / math.sqrt(hid)
    return dict(
        w_dw=_uniform(ks[0], (7, cin), bound_dw),
        b_dw=_uniform(ks[1], (1, cin), bound_dw),
        gamma=jnp.ones((1, cin), jnp.float32),
        beta=jnp.zeros((1, cin), jnp.float32),
        w1=_uniform(ks[2], (cin, hid), bound1),
        b1=_uniform(ks[3], (1, hid), bound1),
        w2=_uniform(ks[4], (hid, cin), bound2),
        b2=_uniform(ks[5], (1, cin), bound2),
    )


def init_model_params(key):
    ks = jax.random.split(key, 11)
    return dict(
        conv_1=init_conv1d_params(ks[0], 3, 8, 3),
        block_16=init_convnext_params(ks[1], 8, 16),
        conv_2=init_conv1d_params(ks[2], 8, 16, 3),
        block_24=init_convnext_params(ks[3], 16, 24),
        conv_3=init_conv1d_params(ks[4], 16, 24, 3),
        block_32=init_convnext_params(ks[5], 24, 32),
        conv_4=init_conv1d_params(ks[6], 24, 32, 3),
        block_48=init_convnext_params(ks[7], 32, 48),
        conv_5=init_conv1d_params(ks[8], 32, 48, 3),
        block_64=init_convnext_params(ks[9], 48, 64),
        conv_6=init_conv1d_params(ks[10], 48, 1, 3),
    )


# ---------------------------------------------------------------------------
# Pure-JAX reference (same math, shift via pad/concat) for a sanity check
# ---------------------------------------------------------------------------
def _ref_shift(x, off):
    L, C = x.shape
    if off > 0:
        return jnp.concatenate([x[off:], jnp.zeros((off, C), x.dtype)], axis=0)
    if off < 0:
        return jnp.concatenate([jnp.zeros((-off, C), x.dtype), x[:L + off]], axis=0)
    return x


def _ref_conv1d(x, w, b, apply_gelu):
    K = w.shape[0]
    pad = K // 2
    acc = sum(jnp.dot(_ref_shift(x, k - pad), w[k],
                      precision=jax.lax.Precision.HIGHEST) for k in range(K)) + b
    return _gelu(acc) if apply_gelu else acc


def _ref_block(x, p):
    acc = sum(_ref_shift(x, k - 3) * p["w_dw"][k:k + 1, :] for k in range(7))
    acc = acc + p["b_dw"]
    mean = jnp.mean(acc, axis=-1, keepdims=True)
    var = jnp.mean(jnp.square(acc - mean), axis=-1, keepdims=True)
    yn = (acc - mean) * jax.lax.rsqrt(var + 1e-5) * p["gamma"] + p["beta"]
    h = _gelu(jnp.dot(yn, p["w1"], precision=jax.lax.Precision.HIGHEST) + p["b1"])
    return jnp.dot(h, p["w2"], precision=jax.lax.Precision.HIGHEST) + p["b2"] + x


def reference_forward(x, params):
    outs = []
    for b in range(x.shape[0]):
        y = x[b]
        w, bb = params["conv_1"]; y = _ref_conv1d(y, w, bb, False)
        y = _ref_block(y, params["block_16"])
        w, bb = params["conv_2"]; y = _ref_conv1d(y, w, bb, True)
        y = _ref_block(y, params["block_24"])
        w, bb = params["conv_3"]; y = _ref_conv1d(y, w, bb, True)
        y = _ref_block(y, params["block_32"])
        w, bb = params["conv_4"]; y = _ref_conv1d(y, w, bb, True)
        y = _ref_block(y, params["block_48"])
        w, bb = params["conv_5"]; y = _ref_conv1d(y, w, bb, True)
        y = _ref_block(y, params["block_64"])
        w, bb = params["conv_6"]; y = _ref_conv1d(y, w, bb, True)
        outs.append(jnp.mean(y, axis=0))               # (1,)
    return jnp.stack(outs, axis=0)                     # (B, 1)


if __name__ == "__main__":
    key = jax.random.PRNGKey(0)
    pkey, xkey = jax.random.split(key)
    params = init_model_params(pkey)

    B, L = 2, 16
    x = jax.random.normal(xkey, (B, L, 3), jnp.float32)

    out = jax.jit(modified_convnext_forward)(x, params)
    out = jax.block_until_ready(out)
    assert out.shape == (B, 1), out.shape

    ref = reference_forward(x, params)
    max_err = float(jnp.max(jnp.abs(out - ref)))
    assert jnp.allclose(out, ref, atol=1e-4, rtol=1e-2), (
        f"kernel/reference mismatch, max abs err = {max_err}")

    print("KERNEL_OK")
</pallas_src>

<mosaic_0001>
module attributes {stable_mosaic.version = 11 : i64} {
  func.func @kernel(%arg0: i32, %arg1: memref<1x16x3xf32, #tpu.memory_space<vmem>>, %arg2: memref<1x24xf32, #tpu.memory_space<vmem>>, %arg3: memref<1x8xf32, #tpu.memory_space<vmem>>, %arg4: memref<1x8xf32, #tpu.memory_space<vmem>>, %arg5: memref<1x8xf32, #tpu.memory_space<vmem>>, %arg6: memref<1x8xf32, #tpu.memory_space<vmem>>, %arg7: memref<8x24xf32, #tpu.memory_space<vmem>>, %arg8: memref<24x8xf32, #tpu.memory_space<vmem>>, %arg9: memref<7x8xf32, #tpu.memory_space<vmem>>, %arg10: memref<1x36xf32, #tpu.memory_space<vmem>>, %arg11: memref<1x16xf32, #tpu.memory_space<vmem>>, %arg12: memref<1x16xf32, #tpu.memory_space<vmem>>, %arg13: memref<1x16xf32, #tpu.memory_space<vmem>>, %arg14: memref<1x16xf32, #tpu.memory_space<vmem>>, %arg15: memref<16x36xf32, #tpu.memory_space<vmem>>, %arg16: memref<36x16xf32, #tpu.memory_space<vmem>>, %arg17: memref<7x16xf32, #tpu.memory_space<vmem>>, %arg18: memref<1x48xf32, #tpu.memory_space<vmem>>, %arg19: memref<1x24xf32, #tpu.memory_space<vmem>>, %arg20: memref<1x24xf32, #tpu.memory_space<vmem>>, %arg21: memref<1x24xf32, #tpu.memory_space<vmem>>, %arg22: memref<1x24xf32, #tpu.memory_space<vmem>>, %arg23: memref<24x48xf32, #tpu.memory_space<vmem>>, %arg24: memref<48x24xf32, #tpu.memory_space<vmem>>, %arg25: memref<7x24xf32, #tpu.memory_space<vmem>>, %arg26: memref<1x72xf32, #tpu.memory_space<vmem>>, %arg27: memref<1x32xf32, #tpu.memory_space<vmem>>, %arg28: memref<1x32xf32, #tpu.memory_space<vmem>>, %arg29: memref<1x32xf32, #tpu.memory_space<vmem>>, %arg30: memref<1x32xf32, #tpu.memory_space<vmem>>, %arg31: memref<32x72xf32, #tpu.memory_space<vmem>>, %arg32: memref<72x32xf32, #tpu.memory_space<vmem>>, %arg33: memref<7x32xf32, #tpu.memory_space<vmem>>, %arg34: memref<1x96xf32, #tpu.memory_space<vmem>>, %arg35: memref<1x48xf32, #tpu.memory_space<vmem>>, %arg36: memref<1x48xf32, #tpu.memory_space<vmem>>, %arg37: memref<1x48xf32, #tpu.memory_space<vmem>>, %arg38: memref<1x48xf32, #tpu.memory_space<vmem>>, %arg39: memref<48x96xf32, #tpu.memory_space<vmem>>, %arg40: memref<96x48xf32, #tpu.memory_space<vmem>>, %arg41: memref<7x48xf32, #tpu.memory_space<vmem>>, %arg42: memref<3x3x8xf32, #tpu.memory_space<vmem>>, %arg43: memref<1x8xf32, #tpu.memory_space<vmem>>, %arg44: memref<3x8x16xf32, #tpu.memory_space<vmem>>, %arg45: memref<1x16xf32, #tpu.memory_space<vmem>>, %arg46: memref<3x16x24xf32, #tpu.memory_space<vmem>>, %arg47: memref<1x24xf32, #tpu.memory_space<vmem>>, %arg48: memref<3x24x32xf32, #tpu.memory_space<vmem>>, %arg49: memref<1x32xf32, #tpu.memory_space<vmem>>, %arg50: memref<3x32x48xf32, #tpu.memory_space<vmem>>, %arg51: memref<1x48xf32, #tpu.memory_space<vmem>>, %arg52: memref<3x48x1xf32, #tpu.memory_space<vmem>>, %arg53: memref<1x1xf32, #tpu.memory_space<vmem>>, %arg54: memref<1x8x128xf32, #tpu.memory_space<vmem>>) attributes {dimension_semantics = [#tpu.dimension_semantics<parallel>], iteration_bounds = array<i64: 2>, scalar_prefetch = 0 : i64, scratch_operands = 0 : i64, tpu.core_type = #tpu.core_type<tc>, window_params = [{transform_indices = @transform_0, window_bounds = array<i64: 1, 16, 3>}, {pipeline_mode = #tpu.pipeline_mode<synchronous>, transform_indices = @transform_1, window_bounds = array<i64: 1, 24>}, {pipeline_mode = #tpu.pipeline_mode<synchronous>, transform_indices = @transform_2, window_bounds = array<i64: 1, 8>}, {pipeline_mode = #tpu.pipeline_mode<synchronous>, transform_indices = @transform_3, window_bounds = array<i64: 1, 8>}, {pipeline_mode = #tpu.pipeline_mode<synchronous>, transform_indices = @transform_4, window_bounds = array<i64: 1, 8>}, {pipeline_mode = #tpu.pipeline_mode<synchronous>, transform_indices = @transform_5, window_bounds = array<i64: 1, 8>}, {pipeline_mode = #tpu.pipeline_mode<synchronous>, transform_indices = @transform_6, window_bounds = array<i64: 8, 24>}, {pipeline_mode = #tpu.pipeline_mode<synchronous>, transform_indices = @transform_7, window_bounds = array<i64: 24, 8>}, {pipeline_mode = #tpu.pipeline_mode<synchronous>, transform_indices = @transform_8, window_bounds = array<i64: 7, 8>}, {pipeline_mode = #tpu.pipeline_mode<synchronous>, transform_indices = @transform_9, window_bounds = array<i64: 1, 36>}, {pipeline_mode = #tpu.pipeline_mode<synchronous>, transform_indices = @transform_10, window_bounds = array<i64: 1, 16>}, {pipeline_mode = #tpu.pipeline_mode<synchronous>, transform_indices = @transform_11, window_bounds = array<i64: 1, 16>}, {pipeline_mode = #tpu.pipeline_mode<synchronous>, transform_indices = @transform_12, window_bounds = array<i64: 1, 16>}, {pipeline_mode = #tpu.pipeline_mode<synchronous>, transform_indices = @transform_13, window_bounds = array<i64: 1, 16>}, {pipeline_mode = #tpu.pipeline_mode<synchronous>, transform_indices = @transform_14, window_bounds = array<i64: 16, 36>}, {pipeline_mode = #tpu.pipeline_mode<synchronous>, transform_indices = @transform_15, window_bounds = array<i64: 36, 16>}, {pipeline_mode = #tpu.pipeline_mode<synchronous>, transform_indices = @transform_16, window_bounds = array<i64: 7, 16>}, {pipeline_mode = #tpu.pipeline_mode<synchronous>, transform_indices = @transform_17, window_bounds = array<i64: 1, 48>}, {pipeline_mode = #tpu.pipeline_mode<synchronous>, transform_indices = @transform_18, window_bounds = array<i64: 1, 24>}, {pipeline_mode = #tpu.pipeline_mode<synchronous>, transform_indices = @transform_19, window_bounds = array<i64: 1, 24>}, {pipeline_mode = #tpu.pipeline_mode<synchronous>, transform_indices = @transform_20, window_bounds = array<i64: 1, 24>}, {pipeline_mode = #tpu.pipeline_mode<synchronous>, transform_indices = @transform_21, window_bounds = array<i64: 1, 24>}, {pipeline_mode = #tpu.pipeline_mode<synchronous>, transform_indices = @transform_22, window_bounds = array<i64: 24, 48>}, {pipeline_mode = #tpu.pipeline_mode<synchronous>, transform_indices = @transform_23, window_bounds = array<i64: 48, 24>}, {pipeline_mode = #tpu.pipeline_mode<synchronous>, transform_indices = @transform_24, window_bounds = array<i64: 7, 24>}, {pipeline_mode = #tpu.pipeline_mode<synchronous>, transform_indices = @transform_25, window_bounds = array<i64: 1, 72>}, {pipeline_mode = #tpu.pipeline_mode<synchronous>, transform_indices = @transform_26, window_bounds = array<i64: 1, 32>}, {pipeline_mode = #tpu.pipeline_mode<synchronous>, transform_indices = @transform_27, window_bounds = array<i64: 1, 32>}, {pipeline_mode = #tpu.pipeline_mode<synchronous>, transform_indices = @transform_28, window_bounds = array<i64: 1, 32>}, {pipeline_mode = #tpu.pipeline_mode<synchronous>, transform_indices = @transform_29, window_bounds = array<i64: 1, 32>}, {pipeline_mode = #tpu.pipeline_mode<synchronous>, transform_indices = @transform_30, window_bounds = array<i64: 32, 72>}, {pipeline_mode = #tpu.pipeline_mode<synchronous>, transform_indices = @transform_31, window_bounds = array<i64: 72, 32>}, {pipeline_mode = #tpu.pipeline_mode<synchronous>, transform_indices = @transform_32, window_bounds = array<i64: 7, 32>}, {pipeline_mode = #tpu.pipeline_mode<synchronous>, transform_indices = @transform_33, window_bounds = array<i64: 1, 96>}, {pipeline_mode = #tpu.pipeline_mode<synchronous>, transform_indices = @transform_34, window_bounds = array<i64: 1, 48>}, {pipeline_mode = #tpu.pipeline_mode<synchronous>, transform_indices = @transform_35, window_bounds = array<i64: 1, 48>}, {pipeline_mode = #tpu.pipeline_mode<synchronous>, transform_indices = @transform_36, window_bounds = array<i64: 1, 48>}, {pipeline_mode = #tpu.pipeline_mode<synchronous>, transform_indices = @transform_37, window_bounds = array<i64: 1, 48>}, {pipeline_mode = #tpu.pipeline_mode<synchronous>, transform_indices = @transform_38, window_bounds = array<i64: 48, 96>}, {pipeline_mode = #tpu.pipeline_mode<synchronous>, transform_indices = @transform_39, window_bounds = array<i64: 96, 48>}, {pipeline_mode = #tpu.pipeline_mode<synchronous>, transform_indices = @transform_40, window_bounds = array<i64: 7, 48>}, {pipeline_mode = #tpu.pipeline_mode<synchronous>, transform_indices = @transform_41, window_bounds = array<i64: 3, 3, 8>}, {pipeline_mode = #tpu.pipeline_mode<synchronous>, transform_indices = @transform_42, window_bounds = array<i64: 1, 8>}, {pipeline_mode = #tpu.pipeline_mode<synchronous>, transform_indices = @transform_43, window_bounds = array<i64: 3, 8, 16>}, {pipeline_mode = #tpu.pipeline_mode<synchronous>, transform_indices = @transform_44, window_bounds = array<i64: 1, 16>}, {pipeline_mode = #tpu.pipeline_mode<synchronous>, transform_indices = @transform_45, window_bounds = array<i64: 3, 16, 24>}, {pipeline_mode = #tpu.pipeline_mode<synchronous>, transform_indices = @transform_46, window_bounds = array<i64: 1, 24>}, {pipeline_mode = #tpu.pipeline_mode<synchronous>, transform_indices = @transform_47, window_bounds = array<i64: 3, 24, 32>}, {pipeline_mode = #tpu.pipeline_mode<synchronous>, transform_indices = @transform_48, window_bounds = array<i64: 1, 32>}, {pipeline_mode = #tpu.pipeline_mode<synchronous>, transform_indices = @transform_49, window_bounds = array<i64: 3, 32, 48>}, {pipeline_mode = #tpu.pipeline_mode<synchronous>, transform_indices = @transform_50, window_bounds = array<i64: 1, 48>}, {pipeline_mode = #tpu.pipeline_mode<synchronous>, transform_indices = @transform_51, window_bounds = array<i64: 3, 48, 1>}, {pipeline_mode = #tpu.pipeline_mode<synchronous>, transform_indices = @transform_52, window_bounds = array<i64: 1, 1>}, {transform_indices = @transform_53, window_bounds = array<i64: 1, 8, 128>}]} {
    %c0 = arith.constant 0 : index
    %c0_0 = arith.constant 0 : index
    %0 = vector.load %arg2[%c0, %c0_0] : memref<1x24xf32, #tpu.memory_space<vmem>>, vector<1x24xf32>
    %c0_1 = arith.constant 0 : index
    %c0_2 = arith.constant 0 : index
    %1 = vector.load %arg3[%c0_1, %c0_2] : memref<1x8xf32, #tpu.memory_space<vmem>>, vector<1x8xf32>
    %c0_3 = arith.constant 0 : index
    %c0_4 = arith.constant 0 : index
    %2 = vector.load %arg4[%c0_3, %c0_4] : memref<1x8xf32, #tpu.memory_space<vmem>>, vector<1x8xf32>
    %c0_5 = arith.constant 0 : index
    %c0_6 = arith.constant 0 : index
    %3 = vector.load %arg5[%c0_5, %c0_6] : memref<1x8xf32, #tpu.memory_space<vmem>>, vector<1x8xf32>
    %c0_7 = arith.constant 0 : index
    %c0_8 = arith.constant 0 : index
    %4 = vector.load %arg6[%c0_7, %c0_8] : memref<1x8xf32, #tpu.memory_space<vmem>>, vector<1x8xf32>
    %c0_9 = arith.constant 0 : index
    %c0_10 = arith.constant 0 : index
    %5 = vector.load %arg7[%c0_9, %c0_10] : memref<8x24xf32, #tpu.memory_space<vmem>>, vector<8x24xf32>
    %c0_11 = arith.constant 0 : index
    %c0_12 = arith.constant 0 : index
    %6 = vector.load %arg8[%c0_11, %c0_12] : memref<24x8xf32, #tpu.memory_space<vmem>>, vector<24x8xf32>
    %c0_13 = arith.constant 0 : index
    %c0_14 = arith.constant 0 : index
    %7 = vector.load %arg9[%c0_13, %c0_14] : memref<7x8xf32, #tpu.memory_space<vmem>>, vector<7x8xf32>
    %c0_15 = arith.constant 0 : index
    %c0_16 = arith.constant 0 : index
    %8 = vector.load %arg10[%c0_15, %c0_16] : memref<1x36xf32, #tpu.memory_space<vmem>>, vector<1x36xf32>
    %c0_17 = arith.constant 0 : index
    %c0_18 = arith.constant 0 : index
    %9 = vector.load %arg11[%c0_17, %c0_18] : memref<1x16xf32, #tpu.memory_space<vmem>>, vector<1x16xf32>
    %c0_19 = arith.constant 0 : index
    %c0_20 = arith.constant 0 : index
    %10 = vector.load %arg12[%c0_19, %c0_20] : memref<1x16xf32, #tpu.memory_space<vmem>>, vector<1x16xf32>
    %c0_21 = arith.constant 0 : index
    %c0_22 = arith.constant 0 : index
    %11 = vector.load %arg13[%c0_21, %c0_22] : memref<1x16xf32, #tpu.memory_space<vmem>>, vector<1x16xf32>
    %c0_23 = arith.constant 0 : index
    %c0_24 = arith.constant 0 : index
    %12 = vector.load %arg14[%c0_23, %c0_24] : memref<1x16xf32, #tpu.memory_space<vmem>>, vector<1x16xf32>
    %c0_25 = arith.constant 0 : index
    %c0_26 = arith.constant 0 : index
    %13 = vector.load %arg15[%c0_25, %c0_26] : memref<16x36xf32, #tpu.memory_space<vmem>>, vector<16x36xf32>
    %c0_27 = arith.constant 0 : index
    %c0_28 = arith.constant 0 : index
    %14 = vector.load %arg16[%c0_27, %c0_28] : memref<36x16xf32, #tpu.memory_space<vmem>>, vector<36x16xf32>
    %c0_29 = arith.constant 0 : index
    %c0_30 = arith.constant 0 : index
    %15 = vector.load %arg17[%c0_29, %c0_30] : memref<7x16xf32, #tpu.memory_space<vmem>>, vector<7x16xf32>
    %c0_31 = arith.constant 0 : index
    %c0_32 = arith.constant 0 : index
    %16 = vector.load %arg18[%c0_31, %c0_32] : memref<1x48xf32, #tpu.memory_space<vmem>>, vector<1x48xf32>
    %c0_33 = arith.constant 0 : index
    %c0_34 = arith.constant 0 : index
    %17 = vector.load %arg19[%c0_33, %c0_34] : memref<1x24xf32, #tpu.memory_space<vmem>>, vector<1x24xf32>
    %c0_35 = arith.constant 0 : index
    %c0_36 = arith.constant 0 : index
    %18 = vector.load %arg20[%c0_35, %c0_36] : memref<1x24xf32, #tpu.memory_space<vmem>>, vector<1x24xf32>
    %c0_37 = arith.constant 0 : index
    %c0_38 = arith.constant 0 : index
    %19 = vector.load %arg21[%c0_37, %c0_38] : memref<1x24xf32, #tpu.memory_space<vmem>>, vector<1x24xf32>
    %c0_39 = arith.constant 0 : index
    %c0_40 = arith.constant 0 : index
    %20 = vector.load %arg22[%c0_39, %c0_40] : memref<1x24xf32, #tpu.memory_space<vmem>>, vector<1x24xf32>
    %c0_41 = arith.constant 0 : index
    %c0_42 = arith.constant 0 : index
    %21 = vector.load %arg23[%c0_41, %c0_42] : memref<24x48xf32, #tpu.memory_space<vmem>>, vector<24x48xf32>
    %c0_43 = arith.constant 0 : index
    %c0_44 = arith.constant 0 : index
    %22 = vector.load %arg24[%c0_43, %c0_44] : memref<48x24xf32, #tpu.memory_space<vmem>>, vector<48x24xf32>
    %c0_45 = arith.constant 0 : index
    %c0_46 = arith.constant 0 : index
    %23 = vector.load %arg25[%c0_45, %c0_46] : memref<7x24xf32, #tpu.memory_space<vmem>>, vector<7x24xf32>
    %c0_47 = arith.constant 0 : index
    %c0_48 = arith.constant 0 : index
    %24 = vector.load %arg26[%c0_47, %c0_48] : memref<1x72xf32, #tpu.memory_space<vmem>>, vector<1x72xf32>
    %c0_49 = arith.constant 0 : index
    %c0_50 = arith.constant 0 : index
    %25 = vector.load %arg27[%c0_49, %c0_50] : memref<1x32xf32, #tpu.memory_space<vmem>>, vector<1x32xf32>
    %c0_51 = arith.constant 0 : index
    %c0_52 = arith.constant 0 : index
    %26 = vector.load %arg28[%c0_51, %c0_52] : memref<1x32xf32, #tpu.memory_space<vmem>>, vector<1x32xf32>
    %c0_53 = arith.constant 0 : index
    %c0_54 = arith.constant 0 : index
    %27 = vector.load %arg29[%c0_53, %c0_54] : memref<1x32xf32, #tpu.memory_space<vmem>>, vector<1x32xf32>
    %c0_55 = arith.constant 0 : index
    %c0_56 = arith.constant 0 : index
    %28 = vector.load %arg30[%c0_55, %c0_56] : memref<1x32xf32, #tpu.memory_space<vmem>>, vector<1x32xf32>
    %c0_57 = arith.constant 0 : index
    %c0_58 = arith.constant 0 : index
    %29 = vector.load %arg31[%c0_57, %c0_58] : memref<32x72xf32, #tpu.memory_space<vmem>>, vector<32x72xf32>
    %c0_59 = arith.constant 0 : index
    %c0_60 = arith.constant 0 : index
    %30 = vector.load %arg32[%c0_59, %c0_60] : memref<72x32xf32, #tpu.memory_space<vmem>>, vector<72x32xf32>
    %c0_61 = arith.constant 0 : index
    %c0_62 = arith.constant 0 : index
    %31 = vector.load %arg33[%c0_61, %c0_62] : memref<7x32xf32, #tpu.memory_space<vmem>>, vector<7x32xf32>
    %c0_63 = arith.constant 0 : index
    %c0_64 = arith.constant 0 : index
    %32 = vector.load %arg34[%c0_63, %c0_64] : memref<1x96xf32, #tpu.memory_space<vmem>>, vector<1x96xf32>
    %c0_65 = arith.constant 0 : index
    %c0_66 = arith.constant 0 : index
    %33 = vector.load %arg35[%c0_65, %c0_66] : memref<1x48xf32, #tpu.memory_space<vmem>>, vector<1x48xf32>
    %c0_67 = arith.constant 0 : index
    %c0_68 = arith.constant 0 : index
    %34 = vector.load %arg36[%c0_67, %c0_68] : memref<1x48xf32, #tpu.memory_space<vmem>>, vector<1x48xf32>
    %c0_69 = arith.constant 0 : index
    %c0_70 = arith.constant 0 : index
    %35 = vector.load %arg37[%c0_69, %c0_70] : memref<1x48xf32, #tpu.memory_space<vmem>>, vector<1x48xf32>
    %c0_71 = arith.constant 0 : index
    %c0_72 = arith.constant 0 : index
    %36 = vector.load %arg38[%c0_71, %c0_72] : memref<1x48xf32, #tpu.memory_space<vmem>>, vector<1x48xf32>
    %c0_73 = arith.constant 0 : index
    %c0_74 = arith.constant 0 : index
    %37 = vector.load %arg39[%c0_73, %c0_74] : memref<48x96xf32, #tpu.memory_space<vmem>>, vector<48x96xf32>
    %c0_75 = arith.constant 0 : index
    %c0_76 = arith.constant 0 : index
    %38 = vector.load %arg40[%c0_75, %c0_76] : memref<96x48xf32, #tpu.memory_space<vmem>>, vector<96x48xf32>
    %c0_77 = arith.constant 0 : index
    %c0_78 = arith.constant 0 : index
    %39 = vector.load %arg41[%c0_77, %c0_78] : memref<7x48xf32, #tpu.memory_space<vmem>>, vector<7x48xf32>
    %c0_79 = arith.constant 0 : index
    %c0_80 = arith.constant 0 : index
    %c0_81 = arith.constant 0 : index
    %40 = vector.load %arg42[%c0_79, %c0_80, %c0_81] : memref<3x3x8xf32, #tpu.memory_space<vmem>>, vector<3x3x8xf32>
    %c0_82 = arith.constant 0 : index
    %c0_83 = arith.constant 0 : index
    %41 = vector.load %arg43[%c0_82, %c0_83] : memref<1x8xf32, #tpu.memory_space<vmem>>, vector<1x8xf32>
    %c0_84 = arith.constant 0 : index
    %c0_85 = arith.constant 0 : index
    %c0_86 = arith.constant 0 : index
    %42 = vector.load %arg44[%c0_84, %c0_85, %c0_86] : memref<3x8x16xf32, #tpu.memory_space<vmem>>, vector<3x8x16xf32>
    %c0_87 = arith.constant 0 : index
    %c0_88 = arith.constant 0 : index
    %43 = vector.load %arg45[%c0_87, %c0_88] : memref<1x16xf32, #tpu.memory_space<vmem>>, vector<1x16xf32>
    %c0_89 = arith.constant 0 : index
    %c0_90 = arith.constant 0 : index
    %c0_91 = arith.constant 0 : index
    %44 = vector.load %arg46[%c0_89, %c0_90, %c0_91] : memref<3x16x24xf32, #tpu.memory_space<vmem>>, vector<3x16x24xf32>
    %c0_92 = arith.constant 0 : index
    %c0_93 = arith.constant 0 : index
    %45 = vector.load %arg47[%c0_92, %c0_93] : memref<1x24xf32, #tpu.memory_space<vmem>>, vector<1x24xf32>
    %c0_94 = arith.constant 0 : index
    %c0_95 = arith.constant 0 : index
    %c0_96 = arith.constant 0 : index
    %46 = vector.load %arg48[%c0_94, %c0_95, %c0_96] : memref<3x24x32xf32, #tpu.memory_space<vmem>>, vector<3x24x32xf32>
    %c0_97 = arith.constant 0 : index
    %c0_98 = arith.constant 0 : index
    %47 = vector.load %arg49[%c0_97, %c0_98] : memref<1x32xf32, #tpu.memory_space<vmem>>, vector<1x32xf32>
    %c0_99 = arith.constant 0 : index
    %c0_100 = arith.constant 0 : index
    %c0_101 = arith.constant 0 : index
    %48 = vector.load %arg50[%c0_99, %c0_100, %c0_101] : memref<3x32x48xf32, #tpu.memory_space<vmem>>, vector<3x32x48xf32>
    %c0_102 = arith.constant 0 : index
    %c0_103 = arith.constant 0 : index
    %49 = vector.load %arg51[%c0_102, %c0_103] : memref<1x48xf32, #tpu.memory_space<vmem>>, vector<1x48xf32>
    %c0_104 = arith.constant 0 : index
    %c0_105 = arith.constant 0 : index
    %c0_106 = arith.constant 0 : index
    %50 = vector.load %arg52[%c0_104, %c0_105, %c0_106] : memref<3x48x1xf32, #tpu.memory_space<vmem>>, vector<3x48x1xf32>
    %c0_107 = arith.constant 0 : index
    %c0_108 = arith.constant 0 : index
    %51 = vector.load %arg53[%c0_107, %c0_108] : memref<1x1xf32, #tpu.memory_space<vmem>>, vector<1x1xf32>
    %c0_109 = arith.constant 0 : index
    %c0_110 = arith.constant 0 : index
    %c0_111 = arith.constant 0 : index
    %52 = vector.load %arg1[%c0_109, %c0_110, %c0_111] : memref<1x16x3xf32, #tpu.memory_space<vmem>>, vector<1x16x3xf32>
    %53 = vector.shape_cast %52 : vector<1x16x3xf32> to vector<16x3xf32>
    %cst = arith.constant 0.000000e+00 : f32
    %54 = vector.broadcast %cst : f32 to vector<16x8xf32>
    %c1_i32 = arith.constant 1 : i32
    %55 = tpu.dynamic_rotate %53 by %c1_i32 dim 0 : vector<16x3xf32>, i32 -> vector<16x3xf32>
    %56 = tpu.iota {dimensions = array<i32: 0>} : vector<16x3xi32>
    %c1_i32_112 = arith.constant 1 : i32
    %57 = vector.broadcast %c1_i32_112 : i32 to vector<16x3xi32>
    %58 = arith.cmpi sge, %56, %57 : vector<16x3xi32>
    %cst_113 = arith.constant 0.000000e+00 : f32
    %59 = vector.broadcast %cst_113 : f32 to vector<16x3xf32>
    %60 = arith.select %58, %55, %59 : vector<16x3xi1>, vector<16x3xf32>
    %61 = vector.extract_strided_slice %60 {offsets = [0, 0], sizes = [16, 1], strides = [1, 1]} : vector<16x3xf32> to vector<16x1xf32>
    %62 = vector.extract_strided_slice %40 {offsets = [0, 0, 0], sizes = [1, 1, 8], strides = [1, 1, 1]} : vector<3x3x8xf32> to vector<1x1x8xf32>
    %63 = vector.shape_cast %62 : vector<1x1x8xf32> to vector<1x8xf32>
    %64 = vector.broadcast %61 : vector<16x1xf32> to vector<16x8xf32>
    %65 = vector.broadcast %63 : vector<1x8xf32> to vector<16x8xf32>
    %66 = arith.mulf %64, %65 : vector<16x8xf32>
    %67 = arith.addf %54, %66 : vector<16x8xf32>
    %68 = vector.extract_strided_slice %60 {offsets = [0, 1], sizes = [16, 1], strides = [1, 1]} : vector<16x3xf32> to vector<16x1xf32>
    %69 = vector.extract_strided_slice %40 {offsets = [0, 1, 0], sizes = [1, 1, 8], strides = [1, 1, 1]} : vector<3x3x8xf32> to vector<1x1x8xf32>
    %70 = vector.shape_cast %69 : vector<1x1x8xf32> to vector<1x8xf32>
    %71 = vector.broadcast %68 : vector<16x1xf32> to vector<16x8xf32>
    %72 = vector.broadcast %70 : vector<1x8xf32> to vector<16x8xf32>
    %73 = arith.mulf %71, %72 : vector<16x8xf32>
    %74 = arith.addf %67, %73 : vector<16x8xf32>
    %75 = vector.extract_strided_slice %60 {offsets = [0, 2], sizes = [16, 1], strides = [1, 1]} : vector<16x3xf32> to vector<16x1xf32>
    %76 = vector.extract_strided_slice %40 {offsets = [0, 2, 0], sizes = [1, 1, 8], strides = [1, 1, 1]} : vector<3x3x8xf32> to vector<1x1x8xf32>
    %77 = vector.shape_cast %76 : vector<1x1x8xf32> to vector<1x8xf32>
    %78 = vector.broadcast %75 : vector<16x1xf32> to vector<16x8xf32>
    %79 = vector.broadcast %77 : vector<1x8xf32> to vector<16x8xf32>
    %80 = arith.mulf %78, %79 : vector<16x8xf32>
    %81 = arith.addf %74, %80 : vector<16x8xf32>
    %82 = vector.extract_strided_slice %53 {offsets = [0, 0], sizes = [16, 1], strides = [1, 1]} : vector<16x3xf32> to vector<16x1xf32>
    %83 = vector.extract_strided_slice %40 {offsets = [1, 0, 0], sizes = [1, 1, 8], strides = [1, 1, 1]} : vector<3x3x8xf32> to vector<1x1x8xf32>
    %84 = vector.shape_cast %83 : vector<1x1x8xf32> to vector<1x8xf32>
    %85 = vector.broadcast %82 : vector<16x1xf32> to vector<16x8xf32>
    %86 = vector.broadcast %84 : vector<1x8xf32> to vector<16x8xf32>
    %87 = arith.mulf %85, %86 : vector<16x8xf32>
    %88 = arith.addf %81, %87 : vector<16x8xf32>
    %89 = vector.extract_strided_slice %53 {offsets = [0, 1], sizes = [16, 1], strides = [1, 1]} : vector<16x3xf32> to vector<16x1xf32>
    %90 = vector.extract_strided_slice %40 {offsets = [1, 1, 0], sizes = [1, 1, 8], strides = [1, 1, 1]} : vector<3x3x8xf32> to vector<1x1x8xf32>
    %91 = vector.shape_cast %90 : vector<1x1x8xf32> to vector<1x8xf32>
    %92 = vector.broadcast %89 : vector<16x1xf32> to vector<16x8xf32>
    %93 = vector.broadcast %91 : vector<1x8xf32> to vector<16x8xf32>
    %94 = arith.mulf %92, %93 : vector<16x8xf32>
    %95 = arith.addf %88, %94 : vector<16x8xf32>
    %96 = vector.extract_strided_slice %53 {offsets = [0, 2], sizes = [16, 1], strides = [1, 1]} : vector<16x3xf32> to vector<16x1xf32>
    %97 = vector.extract_strided_slice %40 {offsets = [1, 2, 0], sizes = [1, 1, 8], strides = [1, 1, 1]} : vector<3x3x8xf32> to vector<1x1x8xf32>
    %98 = vector.shape_cast %97 : vector<1x1x8xf32> to vector<1x8xf32>
    %99 = vector.broadcast %96 : vector<16x1xf32> to vector<16x8xf32>
    %100 = vector.broadcast %98 : vector<1x8xf32> to vector<16x8xf32>
    %101 = arith.mulf %99, %100 : vector<16x8xf32>
    %102 = arith.addf %95, %101 : vector<16x8xf32>
    %c15_i32 = arith.constant 15 : i32
    %103 = tpu.dynamic_rotate %53 by %c15_i32 dim 0 : vector<16x3xf32>, i32 -> vector<16x3xf32>
    %104 = tpu.iota {dimensions = array<i32: 0>} : vector<16x3xi32>
    %c15_i32_114 = arith.constant 15 : i32
    %105 = vector.broadcast %c15_i32_114 : i32 to vector<16x3xi32>
    %106 = arith.cmpi slt, %104, %105 : vector<16x3xi32>
    %cst_115 = arith.constant 0.000000e+00 : f32
    %107 = vector.broadcast %cst_115 : f32 to vector<16x3xf32>
    %108 = arith.select %106, %103, %107 : vector<16x3xi1>, vector<16x3xf32>
    %109 = vector.extract_strided_slice %108 {offsets = [0, 0], sizes = [16, 1], strides = [1, 1]} : vector<16x3xf32> to vector<16x1xf32>
    %110 = vector.extract_strided_slice %40 {offsets = [2, 0, 0], sizes = [1, 1, 8], strides = [1, 1, 1]} : vector<3x3x8xf32> to vector<1x1x8xf32>
    %111 = vector.shape_cast %110 : vector<1x1x8xf32> to vector<1x8xf32>
    %112 = vector.broadcast %109 : vector<16x1xf32> to vector<16x8xf32>
    %113 = vector.broadcast %111 : vector<1x8xf32> to vector<16x8xf32>
    %114 = arith.mulf %112, %113 : vector<16x8xf32>
    %115 = arith.addf %102, %114 : vector<16x8xf32>
    %116 = vector.extract_strided_slice %108 {offsets = [0, 1], sizes = [16, 1], strides = [1, 1]} : vector<16x3xf32> to vector<16x1xf32>
    %117 = vector.extract_strided_slice %40 {offsets = [2, 1, 0], sizes = [1, 1, 8], strides = [1, 1, 1]} : vector<3x3x8xf32> to vector<1x1x8xf32>
    %118 = vector.shape_cast %117 : vector<1x1x8xf32> to vector<1x8xf32>
    %119 = vector.broadcast %116 : vector<16x1xf32> to vector<16x8xf32>
    %120 = vector.broadcast %118 : vector<1x8xf32> to vector<16x8xf32>
    %121 = arith.mulf %119, %120 : vector<16x8xf32>
    %122 = arith.addf %115, %121 : vector<16x8xf32>
    %123 = vector.extract_strided_slice %108 {offsets = [0, 2], sizes = [16, 1], strides = [1, 1]} : vector<16x3xf32> to vector<16x1xf32>
    %124 = vector.extract_strided_slice %40 {offsets = [2, 2, 0], sizes = [1, 1, 8], strides = [1, 1, 1]} : vector<3x3x8xf32> to vector<1x1x8xf32>
    %125 = vector.shape_cast %124 : vector<1x1x8xf32> to vector<1x8xf32>
    %126 = vector.broadcast %123 : vector<16x1xf32> to vector<16x8xf32>
    %127 = vector.broadcast %125 : vector<1x8xf32> to vector<16x8xf32>
    %128 = arith.mulf %126, %127 : vector<16x8xf32>
    %129 = arith.addf %122, %128 : vector<16x8xf32>
    %130 = vector.broadcast %41 : vector<1x8xf32> to vector<16x8xf32>
    %131 = arith.addf %129, %130 : vector<16x8xf32>
    %cst_116 = arith.constant 0.000000e+00 : f32
    %132 = vector.broadcast %cst_116 : f32 to vector<16x8xf32>
    %c3_i32 = arith.constant 3 : i32
    %133 = tpu.dynamic_rotate %131 by %c3_i32 dim 0 : vector<16x8xf32>, i32 -> vector<16x8xf32>
    %134 = tpu.iota {dimensions = array<i32: 0>} : vector<16x8xi32>
    %c3_i32_117 = arith.constant 3 : i32
    %135 = vector.broadcast %c3_i32_117 : i32 to vector<16x8xi32>
    %136 = arith.cmpi sge, %134, %135 : vector<16x8xi32>
    %cst_118 = arith.constant 0.000000e+00 : f32
    %137 = vector.broadcast %cst_118 : f32 to vector<16x8xf32>
    %138 = arith.select %136, %133, %137 : vector<16x8xi1>, vector<16x8xf32>
    %139 = vector.extract_strided_slice %7 {offsets = [0, 0], sizes = [1, 8], strides = [1, 1]} : vector<7x8xf32> to vector<1x8xf32>
    %140 = vector.broadcast %139 : vector<1x8xf32> to vector<16x8xf32>
    %141 = arith.mulf %138, %140 : vector<16x8xf32>
    %142 = arith.addf %132, %141 : vector<16x8xf32>
    %c2_i32 = arith.constant 2 : i32
    %143 = tpu.dynamic_rotate %131 by %c2_i32 dim 0 : vector<16x8xf32>, i32 -> vector<16x8xf32>
    %144 = tpu.iota {dimensions = array<i32: 0>} : vector<16x8xi32>
    %c2_i32_119 = arith.constant 2 : i32
    %145 = vector.broadcast %c2_i32_119 : i32 to vector<16x8xi32>
    %146 = arith.cmpi sge, %144, %145 : vector<16x8xi32>
    %cst_120 = arith.constant 0.000000e+00 : f32
    %147 = vector.broadcast %cst_120 : f32 to vector<16x8xf32>
    %148 = arith.select %146, %143, %147 : vector<16x8xi1>, vector<16x8xf32>
    %149 = vector.extract_strided_slice %7 {offsets = [1, 0], sizes = [1, 8], strides = [1, 1]} : vector<7x8xf32> to vector<1x8xf32>
    %150 = vector.broadcast %149 : vector<1x8xf32> to vector<16x8xf32>
    %151 = arith.mulf %148, %150 : vector<16x8xf32>
    %152 = arith.addf %142, %151 : vector<16x8xf32>
    %c1_i32_121 = arith.constant 1 : i32
    %153 = tpu.dynamic_rotate %131 by %c1_i32_121 dim 0 : vector<16x8xf32>, i32 -> vector<16x8xf32>
    %154 = tpu.iota {dimensions = array<i32: 0>} : vector<16x8xi32>
    %c1_i32_122 = arith.constant 1 : i32
    %155 = vector.broadcast %c1_i32_122 : i32 to vector<16x8xi32>
    %156 = arith.cmpi sge, %154, %155 : vector<16x8xi32>
    %cst_123 = arith.constant 0.000000e+00 : f32
    %157 = vector.broadcast %cst_123 : f32 to vector<16x8xf32>
    %158 = arith.select %156, %153, %157 : vector<16x8xi1>, vector<16x8xf32>
    %159 = vector.extract_strided_slice %7 {offsets = [2, 0], sizes = [1, 8], strides = [1, 1]} : vector<7x8xf32> to vector<1x8xf32>
    %160 = vector.broadcast %159 : vector<1x8xf32> to vector<16x8xf32>
    %161 = arith.mulf %158, %160 : vector<16x8xf32>
    %162 = arith.addf %152, %161 : vector<16x8xf32>
    %163 = vector.extract_strided_slice %7 {offsets = [3, 0], sizes = [1, 8], strides = [1, 1]} : vector<7x8xf32> to vector<1x8xf32>
    %164 = vector.broadcast %163 : vector<1x8xf32> to vector<16x8xf32>
    %165 = arith.mulf %131, %164 : vector<16x8xf32>
    %166 = arith.addf %162, %165 : vector<16x8xf32>
    %c15_i32_124 = arith.constant 15 : i32
    %167 = tpu.dynamic_rotate %131 by %c15_i32_124 dim 0 : vector<16x8xf32>, i32 -> vector<16x8xf32>
    %168 = tpu.iota {dimensions = array<i32: 0>} : vector<16x8xi32>
    %c15_i32_125 = arith.constant 15 : i32
    %169 = vector.broadcast %c15_i32_125 : i32 to vector<16x8xi32>
    %170 = arith.cmpi slt, %168, %169 : vector<16x8xi32>
    %cst_126 = arith.constant 0.000000e+00 : f32
    %171 = vector.broadcast %cst_126 : f32 to vector<16x8xf32>
    %172 = arith.select %170, %167, %171 : vector<16x8xi1>, vector<16x8xf32>
    %173 = vector.extract_strided_slice %7 {offsets = [4, 0], sizes = [1, 8], strides = [1, 1]} : vector<7x8xf32> to vector<1x8xf32>
    %174 = vector.broadcast %173 : vector<1x8xf32> to vector<16x8xf32>
    %175 = arith.mulf %172, %174 : vector<16x8xf32>
    %176 = arith.addf %166, %175 : vector<16x8xf32>
    %c14_i32 = arith.constant 14 : i32
    %177 = tpu.dynamic_rotate %131 by %c14_i32 dim 0 : vector<16x8xf32>, i32 -> vector<16x8xf32>
    %178 = tpu.iota {dimensions = array<i32: 0>} : vector<16x8xi32>
    %c14_i32_127 = arith.constant 14 : i32
    %179 = vector.broadcast %c14_i32_127 : i32 to vector<16x8xi32>
    %180 = arith.cmpi slt, %178, %179 : vector<16x8xi32>
    %cst_128 = arith.constant 0.000000e+00 : f32
    %181 = vector.broadcast %cst_128 : f32 to vector<16x8xf32>
    %182 = arith.select %180, %177, %181 : vector<16x8xi1>, vector<16x8xf32>
    %183 = vector.extract_strided_slice %7 {offsets = [5, 0], sizes = [1, 8], strides = [1, 1]} : vector<7x8xf32> to vector<1x8xf32>
    %184 = vector.broadcast %183 : vector<1x8xf32> to vector<16x8xf32>
    %185 = arith.mulf %182, %184 : vector<16x8xf32>
    %186 = arith.addf %176, %185 : vector<16x8xf32>
    %c13_i32 = arith.constant 13 : i32
    %187 = tpu.dynamic_rotate %131 by %c13_i32 dim 0 : vector<16x8xf32>, i32 -> vector<16x8xf32>
    %188 = tpu.iota {dimensions = array<i32: 0>} : vector<16x8xi32>
    %c13_i32_129 = arith.constant 13 : i32
    %189 = vector.broadcast %c13_i32_129 : i32 to vector<16x8xi32>
    %190 = arith.cmpi slt, %188, %189 : vector<16x8xi32>
    %cst_130 = arith.constant 0.000000e+00 : f32
    %191 = vector.broadcast %cst_130 : f32 to vector<16x8xf32>
    %192 = arith.select %190, %187, %191 : vector<16x8xi1>, vector<16x8xf32>
    %193 = vector.extract_strided_slice %7 {offsets = [6, 0], sizes = [1, 8], strides = [1, 1]} : vector<7x8xf32> to vector<1x8xf32>
    %194 = vector.broadcast %193 : vector<1x8xf32> to vector<16x8xf32>
    %195 = arith.mulf %192, %194 : vector<16x8xf32>
    %196 = arith.addf %186, %195 : vector<16x8xf32>
    %197 = vector.broadcast %2 : vector<1x8xf32> to vector<16x8xf32>
    %198 = arith.addf %196, %197 : vector<16x8xf32>
    %cst_131 = arith.constant dense<0.000000e+00> : vector<16xf32>
    %199 = vector.multi_reduction <add>, %198, %cst_131 [1] : vector<16x8xf32> to vector<16xf32>
    %200 = vector.shape_cast %199 : vector<16xf32> to vector<16x1xf32>
    %cst_132 = arith.constant 8.000000e+00 : f32
    %201 = vector.broadcast %cst_132 : f32 to vector<16x1xf32>
    %202 = arith.divf %200, %201 : vector<16x1xf32>
    %203 = vector.broadcast %202 : vector<16x1xf32> to vector<16x8xf32>
    %204 = arith.subf %198, %203 : vector<16x8xf32>
    %205 = arith.mulf %204, %204 : vector<16x8xf32>
    %cst_133 = arith.constant dense<0.000000e+00> : vector<16xf32>
    %206 = vector.multi_reduction <add>, %205, %cst_133 [1] : vector<16x8xf32> to vector<16xf32>
    %207 = vector.shape_cast %206 : vector<16xf32> to vector<16x1xf32>
    %cst_134 = arith.constant 8.000000e+00 : f32
    %208 = vector.broadcast %cst_134 : f32 to vector<16x1xf32>
    %209 = arith.divf %207, %208 : vector<16x1xf32>
    %210 = vector.broadcast %202 : vector<16x1xf32> to vector<16x8xf32>
    %211 = arith.subf %198, %210 : vector<16x8xf32>
    %cst_135 = arith.constant 9.99999974E-6 : f32
    %212 = vector.broadcast %cst_135 : f32 to vector<16x1xf32>
    %213 = arith.addf %209, %212 : vector<16x1xf32>
    %214 = math.rsqrt %213 : vector<16x1xf32>
    %215 = vector.broadcast %214 : vector<16x1xf32> to vector<16x8xf32>
    %216 = arith.mulf %211, %215 : vector<16x8xf32>
    %217 = vector.broadcast %4 : vector<1x8xf32> to vector<16x8xf32>
    %218 = arith.mulf %216, %217 : vector<16x8xf32>
    %219 = vector.broadcast %3 : vector<1x8xf32> to vector<16x8xf32>
    %220 = arith.addf %218, %219 : vector<16x8xf32>
    %cst_136 = arith.constant dense<0.000000e+00> : vector<16x24xf32>
    %221 = tpu.matmul %220, %5, %cst_136 {dimension_numbers = #tpu.dot_dimension_numbers<[1], [0], [0], [1], [0, 0, 1, 1], [], []>} : vector<16x8xf32>, vector<8x24xf32>, vector<16x24xf32> -> vector<16x24xf32>
    %222 = vector.broadcast %0 : vector<1x24xf32> to vector<16x24xf32>
    %223 = arith.addf %221, %222 : vector<16x24xf32>
    %cst_137 = arith.constant 5.000000e-01 : f32
    %224 = vector.broadcast %cst_137 : f32 to vector<16x24xf32>
    %225 = arith.mulf %224, %223 : vector<16x24xf32>
    %cst_138 = arith.constant 0.707106769 : f32
    %226 = vector.broadcast %cst_138 : f32 to vector<16x24xf32>
    %227 = arith.mulf %223, %226 : vector<16x24xf32>
    %228 = math.absf %227 : vector<16x24xf32>
    %cst_139 = arith.constant 0.327591091 : f32
    %229 = vector.broadcast %cst_139 : f32 to vector<16x24xf32>
    %230 = arith.mulf %229, %228 : vector<16x24xf32>
    %cst_140 = arith.constant 1.000000e+00 : f32
    %231 = vector.broadcast %cst_140 : f32 to vector<16x24xf32>
    %232 = arith.addf %231, %230 : vector<16x24xf32>
    %cst_141 = arith.constant 1.000000e+00 : f32
    %233 = vector.broadcast %cst_141 : f32 to vector<16x24xf32>
    %234 = arith.divf %233, %232 : vector<16x24xf32>
    %cst_142 = arith.constant 1.06140542 : f32
    %235 = vector.broadcast %cst_142 : f32 to vector<16x24xf32>
    %236 = arith.mulf %235, %234 : vector<16x24xf32>
    %cst_143 = arith.constant -1.45315206 : f32
    %237 = vector.broadcast %cst_143 : f32 to vector<16x24xf32>
    %238 = arith.addf %236, %237 : vector<16x24xf32>
    %239 = arith.mulf %238, %234 : vector<16x24xf32>
    %cst_144 = arith.constant 1.42141378 : f32
    %240 = vector.broadcast %cst_144 : f32 to vector<16x24xf32>
    %241 = arith.addf %239, %240 : vector<16x24xf32>
    %242 = arith.mulf %241, %234 : vector<16x24xf32>
    %cst_145 = arith.constant -0.284496725 : f32
    %243 = vector.broadcast %cst_145 : f32 to vector<16x24xf32>
    %244 = arith.addf %242, %243 : vector<16x24xf32>
    %245 = arith.mulf %244, %234 : vector<16x24xf32>
    %cst_146 = arith.constant 0.254829586 : f32
    %246 = vector.broadcast %cst_146 : f32 to vector<16x24xf32>
    %247 = arith.addf %245, %246 : vector<16x24xf32>
    %248 = arith.mulf %247, %234 : vector<16x24xf32>
    %cst_147 = arith.constant 0.000000e+00 : f32
    %249 = vector.broadcast %cst_147 : f32 to vector<16x24xf32>
    %250 = arith.subf %249, %228 : vector<16x24xf32>
    %251 = arith.mulf %250, %228 : vector<16x24xf32>
    %252 = math.exp %251 : vector<16x24xf32>
    %253 = arith.mulf %248, %252 : vector<16x24xf32>
    %cst_148 = arith.constant 1.000000e+00 : f32
    %254 = vector.broadcast %cst_148 : f32 to vector<16x24xf32>
    %255 = arith.subf %254, %253 : vector<16x24xf32>
    %cst_149 = arith.constant 0.000000e+00 : f32
    %256 = vector.broadcast %cst_149 : f32 to vector<16x24xf32>
    %257 = arith.cmpf oge, %227, %256 : vector<16x24xf32>
    %cst_150 = arith.constant 0.000000e+00 : f32
    %258 = vector.broadcast %cst_150 : f32 to vector<16x24xf32>
    %259 = arith.subf %258, %255 : vector<16x24xf32>
    %260 = arith.select %257, %255, %259 : vector<16x24xi1>, vector<16x24xf32>
    %cst_151 = arith.constant 1.000000e+00 : f32
    %261 = vector.broadcast %cst_151 : f32 to vector<16x24xf32>
    %262 = arith.addf %261, %260 : vector<16x24xf32>
    %263 = arith.mulf %225, %262 : vector<16x24xf32>
    %cst_152 = arith.constant dense<0.000000e+00> : vector<16x8xf32>
    %264 = tpu.matmul %263, %6, %cst_152 {dimension_numbers = #tpu.dot_dimension_numbers<[1], [0], [0], [1], [0, 0, 1, 1], [], []>} : vector<16x24xf32>, vector<24x8xf32>, vector<16x8xf32> -> vector<16x8xf32>
    %265 = vector.broadcast %1 : vector<1x8xf32> to vector<16x8xf32>
    %266 = arith.addf %264, %265 : vector<16x8xf32>
    %267 = arith.addf %266, %131 : vector<16x8xf32>
    %cst_153 = arith.constant 0.000000e+00 : f32
    %268 = vector.broadcast %cst_153 : f32 to vector<16x16xf32>
    %c1_i32_154 = arith.constant 1 : i32
    %269 = tpu.dynamic_rotate %267 by %c1_i32_154 dim 0 : vector<16x8xf32>, i32 -> vector<16x8xf32>
    %270 = tpu.iota {dimensions = array<i32: 0>} : vector<16x8xi32>
    %c1_i32_155 = arith.constant 1 : i32
    %271 = vector.broadcast %c1_i32_155 : i32 to vector<16x8xi32>
    %272 = arith.cmpi sge, %270, %271 : vector<16x8xi32>
    %cst_156 = arith.constant 0.000000e+00 : f32
    %273 = vector.broadcast %cst_156 : f32 to vector<16x8xf32>
    %274 = arith.select %272, %269, %273 : vector<16x8xi1>, vector<16x8xf32>
    %275 = vector.extract_strided_slice %42 {offsets = [0, 0, 0], sizes = [1, 8, 16], strides = [1, 1, 1]} : vector<3x8x16xf32> to vector<1x8x16xf32>
    %276 = vector.shape_cast %275 : vector<1x8x16xf32> to vector<8x16xf32>
    %cst_157 = arith.constant dense<0.000000e+00> : vector<16x16xf32>
    %277 = tpu.matmul %274, %276, %cst_157 {dimension_numbers = #tpu.dot_dimension_numbers<[1], [0], [0], [1], [0, 0, 1, 1], [], []>} : vector<16x8xf32>, vector<8x16xf32>, vector<16x16xf32> -> vector<16x16xf32>
    %278 = arith.addf %268, %277 : vector<16x16xf32>
    %279 = vector.extract_strided_slice %42 {offsets = [1, 0, 0], sizes = [1, 8, 16], strides = [1, 1, 1]} : vector<3x8x16xf32> to vector<1x8x16xf32>
    %280 = vector.shape_cast %279 : vector<1x8x16xf32> to vector<8x16xf32>
    %cst_158 = arith.constant dense<0.000000e+00> : vector<16x16xf32>
    %281 = tpu.matmul %267, %280, %cst_158 {dimension_numbers = #tpu.dot_dimension_numbers<[1], [0], [0], [1], [0, 0, 1, 1], [], []>} : vector<16x8xf32>, vector<8x16xf32>, vector<16x16xf32> -> vector<16x16xf32>
    %282 = arith.addf %278, %281 : vector<16x16xf32>
    %c15_i32_159 = arith.constant 15 : i32
    %283 = tpu.dynamic_rotate %267 by %c15_i32_159 dim 0 : vector<16x8xf32>, i32 -> vector<16x8xf32>
    %284 = tpu.iota {dimensions = array<i32: 0>} : vector<16x8xi32>
    %c15_i32_160 = arith.constant 15 : i32
    %285 = vector.broadcast %c15_i32_160 : i32 to vector<16x8xi32>
    %286 = arith.cmpi slt, %284, %285 : vector<16x8xi32>
    %cst_161 = arith.constant 0.000000e+00 : f32
    %287 = vector.broadcast %cst_161 : f32 to vector<16x8xf32>
    %288 = arith.select %286, %283, %287 : vector<16x8xi1>, vector<16x8xf32>
    %289 = vector.extract_strided_slice %42 {offsets = [2, 0, 0], sizes = [1, 8, 16], strides = [1, 1, 1]} : vector<3x8x16xf32> to vector<1x8x16xf32>
    %290 = vector.shape_cast %289 : vector<1x8x16xf32> to vector<8x16xf32>
    %cst_162 = arith.constant dense<0.000000e+00> : vector<16x16xf32>
    %291 = tpu.matmul %288, %290, %cst_162 {dimension_numbers = #tpu.dot_dimension_numbers<[1], [0], [0], [1], [0, 0, 1, 1], [], []>} : vector<16x8xf32>, vector<8x16xf32>, vector<16x16xf32> -> vector<16x16xf32>
    %292 = arith.addf %282, %291 : vector<16x16xf32>
    %293 = vector.broadcast %43 : vector<1x16xf32> to vector<16x16xf32>
    %294 = arith.addf %292, %293 : vector<16x16xf32>
    %cst_163 = arith.constant 5.000000e-01 : f32
    %295 = vector.broadcast %cst_163 : f32 to vector<16x16xf32>
    %296 = arith.mulf %295, %294 : vector<16x16xf32>
    %cst_164 = arith.constant 0.707106769 : f32
    %297 = vector.broadcast %cst_164 : f32 to vector<16x16xf32>
    %298 = arith.mulf %294, %297 : vector<16x16xf32>
    %299 = math.absf %298 : vector<16x16xf32>
    %cst_165 = arith.constant 0.327591091 : f32
    %300 = vector.broadcast %cst_165 : f32 to vector<16x16xf32>
    %301 = arith.mulf %300, %299 : vector<16x16xf32>
    %cst_166 = arith.constant 1.000000e+00 : f32
    %302 = vector.broadcast %cst_166 : f32 to vector<16x16xf32>
    %303 = arith.addf %302, %301 : vector<16x16xf32>
    %cst_167 = arith.constant 1.000000e+00 : f32
    %304 = vector.broadcast %cst_167 : f32 to vector<16x16xf32>
    %305 = arith.divf %304, %303 : vector<16x16xf32>
    %cst_168 = arith.constant 1.06140542 : f32
    %306 = vector.broadcast %cst_168 : f32 to vector<16x16xf32>
    %307 = arith.mulf %306, %305 : vector<16x16xf32>
    %cst_169 = arith.constant -1.45315206 : f32
    %308 = vector.broadcast %cst_169 : f32 to vector<16x16xf32>
    %309 = arith.addf %307, %308 : vector<16x16xf32>
    %310 = arith.mulf %309, %305 : vector<16x16xf32>
    %cst_170 = arith.constant 1.42141378 : f32
    %311 = vector.broadcast %cst_170 : f32 to vector<16x16xf32>
    %312 = arith.addf %310, %311 : vector<16x16xf32>
    %313 = arith.mulf %312, %305 : vector<16x16xf32>
    %cst_171 = arith.constant -0.284496725 : f32
    %314 = vector.broadcast %cst_171 : f32 to vector<16x16xf32>
    %315 = arith.addf %313, %314 : vector<16x16xf32>
    %316 = arith.mulf %315, %305 : vector<16x16xf32>
    %cst_172 = arith.constant 0.254829586 : f32
    %317 = vector.broadcast %cst_172 : f32 to vector<16x16xf32>
    %318 = arith.addf %316, %317 : vector<16x16xf32>
    %319 = arith.mulf %318, %305 : vector<16x16xf32>
    %cst_173 = arith.constant 0.000000e+00 : f32
    %320 = vector.broadcast %cst_173 : f32 to vector<16x16xf32>
    %321 = arith.subf %320, %299 : vector<16x16xf32>
    %322 = arith.mulf %321, %299 : vector<16x16xf32>
    %323 = math.exp %322 : vector<16x16xf32>
    %324 = arith.mulf %319, %323 : vector<16x16xf32>
    %cst_174 = arith.constant 1.000000e+00 : f32
    %325 = vector.broadcast %cst_174 : f32 to vector<16x16xf32>
    %326 = arith.subf %325, %324 : vector<16x16xf32>
    %cst_175 = arith.constant 0.000000e+00 : f32
    %327 = vector.broadcast %cst_175 : f32 to vector<16x16xf32>
    %328 = arith.cmpf oge, %298, %327 : vector<16x16xf32>
    %cst_176 = arith.constant 0.000000e+00 : f32
    %329 = vector.broadcast %cst_176 : f32 to vector<16x16xf32>
    %330 = arith.subf %329, %326 : vector<16x16xf32>
    %331 = arith.select %328, %326, %330 : vector<16x16xi1>, vector<16x16xf32>
    %cst_177 = arith.constant 1.000000e+00 : f32
    %332 = vector.broadcast %cst_177 : f32 to vector<16x16xf32>
    %333 = arith.addf %332, %331 : vector<16x16xf32>
    %334 = arith.mulf %296, %333 : vector<16x16xf32>
    %cst_178 = arith.constant 0.000000e+00 : f32
    %335 = vector.broadcast %cst_178 : f32 to vector<16x16xf32>
    %c3_i32_179 = arith.constant 3 : i32
    %336 = tpu.dynamic_rotate %334 by %c3_i32_179 dim 0 : vector<16x16xf32>, i32 -> vector<16x16xf32>
    %337 = tpu.iota {dimensions = array<i32: 0>} : vector<16x16xi32>
    %c3_i32_180 = arith.constant 3 : i32
    %338 = vector.broadcast %c3_i32_180 : i32 to vector<16x16xi32>
    %339 = arith.cmpi sge, %337, %338 : vector<16x16xi32>
    %cst_181 = arith.constant 0.000000e+00 : f32
    %340 = vector.broadcast %cst_181 : f32 to vector<16x16xf32>
    %341 = arith.select %339, %336, %340 : vector<16x16xi1>, vector<16x16xf32>
    %342 = vector.extract_strided_slice %15 {offsets = [0, 0], sizes = [1, 16], strides = [1, 1]} : vector<7x16xf32> to vector<1x16xf32>
    %343 = vector.broadcast %342 : vector<1x16xf32> to vector<16x16xf32>
    %344 = arith.mulf %341, %343 : vector<16x16xf32>
    %345 = arith.addf %335, %344 : vector<16x16xf32>
    %c2_i32_182 = arith.constant 2 : i32
    %346 = tpu.dynamic_rotate %334 by %c2_i32_182 dim 0 : vector<16x16xf32>, i32 -> vector<16x16xf32>
    %347 = tpu.iota {dimensions = array<i32: 0>} : vector<16x16xi32>
    %c2_i32_183 = arith.constant 2 : i32
    %348 = vector.broadcast %c2_i32_183 : i32 to vector<16x16xi32>
    %349 = arith.cmpi sge, %347, %348 : vector<16x16xi32>
    %cst_184 = arith.constant 0.000000e+00 : f32
    %350 = vector.broadcast %cst_184 : f32 to vector<16x16xf32>
    %351 = arith.select %349, %346, %350 : vector<16x16xi1>, vector<16x16xf32>
    %352 = vector.extract_strided_slice %15 {offsets = [1, 0], sizes = [1, 16], strides = [1, 1]} : vector<7x16xf32> to vector<1x16xf32>
    %353 = vector.broadcast %352 : vector<1x16xf32> to vector<16x16xf32>
    %354 = arith.mulf %351, %353 : vector<16x16xf32>
    %355 = arith.addf %345, %354 : vector<16x16xf32>
    %c1_i32_185 = arith.constant 1 : i32
    %356 = tpu.dynamic_rotate %334 by %c1_i32_185 dim 0 : vector<16x16xf32>, i32 -> vector<16x16xf32>
    %357 = tpu.iota {dimensions = array<i32: 0>} : vector<16x16xi32>
    %c1_i32_186 = arith.constant 1 : i32
    %358 = vector.broadcast %c1_i32_186 : i32 to vector<16x16xi32>
    %359 = arith.cmpi sge, %357, %358 : vector<16x16xi32>
    %cst_187 = arith.constant 0.000000e+00 : f32
    %360 = vector.broadcast %cst_187 : f32 to vector<16x16xf32>
    %361 = arith.select %359, %356, %360 : vector<16x16xi1>, vector<16x16xf32>
    %362 = vector.extract_strided_slice %15 {offsets = [2, 0], sizes = [1, 16], strides = [1, 1]} : vector<7x16xf32> to vector<1x16xf32>
    %363 = vector.broadcast %362 : vector<1x16xf32> to vector<16x16xf32>
    %364 = arith.mulf %361, %363 : vector<16x16xf32>
    %365 = arith.addf %355, %364 : vector<16x16xf32>
    %366 = vector.extract_strided_slice %15 {offsets = [3, 0], sizes = [1, 16], strides = [1, 1]} : vector<7x16xf32> to vector<1x16xf32>
    %367 = vector.broadcast %366 : vector<1x16xf32> to vector<16x16xf32>
    %368 = arith.mulf %334, %367 : vector<16x16xf32>
    %369 = arith.addf %365, %368 : vector<16x16xf32>
    %c15_i32_188 = arith.constant 15 : i32
    %370 = tpu.dynamic_rotate %334 by %c15_i32_188 dim 0 : vector<16x16xf32>, i32 -> vector<16x16xf32>
    %371 = tpu.iota {dimensions = array<i32: 0>} : vector<16x16xi32>
    %c15_i32_189 = arith.constant 15 : i32
    %372 = vector.broadcast %c15_i32_189 : i32 to vector<16x16xi32>
    %373 = arith.cmpi slt, %371, %372 : vector<16x16xi32>
    %cst_190 = arith.constant 0.000000e+00 : f32
    %374 = vector.broadcast %cst_190 : f32 to vector<16x16xf32>
    %375 = arith.select %373, %370, %374 : vector<16x16xi1>, vector<16x16xf32>
    %376 = vector.extract_strided_slice %15 {offsets = [4, 0], sizes = [1, 16], strides = [1, 1]} : vector<7x16xf32> to vector<1x16xf32>
    %377 = vector.broadcast %376 : vector<1x16xf32> to vector<16x16xf32>
    %378 = arith.mulf %375, %377 : vector<16x16xf32>
    %379 = arith.addf %369, %378 : vector<16x16xf32>
    %c14_i32_191 = arith.constant 14 : i32
    %380 = tpu.dynamic_rotate %334 by %c14_i32_191 dim 0 : vector<16x16xf32>, i32 -> vector<16x16xf32>
    %381 = tpu.iota {dimensions = array<i32: 0>} : vector<16x16xi32>
    %c14_i32_192 = arith.constant 14 : i32
    %382 = vector.broadcast %c14_i32_192 : i32 to vector<16x16xi32>
    %383 = arith.cmpi slt, %381, %382 : vector<16x16xi32>
    %cst_193 = arith.constant 0.000000e+00 : f32
    %384 = vector.broadcast %cst_193 : f32 to vector<16x16xf32>
    %385 = arith.select %383, %380, %384 : vector<16x16xi1>, vector<16x16xf32>
    %386 = vector.extract_strided_slice %15 {offsets = [5, 0], sizes = [1, 16], strides = [1, 1]} : vector<7x16xf32> to vector<1x16xf32>
    %387 = vector.broadcast %386 : vector<1x16xf32> to vector<16x16xf32>
    %388 = arith.mulf %385, %387 : vector<16x16xf32>
    %389 = arith.addf %379, %388 : vector<16x16xf32>
    %c13_i32_194 = arith.constant 13 : i32
    %390 = tpu.dynamic_rotate %334 by %c13_i32_194 dim 0 : vector<16x16xf32>, i32 -> vector<16x16xf32>
    %391 = tpu.iota {dimensions = array<i32: 0>} : vector<16x16xi32>
    %c13_i32_195 = arith.constant 13 : i32
    %392 = vector.broadcast %c13_i32_195 : i32 to vector<16x16xi32>
    %393 = arith.cmpi slt, %391, %392 : vector<16x16xi32>
    %cst_196 = arith.constant 0.000000e+00 : f32
    %394 = vector.broadcast %cst_196 : f32 to vector<16x16xf32>
    %395 = arith.select %393, %390, %394 : vector<16x16xi1>, vector<16x16xf32>
    %396 = vector.extract_strided_slice %15 {offsets = [6, 0], sizes = [1, 16], strides = [1, 1]} : vector<7x16xf32> to vector<1x16xf32>
    %397 = vector.broadcast %396 : vector<1x16xf32> to vector<16x16xf32>
    %398 = arith.mulf %395, %397 : vector<16x16xf32>
    %399 = arith.addf %389, %398 : vector<16x16xf32>
    %400 = vector.broadcast %10 : vector<1x16xf32> to vector<16x16xf32>
    %401 = arith.addf %399, %400 : vector<16x16xf32>
    %cst_197 = arith.constant dense<0.000000e+00> : vector<16xf32>
    %402 = vector.multi_reduction <add>, %401, %cst_197 [1] : vector<16x16xf32> to vector<16xf32>
    %403 = vector.shape_cast %402 : vector<16xf32> to vector<16x1xf32>
    %cst_198 = arith.constant 1.600000e+01 : f32
    %404 = vector.broadcast %cst_198 : f32 to vector<16x1xf32>
    %405 = arith.divf %403, %404 : vector<16x1xf32>
    %406 = vector.broadcast %405 : vector<16x1xf32> to vector<16x16xf32>
    %407 = arith.subf %401, %406 : vector<16x16xf32>
    %408 = arith.mulf %407, %407 : vector<16x16xf32>
    %cst_199 = arith.constant dense<0.000000e+00> : vector<16xf32>
    %409 = vector.multi_reduction <add>, %408, %cst_199 [1] : vector<16x16xf32> to vector<16xf32>
    %410 = vector.shape_cast %409 : vector<16xf32> to vector<16x1xf32>
    %cst_200 = arith.constant 1.600000e+01 : f32
    %411 = vector.broadcast %cst_200 : f32 to vector<16x1xf32>
    %412 = arith.divf %410, %411 : vector<16x1xf32>
    %413 = vector.broadcast %405 : vector<16x1xf32> to vector<16x16xf32>
    %414 = arith.subf %401, %413 : vector<16x16xf32>
    %cst_201 = arith.constant 9.99999974E-6 : f32
    %415 = vector.broadcast %cst_201 : f32 to vector<16x1xf32>
    %416 = arith.addf %412, %415 : vector<16x1xf32>
    %417 = math.rsqrt %416 : vector<16x1xf32>
    %418 = vector.broadcast %417 : vector<16x1xf32> to vector<16x16xf32>
    %419 = arith.mulf %414, %418 : vector<16x16xf32>
    %420 = vector.broadcast %12 : vector<1x16xf32> to vector<16x16xf32>
    %421 = arith.mulf %419, %420 : vector<16x16xf32>
    %422 = vector.broadcast %11 : vector<1x16xf32> to vector<16x16xf32>
    %423 = arith.addf %421, %422 : vector<16x16xf32>
    %cst_202 = arith.constant dense<0.000000e+00> : vector<16x36xf32>
    %424 = tpu.matmul %423, %13, %cst_202 {dimension_numbers = #tpu.dot_dimension_numbers<[1], [0], [0], [1], [0, 0, 1, 1], [], []>} : vector<16x16xf32>, vector<16x36xf32>, vector<16x36xf32> -> vector<16x36xf32>
    %425 = vector.broadcast %8 : vector<1x36xf32> to vector<16x36xf32>
    %426 = arith.addf %424, %425 : vector<16x36xf32>
    %cst_203 = arith.constant 5.000000e-01 : f32
    %427 = vector.broadcast %cst_203 : f32 to vector<16x36xf32>
    %428 = arith.mulf %427, %426 : vector<16x36xf32>
    %cst_204 = arith.constant 0.707106769 : f32
    %429 = vector.broadcast %cst_204 : f32 to vector<16x36xf32>
    %430 = arith.mulf %426, %429 : vector<16x36xf32>
    %431 = math.absf %430 : vector<16x36xf32>
    %cst_205 = arith.constant 0.327591091 : f32
    %432 = vector.broadcast %cst_205 : f32 to vector<16x36xf32>
    %433 = arith.mulf %432, %431 : vector<16x36xf32>
    %cst_206 = arith.constant 1.000000e+00 : f32
    %434 = vector.broadcast %cst_206 : f32 to vector<16x36xf32>
    %435 = arith.addf %434, %433 : vector<16x36xf32>
    %cst_207 = arith.constant 1.000000e+00 : f32
    %436 = vector.broadcast %cst_207 : f32 to vector<16x36xf32>
    %437 = arith.divf %436, %435 : vector<16x36xf32>
    %cst_208 = arith.constant 1.06140542 : f32
    %438 = vector.broadcast %cst_208 : f32 to vector<16x36xf32>
    %439 = arith.mulf %438, %437 : vector<16x36xf32>
    %cst_209 = arith.constant -1.45315206 : f32
    %440 = vector.broadcast %cst_209 : f32 to vector<16x36xf32>
    %441 = arith.addf %439, %440 : vector<16x36xf32>
    %442 = arith.mulf %441, %437 : vector<16x36xf32>
    %cst_210 = arith.constant 1.42141378 : f32
    %443 = vector.broadcast %cst_210 : f32 to vector<16x36xf32>
    %444 = arith.addf %442, %443 : vector<16x36xf32>
    %445 = arith.mulf %444, %437 : vector<16x36xf32>
    %cst_211 = arith.constant -0.284496725 : f32
    %446 = vector.broadcast %cst_211 : f32 to vector<16x36xf32>
    %447 = arith.addf %445, %446 : vector<16x36xf32>
    %448 = arith.mulf %447, %437 : vector<16x36xf32>
    %cst_212 = arith.constant 0.254829586 : f32
    %449 = vector.broadcast %cst_212 : f32 to vector<16x36xf32>
    %450 = arith.addf %448, %449 : vector<16x36xf32>
    %451 = arith.mulf %450, %437 : vector<16x36xf32>
    %cst_213 = arith.constant 0.000000e+00 : f32
    %452 = vector.broadcast %cst_213 : f32 to vector<16x36xf32>
    %453 = arith.subf %452, %431 : vector<16x36xf32>
    %454 = arith.mulf %453, %431 : vector<16x36xf32>
    %455 = math.exp %454 : vector<16x36xf32>
    %456 = arith.mulf %451, %455 : vector<16x36xf32>
    %cst_214 = arith.constant 1.000000e+00 : f32
    %457 = vector.broadcast %cst_214 : f32 to vector<16x36xf32>
    %458 = arith.subf %457, %456 : vector<16x36xf32>
    %cst_215 = arith.constant 0.000000e+00 : f32
    %459 = vector.broadcast %cst_215 : f32 to vector<16x36xf32>
    %460 = arith.cmpf oge, %430, %459 : vector<16x36xf32>
    %cst_216 = arith.constant 0.000000e+00 : f32
    %461 = vector.broadcast %cst_216 : f32 to vector<16x36xf32>
    %462 = arith.subf %461, %458 : vector<16x36xf32>
    %463 = arith.select %460, %458, %462 : vector<16x36xi1>, vector<16x36xf32>
    %cst_217 = arith.constant 1.000000e+00 : f32
    %464 = vector.broadcast %cst_217 : f32 to vector<16x36xf32>
    %465 = arith.addf %464, %463 : vector<16x36xf32>
    %466 = arith.mulf %428, %465 : vector<16x36xf32>
    %cst_218 = arith.constant dense<0.000000e+00> : vector<16x16xf32>
    %467 = tpu.matmul %466, %14, %cst_218 {dimension_numbers = #tpu.dot_dimension_numbers<[1], [0], [0], [1], [0, 0, 1, 1], [], []>} : vector<16x36xf32>, vector<36x16xf32>, vector<16x16xf32> -> vector<16x16xf32>
    %468 = vector.broadcast %9 : vector<1x16xf32> to vector<16x16xf32>
    %469 = arith.addf %467, %468 : vector<16x16xf32>
    %470 = arith.addf %469, %334 : vector<16x16xf32>
    %cst_219 = arith.constant 0.000000e+00 : f32
    %471 = vector.broadcast %cst_219 : f32 to vector<16x24xf32>
    %c1_i32_220 = arith.constant 1 : i32
    %472 = tpu.dynamic_rotate %470 by %c1_i32_220 dim 0 : vector<16x16xf32>, i32 -> vector<16x16xf32>
    %473 = tpu.iota {dimensions = array<i32: 0>} : vector<16x16xi32>
    %c1_i32_221 = arith.constant 1 : i32
    %474 = vector.broadcast %c1_i32_221 : i32 to vector<16x16xi32>
    %475 = arith.cmpi sge, %473, %474 : vector<16x16xi32>
    %cst_222 = arith.constant 0.000000e+00 : f32
    %476 = vector.broadcast %cst_222 : f32 to vector<16x16xf32>
    %477 = arith.select %475, %472, %476 : vector<16x16xi1>, vector<16x16xf32>
    %478 = vector.extract_strided_slice %44 {offsets = [0, 0, 0], sizes = [1, 16, 24], strides = [1, 1, 1]} : vector<3x16x24xf32> to vector<1x16x24xf32>
    %479 = vector.shape_cast %478 : vector<1x16x24xf32> to vector<16x24xf32>
    %cst_223 = arith.constant dense<0.000000e+00> : vector<16x24xf32>
    %480 = tpu.matmul %477, %479, %cst_223 {dimension_numbers = #tpu.dot_dimension_numbers<[1], [0], [0], [1], [0, 0, 1, 1], [], []>} : vector<16x16xf32>, vector<16x24xf32>, vector<16x24xf32> -> vector<16x24xf32>
    %481 = arith.addf %471, %480 : vector<16x24xf32>
    %482 = vector.extract_strided_slice %44 {offsets = [1, 0, 0], sizes = [1, 16, 24], strides = [1, 1, 1]} : vector<3x16x24xf32> to vector<1x16x24xf32>
    %483 = vector.shape_cast %482 : vector<1x16x24xf32> to vector<16x24xf32>
    %cst_224 = arith.constant dense<0.000000e+00> : vector<16x24xf32>
    %484 = tpu.matmul %470, %483, %cst_224 {dimension_numbers = #tpu.dot_dimension_numbers<[1], [0], [0], [1], [0, 0, 1, 1], [], []>} : vector<16x16xf32>, vector<16x24xf32>, vector<16x24xf32> -> vector<16x24xf32>
    %485 = arith.addf %481, %484 : vector<16x24xf32>
    %c15_i32_225 = arith.constant 15 : i32
    %486 = tpu.dynamic_rotate %470 by %c15_i32_225 dim 0 : vector<16x16xf32>, i32 -> vector<16x16xf32>
    %487 = tpu.iota {dimensions = array<i32: 0>} : vector<16x16xi32>
    %c15_i32_226 = arith.constant 15 : i32
    %488 = vector.broadcast %c15_i32_226 : i32 to vector<16x16xi32>
    %489 = arith.cmpi slt, %487, %488 : vector<16x16xi32>
    %cst_227 = arith.constant 0.000000e+00 : f32
    %490 = vector.broadcast %cst_227 : f32 to vector<16x16xf32>
    %491 = arith.select %489, %486, %490 : vector<16x16xi1>, vector<16x16xf32>
    %492 = vector.extract_strided_slice %44 {offsets = [2, 0, 0], sizes = [1, 16, 24], strides = [1, 1, 1]} : vector<3x16x24xf32> to vector<1x16x24xf32>
    %493 = vector.shape_cast %492 : vector<1x16x24xf32> to vector<16x24xf32>
    %cst_228 = arith.constant dense<0.000000e+00> : vector<16x24xf32>
    %494 = tpu.matmul %491, %493, %cst_228 {dimension_numbers = #tpu.dot_dimension_numbers<[1], [0], [0], [1], [0, 0, 1, 1], [], []>} : vector<16x16xf32>, vector<16x24xf32>, vector<16x24xf32> -> vector<16x24xf32>
    %495 = arith.addf %485, %494 : vector<16x24xf32>
    %496 = vector.broadcast %45 : vector<1x24xf32> to vector<16x24xf32>
    %497 = arith.addf %495, %496 : vector<16x24xf32>
    %cst_229 = arith.constant 5.000000e-01 : f32
    %498 = vector.broadcast %cst_229 : f32 to vector<16x24xf32>
    %499 = arith.mulf %498, %497 : vector<16x24xf32>
    %cst_230 = arith.constant 0.707106769 : f32
    %500 = vector.broadcast %cst_230 : f32 to vector<16x24xf32>
    %501 = arith.mulf %497, %500 : vector<16x24xf32>
    %502 = math.absf %501 : vector<16x24xf32>
    %cst_231 = arith.constant 0.327591091 : f32
    %503 = vector.broadcast %cst_231 : f32 to vector<16x24xf32>
    %504 = arith.mulf %503, %502 : vector<16x24xf32>
    %cst_232 = arith.constant 1.000000e+00 : f32
    %505 = vector.broadcast %cst_232 : f32 to vector<16x24xf32>
    %506 = arith.addf %505, %504 : vector<16x24xf32>
    %cst_233 = arith.constant 1.000000e+00 : f32
    %507 = vector.broadcast %cst_233 : f32 to vector<16x24xf32>
    %508 = arith.divf %507, %506 : vector<16x24xf32>
    %cst_234 = arith.constant 1.06140542 : f32
    %509 = vector.broadcast %cst_234 : f32 to vector<16x24xf32>
    %510 = arith.mulf %509, %508 : vector<16x24xf32>
    %cst_235 = arith.constant -1.45315206 : f32
    %511 = vector.broadcast %cst_235 : f32 to vector<16x24xf32>
    %512 = arith.addf %510, %511 : vector<16x24xf32>
    %513 = arith.mulf %512, %508 : vector<16x24xf32>
    %cst_236 = arith.constant 1.42141378 : f32
    %514 = vector.broadcast %cst_236 : f32 to vector<16x24xf32>
    %515 = arith.addf %513, %514 : vector<16x24xf32>
    %516 = arith.mulf %515, %508 : vector<16x24xf32>
    %cst_237 = arith.constant -0.284496725 : f32
    %517 = vector.broadcast %cst_237 : f32 to vector<16x24xf32>
    %518 = arith.addf %516, %517 : vector<16x24xf32>
    %519 = arith.mulf %518, %508 : vector<16x24xf32>
    %cst_238 = arith.constant 0.254829586 : f32
    %520 = vector.broadcast %cst_238 : f32 to vector<16x24xf32>
    %521 = arith.addf %519, %520 : vector<16x24xf32>
    %522 = arith.mulf %521, %508 : vector<16x24xf32>
    %cst_239 = arith.constant 0.000000e+00 : f32
    %523 = vector.broadcast %cst_239 : f32 to vector<16x24xf32>
    %524 = arith.subf %523, %502 : vector<16x24xf32>
    %525 = arith.mulf %524, %502 : vector<16x24xf32>
    %526 = math.exp %525 : vector<16x24xf32>
    %527 = arith.mulf %522, %526 : vector<16x24xf32>
    %cst_240 = arith.constant 1.000000e+00 : f32
    %528 = vector.broadcast %cst_240 : f32 to vector<16x24xf32>
    %529 = arith.subf %528, %527 : vector<16x24xf32>
    %cst_241 = arith.constant 0.000000e+00 : f32
    %530 = vector.broadcast %cst_241 : f32 to vector<16x24xf32>
    %531 = arith.cmpf oge, %501, %530 : vector<16x24xf32>
    %cst_242 = arith.constant 0.000000e+00 : f32
    %532 = vector.broadcast %cst_242 : f32 to vector<16x24xf32>
    %533 = arith.subf %532, %529 : vector<16x24xf32>
    %534 = arith.select %531, %529, %533 : vector<16x24xi1>, vector<16x24xf32>
    %cst_243 = arith.constant 1.000000e+00 : f32
    %535 = vector.broadcast %cst_243 : f32 to vector<16x24xf32>
    %536 = arith.addf %535, %534 : vector<16x24xf32>
    %537 = arith.mulf %499, %536 : vector<16x24xf32>
    %cst_244 = arith.constant 0.000000e+00 : f32
    %538 = vector.broadcast %cst_244 : f32 to vector<16x24xf32>
    %c3_i32_245 = arith.constant 3 : i32
    %539 = tpu.dynamic_rotate %537 by %c3_i32_245 dim 0 : vector<16x24xf32>, i32 -> vector<16x24xf32>
    %540 = tpu.iota {dimensions = array<i32: 0>} : vector<16x24xi32>
    %c3_i32_246 = arith.constant 3 : i32
    %541 = vector.broadcast %c3_i32_246 : i32 to vector<16x24xi32>
    %542 = arith.cmpi sge, %540, %541 : vector<16x24xi32>
    %cst_247 = arith.constant 0.000000e+00 : f32
    %543 = vector.broadcast %cst_247 : f32 to vector<16x24xf32>
    %544 = arith.select %542, %539, %543 : vector<16x24xi1>, vector<16x24xf32>
    %545 = vector.extract_strided_slice %23 {offsets = [0, 0], sizes = [1, 24], strides = [1, 1]} : vector<7x24xf32> to vector<1x24xf32>
    %546 = vector.broadcast %545 : vector<1x24xf32> to vector<16x24xf32>
    %547 = arith.mulf %544, %546 : vector<16x24xf32>
    %548 = arith.addf %538, %547 : vector<16x24xf32>
    %c2_i32_248 = arith.constant 2 : i32
    %549 = tpu.dynamic_rotate %537 by %c2_i32_248 dim 0 : vector<16x24xf32>, i32 -> vector<16x24xf32>
    %550 = tpu.iota {dimensions = array<i32: 0>} : vector<16x24xi32>
    %c2_i32_249 = arith.constant 2 : i32
    %551 = vector.broadcast %c2_i32_249 : i32 to vector<16x24xi32>
    %552 = arith.cmpi sge, %550, %551 : vector<16x24xi32>
    %cst_250 = arith.constant 0.000000e+00 : f32
    %553 = vector.broadcast %cst_250 : f32 to vector<16x24xf32>
    %554 = arith.select %552, %549, %553 : vector<16x24xi1>, vector<16x24xf32>
    %555 = vector.extract_strided_slice %23 {offsets = [1, 0], sizes = [1, 24], strides = [1, 1]} : vector<7x24xf32> to vector<1x24xf32>
    %556 = vector.broadcast %555 : vector<1x24xf32> to vector<16x24xf32>
    %557 = arith.mulf %554, %556 : vector<16x24xf32>
    %558 = arith.addf %548, %557 : vector<16x24xf32>
    %c1_i32_251 = arith.constant 1 : i32
    %559 = tpu.dynamic_rotate %537 by %c1_i32_251 dim 0 : vector<16x24xf32>, i32 -> vector<16x24xf32>
    %560 = tpu.iota {dimensions = array<i32: 0>} : vector<16x24xi32>
    %c1_i32_252 = arith.constant 1 : i32
    %561 = vector.broadcast %c1_i32_252 : i32 to vector<16x24xi32>
    %562 = arith.cmpi sge, %560, %561 : vector<16x24xi32>
    %cst_253 = arith.constant 0.000000e+00 : f32
    %563 = vector.broadcast %cst_253 : f32 to vector<16x24xf32>
    %564 = arith.select %562, %559, %563 : vector<16x24xi1>, vector<16x24xf32>
    %565 = vector.extract_strided_slice %23 {offsets = [2, 0], sizes = [1, 24], strides = [1, 1]} : vector<7x24xf32> to vector<1x24xf32>
    %566 = vector.broadcast %565 : vector<1x24xf32> to vector<16x24xf32>
    %567 = arith.mulf %564, %566 : vector<16x24xf32>
    %568 = arith.addf %558, %567 : vector<16x24xf32>
    %569 = vector.extract_strided_slice %23 {offsets = [3, 0], sizes = [1, 24], strides = [1, 1]} : vector<7x24xf32> to vector<1x24xf32>
    %570 = vector.broadcast %569 : vector<1x24xf32> to vector<16x24xf32>
    %571 = arith.mulf %537, %570 : vector<16x24xf32>
    %572 = arith.addf %568, %571 : vector<16x24xf32>
    %c15_i32_254 = arith.constant 15 : i32
    %573 = tpu.dynamic_rotate %537 by %c15_i32_254 dim 0 : vector<16x24xf32>, i32 -> vector<16x24xf32>
    %574 = tpu.iota {dimensions = array<i32: 0>} : vector<16x24xi32>
    %c15_i32_255 = arith.constant 15 : i32
    %575 = vector.broadcast %c15_i32_255 : i32 to vector<16x24xi32>
    %576 = arith.cmpi slt, %574, %575 : vector<16x24xi32>
    %cst_256 = arith.constant 0.000000e+00 : f32
    %577 = vector.broadcast %cst_256 : f32 to vector<16x24xf32>
    %578 = arith.select %576, %573, %577 : vector<16x24xi1>, vector<16x24xf32>
    %579 = vector.extract_strided_slice %23 {offsets = [4, 0], sizes = [1, 24], strides = [1, 1]} : vector<7x24xf32> to vector<1x24xf32>
    %580 = vector.broadcast %579 : vector<1x24xf32> to vector<16x24xf32>
    %581 = arith.mulf %578, %580 : vector<16x24xf32>
    %582 = arith.addf %572, %581 : vector<16x24xf32>
    %c14_i32_257 = arith.constant 14 : i32
    %583 = tpu.dynamic_rotate %537 by %c14_i32_257 dim 0 : vector<16x24xf32>, i32 -> vector<16x24xf32>
    %584 = tpu.iota {dimensions = array<i32: 0>} : vector<16x24xi32>
    %c14_i32_258 = arith.constant 14 : i32
    %585 = vector.broadcast %c14_i32_258 : i32 to vector<16x24xi32>
    %586 = arith.cmpi slt, %584, %585 : vector<16x24xi32>
    %cst_259 = arith.constant 0.000000e+00 : f32
    %587 = vector.broadcast %cst_259 : f32 to vector<16x24xf32>
    %588 = arith.select %586, %583, %587 : vector<16x24xi1>, vector<16x24xf32>
    %589 = vector.extract_strided_slice %23 {offsets = [5, 0], sizes = [1, 24], strides = [1, 1]} : vector<7x24xf32> to vector<1x24xf32>
    %590 = vector.broadcast %589 : vector<1x24xf32> to vector<16x24xf32>
    %591 = arith.mulf %588, %590 : vector<16x24xf32>
    %592 = arith.addf %582, %591 : vector<16x24xf32>
    %c13_i32_260 = arith.constant 13 : i32
    %593 = tpu.dynamic_rotate %537 by %c13_i32_260 dim 0 : vector<16x24xf32>, i32 -> vector<16x24xf32>
    %594 = tpu.iota {dimensions = array<i32: 0>} : vector<16x24xi32>
    %c13_i32_261 = arith.constant 13 : i32
    %595 = vector.broadcast %c13_i32_261 : i32 to vector<16x24xi32>
    %596 = arith.cmpi slt, %594, %595 : vector<16x24xi32>
    %cst_262 = arith.constant 0.000000e+00 : f32
    %597 = vector.broadcast %cst_262 : f32 to vector<16x24xf32>
    %598 = arith.select %596, %593, %597 : vector<16x24xi1>, vector<16x24xf32>
    %599 = vector.extract_strided_slice %23 {offsets = [6, 0], sizes = [1, 24], strides = [1, 1]} : vector<7x24xf32> to vector<1x24xf32>
    %600 = vector.broadcast %599 : vector<1x24xf32> to vector<16x24xf32>
    %601 = arith.mulf %598, %600 : vector<16x24xf32>
    %602 = arith.addf %592, %601 : vector<16x24xf32>
    %603 = vector.broadcast %18 : vector<1x24xf32> to vector<16x24xf32>
    %604 = arith.addf %602, %603 : vector<16x24xf32>
    %cst_263 = arith.constant dense<0.000000e+00> : vector<16xf32>
    %605 = vector.multi_reduction <add>, %604, %cst_263 [1] : vector<16x24xf32> to vector<16xf32>
    %606 = vector.shape_cast %605 : vector<16xf32> to vector<16x1xf32>
    %cst_264 = arith.constant 2.400000e+01 : f32
    %607 = vector.broadcast %cst_264 : f32 to vector<16x1xf32>
    %608 = arith.divf %606, %607 : vector<16x1xf32>
    %609 = vector.broadcast %608 : vector<16x1xf32> to vector<16x24xf32>
    %610 = arith.subf %604, %609 : vector<16x24xf32>
    %611 = arith.mulf %610, %610 : vector<16x24xf32>
    %cst_265 = arith.constant dense<0.000000e+00> : vector<16xf32>
    %612 = vector.multi_reduction <add>, %611, %cst_265 [1] : vector<16x24xf32> to vector<16xf32>
    %613 = vector.shape_cast %612 : vector<16xf32> to vector<16x1xf32>
    %cst_266 = arith.constant 2.400000e+01 : f32
    %614 = vector.broadcast %cst_266 : f32 to vector<16x1xf32>
    %615 = arith.divf %613, %614 : vector<16x1xf32>
    %616 = vector.broadcast %608 : vector<16x1xf32> to vector<16x24xf32>
    %617 = arith.subf %604, %616 : vector<16x24xf32>
    %cst_267 = arith.constant 9.99999974E-6 : f32
    %618 = vector.broadcast %cst_267 : f32 to vector<16x1xf32>
    %619 = arith.addf %615, %618 : vector<16x1xf32>
    %620 = math.rsqrt %619 : vector<16x1xf32>
    %621 = vector.broadcast %620 : vector<16x1xf32> to vector<16x24xf32>
    %622 = arith.mulf %617, %621 : vector<16x24xf32>
    %623 = vector.broadcast %20 : vector<1x24xf32> to vector<16x24xf32>
    %624 = arith.mulf %622, %623 : vector<16x24xf32>
    %625 = vector.broadcast %19 : vector<1x24xf32> to vector<16x24xf32>
    %626 = arith.addf %624, %625 : vector<16x24xf32>
    %cst_268 = arith.constant dense<0.000000e+00> : vector<16x48xf32>
    %627 = tpu.matmul %626, %21, %cst_268 {dimension_numbers = #tpu.dot_dimension_numbers<[1], [0], [0], [1], [0, 0, 1, 1], [], []>} : vector<16x24xf32>, vector<24x48xf32>, vector<16x48xf32> -> vector<16x48xf32>
    %628 = vector.broadcast %16 : vector<1x48xf32> to vector<16x48xf32>
    %629 = arith.addf %627, %628 : vector<16x48xf32>
    %cst_269 = arith.constant 5.000000e-01 : f32
    %630 = vector.broadcast %cst_269 : f32 to vector<16x48xf32>
    %631 = arith.mulf %630, %629 : vector<16x48xf32>
    %cst_270 = arith.constant 0.707106769 : f32
    %632 = vector.broadcast %cst_270 : f32 to vector<16x48xf32>
    %633 = arith.mulf %629, %632 : vector<16x48xf32>
    %634 = math.absf %633 : vector<16x48xf32>
    %cst_271 = arith.constant 0.327591091 : f32
    %635 = vector.broadcast %cst_271 : f32 to vector<16x48xf32>
    %636 = arith.mulf %635, %634 : vector<16x48xf32>
    %cst_272 = arith.constant 1.000000e+00 : f32
    %637 = vector.broadcast %cst_272 : f32 to vector<16x48xf32>
    %638 = arith.addf %637, %636 : vector<16x48xf32>
    %cst_273 = arith.constant 1.000000e+00 : f32
    %639 = vector.broadcast %cst_273 : f32 to vector<16x48xf32>
    %640 = arith.divf %639, %638 : vector<16x48xf32>
    %cst_274 = arith.constant 1.06140542 : f32
    %641 = vector.broadcast %cst_274 : f32 to vector<16x48xf32>
    %642 = arith.mulf %641, %640 : vector<16x48xf32>
    %cst_275 = arith.constant -1.45315206 : f32
    %643 = vector.broadcast %cst_275 : f32 to vector<16x48xf32>
    %644 = arith.addf %642, %643 : vector<16x48xf32>
    %645 = arith.mulf %644, %640 : vector<16x48xf32>
    %cst_276 = arith.constant 1.42141378 : f32
    %646 = vector.broadcast %cst_276 : f32 to vector<16x48xf32>
    %647 = arith.addf %645, %646 : vector<16x48xf32>
    %648 = arith.mulf %647, %640 : vector<16x48xf32>
    %cst_277 = arith.constant -0.284496725 : f32
    %649 = vector.broadcast %cst_277 : f32 to vector<16x48xf32>
    %650 = arith.addf %648, %649 : vector<16x48xf32>
    %651 = arith.mulf %650, %640 : vector<16x48xf32>
    %cst_278 = arith.constant 0.254829586 : f32
    %652 = vector.broadcast %cst_278 : f32 to vector<16x48xf32>
    %653 = arith.addf %651, %652 : vector<16x48xf32>
    %654 = arith.mulf %653, %640 : vector<16x48xf32>
    %cst_279 = arith.constant 0.000000e+00 : f32
    %655 = vector.broadcast %cst_279 : f32 to vector<16x48xf32>
    %656 = arith.subf %655, %634 : vector<16x48xf32>
    %657 = arith.mulf %656, %634 : vector<16x48xf32>
    %658 = math.exp %657 : vector<16x48xf32>
    %659 = arith.mulf %654, %658 : vector<16x48xf32>
    %cst_280 = arith.constant 1.000000e+00 : f32
    %660 = vector.broadcast %cst_280 : f32 to vector<16x48xf32>
    %661 = arith.subf %660, %659 : vector<16x48xf32>
    %cst_281 = arith.constant 0.000000e+00 : f32
    %662 = vector.broadcast %cst_281 : f32 to vector<16x48xf32>
    %663 = arith.cmpf oge, %633, %662 : vector<16x48xf32>
    %cst_282 = arith.constant 0.000000e+00 : f32
    %664 = vector.broadcast %cst_282 : f32 to vector<16x48xf32>
    %665 = arith.subf %664, %661 : vector<16x48xf32>
    %666 = arith.select %663, %661, %665 : vector<16x48xi1>, vector<16x48xf32>
    %cst_283 = arith.constant 1.000000e+00 : f32
    %667 = vector.broadcast %cst_283 : f32 to vector<16x48xf32>
    %668 = arith.addf %667, %666 : vector<16x48xf32>
    %669 = arith.mulf %631, %668 : vector<16x48xf32>
    %cst_284 = arith.constant dense<0.000000e+00> : vector<16x24xf32>
    %670 = tpu.matmul %669, %22, %cst_284 {dimension_numbers = #tpu.dot_dimension_numbers<[1], [0], [0], [1], [0, 0, 1, 1], [], []>} : vector<16x48xf32>, vector<48x24xf32>, vector<16x24xf32> -> vector<16x24xf32>
    %671 = vector.broadcast %17 : vector<1x24xf32> to vector<16x24xf32>
    %672 = arith.addf %670, %671 : vector<16x24xf32>
    %673 = arith.addf %672, %537 : vector<16x24xf32>
    %cst_285 = arith.constant 0.000000e+00 : f32
    %674 = vector.broadcast %cst_285 : f32 to vector<16x32xf32>
    %c1_i32_286 = arith.constant 1 : i32
    %675 = tpu.dynamic_rotate %673 by %c1_i32_286 dim 0 : vector<16x24xf32>, i32 -> vector<16x24xf32>
    %676 = tpu.iota {dimensions = array<i32: 0>} : vector<16x24xi32>
    %c1_i32_287 = arith.constant 1 : i32
    %677 = vector.broadcast %c1_i32_287 : i32 to vector<16x24xi32>
    %678 = arith.cmpi sge, %676, %677 : vector<16x24xi32>
    %cst_288 = arith.constant 0.000000e+00 : f32
    %679 = vector.broadcast %cst_288 : f32 to vector<16x24xf32>
    %680 = arith.select %678, %675, %679 : vector<16x24xi1>, vector<16x24xf32>
    %681 = vector.extract_strided_slice %46 {offsets = [0, 0, 0], sizes = [1, 24, 32], strides = [1, 1, 1]} : vector<3x24x32xf32> to vector<1x24x32xf32>
    %682 = vector.shape_cast %681 : vector<1x24x32xf32> to vector<24x32xf32>
    %cst_289 = arith.constant dense<0.000000e+00> : vector<16x32xf32>
    %683 = tpu.matmul %680, %682, %cst_289 {dimension_numbers = #tpu.dot_dimension_numbers<[1], [0], [0], [1], [0, 0, 1, 1], [], []>} : vector<16x24xf32>, vector<24x32xf32>, vector<16x32xf32> -> vector<16x32xf32>
    %684 = arith.addf %674, %683 : vector<16x32xf32>
    %685 = vector.extract_strided_slice %46 {offsets = [1, 0, 0], sizes = [1, 24, 32], strides = [1, 1, 1]} : vector<3x24x32xf32> to vector<1x24x32xf32>
    %686 = vector.shape_cast %685 : vector<1x24x32xf32> to vector<24x32xf32>
    %cst_290 = arith.constant dense<0.000000e+00> : vector<16x32xf32>
    %687 = tpu.matmul %673, %686, %cst_290 {dimension_numbers = #tpu.dot_dimension_numbers<[1], [0], [0], [1], [0, 0, 1, 1], [], []>} : vector<16x24xf32>, vector<24x32xf32>, vector<16x32xf32> -> vector<16x32xf32>
    %688 = arith.addf %684, %687 : vector<16x32xf32>
    %c15_i32_291 = arith.constant 15 : i32
    %689 = tpu.dynamic_rotate %673 by %c15_i32_291 dim 0 : vector<16x24xf32>, i32 -> vector<16x24xf32>
    %690 = tpu.iota {dimensions = array<i32: 0>} : vector<16x24xi32>
    %c15_i32_292 = arith.constant 15 : i32
    %691 = vector.broadcast %c15_i32_292 : i32 to vector<16x24xi32>
    %692 = arith.cmpi slt, %690, %691 : vector<16x24xi32>
    %cst_293 = arith.constant 0.000000e+00 : f32
    %693 = vector.broadcast %cst_293 : f32 to vector<16x24xf32>
    %694 = arith.select %692, %689, %693 : vector<16x24xi1>, vector<16x24xf32>
    %695 = vector.extract_strided_slice %46 {offsets = [2, 0, 0], sizes = [1, 24, 32], strides = [1, 1, 1]} : vector<3x24x32xf32> to vector<1x24x32xf32>
    %696 = vector.shape_cast %695 : vector<1x24x32xf32> to vector<24x32xf32>
    %cst_294 = arith.constant dense<0.000000e+00> : vector<16x32xf32>
    %697 = tpu.matmul %694, %696, %cst_294 {dimension_numbers = #tpu.dot_dimension_numbers<[1], [0], [0], [1], [0, 0, 1, 1], [], []>} : vector<16x24xf32>, vector<24x32xf32>, vector<16x32xf32> -> vector<16x32xf32>
    %698 = arith.addf %688, %697 : vector<16x32xf32>
    %699 = vector.broadcast %47 : vector<1x32xf32> to vector<16x32xf32>
    %700 = arith.addf %698, %699 : vector<16x32xf32>
    %cst_295 = arith.constant 5.000000e-01 : f32
    %701 = vector.broadcast %cst_295 : f32 to vector<16x32xf32>
    %702 = arith.mulf %701, %700 : vector<16x32xf32>
    %cst_296 = arith.constant 0.707106769 : f32
    %703 = vector.broadcast %cst_296 : f32 to vector<16x32xf32>
    %704 = arith.mulf %700, %703 : vector<16x32xf32>
    %705 = math.absf %704 : vector<16x32xf32>
    %cst_297 = arith.constant 0.327591091 : f32
    %706 = vector.broadcast %cst_297 : f32 to vector<16x32xf32>
    %707 = arith.mulf %706, %705 : vector<16x32xf32>
    %cst_298 = arith.constant 1.000000e+00 : f32
    %708 = vector.broadcast %cst_298 : f32 to vector<16x32xf32>
    %709 = arith.addf %708, %707 : vector<16x32xf32>
    %cst_299 = arith.constant 1.000000e+00 : f32
    %710 = vector.broadcast %cst_299 : f32 to vector<16x32xf32>
    %711 = arith.divf %710, %709 : vector<16x32xf32>
    %cst_300 = arith.constant 1.06140542 : f32
    %712 = vector.broadcast %cst_300 : f32 to vector<16x32xf32>
    %713 = arith.mulf %712, %711 : vector<16x32xf32>
    %cst_301 = arith.constant -1.45315206 : f32
    %714 = vector.broadcast %cst_301 : f32 to vector<16x32xf32>
    %715 = arith.addf %713, %714 : vector<16x32xf32>
    %716 = arith.mulf %715, %711 : vector<16x32xf32>
    %cst_302 = arith.constant 1.42141378 : f32
    %717 = vector.broadcast %cst_302 : f32 to vector<16x32xf32>
    %718 = arith.addf %716, %717 : vector<16x32xf32>
    %719 = arith.mulf %718, %711 : vector<16x32xf32>
    %cst_303 = arith.constant -0.284496725 : f32
    %720 = vector.broadcast %cst_303 : f32 to vector<16x32xf32>
    %721 = arith.addf %719, %720 : vector<16x32xf32>
    %722 = arith.mulf %721, %711 : vector<16x32xf32>
    %cst_304 = arith.constant 0.254829586 : f32
    %723 = vector.broadcast %cst_304 : f32 to vector<16x32xf32>
    %724 = arith.addf %722, %723 : vector<16x32xf32>
    %725 = arith.mulf %724, %711 : vector<16x32xf32>
    %cst_305 = arith.constant 0.000000e+00 : f32
    %726 = vector.broadcast %cst_305 : f32 to vector<16x32xf32>
    %727 = arith.subf %726, %705 : vector<16x32xf32>
    %728 = arith.mulf %727, %705 : vector<16x32xf32>
    %729 = math.exp %728 : vector<16x32xf32>
    %730 = arith.mulf %725, %729 : vector<16x32xf32>
    %cst_306 = arith.constant 1.000000e+00 : f32
    %731 = vector.broadcast %cst_306 : f32 to vector<16x32xf32>
    %732 = arith.subf %731, %730 : vector<16x32xf32>
    %cst_307 = arith.constant 0.000000e+00 : f32
    %733 = vector.broadcast %cst_307 : f32 to vector<16x32xf32>
    %734 = arith.cmpf oge, %704, %733 : vector<16x32xf32>
    %cst_308 = arith.constant 0.000000e+00 : f32
    %735 = vector.broadcast %cst_308 : f32 to vector<16x32xf32>
    %736 = arith.subf %735, %732 : vector<16x32xf32>
    %737 = arith.select %734, %732, %736 : vector<16x32xi1>, vector<16x32xf32>
    %cst_309 = arith.constant 1.000000e+00 : f32
    %738 = vector.broadcast %cst_309 : f32 to vector<16x32xf32>
    %739 = arith.addf %738, %737 : vector<16x32xf32>
    %740 = arith.mulf %702, %739 : vector<16x32xf32>
    %cst_310 = arith.constant 0.000000e+00 : f32
    %741 = vector.broadcast %cst_310 : f32 to vector<16x32xf32>
    %c3_i32_311 = arith.constant 3 : i32
    %742 = tpu.dynamic_rotate %740 by %c3_i32_311 dim 0 : vector<16x32xf32>, i32 -> vector<16x32xf32>
    %743 = tpu.iota {dimensions = array<i32: 0>} : vector<16x32xi32>
    %c3_i32_312 = arith.constant 3 : i32
    %744 = vector.broadcast %c3_i32_312 : i32 to vector<16x32xi32>
    %745 = arith.cmpi sge, %743, %744 : vector<16x32xi32>
    %cst_313 = arith.constant 0.000000e+00 : f32
    %746 = vector.broadcast %cst_313 : f32 to vector<16x32xf32>
    %747 = arith.select %745, %742, %746 : vector<16x32xi1>, vector<16x32xf32>
    %748 = vector.extract_strided_slice %31 {offsets = [0, 0], sizes = [1, 32], strides = [1, 1]} : vector<7x32xf32> to vector<1x32xf32>
    %749 = vector.broadcast %748 : vector<1x32xf32> to vector<16x32xf32>
    %750 = arith.mulf %747, %749 : vector<16x32xf32>
    %751 = arith.addf %741, %750 : vector<16x32xf32>
    %c2_i32_314 = arith.constant 2 : i32
    %752 = tpu.dynamic_rotate %740 by %c2_i32_314 dim 0 : vector<16x32xf32>, i32 -> vector<16x32xf32>
    %753 = tpu.iota {dimensions = array<i32: 0>} : vector<16x32xi32>
    %c2_i32_315 = arith.constant 2 : i32
    %754 = vector.broadcast %c2_i32_315 : i32 to vector<16x32xi32>
    %755 = arith.cmpi sge, %753, %754 : vector<16x32xi32>
    %cst_316 = arith.constant 0.000000e+00 : f32
    %756 = vector.broadcast %cst_316 : f32 to vector<16x32xf32>
    %757 = arith.select %755, %752, %756 : vector<16x32xi1>, vector<16x32xf32>
    %758 = vector.extract_strided_slice %31 {offsets = [1, 0], sizes = [1, 32], strides = [1, 1]} : vector<7x32xf32> to vector<1x32xf32>
    %759 = vector.broadcast %758 : vector<1x32xf32> to vector<16x32xf32>
    %760 = arith.mulf %757, %759 : vector<16x32xf32>
    %761 = arith.addf %751, %760 : vector<16x32xf32>
    %c1_i32_317 = arith.constant 1 : i32
    %762 = tpu.dynamic_rotate %740 by %c1_i32_317 dim 0 : vector<16x32xf32>, i32 -> vector<16x32xf32>
    %763 = tpu.iota {dimensions = array<i32: 0>} : vector<16x32xi32>
    %c1_i32_318 = arith.constant 1 : i32
    %764 = vector.broadcast %c1_i32_318 : i32 to vector<16x32xi32>
    %765 = arith.cmpi sge, %763, %764 : vector<16x32xi32>
    %cst_319 = arith.constant 0.000000e+00 : f32
    %766 = vector.broadcast %cst_319 : f32 to vector<16x32xf32>
    %767 = arith.select %765, %762, %766 : vector<16x32xi1>, vector<16x32xf32>
    %768 = vector.extract_strided_slice %31 {offsets = [2, 0], sizes = [1, 32], strides = [1, 1]} : vector<7x32xf32> to vector<1x32xf32>
    %769 = vector.broadcast %768 : vector<1x32xf32> to vector<16x32xf32>
    %770 = arith.mulf %767, %769 : vector<16x32xf32>
    %771 = arith.addf %761, %770 : vector<16x32xf32>
    %772 = vector.extract_strided_slice %31 {offsets = [3, 0], sizes = [1, 32], strides = [1, 1]} : vector<7x32xf32> to vector<1x32xf32>
    %773 = vector.broadcast %772 : vector<1x32xf32> to vector<16x32xf32>
    %774 = arith.mulf %740, %773 : vector<16x32xf32>
    %775 = arith.addf %771, %774 : vector<16x32xf32>
    %c15_i32_320 = arith.constant 15 : i32
    %776 = tpu.dynamic_rotate %740 by %c15_i32_320 dim 0 : vector<16x32xf32>, i32 -> vector<16x32xf32>
    %777 = tpu.iota {dimensions = array<i32: 0>} : vector<16x32xi32>
    %c15_i32_321 = arith.constant 15 : i32
    %778 = vector.broadcast %c15_i32_321 : i32 to vector<16x32xi32>
    %779 = arith.cmpi slt, %777, %778 : vector<16x32xi32>
    %cst_322 = arith.constant 0.000000e+00 : f32
    %780 = vector.broadcast %cst_322 : f32 to vector<16x32xf32>
    %781 = arith.select %779, %776, %780 : vector<16x32xi1>, vector<16x32xf32>
    %782 = vector.extract_strided_slice %31 {offsets = [4, 0], sizes = [1, 32], strides = [1, 1]} : vector<7x32xf32> to vector<1x32xf32>
    %783 = vector.broadcast %782 : vector<1x32xf32> to vector<16x32xf32>
    %784 = arith.mulf %781, %783 : vector<16x32xf32>
    %785 = arith.addf %775, %784 : vector<16x32xf32>
    %c14_i32_323 = arith.constant 14 : i32
    %786 = tpu.dynamic_rotate %740 by %c14_i32_323 dim 0 : vector<16x32xf32>, i32 -> vector<16x32xf32>
    %787 = tpu.iota {dimensions = array<i32: 0>} : vector<16x32xi32>
    %c14_i32_324 = arith.constant 14 : i32
    %788 = vector.broadcast %c14_i32_324 : i32 to vector<16x32xi32>
    %789 = arith.cmpi slt, %787, %788 : vector<16x32xi32>
    %cst_325 = arith.constant 0.000000e+00 : f32
    %790 = vector.broadcast %cst_325 : f32 to vector<16x32xf32>
    %791 = arith.select %789, %786, %790 : vector<16x32xi1>, vector<16x32xf32>
    %792 = vector.extract_strided_slice %31 {offsets = [5, 0], sizes = [1, 32], strides = [1, 1]} : vector<7x32xf32> to vector<1x32xf32>
    %793 = vector.broadcast %792 : vector<1x32xf32> to vector<16x32xf32>
    %794 = arith.mulf %791, %793 : vector<16x32xf32>
    %795 = arith.addf %785, %794 : vector<16x32xf32>
    %c13_i32_326 = arith.constant 13 : i32
    %796 = tpu.dynamic_rotate %740 by %c13_i32_326 dim 0 : vector<16x32xf32>, i32 -> vector<16x32xf32>
    %797 = tpu.iota {dimensions = array<i32: 0>} : vector<16x32xi32>
    %c13_i32_327 = arith.constant 13 : i32
    %798 = vector.broadcast %c13_i32_327 : i32 to vector<16x32xi32>
    %799 = arith.cmpi slt, %797, %798 : vector<16x32xi32>
    %cst_328 = arith.constant 0.000000e+00 : f32
    %800 = vector.broadcast %cst_328 : f32 to vector<16x32xf32>
    %801 = arith.select %799, %796, %800 : vector<16x32xi1>, vector<16x32xf32>
    %802 = vector.extract_strided_slice %31 {offsets = [6, 0], sizes = [1, 32], strides = [1, 1]} : vector<7x32xf32> to vector<1x32xf32>
    %803 = vector.broadcast %802 : vector<1x32xf32> to vector<16x32xf32>
    %804 = arith.mulf %801, %803 : vector<16x32xf32>
    %805 = arith.addf %795, %804 : vector<16x32xf32>
    %806 = vector.broadcast %26 : vector<1x32xf32> to vector<16x32xf32>
    %807 = arith.addf %805, %806 : vector<16x32xf32>
    %cst_329 = arith.constant dense<0.000000e+00> : vector<16xf32>
    %808 = vector.multi_reduction <add>, %807, %cst_329 [1] : vector<16x32xf32> to vector<16xf32>
    %809 = vector.shape_cast %808 : vector<16xf32> to vector<16x1xf32>
    %cst_330 = arith.constant 3.200000e+01 : f32
    %810 = vector.broadcast %cst_330 : f32 to vector<16x1xf32>
    %811 = arith.divf %809, %810 : vector<16x1xf32>
    %812 = vector.broadcast %811 : vector<16x1xf32> to vector<16x32xf32>
    %813 = arith.subf %807, %812 : vector<16x32xf32>
    %814 = arith.mulf %813, %813 : vector<16x32xf32>
    %cst_331 = arith.constant dense<0.000000e+00> : vector<16xf32>
    %815 = vector.multi_reduction <add>, %814, %cst_331 [1] : vector<16x32xf32> to vector<16xf32>
    %816 = vector.shape_cast %815 : vector<16xf32> to vector<16x1xf32>
    %cst_332 = arith.constant 3.200000e+01 : f32
    %817 = vector.broadcast %cst_332 : f32 to vector<16x1xf32>
    %818 = arith.divf %816, %817 : vector<16x1xf32>
    %819 = vector.broadcast %811 : vector<16x1xf32> to vector<16x32xf32>
    %820 = arith.subf %807, %819 : vector<16x32xf32>
    %cst_333 = arith.constant 9.99999974E-6 : f32
    %821 = vector.broadcast %cst_333 : f32 to vector<16x1xf32>
    %822 = arith.addf %818, %821 : vector<16x1xf32>
    %823 = math.rsqrt %822 : vector<16x1xf32>
    %824 = vector.broadcast %823 : vector<16x1xf32> to vector<16x32xf32>
    %825 = arith.mulf %820, %824 : vector<16x32xf32>
    %826 = vector.broadcast %28 : vector<1x32xf32> to vector<16x32xf32>
    %827 = arith.mulf %825, %826 : vector<16x32xf32>
    %828 = vector.broadcast %27 : vector<1x32xf32> to vector<16x32xf32>
    %829 = arith.addf %827, %828 : vector<16x32xf32>
    %cst_334 = arith.constant dense<0.000000e+00> : vector<16x72xf32>
    %830 = tpu.matmul %829, %29, %cst_334 {dimension_numbers = #tpu.dot_dimension_numbers<[1], [0], [0], [1], [0, 0, 1, 1], [], []>} : vector<16x32xf32>, vector<32x72xf32>, vector<16x72xf32> -> vector<16x72xf32>
    %831 = vector.broadcast %24 : vector<1x72xf32> to vector<16x72xf32>
    %832 = arith.addf %830, %831 : vector<16x72xf32>
    %cst_335 = arith.constant 5.000000e-01 : f32
    %833 = vector.broadcast %cst_335 : f32 to vector<16x72xf32>
    %834 = arith.mulf %833, %832 : vector<16x72xf32>
    %cst_336 = arith.constant 0.707106769 : f32
    %835 = vector.broadcast %cst_336 : f32 to vector<16x72xf32>
    %836 = arith.mulf %832, %835 : vector<16x72xf32>
    %837 = math.absf %836 : vector<16x72xf32>
    %cst_337 = arith.constant 0.327591091 : f32
    %838 = vector.broadcast %cst_337 : f32 to vector<16x72xf32>
    %839 = arith.mulf %838, %837 : vector<16x72xf32>
    %cst_338 = arith.constant 1.000000e+00 : f32
    %840 = vector.broadcast %cst_338 : f32 to vector<16x72xf32>
    %841 = arith.addf %840, %839 : vector<16x72xf32>
    %cst_339 = arith.constant 1.000000e+00 : f32
    %842 = vector.broadcast %cst_339 : f32 to vector<16x72xf32>
    %843 = arith.divf %842, %841 : vector<16x72xf32>
    %cst_340 = arith.constant 1.06140542 : f32
    %844 = vector.broadcast %cst_340 : f32 to vector<16x72xf32>
    %845 = arith.mulf %844, %843 : vector<16x72xf32>
    %cst_341 = arith.constant -1.45315206 : f32
    %846 = vector.broadcast %cst_341 : f32 to vector<16x72xf32>
    %847 = arith.addf %845, %846 : vector<16x72xf32>
    %848 = arith.mulf %847, %843 : vector<16x72xf32>
    %cst_342 = arith.constant 1.42141378 : f32
    %849 = vector.broadcast %cst_342 : f32 to vector<16x72xf32>
    %850 = arith.addf %848, %849 : vector<16x72xf32>
    %851 = arith.mulf %850, %843 : vector<16x72xf32>
    %cst_343 = arith.constant -0.284496725 : f32
    %852 = vector.broadcast %cst_343 : f32 to vector<16x72xf32>
    %853 = arith.addf %851, %852 : vector<16x72xf32>
    %854 = arith.mulf %853, %843 : vector<16x72xf32>
    %cst_344 = arith.constant 0.254829586 : f32
    %855 = vector.broadcast %cst_344 : f32 to vector<16x72xf32>
    %856 = arith.addf %854, %855 : vector<16x72xf32>
    %857 = arith.mulf %856, %843 : vector<16x72xf32>
    %cst_345 = arith.constant 0.000000e+00 : f32
    %858 = vector.broadcast %cst_345 : f32 to vector<16x72xf32>
    %859 = arith.subf %858, %837 : vector<16x72xf32>
    %860 = arith.mulf %859, %837 : vector<16x72xf32>
    %861 = math.exp %860 : vector<16x72xf32>
    %862 = arith.mulf %857, %861 : vector<16x72xf32>
    %cst_346 = arith.constant 1.000000e+00 : f32
    %863 = vector.broadcast %cst_346 : f32 to vector<16x72xf32>
    %864 = arith.subf %863, %862 : vector<16x72xf32>
    %cst_347 = arith.constant 0.000000e+00 : f32
    %865 = vector.broadcast %cst_347 : f32 to vector<16x72xf32>
    %866 = arith.cmpf oge, %836, %865 : vector<16x72xf32>
    %cst_348 = arith.constant 0.000000e+00 : f32
    %867 = vector.broadcast %cst_348 : f32 to vector<16x72xf32>
    %868 = arith.subf %867, %864 : vector<16x72xf32>
    %869 = arith.select %866, %864, %868 : vector<16x72xi1>, vector<16x72xf32>
    %cst_349 = arith.constant 1.000000e+00 : f32
    %870 = vector.broadcast %cst_349 : f32 to vector<16x72xf32>
    %871 = arith.addf %870, %869 : vector<16x72xf32>
    %872 = arith.mulf %834, %871 : vector<16x72xf32>
    %cst_350 = arith.constant dense<0.000000e+00> : vector<16x32xf32>
    %873 = tpu.matmul %872, %30, %cst_350 {dimension_numbers = #tpu.dot_dimension_numbers<[1], [0], [0], [1], [0, 0, 1, 1], [], []>} : vector<16x72xf32>, vector<72x32xf32>, vector<16x32xf32> -> vector<16x32xf32>
    %874 = vector.broadcast %25 : vector<1x32xf32> to vector<16x32xf32>
    %875 = arith.addf %873, %874 : vector<16x32xf32>
    %876 = arith.addf %875, %740 : vector<16x32xf32>
    %cst_351 = arith.constant 0.000000e+00 : f32
    %877 = vector.broadcast %cst_351 : f32 to vector<16x48xf32>
    %c1_i32_352 = arith.constant 1 : i32
    %878 = tpu.dynamic_rotate %876 by %c1_i32_352 dim 0 : vector<16x32xf32>, i32 -> vector<16x32xf32>
    %879 = tpu.iota {dimensions = array<i32: 0>} : vector<16x32xi32>
    %c1_i32_353 = arith.constant 1 : i32
    %880 = vector.broadcast %c1_i32_353 : i32 to vector<16x32xi32>
    %881 = arith.cmpi sge, %879, %880 : vector<16x32xi32>
    %cst_354 = arith.constant 0.000000e+00 : f32
    %882 = vector.broadcast %cst_354 : f32 to vector<16x32xf32>
    %883 = arith.select %881, %878, %882 : vector<16x32xi1>, vector<16x32xf32>
    %884 = vector.extract_strided_slice %48 {offsets = [0, 0, 0], sizes = [1, 32, 48], strides = [1, 1, 1]} : vector<3x32x48xf32> to vector<1x32x48xf32>
    %885 = vector.shape_cast %884 : vector<1x32x48xf32> to vector<32x48xf32>
    %cst_355 = arith.constant dense<0.000000e+00> : vector<16x48xf32>
    %886 = tpu.matmul %883, %885, %cst_355 {dimension_numbers = #tpu.dot_dimension_numbers<[1], [0], [0], [1], [0, 0, 1, 1], [], []>} : vector<16x32xf32>, vector<32x48xf32>, vector<16x48xf32> -> vector<16x48xf32>
    %887 = arith.addf %877, %886 : vector<16x48xf32>
    %888 = vector.extract_strided_slice %48 {offsets = [1, 0, 0], sizes = [1, 32, 48], strides = [1, 1, 1]} : vector<3x32x48xf32> to vector<1x32x48xf32>
    %889 = vector.shape_cast %888 : vector<1x32x48xf32> to vector<32x48xf32>
    %cst_356 = arith.constant dense<0.000000e+00> : vector<16x48xf32>
    %890 = tpu.matmul %876, %889, %cst_356 {dimension_numbers = #tpu.dot_dimension_numbers<[1], [0], [0], [1], [0, 0, 1, 1], [], []>} : vector<16x32xf32>, vector<32x48xf32>, vector<16x48xf32> -> vector<16x48xf32>
    %891 = arith.addf %887, %890 : vector<16x48xf32>
    %c15_i32_357 = arith.constant 15 : i32
    %892 = tpu.dynamic_rotate %876 by %c15_i32_357 dim 0 : vector<16x32xf32>, i32 -> vector<16x32xf32>
    %893 = tpu.iota {dimensions = array<i32: 0>} : vector<16x32xi32>
    %c15_i32_358 = arith.constant 15 : i32
    %894 = vector.broadcast %c15_i32_358 : i32 to vector<16x32xi32>
    %895 = arith.cmpi slt, %893, %894 : vector<16x32xi32>
    %cst_359 = arith.constant 0.000000e+00 : f32
    %896 = vector.broadcast %cst_359 : f32 to vector<16x32xf32>
    %897 = arith.select %895, %892, %896 : vector<16x32xi1>, vector<16x32xf32>
    %898 = vector.extract_strided_slice %48 {offsets = [2, 0, 0], sizes = [1, 32, 48], strides = [1, 1, 1]} : vector<3x32x48xf32> to vector<1x32x48xf32>
    %899 = vector.shape_cast %898 : vector<1x32x48xf32> to vector<32x48xf32>
    %cst_360 = arith.constant dense<0.000000e+00> : vector<16x48xf32>
    %900 = tpu.matmul %897, %899, %cst_360 {dimension_numbers = #tpu.dot_dimension_numbers<[1], [0], [0], [1], [0, 0, 1, 1], [], []>} : vector<16x32xf32>, vector<32x48xf32>, vector<16x48xf32> -> vector<16x48xf32>
    %901 = arith.addf %891, %900 : vector<16x48xf32>
    %902 = vector.broadcast %49 : vector<1x48xf32> to vector<16x48xf32>
    %903 = arith.addf %901, %902 : vector<16x48xf32>
    %cst_361 = arith.constant 5.000000e-01 : f32
    %904 = vector.broadcast %cst_361 : f32 to vector<16x48xf32>
    %905 = arith.mulf %904, %903 : vector<16x48xf32>
    %cst_362 = arith.constant 0.707106769 : f32
    %906 = vector.broadcast %cst_362 : f32 to vector<16x48xf32>
    %907 = arith.mulf %903, %906 : vector<16x48xf32>
    %908 = math.absf %907 : vector<16x48xf32>
    %cst_363 = arith.constant 0.327591091 : f32
    %909 = vector.broadcast %cst_363 : f32 to vector<16x48xf32>
    %910 = arith.mulf %909, %908 : vector<16x48xf32>
    %cst_364 = arith.constant 1.000000e+00 : f32
    %911 = vector.broadcast %cst_364 : f32 to vector<16x48xf32>
    %912 = arith.addf %911, %910 : vector<16x48xf32>
    %cst_365 = arith.constant 1.000000e+00 : f32
    %913 = vector.broadcast %cst_365 : f32 to vector<16x48xf32>
    %914 = arith.divf %913, %912 : vector<16x48xf32>
    %cst_366 = arith.constant 1.06140542 : f32
    %915 = vector.broadcast %cst_366 : f32 to vector<16x48xf32>
    %916 = arith.mulf %915, %914 : vector<16x48xf32>
    %cst_367 = arith.constant -1.45315206 : f32
    %917 = vector.broadcast %cst_367 : f32 to vector<16x48xf32>
    %918 = arith.addf %916, %917 : vector<16x48xf32>
    %919 = arith.mulf %918, %914 : vector<16x48xf32>
    %cst_368 = arith.constant 1.42141378 : f32
    %920 = vector.broadcast %cst_368 : f32 to vector<16x48xf32>
    %921 = arith.addf %919, %920 : vector<16x48xf32>
    %922 = arith.mulf %921, %914 : vector<16x48xf32>
    %cst_369 = arith.constant -0.284496725 : f32
    %923 = vector.broadcast %cst_369 : f32 to vector<16x48xf32>
    %924 = arith.addf %922, %923 : vector<16x48xf32>
    %925 = arith.mulf %924, %914 : vector<16x48xf32>
    %cst_370 = arith.constant 0.254829586 : f32
    %926 = vector.broadcast %cst_370 : f32 to vector<16x48xf32>
    %927 = arith.addf %925, %926 : vector<16x48xf32>
    %928 = arith.mulf %927, %914 : vector<16x48xf32>
    %cst_371 = arith.constant 0.000000e+00 : f32
    %929 = vector.broadcast %cst_371 : f32 to vector<16x48xf32>
    %930 = arith.subf %929, %908 : vector<16x48xf32>
    %931 = arith.mulf %930, %908 : vector<16x48xf32>
    %932 = math.exp %931 : vector<16x48xf32>
    %933 = arith.mulf %928, %932 : vector<16x48xf32>
    %cst_372 = arith.constant 1.000000e+00 : f32
    %934 = vector.broadcast %cst_372 : f32 to vector<16x48xf32>
    %935 = arith.subf %934, %933 : vector<16x48xf32>
    %cst_373 = arith.constant 0.000000e+00 : f32
    %936 = vector.broadcast %cst_373 : f32 to vector<16x48xf32>
    %937 = arith.cmpf oge, %907, %936 : vector<16x48xf32>
    %cst_374 = arith.constant 0.000000e+00 : f32
    %938 = vector.broadcast %cst_374 : f32 to vector<16x48xf32>
    %939 = arith.subf %938, %935 : vector<16x48xf32>
    %940 = arith.select %937, %935, %939 : vector<16x48xi1>, vector<16x48xf32>
    %cst_375 = arith.constant 1.000000e+00 : f32
    %941 = vector.broadcast %cst_375 : f32 to vector<16x48xf32>
    %942 = arith.addf %941, %940 : vector<16x48xf32>
    %943 = arith.mulf %905, %942 : vector<16x48xf32>
    %cst_376 = arith.constant 0.000000e+00 : f32
    %944 = vector.broadcast %cst_376 : f32 to vector<16x48xf32>
    %c3_i32_377 = arith.constant 3 : i32
    %945 = tpu.dynamic_rotate %943 by %c3_i32_377 dim 0 : vector<16x48xf32>, i32 -> vector<16x48xf32>
    %946 = tpu.iota {dimensions = array<i32: 0>} : vector<16x48xi32>
    %c3_i32_378 = arith.constant 3 : i32
    %947 = vector.broadcast %c3_i32_378 : i32 to vector<16x48xi32>
    %948 = arith.cmpi sge, %946, %947 : vector<16x48xi32>
    %cst_379 = arith.constant 0.000000e+00 : f32
    %949 = vector.broadcast %cst_379 : f32 to vector<16x48xf32>
    %950 = arith.select %948, %945, %949 : vector<16x48xi1>, vector<16x48xf32>
    %951 = vector.extract_strided_slice %39 {offsets = [0, 0], sizes = [1, 48], strides = [1, 1]} : vector<7x48xf32> to vector<1x48xf32>
    %952 = vector.broadcast %951 : vector<1x48xf32> to vector<16x48xf32>
    %953 = arith.mulf %950, %952 : vector<16x48xf32>
    %954 = arith.addf %944, %953 : vector<16x48xf32>
    %c2_i32_380 = arith.constant 2 : i32
    %955 = tpu.dynamic_rotate %943 by %c2_i32_380 dim 0 : vector<16x48xf32>, i32 -> vector<16x48xf32>
    %956 = tpu.iota {dimensions = array<i32: 0>} : vector<16x48xi32>
    %c2_i32_381 = arith.constant 2 : i32
    %957 = vector.broadcast %c2_i32_381 : i32 to vector<16x48xi32>
    %958 = arith.cmpi sge, %956, %957 : vector<16x48xi32>
    %cst_382 = arith.constant 0.000000e+00 : f32
    %959 = vector.broadcast %cst_382 : f32 to vector<16x48xf32>
    %960 = arith.select %958, %955, %959 : vector<16x48xi1>, vector<16x48xf32>
    %961 = vector.extract_strided_slice %39 {offsets = [1, 0], sizes = [1, 48], strides = [1, 1]} : vector<7x48xf32> to vector<1x48xf32>
    %962 = vector.broadcast %961 : vector<1x48xf32> to vector<16x48xf32>
    %963 = arith.mulf %960, %962 : vector<16x48xf32>
    %964 = arith.addf %954, %963 : vector<16x48xf32>
    %c1_i32_383 = arith.constant 1 : i32
    %965 = tpu.dynamic_rotate %943 by %c1_i32_383 dim 0 : vector<16x48xf32>, i32 -> vector<16x48xf32>
    %966 = tpu.iota {dimensions = array<i32: 0>} : vector<16x48xi32>
    %c1_i32_384 = arith.constant 1 : i32
    %967 = vector.broadcast %c1_i32_384 : i32 to vector<16x48xi32>
    %968 = arith.cmpi sge, %966, %967 : vector<16x48xi32>
    %cst_385 = arith.constant 0.000000e+00 : f32
    %969 = vector.broadcast %cst_385 : f32 to vector<16x48xf32>
    %970 = arith.select %968, %965, %969 : vector<16x48xi1>, vector<16x48xf32>
    %971 = vector.extract_strided_slice %39 {offsets = [2, 0], sizes = [1, 48], strides = [1, 1]} : vector<7x48xf32> to vector<1x48xf32>
    %972 = vector.broadcast %971 : vector<1x48xf32> to vector<16x48xf32>
    %973 = arith.mulf %970, %972 : vector<16x48xf32>
    %974 = arith.addf %964, %973 : vector<16x48xf32>
    %975 = vector.extract_strided_slice %39 {offsets = [3, 0], sizes = [1, 48], strides = [1, 1]} : vector<7x48xf32> to vector<1x48xf32>
    %976 = vector.broadcast %975 : vector<1x48xf32> to vector<16x48xf32>
    %977 = arith.mulf %943, %976 : vector<16x48xf32>
    %978 = arith.addf %974, %977 : vector<16x48xf32>
    %c15_i32_386 = arith.constant 15 : i32
    %979 = tpu.dynamic_rotate %943 by %c15_i32_386 dim 0 : vector<16x48xf32>, i32 -> vector<16x48xf32>
    %980 = tpu.iota {dimensions = array<i32: 0>} : vector<16x48xi32>
    %c15_i32_387 = arith.constant 15 : i32
    %981 = vector.broadcast %c15_i32_387 : i32 to vector<16x48xi32>
    %982 = arith.cmpi slt, %980, %981 : vector<16x48xi32>
    %cst_388 = arith.constant 0.000000e+00 : f32
    %983 = vector.broadcast %cst_388 : f32 to vector<16x48xf32>
    %984 = arith.select %982, %979, %983 : vector<16x48xi1>, vector<16x48xf32>
    %985 = vector.extract_strided_slice %39 {offsets = [4, 0], sizes = [1, 48], strides = [1, 1]} : vector<7x48xf32> to vector<1x48xf32>
    %986 = vector.broadcast %985 : vector<1x48xf32> to vector<16x48xf32>
    %987 = arith.mulf %984, %986 : vector<16x48xf32>
    %988 = arith.addf %978, %987 : vector<16x48xf32>
    %c14_i32_389 = arith.constant 14 : i32
    %989 = tpu.dynamic_rotate %943 by %c14_i32_389 dim 0 : vector<16x48xf32>, i32 -> vector<16x48xf32>
    %990 = tpu.iota {dimensions = array<i32: 0>} : vector<16x48xi32>
    %c14_i32_390 = arith.constant 14 : i32
    %991 = vector.broadcast %c14_i32_390 : i32 to vector<16x48xi32>
    %992 = arith.cmpi slt, %990, %991 : vector<16x48xi32>
    %cst_391 = arith.constant 0.000000e+00 : f32
    %993 = vector.broadcast %cst_391 : f32 to vector<16x48xf32>
    %994 = arith.select %992, %989, %993 : vector<16x48xi1>, vector<16x48xf32>
    %995 = vector.extract_strided_slice %39 {offsets = [5, 0], sizes = [1, 48], strides = [1, 1]} : vector<7x48xf32> to vector<1x48xf32>
    %996 = vector.broadcast %995 : vector<1x48xf32> to vector<16x48xf32>
    %997 = arith.mulf %994, %996 : vector<16x48xf32>
    %998 = arith.addf %988, %997 : vector<16x48xf32>
    %c13_i32_392 = arith.constant 13 : i32
    %999 = tpu.dynamic_rotate %943 by %c13_i32_392 dim 0 : vector<16x48xf32>, i32 -> vector<16x48xf32>
    %1000 = tpu.iota {dimensions = array<i32: 0>} : vector<16x48xi32>
    %c13_i32_393 = arith.constant 13 : i32
    %1001 = vector.broadcast %c13_i32_393 : i32 to vector<16x48xi32>
    %1002 = arith.cmpi slt, %1000, %1001 : vector<16x48xi32>
    %cst_394 = arith.constant 0.000000e+00 : f32
    %1003 = vector.broadcast %cst_394 : f32 to vector<16x48xf32>
    %1004 = arith.select %1002, %999, %1003 : vector<16x48xi1>, vector<16x48xf32>
    %1005 = vector.extract_strided_slice %39 {offsets = [6, 0], sizes = [1, 48], strides = [1, 1]} : vector<7x48xf32> to vector<1x48xf32>
    %1006 = vector.broadcast %1005 : vector<1x48xf32> to vector<16x48xf32>
    %1007 = arith.mulf %1004, %1006 : vector<16x48xf32>
    %1008 = arith.addf %998, %1007 : vector<16x48xf32>
    %1009 = vector.broadcast %34 : vector<1x48xf32> to vector<16x48xf32>
    %1010 = arith.addf %1008, %1009 : vector<16x48xf32>
    %cst_395 = arith.constant dense<0.000000e+00> : vector<16xf32>
    %1011 = vector.multi_reduction <add>, %1010, %cst_395 [1] : vector<16x48xf32> to vector<16xf32>
    %1012 = vector.shape_cast %1011 : vector<16xf32> to vector<16x1xf32>
    %cst_396 = arith.constant 4.800000e+01 : f32
    %1013 = vector.broadcast %cst_396 : f32 to vector<16x1xf32>
    %1014 = arith.divf %1012, %1013 : vector<16x1xf32>
    %1015 = vector.broadcast %1014 : vector<16x1xf32> to vector<16x48xf32>
    %1016 = arith.subf %1010, %1015 : vector<16x48xf32>
    %1017 = arith.mulf %1016, %1016 : vector<16x48xf32>
    %cst_397 = arith.constant dense<0.000000e+00> : vector<16xf32>
    %1018 = vector.multi_reduction <add>, %1017, %cst_397 [1] : vector<16x48xf32> to vector<16xf32>
    %1019 = vector.shape_cast %1018 : vector<16xf32> to vector<16x1xf32>
    %cst_398 = arith.constant 4.800000e+01 : f32
    %1020 = vector.broadcast %cst_398 : f32 to vector<16x1xf32>
    %1021 = arith.divf %1019, %1020 : vector<16x1xf32>
    %1022 = vector.broadcast %1014 : vector<16x1xf32> to vector<16x48xf32>
    %1023 = arith.subf %1010, %1022 : vector<16x48xf32>
    %cst_399 = arith.constant 9.99999974E-6 : f32
    %1024 = vector.broadcast %cst_399 : f32 to vector<16x1xf32>
    %1025 = arith.addf %1021, %1024 : vector<16x1xf32>
    %1026 = math.rsqrt %1025 : vector<16x1xf32>
    %1027 = vector.broadcast %1026 : vector<16x1xf32> to vector<16x48xf32>
    %1028 = arith.mulf %1023, %1027 : vector<16x48xf32>
    %1029 = vector.broadcast %36 : vector<1x48xf32> to vector<16x48xf32>
    %1030 = arith.mulf %1028, %1029 : vector<16x48xf32>
    %1031 = vector.broadcast %35 : vector<1x48xf32> to vector<16x48xf32>
    %1032 = arith.addf %1030, %1031 : vector<16x48xf32>
    %cst_400 = arith.constant dense<0.000000e+00> : vector<16x96xf32>
    %1033 = tpu.matmul %1032, %37, %cst_400 {dimension_numbers = #tpu.dot_dimension_numbers<[1], [0], [0], [1], [0, 0, 1, 1], [], []>} : vector<16x48xf32>, vector<48x96xf32>, vector<16x96xf32> -> vector<16x96xf32>
    %1034 = vector.broadcast %32 : vector<1x96xf32> to vector<16x96xf32>
    %1035 = arith.addf %1033, %1034 : vector<16x96xf32>
    %cst_401 = arith.constant 5.000000e-01 : f32
    %1036 = vector.broadcast %cst_401 : f32 to vector<16x96xf32>
    %1037 = arith.mulf %1036, %1035 : vector<16x96xf32>
    %cst_402 = arith.constant 0.707106769 : f32
    %1038 = vector.broadcast %cst_402 : f32 to vector<16x96xf32>
    %1039 = arith.mulf %1035, %1038 : vector<16x96xf32>
    %1040 = math.absf %1039 : vector<16x96xf32>
    %cst_403 = arith.constant 0.327591091 : f32
    %1041 = vector.broadcast %cst_403 : f32 to vector<16x96xf32>
    %1042 = arith.mulf %1041, %1040 : vector<16x96xf32>
    %cst_404 = arith.constant 1.000000e+00 : f32
    %1043 = vector.broadcast %cst_404 : f32 to vector<16x96xf32>
    %1044 = arith.addf %1043, %1042 : vector<16x96xf32>
    %cst_405 = arith.constant 1.000000e+00 : f32
    %1045 = vector.broadcast %cst_405 : f32 to vector<16x96xf32>
    %1046 = arith.divf %1045, %1044 : vector<16x96xf32>
    %cst_406 = arith.constant 1.06140542 : f32
    %1047 = vector.broadcast %cst_406 : f32 to vector<16x96xf32>
    %1048 = arith.mulf %1047, %1046 : vector<16x96xf32>
    %cst_407 = arith.constant -1.45315206 : f32
    %1049 = vector.broadcast %cst_407 : f32 to vector<16x96xf32>
    %1050 = arith.addf %1048, %1049 : vector<16x96xf32>
    %1051 = arith.mulf %1050, %1046 : vector<16x96xf32>
    %cst_408 = arith.constant 1.42141378 : f32
    %1052 = vector.broadcast %cst_408 : f32 to vector<16x96xf32>
    %1053 = arith.addf %1051, %1052 : vector<16x96xf32>
    %1054 = arith.mulf %1053, %1046 : vector<16x96xf32>
    %cst_409 = arith.constant -0.284496725 : f32
    %1055 = vector.broadcast %cst_409 : f32 to vector<16x96xf32>
    %1056 = arith.addf %1054, %1055 : vector<16x96xf32>
    %1057 = arith.mulf %1056, %1046 : vector<16x96xf32>
    %cst_410 = arith.constant 0.254829586 : f32
    %1058 = vector.broadcast %cst_410 : f32 to vector<16x96xf32>
    %1059 = arith.addf %1057, %1058 : vector<16x96xf32>
    %1060 = arith.mulf %1059, %1046 : vector<16x96xf32>
    %cst_411 = arith.constant 0.000000e+00 : f32
    %1061 = vector.broadcast %cst_411 : f32 to vector<16x96xf32>
    %1062 = arith.subf %1061, %1040 : vector<16x96xf32>
    %1063 = arith.mulf %1062, %1040 : vector<16x96xf32>
    %1064 = math.exp %1063 : vector<16x96xf32>
    %1065 = arith.mulf %1060, %1064 : vector<16x96xf32>
    %cst_412 = arith.constant 1.000000e+00 : f32
    %1066 = vector.broadcast %cst_412 : f32 to vector<16x96xf32>
    %1067 = arith.subf %1066, %1065 : vector<16x96xf32>
    %cst_413 = arith.constant 0.000000e+00 : f32
    %1068 = vector.broadcast %cst_413 : f32 to vector<16x96xf32>
    %1069 = arith.cmpf oge, %1039, %1068 : vector<16x96xf32>
    %cst_414 = arith.constant 0.000000e+00 : f32
    %1070 = vector.broadcast %cst_414 : f32 to vector<16x96xf32>
    %1071 = arith.subf %1070, %1067 : vector<16x96xf32>
    %1072 = arith.select %1069, %1067, %1071 : vector<16x96xi1>, vector<16x96xf32>
    %cst_415 = arith.constant 1.000000e+00 : f32
    %1073 = vector.broadcast %cst_415 : f32 to vector<16x96xf32>
    %1074 = arith.addf %1073, %1072 : vector<16x96xf32>
    %1075 = arith.mulf %1037, %1074 : vector<16x96xf32>
    %cst_416 = arith.constant dense<0.000000e+00> : vector<16x48xf32>
    %1076 = tpu.matmul %1075, %38, %cst_416 {dimension_numbers = #tpu.dot_dimension_numbers<[1], [0], [0], [1], [0, 0, 1, 1], [], []>} : vector<16x96xf32>, vector<96x48xf32>, vector<16x48xf32> -> vector<16x48xf32>
    %1077 = vector.broadcast %33 : vector<1x48xf32> to vector<16x48xf32>
    %1078 = arith.addf %1076, %1077 : vector<16x48xf32>
    %1079 = arith.addf %1078, %943 : vector<16x48xf32>
    %cst_417 = arith.constant 0.000000e+00 : f32
    %1080 = vector.broadcast %cst_417 : f32 to vector<16x1xf32>
    %c1_i32_418 = arith.constant 1 : i32
    %1081 = tpu.dynamic_rotate %1079 by %c1_i32_418 dim 0 : vector<16x48xf32>, i32 -> vector<16x48xf32>
    %1082 = tpu.iota {dimensions = array<i32: 0>} : vector<16x48xi32>
    %c1_i32_419 = arith.constant 1 : i32
    %1083 = vector.broadcast %c1_i32_419 : i32 to vector<16x48xi32>
    %1084 = arith.cmpi sge, %1082, %1083 : vector<16x48xi32>
    %cst_420 = arith.constant 0.000000e+00 : f32
    %1085 = vector.broadcast %cst_420 : f32 to vector<16x48xf32>
    %1086 = arith.select %1084, %1081, %1085 : vector<16x48xi1>, vector<16x48xf32>
    %1087 = vector.extract_strided_slice %50 {offsets = [0, 0, 0], sizes = [1, 48, 1], strides = [1, 1, 1]} : vector<3x48x1xf32> to vector<1x48x1xf32>
    %1088 = vector.shape_cast %1087 : vector<1x48x1xf32> to vector<48x1xf32>
    %cst_421 = arith.constant dense<0.000000e+00> : vector<16x1xf32>
    %1089 = tpu.matmul %1086, %1088, %cst_421 {dimension_numbers = #tpu.dot_dimension_numbers<[1], [0], [0], [1], [0, 0, 1, 1], [], []>} : vector<16x48xf32>, vector<48x1xf32>, vector<16x1xf32> -> vector<16x1xf32>
    %1090 = arith.addf %1080, %1089 : vector<16x1xf32>
    %1091 = vector.extract_strided_slice %50 {offsets = [1, 0, 0], sizes = [1, 48, 1], strides = [1, 1, 1]} : vector<3x48x1xf32> to vector<1x48x1xf32>
    %1092 = vector.shape_cast %1091 : vector<1x48x1xf32> to vector<48x1xf32>
    %cst_422 = arith.constant dense<0.000000e+00> : vector<16x1xf32>
    %1093 = tpu.matmul %1079, %1092, %cst_422 {dimension_numbers = #tpu.dot_dimension_numbers<[1], [0], [0], [1], [0, 0, 1, 1], [], []>} : vector<16x48xf32>, vector<48x1xf32>, vector<16x1xf32> -> vector<16x1xf32>
    %1094 = arith.addf %1090, %1093 : vector<16x1xf32>
    %c15_i32_423 = arith.constant 15 : i32
    %1095 = tpu.dynamic_rotate %1079 by %c15_i32_423 dim 0 : vector<16x48xf32>, i32 -> vector<16x48xf32>
    %1096 = tpu.iota {dimensions = array<i32: 0>} : vector<16x48xi32>
    %c15_i32_424 = arith.constant 15 : i32
    %1097 = vector.broadcast %c15_i32_424 : i32 to vector<16x48xi32>
    %1098 = arith.cmpi slt, %1096, %1097 : vector<16x48xi32>
    %cst_425 = arith.constant 0.000000e+00 : f32
    %1099 = vector.broadcast %cst_425 : f32 to vector<16x48xf32>
    %1100 = arith.select %1098, %1095, %1099 : vector<16x48xi1>, vector<16x48xf32>
    %1101 = vector.extract_strided_slice %50 {offsets = [2, 0, 0], sizes = [1, 48, 1], strides = [1, 1, 1]} : vector<3x48x1xf32> to vector<1x48x1xf32>
    %1102 = vector.shape_cast %1101 : vector<1x48x1xf32> to vector<48x1xf32>
    %cst_426 = arith.constant dense<0.000000e+00> : vector<16x1xf32>
    %1103 = tpu.matmul %1100, %1102, %cst_426 {dimension_numbers = #tpu.dot_dimension_numbers<[1], [0], [0], [1], [0, 0, 1, 1], [], []>} : vector<16x48xf32>, vector<48x1xf32>, vector<16x1xf32> -> vector<16x1xf32>
    %1104 = arith.addf %1094, %1103 : vector<16x1xf32>
    %1105 = vector.broadcast %51 : vector<1x1xf32> to vector<16x1xf32>
    %1106 = arith.addf %1104, %1105 : vector<16x1xf32>
    %cst_427 = arith.constant 5.000000e-01 : f32
    %1107 = vector.broadcast %cst_427 : f32 to vector<16x1xf32>
    %1108 = arith.mulf %1107, %1106 : vector<16x1xf32>
    %cst_428 = arith.constant 0.707106769 : f32
    %1109 = vector.broadcast %cst_428 : f32 to vector<16x1xf32>
    %1110 = arith.mulf %1106, %1109 : vector<16x1xf32>
    %1111 = math.absf %1110 : vector<16x1xf32>
    %cst_429 = arith.constant 0.327591091 : f32
    %1112 = vector.broadcast %cst_429 : f32 to vector<16x1xf32>
    %1113 = arith.mulf %1112, %1111 : vector<16x1xf32>
    %cst_430 = arith.constant 1.000000e+00 : f32
    %1114 = vector.broadcast %cst_430 : f32 to vector<16x1xf32>
    %1115 = arith.addf %1114, %1113 : vector<16x1xf32>
    %cst_431 = arith.constant 1.000000e+00 : f32
    %1116 = vector.broadcast %cst_431 : f32 to vector<16x1xf32>
    %1117 = arith.divf %1116, %1115 : vector<16x1xf32>
    %cst_432 = arith.constant 1.06140542 : f32
    %1118 = vector.broadcast %cst_432 : f32 to vector<16x1xf32>
    %1119 = arith.mulf %1118, %1117 : vector<16x1xf32>
    %cst_433 = arith.constant -1.45315206 : f32
    %1120 = vector.broadcast %cst_433 : f32 to vector<16x1xf32>
    %1121 = arith.addf %1119, %1120 : vector<16x1xf32>
    %1122 = arith.mulf %1121, %1117 : vector<16x1xf32>
    %cst_434 = arith.constant 1.42141378 : f32
    %1123 = vector.broadcast %cst_434 : f32 to vector<16x1xf32>
    %1124 = arith.addf %1122, %1123 : vector<16x1xf32>
    %1125 = arith.mulf %1124, %1117 : vector<16x1xf32>
    %cst_435 = arith.constant -0.284496725 : f32
    %1126 = vector.broadcast %cst_435 : f32 to vector<16x1xf32>
    %1127 = arith.addf %1125, %1126 : vector<16x1xf32>
    %1128 = arith.mulf %1127, %1117 : vector<16x1xf32>
    %cst_436 = arith.constant 0.254829586 : f32
    %1129 = vector.broadcast %cst_436 : f32 to vector<16x1xf32>
    %1130 = arith.addf %1128, %1129 : vector<16x1xf32>
    %1131 = arith.mulf %1130, %1117 : vector<16x1xf32>
    %cst_437 = arith.constant 0.000000e+00 : f32
    %1132 = vector.broadcast %cst_437 : f32 to vector<16x1xf32>
    %1133 = arith.subf %1132, %1111 : vector<16x1xf32>
    %1134 = arith.mulf %1133, %1111 : vector<16x1xf32>
    %1135 = math.exp %1134 : vector<16x1xf32>
    %1136 = arith.mulf %1131, %1135 : vector<16x1xf32>
    %cst_438 = arith.constant 1.000000e+00 : f32
    %1137 = vector.broadcast %cst_438 : f32 to vector<16x1xf32>
    %1138 = arith.subf %1137, %1136 : vector<16x1xf32>
    %cst_439 = arith.constant 0.000000e+00 : f32
    %1139 = vector.broadcast %cst_439 : f32 to vector<16x1xf32>
    %1140 = arith.cmpf oge, %1110, %1139 : vector<16x1xf32>
    %cst_440 = arith.constant 0.000000e+00 : f32
    %1141 = vector.broadcast %cst_440 : f32 to vector<16x1xf32>
    %1142 = arith.subf %1141, %1138 : vector<16x1xf32>
    %1143 = arith.select %1140, %1138, %1142 : vector<16x1xi1>, vector<16x1xf32>
    %cst_441 = arith.constant 1.000000e+00 : f32
    %1144 = vector.broadcast %cst_441 : f32 to vector<16x1xf32>
    %1145 = arith.addf %1144, %1143 : vector<16x1xf32>
    %1146 = arith.mulf %1108, %1145 : vector<16x1xf32>
    %cst_442 = arith.constant dense<0.000000e+00> : vector<1xf32>
    %1147 = vector.multi_reduction <add>, %1146, %cst_442 [0] : vector<16x1xf32> to vector<1xf32>
    %1148 = vector.shape_cast %1147 : vector<1xf32> to vector<1x1xf32>
    %cst_443 = arith.constant 1.600000e+01 : f32
    %1149 = vector.broadcast %cst_443 : f32 to vector<1x1xf32>
    %1150 = arith.divf %1148, %1149 : vector<1x1xf32>
    %1151 = vector.shape_cast %1150 : vector<1x1xf32> to vector<1x1xf32>
    %1152 = vector.broadcast %1151 : vector<1x1xf32> to vector<8x128xf32>
    %c0_444 = arith.constant 0 : index
    %c0_445 = arith.constant 0 : index
    %c0_446 = arith.constant 0 : index
    %1153 = vector.load %arg54[%c0_444, %c0_445, %c0_446] : memref<1x8x128xf32, #tpu.memory_space<vmem>>, vector<1x8x128xf32>
    %1154 = vector.shape_cast %1153 : vector<1x8x128xf32> to vector<8x128xf32>
    %1155 = vector.shape_cast %1152 : vector<8x128xf32> to vector<1x8x128xf32>
    tpu.vector_store %arg54[%c0_444, %c0_445, %c0_446], %1155 {strides = array<i32>} : memref<1x8x128xf32, #tpu.memory_space<vmem>>, vector<1x8x128xf32>,
    return
  }
  func.func @transform_0(%arg0: i32) -> (i32, i32, i32) {
    %c0_i32 = arith.constant 0 : i32
    %c0_i32_0 = arith.constant 0 : i32
    %c0_i32_1 = arith.constant 0 : i32
    return %arg0, %c0_i32, %c0_i32_0 : i32, i32, i32
  }
  func.func @transform_1(%arg0: i32) -> (i32, i32) {
    %c0_i32 = arith.constant 0 : i32
    %c0_i32_0 = arith.constant 0 : i32
    %c0_i32_1 = arith.constant 0 : i32
    return %c0_i32, %c0_i32_0 : i32, i32
  }
  func.func @transform_2(%arg0: i32) -> (i32, i32) {
    %c0_i32 = arith.constant 0 : i32
    %c0_i32_0 = arith.constant 0 : i32
    %c0_i32_1 = arith.constant 0 : i32
    return %c0_i32, %c0_i32_0 : i32, i32
  }
  func.func @transform_3(%arg0: i32) -> (i32, i32) {
    %c0_i32 = arith.constant 0 : i32
    %c0_i32_0 = arith.constant 0 : i32
    %c0_i32_1 = arith.constant 0 : i32
    return %c0_i32, %c0_i32_0 : i32, i32
  }
  func.func @transform_4(%arg0: i32) -> (i32, i32) {
    %c0_i32 = arith.constant 0 : i32
    %c0_i32_0 = arith.constant 0 : i32
    %c0_i32_1 = arith.constant 0 : i32
    return %c0_i32, %c0_i32_0 : i32, i32
  }
  func.func @transform_5(%arg0: i32) -> (i32, i32) {
    %c0_i32 = arith.constant 0 : i32
    %c0_i32_0 = arith.constant 0 : i32
    %c0_i32_1 = arith.constant 0 : i32
    return %c0_i32, %c0_i32_0 : i32, i32
  }
  func.func @transform_6(%arg0: i32) -> (i32, i32) {
    %c0_i32 = arith.constant 0 : i32
    %c0_i32_0 = arith.constant 0 : i32
    %c0_i32_1 = arith.constant 0 : i32
    return %c0_i32, %c0_i32_0 : i32, i32
  }
  func.func @transform_7(%arg0: i32) -> (i32, i32) {
    %c0_i32 = arith.constant 0 : i32
    %c0_i32_0 = arith.constant 0 : i32
    %c0_i32_1 = arith.constant 0 : i32
    return %c0_i32, %c0_i32_0 : i32, i32
  }
  func.func @transform_8(%arg0: i32) -> (i32, i32) {
    %c0_i32 = arith.constant 0 : i32
    %c0_i32_0 = arith.constant 0 : i32
    %c0_i32_1 = arith.constant 0 : i32
    return %c0_i32, %c0_i32_0 : i32, i32
  }
  func.func @transform_9(%arg0: i32) -> (i32, i32) {
    %c0_i32 = arith.constant 0 : i32
    %c0_i32_0 = arith.constant 0 : i32
    %c0_i32_1 = arith.constant 0 : i32
    return %c0_i32, %c0_i32_0 : i32, i32
  }
  func.func @transform_10(%arg0: i32) -> (i32, i32) {
    %c0_i32 = arith.constant 0 : i32
    %c0_i32_0 = arith.constant 0 : i32
    %c0_i32_1 = arith.constant 0 : i32
    return %c0_i32, %c0_i32_0 : i32, i32
  }
  func.func @transform_11(%arg0: i32) -> (i32, i32) {
    %c0_i32 = arith.constant 0 : i32
    %c0_i32_0 = arith.constant 0 : i32
    %c0_i32_1 = arith.constant 0 : i32
    return %c0_i32, %c0_i32_0 : i32, i32
  }
  func.func @transform_12(%arg0: i32) -> (i32, i32) {
    %c0_i32 = arith.constant 0 : i32
    %c0_i32_0 = arith.constant 0 : i32
    %c0_i32_1 = arith.constant 0 : i32
    return %c0_i32, %c0_i32_0 : i32, i32
  }
  func.func @transform_13(%arg0: i32) -> (i32, i32) {
    %c0_i32 = arith.constant 0 : i32
    %c0_i32_0 = arith.constant 0 : i32
    %c0_i32_1 = arith.constant 0 : i32
    return %c0_i32, %c0_i32_0 : i32, i32
  }
  func.func @transform_14(%arg0: i32) -> (i32, i32) {
    %c0_i32 = arith.constant 0 : i32
    %c0_i32_0 = arith.constant 0 : i32
    %c0_i32_1 = arith.constant 0 : i32
    return %c0_i32, %c0_i32_0 : i32, i32
  }
  func.func @transform_15(%arg0: i32) -> (i32, i32) {
    %c0_i32 = arith.constant 0 : i32
    %c0_i32_0 = arith.constant 0 : i32
    %c0_i32_1 = arith.constant 0 : i32
    return %c0_i32, %c0_i32_0 : i32, i32
  }
  func.func @transform_16(%arg0: i32) -> (i32, i32) {
    %c0_i32 = arith.constant 0 : i32
    %c0_i32_0 = arith.constant 0 : i32
    %c0_i32_1 = arith.constant 0 : i32
    return %c0_i32, %c0_i32_0 : i32, i32
  }
  func.func @transform_17(%arg0: i32) -> (i32, i32) {
    %c0_i32 = arith.constant 0 : i32
    %c0_i32_0 = arith.constant 0 : i32
    %c0_i32_1 = arith.constant 0 : i32
    return %c0_i32, %c0_i32_0 : i32, i32
  }
  func.func @transform_18(%arg0: i32) -> (i32, i32) {
    %c0_i32 = arith.constant 0 : i32
    %c0_i32_0 = arith.constant 0 : i32
    %c0_i32_1 = arith.constant 0 : i32
    return %c0_i32, %c0_i32_0 : i32, i32
  }
  func.func @transform_19(%arg0: i32) -> (i32, i32) {
    %c0_i32 = arith.constant 0 : i32
    %c0_i32_0 = arith.constant 0 : i32
    %c0_i32_1 = arith.constant 0 : i32
    return %c0_i32, %c0_i32_0 : i32, i32
  }
  func.func @transform_20(%arg0: i32) -> (i32, i32) {
    %c0_i32 = arith.constant 0 : i32
    %c0_i32_0 = arith.constant 0 : i32
    %c0_i32_1 = arith.constant 0 : i32
    return %c0_i32, %c0_i32_0 : i32, i32
  }
  func.func @transform_21(%arg0: i32) -> (i32, i32) {
    %c0_i32 = arith.constant 0 : i32
    %c0_i32_0 = arith.constant 0 : i32
    %c0_i32_1 = arith.constant 0 : i32
    return %c0_i32, %c0_i32_0 : i32, i32
  }
  func.func @transform_22(%arg0: i32) -> (i32, i32) {
    %c0_i32 = arith.constant 0 : i32
    %c0_i32_0 = arith.constant 0 : i32
    %c0_i32_1 = arith.constant 0 : i32
    return %c0_i32, %c0_i32_0 : i32, i32
  }
  func.func @transform_23(%arg0: i32) -> (i32, i32) {
    %c0_i32 = arith.constant 0 : i32
    %c0_i32_0 = arith.constant 0 : i32
    %c0_i32_1 = arith.constant 0 : i32
    return %c0_i32, %c0_i32_0 : i32, i32
  }
  func.func @transform_24(%arg0: i32) -> (i32, i32) {
    %c0_i32 = arith.constant 0 : i32
    %c0_i32_0 = arith.constant 0 : i32
    %c0_i32_1 = arith.constant 0 : i32
    return %c0_i32, %c0_i32_0 : i32, i32
  }
  func.func @transform_25(%arg0: i32) -> (i32, i32) {
    %c0_i32 = arith.constant 0 : i32
    %c0_i32_0 = arith.constant 0 : i32
    %c0_i32_1 = arith.constant 0 : i32
    return %c0_i32, %c0_i32_0 : i32, i32
  }
  func.func @transform_26(%arg0: i32) -> (i32, i32) {
    %c0_i32 = arith.constant 0 : i32
    %c0_i32_0 = arith.constant 0 : i32
    %c0_i32_1 = arith.constant 0 : i32
    return %c0_i32, %c0_i32_0 : i32, i32
  }
  func.func @transform_27(%arg0: i32) -> (i32, i32) {
    %c0_i32 = arith.constant 0 : i32
    %c0_i32_0 = arith.constant 0 : i32
    %c0_i32_1 = arith.constant 0 : i32
    return %c0_i32, %c0_i32_0 : i32, i32
  }
  func.func @transform_28(%arg0: i32) -> (i32, i32) {
    %c0_i32 = arith.constant 0 : i32
    %c0_i32_0 = arith.constant 0 : i32
    %c0_i32_1 = arith.constant 0 : i32
    return %c0_i32, %c0_i32_0 : i32, i32
  }
  func.func @transform_29(%arg0: i32) -> (i32, i32) {
    %c0_i32 = arith.constant 0 : i32
    %c0_i32_0 = arith.constant 0 : i32
    %c0_i32_1 = arith.constant 0 : i32
    return %c0_i32, %c0_i32_0 : i32, i32
  }
  func.func @transform_30(%arg0: i32) -> (i32, i32) {
    %c0_i32 = arith.constant 0 : i32
    %c0_i32_0 = arith.constant 0 : i32
    %c0_i32_1 = arith.constant 0 : i32
    return %c0_i32, %c0_i32_0 : i32, i32
  }
  func.func @transform_31(%arg0: i32) -> (i32, i32) {
    %c0_i32 = arith.constant 0 : i32
    %c0_i32_0 = arith.constant 0 : i32
    %c0_i32_1 = arith.constant 0 : i32
    return %c0_i32, %c0_i32_0 : i32, i32
  }
  func.func @transform_32(%arg0: i32) -> (i32, i32) {
    %c0_i32 = arith.constant 0 : i32
    %c0_i32_0 = arith.constant 0 : i32
    %c0_i32_1 = arith.constant 0 : i32
    return %c0_i32, %c0_i32_0 : i32, i32
  }
  func.func @transform_33(%arg0: i32) -> (i32, i32) {
    %c0_i32 = arith.constant 0 : i32
    %c0_i32_0 = arith.constant 0 : i32
    %c0_i32_1 = arith.constant 0 : i32
    return %c0_i32, %c0_i32_0 : i32, i32
  }
  func.func @transform_34(%arg0: i32) -> (i32, i32) {
    %c0_i32 = arith.constant 0 : i32
    %c0_i32_0 = arith.constant 0 : i32
    %c0_i32_1 = arith.constant 0 : i32
    return %c0_i32, %c0_i32_0 : i32, i32
  }
  func.func @transform_35(%arg0: i32) -> (i32, i32) {
    %c0_i32 = arith.constant 0 : i32
    %c0_i32_0 = arith.constant 0 : i32
    %c0_i32_1 = arith.constant 0 : i32
    return %c0_i32, %c0_i32_0 : i32, i32
  }
  func.func @transform_36(%arg0: i32) -> (i32, i32) {
    %c0_i32 = arith.constant 0 : i32
    %c0_i32_0 = arith.constant 0 : i32
    %c0_i32_1 = arith.constant 0 : i32
    return %c0_i32, %c0_i32_0 : i32, i32
  }
  func.func @transform_37(%arg0: i32) -> (i32, i32) {
    %c0_i32 = arith.constant 0 : i32
    %c0_i32_0 = arith.constant 0 : i32
    %c0_i32_1 = arith.constant 0 : i32
    return %c0_i32, %c0_i32_0 : i32, i32
  }
  func.func @transform_38(%arg0: i32) -> (i32, i32) {
    %c0_i32 = arith.constant 0 : i32
    %c0_i32_0 = arith.constant 0 : i32
    %c0_i32_1 = arith.constant 0 : i32
    return %c0_i32, %c0_i32_0 : i32, i32
  }
  func.func @transform_39(%arg0: i32) -> (i32, i32) {
    %c0_i32 = arith.constant 0 : i32
    %c0_i32_0 = arith.constant 0 : i32
    %c0_i32_1 = arith.constant 0 : i32
    return %c0_i32, %c0_i32_0 : i32, i32
  }
  func.func @transform_40(%arg0: i32) -> (i32, i32) {
    %c0_i32 = arith.constant 0 : i32
    %c0_i32_0 = arith.constant 0 : i32
    %c0_i32_1 = arith.constant 0 : i32
    return %c0_i32, %c0_i32_0 : i32, i32
  }
  func.func @transform_41(%arg0: i32) -> (i32, i32, i32) {
    %c0_i32 = arith.constant 0 : i32
    %c0_i32_0 = arith.constant 0 : i32
    %c0_i32_1 = arith.constant 0 : i32
    %c0_i32_2 = arith.constant 0 : i32
    return %c0_i32, %c0_i32_0, %c0_i32_1 : i32, i32, i32
  }
  func.func @transform_42(%arg0: i32) -> (i32, i32) {
    %c0_i32 = arith.constant 0 : i32
    %c0_i32_0 = arith.constant 0 : i32
    %c0_i32_1 = arith.constant 0 : i32
    return %c0_i32, %c0_i32_0 : i32, i32
  }
  func.func @transform_43(%arg0: i32) -> (i32, i32, i32) {
    %c0_i32 = arith.constant 0 : i32
    %c0_i32_0 = arith.constant 0 : i32
    %c0_i32_1 = arith.constant 0 : i32
    %c0_i32_2 = arith.constant 0 : i32
    return %c0_i32, %c0_i32_0, %c0_i32_1 : i32, i32, i32
  }
  func.func @transform_44(%arg0: i32) -> (i32, i32) {
    %c0_i32 = arith.constant 0 : i32
    %c0_i32_0 = arith.constant 0 : i32
    %c0_i32_1 = arith.constant 0 : i32
    return %c0_i32, %c0_i32_0 : i32, i32
  }
  func.func @transform_45(%arg0: i32) -> (i32, i32, i32) {
    %c0_i32 = arith.constant 0 : i32
    %c0_i32_0 = arith.constant 0 : i32
    %c0_i32_1 = arith.constant 0 : i32
    %c0_i32_2 = arith.constant 0 : i32
    return %c0_i32, %c0_i32_0, %c0_i32_1 : i32, i32, i32
  }
  func.func @transform_46(%arg0: i32) -> (i32, i32) {
    %c0_i32 = arith.constant 0 : i32
    %c0_i32_0 = arith.constant 0 : i32
    %c0_i32_1 = arith.constant 0 : i32
    return %c0_i32, %c0_i32_0 : i32, i32
  }
  func.func @transform_47(%arg0: i32) -> (i32, i32, i32) {
    %c0_i32 = arith.constant 0 : i32
    %c0_i32_0 = arith.constant 0 : i32
    %c0_i32_1 = arith.constant 0 : i32
    %c0_i32_2 = arith.constant 0 : i32
    return %c0_i32, %c0_i32_0, %c0_i32_1 : i32, i32, i32
  }
  func.func @transform_48(%arg0: i32) -> (i32, i32) {
    %c0_i32 = arith.constant 0 : i32
    %c0_i32_0 = arith.constant 0 : i32
    %c0_i32_1 = arith.constant 0 : i32
    return %c0_i32, %c0_i32_0 : i32, i32
  }
  func.func @transform_49(%arg0: i32) -> (i32, i32, i32) {
    %c0_i32 = arith.constant 0 : i32
    %c0_i32_0 = arith.constant 0 : i32
    %c0_i32_1 = arith.constant 0 : i32
    %c0_i32_2 = arith.constant 0 : i32
    return %c0_i32, %c0_i32_0, %c0_i32_1 : i32, i32, i32
  }
  func.func @transform_50(%arg0: i32) -> (i32, i32) {
    %c0_i32 = arith.constant 0 : i32
    %c0_i32_0 = arith.constant 0 : i32
    %c0_i32_1 = arith.constant 0 : i32
    return %c0_i32, %c0_i32_0 : i32, i32
  }
  func.func @transform_51(%arg0: i32) -> (i32, i32, i32) {
    %c0_i32 = arith.constant 0 : i32
    %c0_i32_0 = arith.constant 0 : i32
    %c0_i32_1 = arith.constant 0 : i32
    %c0_i32_2 = arith.constant 0 : i32
    return %c0_i32, %c0_i32_0, %c0_i32_1 : i32, i32, i32
  }
  func.func @transform_52(%arg0: i32) -> (i32, i32) {
    %c0_i32 = arith.constant 0 : i32
    %c0_i32_0 = arith.constant 0 : i32
    %c0_i32_1 = arith.constant 0 : i32
    return %c0_i32, %c0_i32_0 : i32, i32
  }
  func.func @transform_53(%arg0: i32) -> (i32, i32, i32) {
    %c0_i32 = arith.constant 0 : i32
    %c0_i32_0 = arith.constant 0 : i32
    %c0_i32_1 = arith.constant 0 : i32
    return %arg0, %c0_i32, %c0_i32_0 : i32, i32, i32
  }
}

</mosaic_0001>

<llo_original>
// kernel: modified_convnext_forward.1
$region0: #{modified_convnext_forward.1}
  #allocation0 [shape = 'u32[]', space=smem, size = 0x4, offset = 0x4, fixed_abs, tag = 'smem constant byte address 0x4 - core index']
  #allocation1 [shape = 'u32[144,128]{1,0:T(1,128)}', space=vmem, size = 0x12000, scoped, tag = 'internal scratch']
  #allocation2 [shape = 'f32[1,1]{1,0:T(1,128)S(1)}', space=vmem, size = 0x200, scoped, tag = 'scoped memory for modified_convnext_forward.1']
  %s0 = inlined_call_operand.smem [shape: u32[54], index: -1, kind: input, shape index: {}]
  %s1 = sld [smem:[%s0]]
  %s2 = scalar_lea.smem %s0, 1
  %s3 = sld [smem:[%s2]]
  %s4 = scalar_lea.smem %s0, 2
  %s5 = sld [smem:[%s4]]
  %s6 = scalar_lea.smem %s0, 3
  %s7 = sld [smem:[%s6]]
  %s8 = scalar_lea.smem %s0, 4
  %s9 = sld [smem:[%s8]]
  %s10 = scalar_lea.smem %s0, 5
  %s11 = sld [smem:[%s10]]
  %s12 = scalar_lea.smem %s0, 6
  %s13 = sld [smem:[%s12]]
  %s14 = scalar_lea.smem %s0, 7
  %s15 = sld [smem:[%s14]]
  %s16 = scalar_lea.smem %s0, 8
  %s17 = sld [smem:[%s16]]
  %s18 = scalar_lea.smem %s0, 9
  %s19 = sld [smem:[%s18]]
  %s20 = scalar_lea.smem %s0, 10
  %s21 = sld [smem:[%s20]]
  %s22 = scalar_lea.smem %s0, 11
  %s23 = sld [smem:[%s22]]
  %s24 = scalar_lea.smem %s0, 12
  %s25 = sld [smem:[%s24]]
  %s26 = scalar_lea.smem %s0, 13
  %s27 = sld [smem:[%s26]]
  %s28 = scalar_lea.smem %s0, 14
  %s29 = sld [smem:[%s28]]
  %s30 = scalar_lea.smem %s0, 15
  %s31 = sld [smem:[%s30]]
  %s32 = scalar_lea.smem %s0, 16
  %s33 = sld [smem:[%s32]]
  %s34 = scalar_lea.smem %s0, 17
  %s35 = sld [smem:[%s34]]
  %s36 = scalar_lea.smem %s0, 18
  %s37 = sld [smem:[%s36]]
  %s38 = scalar_lea.smem %s0, 19
  %s39 = sld [smem:[%s38]]
  %s40 = scalar_lea.smem %s0, 20
  %s41 = sld [smem:[%s40]]
  %s42 = scalar_lea.smem %s0, 21
  %s43 = sld [smem:[%s42]]
  %s44 = scalar_lea.smem %s0, 22
  %s45 = sld [smem:[%s44]]
  %s46 = scalar_lea.smem %s0, 23
  %s47 = sld [smem:[%s46]]
  %s48 = scalar_lea.smem %s0, 24
  %s49 = sld [smem:[%s48]]
  %s50 = scalar_lea.smem %s0, 25
  %s51 = sld [smem:[%s50]]
  %s52 = scalar_lea.smem %s0, 26
  %s53 = sld [smem:[%s52]]
  %s54 = scalar_lea.smem %s0, 27
  %s55 = sld [smem:[%s54]]
  %s56 = scalar_lea.smem %s0, 28
  %s57 = sld [smem:[%s56]]
  %s58 = scalar_lea.smem %s0, 29
  %s59 = sld [smem:[%s58]]
  %s60 = scalar_lea.smem %s0, 30
  %s61 = sld [smem:[%s60]]
  %s62 = scalar_lea.smem %s0, 31
  %s63 = sld [smem:[%s62]]
  %s64 = scalar_lea.smem %s0, 32
  %s65 = sld [smem:[%s64]]
  %s66 = scalar_lea.smem %s0, 33
  %s67 = sld [smem:[%s66]]
  %s68 = scalar_lea.smem %s0, 34
  %s69 = sld [smem:[%s68]]
  %s70 = scalar_lea.smem %s0, 35
  %s71 = sld [smem:[%s70]]
  %s72 = scalar_lea.smem %s0, 36
  %s73 = sld [smem:[%s72]]
  %s74 = scalar_lea.smem %s0, 37
  %s75 = sld [smem:[%s74]]
  %s76 = scalar_lea.smem %s0, 38
  %s77 = sld [smem:[%s76]]
  %s78 = scalar_lea.smem %s0, 39
  %s79 = sld [smem:[%s78]]
  %s80 = scalar_lea.smem %s0, 40
  %s81 = sld [smem:[%s80]]
  %s82 = scalar_lea.smem %s0, 41
  %s83 = sld [smem:[%s82]]
  %s84 = scalar_lea.smem %s0, 42
  %s85 = sld [smem:[%s84]]
  %s86 = scalar_lea.smem %s0, 43
  %s87 = sld [smem:[%s86]]
  %s88 = scalar_lea.smem %s0, 44
  %s89 = sld [smem:[%s88]]
  %s90 = scalar_lea.smem %s0, 45
  %s91 = sld [smem:[%s90]]
  %s92 = scalar_lea.smem %s0, 46
  %s93 = sld [smem:[%s92]]
  %s94 = scalar_lea.smem %s0, 47
  %s95 = sld [smem:[%s94]]
  %s96 = scalar_lea.smem %s0, 48
  %s97 = sld [smem:[%s96]]
  %s98 = scalar_lea.smem %s0, 49
  %s99 = sld [smem:[%s98]]
  %s100 = scalar_lea.smem %s0, 50
  %s101 = sld [smem:[%s100]]
  %s102 = scalar_lea.smem %s0, 51
  %s103 = sld [smem:[%s102]]
  %s104 = scalar_lea.smem %s0, 52
  %s105 = sld [smem:[%s104]]
  %s106 = scalar_lea.smem %s0, 53
  %s107 = sld [smem:[%s106]]
  %s108 = sld [smem:[#allocation0]]
  $region293: #{modified_convnext_forward.1} parent=0
    _
  %s110 = ssub.s32 1, %s108
  %s111 = scalar_select 0, %s110, %s108
  %v112 = vstv %s105
  %113 = vst [vmem:[#allocation2] sm:$0x1] %v112
  $region1: #{modified_convnext_forward.1} parent=0
    #allocation3 [shape = 'u8[512]{0}', space=vmem, size = 0x400, scoped, tag = 'input window, operand 28, single buffered']
    #allocation4 [shape = 's32[2]{0}', space=sflag, size = 0x8, scoped, tag = 'scoped memory for modified_convnext_forward.1']
    #allocation5 [shape = 'u8[512]{0}', space=vmem, size = 0x400, scoped, tag = 'input window, operand 29, single buffered']
    #allocation6 [shape = 's32[1]{0}', space=sflag, size = 0x4, scoped, tag = 'scoped memory for modified_convnext_forward.1']
    #allocation7 [shape = 'u8[512]{0}', space=vmem, size = 0x400, scoped, tag = 'input window, operand 33, single buffered']
    #allocation8 [shape = 'u8[512]{0}', space=vmem, size = 0x400, scoped, tag = 'input window, operand 34, single buffered']
    #allocation9 [shape = 's32[1]{0}', space=sflag, size = 0x4, scoped, tag = 'scoped memory for modified_convnext_forward.1']
    #allocation10 [shape = 'u8[512]{0}', space=vmem, size = 0x400, scoped, tag = 'input window, operand 35, single buffered']
    #allocation11 [shape = 'u8[512]{0}', space=vmem, size = 0x400, scoped, tag = 'input window, operand 36, single buffered']
    #allocation12 [shape = 's32[1]{0}', space=sflag, size = 0x4, scoped, tag = 'scoped memory for modified_convnext_forward.1']
    #allocation13 [shape = 'u8[512]{0}', space=vmem, size = 0x400, scoped, tag = 'input window, operand 37, single buffered']
    #allocation14 [shape = 'u8[512]{0}', space=vmem, size = 0x400, scoped, tag = 'input window, operand 42, single buffered']
    #allocation15 [shape = 's32[1]{0}', space=sflag, size = 0x4, scoped, tag = 'scoped memory for modified_convnext_forward.1']
    #allocation16 [shape = 'u8[512]{0}', space=vmem, size = 0x400, scoped, tag = 'input window, operand 44, single buffered']
    #allocation17 [shape = 'u8[512]{0}', space=vmem, size = 0x400, scoped, tag = 'input window, operand 46, single buffered']
    #allocation18 [shape = 's32[1]{0}', space=sflag, size = 0x4, scoped, tag = 'scoped memory for modified_convnext_forward.1']
    #allocation19 [shape = 'u8[512]{0}', space=vmem, size = 0x400, scoped, tag = 'input window, operand 48, single buffered']
    #allocation20 [shape = 'u8[512]{0}', space=vmem, size = 0x400, scoped, tag = 'input window, operand 50, single buffered']
    #allocation21 [shape = 's32[1]{0}', space=sflag, size = 0x4, scoped, tag = 'scoped memory for modified_convnext_forward.1']
    %114 = vsyncpa [#allocation4], 0
    %115 = vsyncpa [#allocation6], 0
    %116 = vsyncpa [#allocation9], 0
    %117 = vsyncpa [#allocation12], 0
    %118 = vsyncpa [#allocation15], 0
    %119 = vsyncpa [#allocation18], 0
    %120 = vsyncpa [#allocation21], 0
    loop: start=0, step=1, limit=4
    $region2: #{modified_convnext_forward.1} parent=1 // loop_pre_header
      _
    $region3: #{modified_convnext_forward.1} parent=1 // loop_header
      %s122 = sphi 0, %s126
      %p123 = scmp.ge.s32.totalorder %s122, 4
      %s132 = sphi 0, %s134
      %s135 = sphi 0, %s132
      %s136 = sphi 0, %s135
      %s152 = sphi 0, %s136
      %s156 = sphi 0, %s156
      %s158 = sphi 0, %s156
      %s159 = sphi 0, %s158
      %s173 = sphi 0, %s159
      %s177 = sphi 0, %s177
      %s179 = sphi 0, %s177
      %s180 = sphi 0, %s179
      %s194 = sphi 0, %s180
      %s198 = sphi 0, %s198
      %s200 = sphi 0, %s198
      %s201 = sphi 0, %s200
      %s215 = sphi 0, %s201
      %s219 = sphi 0, %s219
      %s221 = sphi 0, %s219
      %s222 = sphi 0, %s221
      %s236 = sphi 0, %s222
      %s240 = sphi 0, %s240
      %s242 = sphi 0, %s240
      %s243 = sphi 0, %s242
      %s257 = sphi 0, %s243
      %s261 = sphi 0, %s261
      %s263 = sphi 0, %s261
      %s264 = sphi 0, %s263
      %s278 = sphi 0, %s264
      %s282 = sphi 0, %s282
      %s284 = sphi 0, %s282
      %s285 = sphi 0, %s284
      %s299 = sphi 0, %s285
      %s303 = sphi 0, %s303
      %s305 = sphi 0, %s303
      %s306 = sphi 0, %s305
      %s320 = sphi 0, %s306
      %s324 = sphi 0, %s324
      %s326 = sphi 0, %s324
      %s327 = sphi 0, %s326
      %s341 = sphi 0, %s327
      %s345 = sphi 0, %s345
      %s347 = sphi 0, %s345
      %s348 = sphi 0, %s347
      %s362 = sphi 0, %s348
      %s366 = sphi 0, %s366
      %s368 = sphi 0, %s366
      %s369 = sphi 0, %s368
      %s383 = sphi 0, %s369
      %s387 = sphi 0, %s387
      %s389 = sphi 0, %s387
      %s390 = sphi 0, %s389
      %s404 = sphi 0, %s390
      %s408 = sphi 0, %s408
      %s410 = sphi 0, %s408
      %s411 = sphi 0, %s410
      %s425 = sphi 0, %s411
      %s429 = sphi 0, %s429
      %s431 = sphi 0, %s429
      %s432 = sphi 0, %s431
      %s446 = sphi 0, %s432
      %s450 = sphi 0, %s450
      %s452 = sphi 0, %s450
      %s453 = sphi 0, %s452
      %s467 = sphi 0, %s453
      %s471 = sphi 0, %s471
      %s473 = sphi 0, %s471
      %s474 = sphi 0, %s473
      %s488 = sphi 0, %s474
      %s492 = sphi 0, %s492
      %s494 = sphi 0, %s492
      %s495 = sphi 0, %s494
      %s509 = sphi 0, %s495
      %s513 = sphi 0, %s513
      %s515 = sphi 0, %s513
      %s516 = sphi 0, %s515
      %s530 = sphi 0, %s516
      %s534 = sphi 0, %s534
      %s536 = sphi 0, %s534
      %s537 = sphi 0, %s536
      %s551 = sphi 0, %s537
      %s555 = sphi 0, %s555
      %s557 = sphi 0, %s555
      %s558 = sphi 0, %s557
      %s572 = sphi 0, %s558
      %s576 = sphi 0, %s576
      %s578 = sphi 0, %s576
      %s579 = sphi 0, %s578
      %s593 = sphi 0, %s579
      %s597 = sphi 0, %s597
      %s599 = sphi 0, %s597
      %s600 = sphi 0, %s599
      %s614 = sphi 0, %s600
      %s618 = sphi 0, %s618
      %s620 = sphi 0, %s618
      %s621 = sphi 0, %s620
      %s635 = sphi 0, %s621
      %s639 = sphi 0, %s639
      %s641 = sphi 0, %s639
      %s642 = sphi 0, %s641
      %s656 = sphi 0, %s642
      %s660 = sphi 0, %s660
      %s662 = sphi 0, %s660
      %s663 = sphi 0, %s662
      %s677 = sphi 0, %s663
      %s681 = sphi 0, %s681
      %s683 = sphi 0, %s681
      %s684 = sphi 0, %s683
      %s698 = sphi 0, %s684
      %s702 = sphi 0, %s702
      %s704 = sphi 0, %s702
      %s705 = sphi 0, %s704
      %s719 = sphi 0, %s705
      %s723 = sphi 0, %s723
      %s725 = sphi 0, %s723
      %s726 = sphi 0, %s725
      %s740 = sphi 0, %s726
      %s744 = sphi 0, %s744
      %s746 = sphi 0, %s744
      %s747 = sphi 0, %s746
      %s761 = sphi 0, %s747
      %s765 = sphi 0, %s765
      %s767 = sphi 0, %s765
      %s768 = sphi 0, %s767
      %s782 = sphi 0, %s768
      %s786 = sphi 0, %s786
      %s788 = sphi 0, %s786
      %s789 = sphi 0, %s788
      %s803 = sphi 0, %s789
      %s807 = sphi 0, %s807
      %s809 = sphi 0, %s807
      %s810 = sphi 0, %s809
      %s824 = sphi 0, %s810
      %s828 = sphi 0, %s828
      %s830 = sphi 0, %s828
      %s831 = sphi 0, %s830
      %s845 = sphi 0, %s831
      %s849 = sphi 0, %s849
      %s851 = sphi 0, %s849
      %s852 = sphi 0, %s851
      %s866 = sphi 0, %s852
      %s870 = sphi 0, %s870
      %s872 = sphi 0, %s870
      %s873 = sphi 0, %s872
      %s887 = sphi 0, %s873
      %s891 = sphi 0, %s891
      %s893 = sphi 0, %s891
      %s894 = sphi 0, %s893
      %s908 = sphi 0, %s894
      %s912 = sphi 0, %s912
      %s914 = sphi 0, %s912
      %s915 = sphi 0, %s914
      %s929 = sphi 0, %s915
      %s933 = sphi 0, %s933
      %s935 = sphi 0, %s933
      %s936 = sphi 0, %s935
      %s950 = sphi 0, %s936
      %s954 = sphi 0, %s954
      %s956 = sphi 0, %s954
      %s957 = sphi 0, %s956
      %s971 = sphi 0, %s957
      %s975 = sphi 0, %s975
      %s977 = sphi 0, %s975
      %s978 = sphi 0, %s977
      %s992 = sphi 0, %s978
      %s996 = sphi 0, %s996
      %s998 = sphi 0, %s996
      %s999 = sphi 0, %s998
      %s1013 = sphi 0, %s999
      %s1017 = sphi 0, %s1017
      %s1019 = sphi 0, %s1017
      %s1020 = sphi 0, %s1019
      %s1034 = sphi 0, %s1020
      %s1038 = sphi 0, %s1038
      %s1040 = sphi 0, %s1038
      %s1041 = sphi 0, %s1040
      %s1055 = sphi 0, %s1041
      %s1059 = sphi 0, %s1059
      %s1061 = sphi 0, %s1059
      %s1062 = sphi 0, %s1061
      %s1076 = sphi 0, %s1062
      %s1080 = sphi 0, %s1080
      %s1082 = sphi 0, %s1080
      %s1083 = sphi 0, %s1082
      %s1097 = sphi 0, %s1083
      %s1101 = sphi 0, %s1101
      %s1103 = sphi 0, %s1101
      %s1104 = sphi 0, %s1103
      %s1118 = sphi 0, %s1104
      %s1122 = sphi 0, %s1122
      %s1124 = sphi 0, %s1122
      %s1125 = sphi 0, %s1124
      %s1139 = sphi 0, %s1125
      %s1143 = sphi 0, %s1143
      %s1145 = sphi 0, %s1143
      %s1146 = sphi 0, %s1145
      %s1160 = sphi 0, %s1146
      %s1164 = sphi 0, %s1164
      %s1166 = sphi 0, %s1164
      %s1167 = sphi 0, %s1166
      %s1181 = sphi 0, %s1167
      %s1185 = sphi 0, %s1185
      %s1187 = sphi 0, %s1185
      %s1188 = sphi 0, %s1187
      %s1202 = sphi 0, %s1188
      %s1206 = sphi 0, %s1206
      %s1208 = sphi 0, %s1206
      %s1209 = sphi 0, %s1208
      %s1223 = sphi 0, %s1209
      %s1227 = sphi 0, %s1227
      %s1229 = sphi 0, %s1227
      %s1230 = sphi 0, %s1229
      %s1244 = sphi 0, %s1230
      %s1250 = sphi 0, %s1252
      %s1253 = sphi 0, %s1250
      %s1254 = sphi 0, %s1253
      %s1270 = sphi 0, %s1254
    $region4: #{modified_convnext_forward.1} parent=1 // loop_header_branch
      %125 = sbr.rel (%p123) target = $region8
    $region5: #{modified_convnext_forward.1} parent=1 // loop_body
      %s127 = ssub.s32 %s122, 1
      %s128 = ssub.s32 %s122, 2
      %s129 = sadd.s32 %s122, 1
      %s130 = ssub.s32 %s122, %s129
      %p131 = scmp.eq.s32.totalorder %s130, 0
      %s133 = sadd.s32 %s132, 1
      %s134 = scalar_select %p131, %s132, %s133
      %p137 = pneg %p131
      %p138 = scmp.eq.s32.totalorder %s122, 1
      %p139 = por %p137, %p138
      %p140 = scmp.ne.s32.totalorder %s132, %s135
      %p141 = scmp.eq.s32.totalorder %s122, 0
      %p142 = por %p140, %p141
      %p143 = scmp.ne.s32.totalorder %s132, %s135
      %p144 = scmp.eq.s32.totalorder %s127, 1
      %p145 = por %p143, %p144
      %p146 = scmp.ne.s32.totalorder %s135, %s136
      %p147 = scmp.eq.s32.totalorder %s127, 0
      %p148 = por %p146, %p147
      %p149 = scmp.ne.s32.totalorder %s135, %s136
      %p150 = scmp.eq.s32.totalorder %s128, 1
      %p151 = por %p149, %p150
      %p153 = scmp.ne.s32.totalorder %s136, %s152
      %p154 = scmp.eq.s32.totalorder %s128, 0
      %p155 = por %p153, %p154
      %s157 = sadd.s32 %s156, 1
      %p160 = scmp.eq.s32.totalorder %s122, 1
      %p161 = scmp.ne.s32.totalorder %s156, %s158
      %p162 = scmp.eq.s32.totalorder %s122, 0
      %p163 = por %p161, %p162
      %p164 = scmp.ne.s32.totalorder %s156, %s158
      %p165 = scmp.eq.s32.totalorder %s127, 1
      %p166 = por %p164, %p165
      %p167 = scmp.ne.s32.totalorder %s158, %s159
      %p168 = scmp.eq.s32.totalorder %s127, 0
      %p169 = por %p167, %p168
      %p170 = scmp.ne.s32.totalorder %s158, %s159
      %p171 = scmp.eq.s32.totalorder %s128, 1
      %p172 = por %p170, %p171
      %p174 = scmp.ne.s32.totalorder %s159, %s173
      %p175 = scmp.eq.s32.totalorder %s128, 0
      %p176 = por %p174, %p175
      %s178 = sadd.s32 %s177, 1
      %p181 = scmp.eq.s32.totalorder %s122, 1
      %p182 = scmp.ne.s32.totalorder %s177, %s179
      %p183 = scmp.eq.s32.totalorder %s122, 0
      %p184 = por %p182, %p183
      %p185 = scmp.ne.s32.totalorder %s177, %s179
      %p186 = scmp.eq.s32.totalorder %s127, 1
      %p187 = por %p185, %p186
      %p188 = scmp.ne.s32.totalorder %s179, %s180
      %p189 = scmp.eq.s32.totalorder %s127, 0
      %p190 = por %p188, %p189
      %p191 = scmp.ne.s32.totalorder %s179, %s180
      %p192 = scmp.eq.s32.totalorder %s128, 1
      %p193 = por %p191, %p192
      %p195 = scmp.ne.s32.totalorder %s180, %s194
      %p196 = scmp.eq.s32.totalorder %s128, 0
      %p197 = por %p195, %p196
      %s199 = sadd.s32 %s198, 1
      %p202 = scmp.eq.s32.totalorder %s122, 1
      %p203 = scmp.ne.s32.totalorder %s198, %s200
      %p204 = scmp.eq.s32.totalorder %s122, 0
      %p205 = por %p203, %p204
      %p206 = scmp.ne.s32.totalorder %s198, %s200
      %p207 = scmp.eq.s32.totalorder %s127, 1
      %p208 = por %p206, %p207
      %p209 = scmp.ne.s32.totalorder %s200, %s201
      %p210 = scmp.eq.s32.totalorder %s127, 0
      %p211 = por %p209, %p210
      %p212 = scmp.ne.s32.totalorder %s200, %s201
      %p213 = scmp.eq.s32.totalorder %s128, 1
      %p214 = por %p212, %p213
      %p216 = scmp.ne.s32.totalorder %s201, %s215
      %p217 = scmp.eq.s32.totalorder %s128, 0
      %p218 = por %p216, %p217
      %s220 = sadd.s32 %s219, 1
      %p223 = scmp.eq.s32.totalorder %s122, 1
      %p224 = scmp.ne.s32.totalorder %s219, %s221
      %p225 = scmp.eq.s32.totalorder %s122, 0
      %p226 = por %p224, %p225
      %p227 = scmp.ne.s32.totalorder %s219, %s221
      %p228 = scmp.eq.s32.totalorder %s127, 1
      %p229 = por %p227, %p228
      %p230 = scmp.ne.s32.totalorder %s221, %s222
      %p231 = scmp.eq.s32.totalorder %s127, 0
      %p232 = por %p230, %p231
      %p233 = scmp.ne.s32.totalorder %s221, %s222
      %p234 = scmp.eq.s32.totalorder %s128, 1
      %p235 = por %p233, %p234
      %p237 = scmp.ne.s32.totalorder %s222, %s236
      %p238 = scmp.eq.s32.totalorder %s128, 0
      %p239 = por %p237, %p238
      %s241 = sadd.s32 %s240, 1
      %p244 = scmp.eq.s32.totalorder %s122, 1
      %p245 = scmp.ne.s32.totalorder %s240, %s242
      %p246 = scmp.eq.s32.totalorder %s122, 0
      %p247 = por %p245, %p246
      %p248 = scmp.ne.s32.totalorder %s240, %s242
      %p249 = scmp.eq.s32.totalorder %s127, 1
      %p250 = por %p248, %p249
      %p251 = scmp.ne.s32.totalorder %s242, %s243
      %p252 = scmp.eq.s32.totalorder %s127, 0
      %p253 = por %p251, %p252
      %p254 = scmp.ne.s32.totalorder %s242, %s243
      %p255 = scmp.eq.s32.totalorder %s128, 1
      %p256 = por %p254, %p255
      %p258 = scmp.ne.s32.totalorder %s243, %s257
      %p259 = scmp.eq.s32.totalorder %s128, 0
      %p260 = por %p258, %p259
      %s262 = sadd.s32 %s261, 1
      %p265 = scmp.eq.s32.totalorder %s122, 1
      %p266 = scmp.ne.s32.totalorder %s261, %s263
      %p267 = scmp.eq.s32.totalorder %s122, 0
      %p268 = por %p266, %p267
      %p269 = scmp.ne.s32.totalorder %s261, %s263
      %p270 = scmp.eq.s32.totalorder %s127, 1
      %p271 = por %p269, %p270
      %p272 = scmp.ne.s32.totalorder %s263, %s264
      %p273 = scmp.eq.s32.totalorder %s127, 0
      %p274 = por %p272, %p273
      %p275 = scmp.ne.s32.totalorder %s263, %s264
      %p276 = scmp.eq.s32.totalorder %s128, 1
      %p277 = por %p275, %p276
      %p279 = scmp.ne.s32.totalorder %s264, %s278
      %p280 = scmp.eq.s32.totalorder %s128, 0
      %p281 = por %p279, %p280
      %s283 = sadd.s32 %s282, 1
      %p286 = scmp.eq.s32.totalorder %s122, 1
      %p287 = scmp.ne.s32.totalorder %s282, %s284
      %p288 = scmp.eq.s32.totalorder %s122, 0
      %p289 = por %p287, %p288
      %p290 = scmp.ne.s32.totalorder %s282, %s284
      %p291 = scmp.eq.s32.totalorder %s127, 1
      %p292 = por %p290, %p291
      %p293 = scmp.ne.s32.totalorder %s284, %s285
      %p294 = scmp.eq.s32.totalorder %s127, 0
      %p295 = por %p293, %p294
      %p296 = scmp.ne.s32.totalorder %s284, %s285
      %p297 = scmp.eq.s32.totalorder %s128, 1
      %p298 = por %p296, %p297
      %p300 = scmp.ne.s32.totalorder %s285, %s299
      %p301 = scmp.eq.s32.totalorder %s128, 0
      %p302 = por %p300, %p301
      %s304 = sadd.s32 %s303, 1
      %p307 = scmp.eq.s32.totalorder %s122, 1
      %p308 = scmp.ne.s32.totalorder %s303, %s305
      %p309 = scmp.eq.s32.totalorder %s122, 0
      %p310 = por %p308, %p309
      %p311 = scmp.ne.s32.totalorder %s303, %s305
      %p312 = scmp.eq.s32.totalorder %s127, 1
      %p313 = por %p311, %p312
      %p314 = scmp.ne.s32.totalorder %s305, %s306
      %p315 = scmp.eq.s32.totalorder %s127, 0
      %p316 = por %p314, %p315
      %p317 = scmp.ne.s32.totalorder %s305, %s306
      %p318 = scmp.eq.s32.totalorder %s128, 1
      %p319 = por %p317, %p318
      %p321 = scmp.ne.s32.totalorder %s306, %s320
      %p322 = scmp.eq.s32.totalorder %s128, 0
      %p323 = por %p321, %p322
      %s325 = sadd.s32 %s324, 1
      %p328 = scmp.eq.s32.totalorder %s122, 1
      %p329 = scmp.ne.s32.totalorder %s324, %s326
      %p330 = scmp.eq.s32.totalorder %s122, 0
      %p331 = por %p329, %p330
      %p332 = scmp.ne.s32.totalorder %s324, %s326
      %p333 = scmp.eq.s32.totalorder %s127, 1
      %p334 = por %p332, %p333
      %p335 = scmp.ne.s32.totalorder %s326, %s327
      %p336 = scmp.eq.s32.totalorder %s127, 0
      %p337 = por %p335, %p336
      %p338 = scmp.ne.s32.totalorder %s326, %s327
      %p339 = scmp.eq.s32.totalorder %s128, 1
      %p340 = por %p338, %p339
      %p342 = scmp.ne.s32.totalorder %s327, %s341
      %p343 = scmp.eq.s32.totalorder %s128, 0
      %p344 = por %p342, %p343
      %s346 = sadd.s32 %s345, 1
      %p349 = scmp.eq.s32.totalorder %s122, 1
      %p350 = scmp.ne.s32.totalorder %s345, %s347
      %p351 = scmp.eq.s32.totalorder %s122, 0
      %p352 = por %p350, %p351
      %p353 = scmp.ne.s32.totalorder %s345, %s347
      %p354 = scmp.eq.s32.totalorder %s127, 1
      %p355 = por %p353, %p354
      %p356 = scmp.ne.s32.totalorder %s347, %s348
      %p357 = scmp.eq.s32.totalorder %s127, 0
      %p358 = por %p356, %p357
      %p359 = scmp.ne.s32.totalorder %s347, %s348
      %p360 = scmp.eq.s32.totalorder %s128, 1
      %p361 = por %p359, %p360
      %p363 = scmp.ne.s32.totalorder %s348, %s362
      %p364 = scmp.eq.s32.totalorder %s128, 0
      %p365 = por %p363, %p364
      %s367 = sadd.s32 %s366, 1
      %p370 = scmp.eq.s32.totalorder %s122, 1
      %p371 = scmp.ne.s32.totalorder %s366, %s368
      %p372 = scmp.eq.s32.totalorder %s122, 0
      %p373 = por %p371, %p372
      %p374 = scmp.ne.s32.totalorder %s366, %s368
      %p375 = scmp.eq.s32.totalorder %s127, 1
      %p376 = por %p374, %p375
      %p377 = scmp.ne.s32.totalorder %s368, %s369
      %p378 = scmp.eq.s32.totalorder %s127, 0
      %p379 = por %p377, %p378
      %p380 = scmp.ne.s32.totalorder %s368, %s369
      %p381 = scmp.eq.s32.totalorder %s128, 1
      %p382 = por %p380, %p381
      %p384 = scmp.ne.s32.totalorder %s369, %s383
      %p385 = scmp.eq.s32.totalorder %s128, 0
      %p386 = por %p384, %p385
      %s388 = sadd.s32 %s387, 1
      %p391 = scmp.eq.s32.totalorder %s122, 1
      %p392 = scmp.ne.s32.totalorder %s387, %s389
      %p393 = scmp.eq.s32.totalorder %s122, 0
      %p394 = por %p392, %p393
      %p395 = scmp.ne.s32.totalorder %s387, %s389
      %p396 = scmp.eq.s32.totalorder %s127, 1
      %p397 = por %p395, %p396
      %p398 = scmp.ne.s32.totalorder %s389, %s390
      %p399 = scmp.eq.s32.totalorder %s127, 0
      %p400 = por %p398, %p399
      %p401 = scmp.ne.s32.totalorder %s389, %s390
      %p402 = scmp.eq.s32.totalorder %s128, 1
      %p403 = por %p401, %p402
      %p405 = scmp.ne.s32.totalorder %s390, %s404
      %p406 = scmp.eq.s32.totalorder %s128, 0
      %p407 = por %p405, %p406
      %s409 = sadd.s32 %s408, 1
      %p412 = scmp.eq.s32.totalorder %s122, 1
      %p413 = scmp.ne.s32.totalorder %s408, %s410
      %p414 = scmp.eq.s32.totalorder %s122, 0
      %p415 = por %p413, %p414
      %p416 = scmp.ne.s32.totalorder %s408, %s410
      %p417 = scmp.eq.s32.totalorder %s127, 1
      %p418 = por %p416, %p417
      %p419 = scmp.ne.s32.totalorder %s410, %s411
      %p420 = scmp.eq.s32.totalorder %s127, 0
      %p421 = por %p419, %p420
      %p422 = scmp.ne.s32.totalorder %s410, %s411
      %p423 = scmp.eq.s32.totalorder %s128, 1
      %p424 = por %p422, %p423
      %p426 = scmp.ne.s32.totalorder %s411, %s425
      %p427 = scmp.eq.s32.totalorder %s128, 0
      %p428 = por %p426, %p427
      %s430 = sadd.s32 %s429, 1
      %p433 = scmp.eq.s32.totalorder %s122, 1
      %p434 = scmp.ne.s32.totalorder %s429, %s431
      %p435 = scmp.eq.s32.totalorder %s122, 0
      %p436 = por %p434, %p435
      %p437 = scmp.ne.s32.totalorder %s429, %s431
      %p438 = scmp.eq.s32.totalorder %s127, 1
      %p439 = por %p437, %p438
      %p440 = scmp.ne.s32.totalorder %s431, %s432
      %p441 = scmp.eq.s32.totalorder %s127, 0
      %p442 = por %p440, %p441
      %p443 = scmp.ne.s32.totalorder %s431, %s432
      %p444 = scmp.eq.s32.totalorder %s128, 1
      %p445 = por %p443, %p444
      %p447 = scmp.ne.s32.totalorder %s432, %s446
      %p448 = scmp.eq.s32.totalorder %s128, 0
      %p449 = por %p447, %p448
      %s451 = sadd.s32 %s450, 1
      %p454 = scmp.eq.s32.totalorder %s122, 1
      %p455 = scmp.ne.s32.totalorder %s450, %s452
      %p456 = scmp.eq.s32.totalorder %s122, 0
      %p457 = por %p455, %p456
      %p458 = scmp.ne.s32.totalorder %s450, %s452
      %p459 = scmp.eq.s32.totalorder %s127, 1
      %p460 = por %p458, %p459
      %p461 = scmp.ne.s32.totalorder %s452, %s453
      %p462 = scmp.eq.s32.totalorder %s127, 0
      %p463 = por %p461, %p462
      %p464 = scmp.ne.s32.totalorder %s452, %s453
      %p465 = scmp.eq.s32.totalorder %s128, 1
      %p466 = por %p464, %p465
      %p468 = scmp.ne.s32.totalorder %s453, %s467
      %p469 = scmp.eq.s32.totalorder %s128, 0
      %p470 = por %p468, %p469
      %s472 = sadd.s32 %s471, 1
      %p475 = scmp.eq.s32.totalorder %s122, 1
      %p476 = scmp.ne.s32.totalorder %s471, %s473
      %p477 = scmp.eq.s32.totalorder %s122, 0
      %p478 = por %p476, %p477
      %p479 = scmp.ne.s32.totalorder %s471, %s473
      %p480 = scmp.eq.s32.totalorder %s127, 1
      %p481 = por %p479, %p480
      %p482 = scmp.ne.s32.totalorder %s473, %s474
      %p483 = scmp.eq.s32.totalorder %s127, 0
      %p484 = por %p482, %p483
      %p485 = scmp.ne.s32.totalorder %s473, %s474
      %p486 = scmp.eq.s32.totalorder %s128, 1
      %p487 = por %p485, %p486
      %p489 = scmp.ne.s32.totalorder %s474, %s488
      %p490 = scmp.eq.s32.totalorder %s128, 0
      %p491 = por %p489, %p490
      %s493 = sadd.s32 %s492, 1
      %p496 = scmp.eq.s32.totalorder %s122, 1
      %p497 = scmp.ne.s32.totalorder %s492, %s494
      %p498 = scmp.eq.s32.totalorder %s122, 0
      %p499 = por %p497, %p498
      %p500 = scmp.ne.s32.totalorder %s492, %s494
      %p501 = scmp.eq.s32.totalorder %s127, 1
      %p502 = por %p500, %p501
      %p503 = scmp.ne.s32.totalorder %s494, %s495
      %p504 = scmp.eq.s32.totalorder %s127, 0
      %p505 = por %p503, %p504
      %p506 = scmp.ne.s32.totalorder %s494, %s495
      %p507 = scmp.eq.s32.totalorder %s128, 1
      %p508 = por %p506, %p507
      %p510 = scmp.ne.s32.totalorder %s495, %s509
      %p511 = scmp.eq.s32.totalorder %s128, 0
      %p512 = por %p510, %p511
      %s514 = sadd.s32 %s513, 1
      %p517 = scmp.eq.s32.totalorder %s122, 1
      %p518 = scmp.ne.s32.totalorder %s513, %s515
      %p519 = scmp.eq.s32.totalorder %s122, 0
      %p520 = por %p518, %p519
      %p521 = scmp.ne.s32.totalorder %s513, %s515
      %p522 = scmp.eq.s32.totalorder %s127, 1
      %p523 = por %p521, %p522
      %p524 = scmp.ne.s32.totalorder %s515, %s516
      %p525 = scmp.eq.s32.totalorder %s127, 0
      %p526 = por %p524, %p525
      %p527 = scmp.ne.s32.totalorder %s515, %s516
      %p528 = scmp.eq.s32.totalorder %s128, 1
      %p529 = por %p527, %p528
      %p531 = scmp.ne.s32.totalorder %s516, %s530
      %p532 = scmp.eq.s32.totalorder %s128, 0
      %p533 = por %p531, %p532
      %s535 = sadd.s32 %s534, 1
      %p538 = scmp.eq.s32.totalorder %s122, 1
      %p539 = scmp.ne.s32.totalorder %s534, %s536
      %p540 = scmp.eq.s32.totalorder %s122, 0
      %p541 = por %p539, %p540
      %p542 = scmp.ne.s32.totalorder %s534, %s536
      %p543 = scmp.eq.s32.totalorder %s127, 1
      %p544 = por %p542, %p543
      %p545 = scmp.ne.s32.totalorder %s536, %s537
      %p546 = scmp.eq.s32.totalorder %s127, 0
      %p547 = por %p545, %p546
      %p548 = scmp.ne.s32.totalorder %s536, %s537
      %p549 = scmp.eq.s32.totalorder %s128, 1
      %p550 = por %p548, %p549
      %p552 = scmp.ne.s32.totalorder %s537, %s551
      %p553 = scmp.eq.s32.totalorder %s128, 0
      %p554 = por %p552, %p553
      %s556 = sadd.s32 %s555, 1
      %p559 = scmp.eq.s32.totalorder %s122, 1
      %p560 = scmp.ne.s32.totalorder %s555, %s557
      %p561 = scmp.eq.s32.totalorder %s122, 0
      %p562 = por %p560, %p561
      %p563 = scmp.ne.s32.totalorder %s555, %s557
      %p564 = scmp.eq.s32.totalorder %s127, 1
      %p565 = por %p563, %p564
      %p566 = scmp.ne.s32.totalorder %s557, %s558
      %p567 = scmp.eq.s32.totalorder %s127, 0
      %p568 = por %p566, %p567
      %p569 = scmp.ne.s32.totalorder %s557, %s558
      %p570 = scmp.eq.s32.totalorder %s128, 1
      %p571 = por %p569, %p570
      %p573 = scmp.ne.s32.totalorder %s558, %s572
      %p574 = scmp.eq.s32.totalorder %s128, 0
      %p575 = por %p573, %p574
      %s577 = sadd.s32 %s576, 1
      %p580 = scmp.eq.s32.totalorder %s122, 1
      %p581 = scmp.ne.s32.totalorder %s576, %s578
      %p582 = scmp.eq.s32.totalorder %s122, 0
      %p583 = por %p581, %p582
      %p584 = scmp.ne.s32.totalorder %s576, %s578
      %p585 = scmp.eq.s32.totalorder %s127, 1
      %p586 = por %p584, %p585
      %p587 = scmp.ne.s32.totalorder %s578, %s579
      %p588 = scmp.eq.s32.totalorder %s127, 0
      %p589 = por %p587, %p588
      %p590 = scmp.ne.s32.totalorder %s578, %s579
      %p591 = scmp.eq.s32.totalorder %s128, 1
      %p592 = por %p590, %p591
      %p594 = scmp.ne.s32.totalorder %s579, %s593
      %p595 = scmp.eq.s32.totalorder %s128, 0
      %p596 = por %p594, %p595
      %s598 = sadd.s32 %s597, 1
      %p601 = scmp.eq.s32.totalorder %s122, 1
      %p602 = scmp.ne.s32.totalorder %s597, %s599
      %p603 = scmp.eq.s32.totalorder %s122, 0
      %p604 = por %p602, %p603
      %p605 = scmp.ne.s32.totalorder %s597, %s599
      %p606 = scmp.eq.s32.totalorder %s127, 1
      %p607 = por %p605, %p606
      %p608 = scmp.ne.s32.totalorder %s599, %s600
      %p609 = scmp.eq.s32.totalorder %s127, 0
      %p610 = por %p608, %p609
      %p611 = scmp.ne.s32.totalorder %s599, %s600
      %p612 = scmp.eq.s32.totalorder %s128, 1
      %p613 = por %p611, %p612
      %p615 = scmp.ne.s32.totalorder %s600, %s614
      %p616 = scmp.eq.s32.totalorder %s128, 0
      %p617 = por %p615, %p616
      %s619 = sadd.s32 %s618, 1
      %p622 = scmp.eq.s32.totalorder %s122, 1
      %p623 = scmp.ne.s32.totalorder %s618, %s620
      %p624 = scmp.eq.s32.totalorder %s122, 0
      %p625 = por %p623, %p624
      %p626 = scmp.ne.s32.totalorder %s618, %s620
      %p627 = scmp.eq.s32.totalorder %s127, 1
      %p628 = por %p626, %p627
      %p629 = scmp.ne.s32.totalorder %s620, %s621
      %p630 = scmp.eq.s32.totalorder %s127, 0
      %p631 = por %p629, %p630
      %p632 = scmp.ne.s32.totalorder %s620, %s621
      %p633 = scmp.eq.s32.totalorder %s128, 1
      %p634 = por %p632, %p633
      %p636 = scmp.ne.s32.totalorder %s621, %s635
      %p637 = scmp.eq.s32.totalorder %s128, 0
      %p638 = por %p636, %p637
      %s640 = sadd.s32 %s639, 1
      %p643 = scmp.eq.s32.totalorder %s122, 1
      %p644 = scmp.ne.s32.totalorder %s639, %s641
      %p645 = scmp.eq.s32.totalorder %s122, 0
      %p646 = por %p644, %p645
      %p647 = scmp.ne.s32.totalorder %s639, %s641
      %p648 = scmp.eq.s32.totalorder %s127, 1
      %p649 = por %p647, %p648
      %p650 = scmp.ne.s32.totalorder %s641, %s642
      %p651 = scmp.eq.s32.totalorder %s127, 0
      %p652 = por %p650, %p651
      %p653 = scmp.ne.s32.totalorder %s641, %s642
      %p654 = scmp.eq.s32.totalorder %s128, 1
      %p655 = por %p653, %p654
      %p657 = scmp.ne.s32.totalorder %s642, %s656
      %p658 = scmp.eq.s32.totalorder %s128, 0
      %p659 = por %p657, %p658
      %s661 = sadd.s32 %s660, 1
      %p664 = scmp.eq.s32.totalorder %s122, 1
      %p665 = scmp.ne.s32.totalorder %s660, %s662
      %p666 = scmp.eq.s32.totalorder %s122, 0
      %p667 = por %p665, %p666
      %p668 = scmp.ne.s32.totalorder %s660, %s662
      %p669 = scmp.eq.s32.totalorder %s127, 1
      %p670 = por %p668, %p669
      %p671 = scmp.ne.s32.totalorder %s662, %s663
      %p672 = scmp.eq.s32.totalorder %s127, 0
      %p673 = por %p671, %p672
      %p674 = scmp.ne.s32.totalorder %s662, %s663
      %p675 = scmp.eq.s32.totalorder %s128, 1
      %p676 = por %p674, %p675
      %p678 = scmp.ne.s32.totalorder %s663, %s677
      %p679 = scmp.eq.s32.totalorder %s128, 0
      %p680 = por %p678, %p679
      %s682 = sadd.s32 %s681, 1
      %p685 = scmp.eq.s32.totalorder %s122, 1
      %p686 = scmp.ne.s32.totalorder %s681, %s683
      %p687 = scmp.eq.s32.totalorder %s122, 0
      %p688 = por %p686, %p687
      %p689 = scmp.ne.s32.totalorder %s681, %s683
      %p690 = scmp.eq.s32.totalorder %s127, 1
      %p691 = por %p689, %p690
      %p692 = scmp.ne.s32.totalorder %s683, %s684
      %p693 = scmp.eq.s32.totalorder %s127, 0
      %p694 = por %p692, %p693
      %p695 = scmp.ne.s32.totalorder %s683, %s684
      %p696 = scmp.eq.s32.totalorder %s128, 1
      %p697 = por %p695, %p696
      %p699 = scmp.ne.s32.totalorder %s684, %s698
      %p700 = scmp.eq.s32.totalorder %s128, 0
      %p701 = por %p699, %p700
      %s703 = sadd.s32 %s702, 1
      %p706 = scmp.eq.s32.totalorder %s122, 1
      %p707 = scmp.ne.s32.totalorder %s702, %s704
      %p708 = scmp.eq.s32.totalorder %s122, 0
      %p709 = por %p707, %p708
      %p710 = scmp.ne.s32.totalorder %s702, %s704
      %p711 = scmp.eq.s32.totalorder %s127, 1
      %p712 = por %p710, %p711
      %p713 = scmp.ne.s32.totalorder %s704, %s705
      %p714 = scmp.eq.s32.totalorder %s127, 0
      %p715 = por %p713, %p714
      %p716 = scmp.ne.s32.totalorder %s704, %s705
      %p717 = scmp.eq.s32.totalorder %s128, 1
      %p718 = por %p716, %p717
      %p720 = scmp.ne.s32.totalorder %s705, %s719
      %p721 = scmp.eq.s32.totalorder %s128, 0
      %p722 = por %p720, %p721
      %s724 = sadd.s32 %s723, 1
      %p727 = scmp.eq.s32.totalorder %s122, 1
      %p728 = scmp.ne.s32.totalorder %s723, %s725
      %p729 = scmp.eq.s32.totalorder %s122, 0
      %p730 = por %p728, %p729
      %p731 = scmp.ne.s32.totalorder %s723, %s725
      %p732 = scmp.eq.s32.totalorder %s127, 1
      %p733 = por %p731, %p732
      %p734 = scmp.ne.s32.totalorder %s725, %s726
      %p735 = scmp.eq.s32.totalorder %s127, 0
      %p736 = por %p734, %p735
      %p737 = scmp.ne.s32.totalorder %s725, %s726
      %p738 = scmp.eq.s32.totalorder %s128, 1
      %p739 = por %p737, %p738
      %p741 = scmp.ne.s32.totalorder %s726, %s740
      %p742 = scmp.eq.s32.totalorder %s128, 0
      %p743 = por %p741, %p742
      %s745 = sadd.s32 %s744, 1
      %p748 = scmp.eq.s32.totalorder %s122, 1
      %p749 = scmp.ne.s32.totalorder %s744, %s746
      %p750 = scmp.eq.s32.totalorder %s122, 0
      %p751 = por %p749, %p750
      %p752 = scmp.ne.s32.totalorder %s744, %s746
      %p753 = scmp.eq.s32.totalorder %s127, 1
      %p754 = por %p752, %p753
      %p755 = scmp.ne.s32.totalorder %s746, %s747
      %p756 = scmp.eq.s32.totalorder %s127, 0
      %p757 = por %p755, %p756
      %p758 = scmp.ne.s32.totalorder %s746, %s747
      %p759 = scmp.eq.s32.totalorder %s128, 1
      %p760 = por %p758, %p759
      %p762 = scmp.ne.s32.totalorder %s747, %s761
      %p763 = scmp.eq.s32.totalorder %s128, 0
      %p764 = por %p762, %p763
      %s766 = sadd.s32 %s765, 1
      %p769 = scmp.eq.s32.totalorder %s122, 1
      %p770 = scmp.ne.s32.totalorder %s765, %s767
      %p771 = scmp.eq.s32.totalorder %s122, 0
      %p772 = por %p770, %p771
      %p773 = scmp.ne.s32.totalorder %s765, %s767
      %p774 = scmp.eq.s32.totalorder %s127, 1
      %p775 = por %p773, %p774
      %p776 = scmp.ne.s32.totalorder %s767, %s768
      %p777 = scmp.eq.s32.totalorder %s127, 0
      %p778 = por %p776, %p777
      %p779 = scmp.ne.s32.totalorder %s767, %s768
      %p780 = scmp.eq.s32.totalorder %s128, 1
      %p781 = por %p779, %p780
      %p783 = scmp.ne.s32.totalorder %s768, %s782
      %p784 = scmp.eq.s32.totalorder %s128, 0
      %p785 = por %p783, %p784
      %s787 = sadd.s32 %s786, 1
      %p790 = scmp.eq.s32.totalorder %s122, 1
      %p791 = scmp.ne.s32.totalorder %s786, %s788
      %p792 = scmp.eq.s32.totalorder %s122, 0
      %p793 = por %p791, %p792
      %p794 = scmp.ne.s32.totalorder %s786, %s788
      %p795 = scmp.eq.s32.totalorder %s127, 1
      %p796 = por %p794, %p795
      %p797 = scmp.ne.s32.totalorder %s788, %s789
      %p798 = scmp.eq.s32.totalorder %s127, 0
      %p799 = por %p797, %p798
      %p800 = scmp.ne.s32.totalorder %s788, %s789
      %p801 = scmp.eq.s32.totalorder %s128, 1
      %p802 = por %p800, %p801
      %p804 = scmp.ne.s32.totalorder %s789, %s803
      %p805 = scmp.eq.s32.totalorder %s128, 0
      %p806 = por %p804, %p805
      %s808 = sadd.s32 %s807, 1
      %p811 = scmp.eq.s32.totalorder %s122, 1
      %p812 = scmp.ne.s32.totalorder %s807, %s809
      %p813 = scmp.eq.s32.totalorder %s122, 0
      %p814 = por %p812, %p813
      %p815 = scmp.ne.s32.totalorder %s807, %s809
      %p816 = scmp.eq.s32.totalorder %s127, 1
      %p817 = por %p815, %p816
      %p818 = scmp.ne.s32.totalorder %s809, %s810
      %p819 = scmp.eq.s32.totalorder %s127, 0
      %p820 = por %p818, %p819
      %p821 = scmp.ne.s32.totalorder %s809, %s810
      %p822 = scmp.eq.s32.totalorder %s128, 1
      %p823 = por %p821, %p822
      %p825 = scmp.ne.s32.totalorder %s810, %s824
      %p826 = scmp.eq.s32.totalorder %s128, 0
      %p827 = por %p825, %p826
      %s829 = sadd.s32 %s828, 1
      %p832 = scmp.eq.s32.totalorder %s122, 1
      %p833 = scmp.ne.s32.totalorder %s828, %s830
      %p834 = scmp.eq.s32.totalorder %s122, 0
      %p835 = por %p833, %p834
      %p836 = scmp.ne.s32.totalorder %s828, %s830
      %p837 = scmp.eq.s32.totalorder %s127, 1
      %p838 = por %p836, %p837
      %p839 = scmp.ne.s32.totalorder %s830, %s831
      %p840 = scmp.eq.s32.totalorder %s127, 0
      %p841 = por %p839, %p840
      %p842 = scmp.ne.s32.totalorder %s830, %s831
      %p843 = scmp.eq.s32.totalorder %s128, 1
      %p844 = por %p842, %p843
      %p846 = scmp.ne.s32.totalorder %s831, %s845
      %p847 = scmp.eq.s32.totalorder %s128, 0
      %p848 = por %p846, %p847
      %s850 = sadd.s32 %s849, 1
      %p853 = scmp.eq.s32.totalorder %s122, 1
      %p854 = scmp.ne.s32.totalorder %s849, %s851
      %p855 = scmp.eq.s32.totalorder %s122, 0
      %p856 = por %p854, %p855
      %p857 = scmp.ne.s32.totalorder %s849, %s851
      %p858 = scmp.eq.s32.totalorder %s127, 1
      %p859 = por %p857, %p858
      %p860 = scmp.ne.s32.totalorder %s851, %s852
      %p861 = scmp.eq.s32.totalorder %s127, 0
      %p862 = por %p860, %p861
      %p863 = scmp.ne.s32.totalorder %s851, %s852
      %p864 = scmp.eq.s32.totalorder %s128, 1
      %p865 = por %p863, %p864
      %p867 = scmp.ne.s32.totalorder %s852, %s866
      %p868 = scmp.eq.s32.totalorder %s128, 0
      %p869 = por %p867, %p868
      %s871 = sadd.s32 %s870, 1
      %p874 = scmp.eq.s32.totalorder %s122, 1
      %p875 = scmp.ne.s32.totalorder %s870, %s872
      %p876 = scmp.eq.s32.totalorder %s122, 0
      %p877 = por %p875, %p876
      %p878 = scmp.ne.s32.totalorder %s870, %s872
      %p879 = scmp.eq.s32.totalorder %s127, 1
      %p880 = por %p878, %p879
      %p881 = scmp.ne.s32.totalorder %s872, %s873
      %p882 = scmp.eq.s32.totalorder %s127, 0
      %p883 = por %p881, %p882
      %p884 = scmp.ne.s32.totalorder %s872, %s873
      %p885 = scmp.eq.s32.totalorder %s128, 1
      %p886 = por %p884, %p885
      %p888 = scmp.ne.s32.totalorder %s873, %s887
      %p889 = scmp.eq.s32.totalorder %s128, 0
      %p890 = por %p888, %p889
      %s892 = sadd.s32 %s891, 1
      %p895 = scmp.eq.s32.totalorder %s122, 1
      %p896 = scmp.ne.s32.totalorder %s891, %s893
      %p897 = scmp.eq.s32.totalorder %s122, 0
      %p898 = por %p896, %p897
      %p899 = scmp.ne.s32.totalorder %s891, %s893
      %p900 = scmp.eq.s32.totalorder %s127, 1
      %p901 = por %p899, %p900
      %p902 = scmp.ne.s32.totalorder %s893, %s894
      %p903 = scmp.eq.s32.totalorder %s127, 0
      %p904 = por %p902, %p903
      %p905 = scmp.ne.s32.totalorder %s893, %s894
      %p906 = scmp.eq.s32.totalorder %s128, 1
      %p907 = por %p905, %p906
      %p909 = scmp.ne.s32.totalorder %s894, %s908
      %p910 = scmp.eq.s32.totalorder %s128, 0
      %p911 = por %p909, %p910
      %s913 = sadd.s32 %s912, 1
      %p916 = scmp.eq.s32.totalorder %s122, 1
      %p917 = scmp.ne.s32.totalorder %s912, %s914
      %p918 = scmp.eq.s32.totalorder %s122, 0
      %p919 = por %p917, %p918
      %p920 = scmp.ne.s32.totalorder %s912, %s914
      %p921 = scmp.eq.s32.totalorder %s127, 1
      %p922 = por %p920, %p921
      %p923 = scmp.ne.s32.totalorder %s914, %s915
      %p924 = scmp.eq.s32.totalorder %s127, 0
      %p925 = por %p923, %p924
      %p926 = scmp.ne.s32.totalorder %s914, %s915
      %p927 = scmp.eq.s32.totalorder %s128, 1
      %p928 = por %p926, %p927
      %p930 = scmp.ne.s32.totalorder %s915, %s929
      %p931 = scmp.eq.s32.totalorder %s128, 0
      %p932 = por %p930, %p931
      %s934 = sadd.s32 %s933, 1
      %p937 = scmp.eq.s32.totalorder %s122, 1
      %p938 = scmp.ne.s32.totalorder %s933, %s935
      %p939 = scmp.eq.s32.totalorder %s122, 0
      %p940 = por %p938, %p939
      %p941 = scmp.ne.s32.totalorder %s933, %s935
      %p942 = scmp.eq.s32.totalorder %s127, 1
      %p943 = por %p941, %p942
      %p944 = scmp.ne.s32.totalorder %s935, %s936
      %p945 = scmp.eq.s32.totalorder %s127, 0
      %p946 = por %p944, %p945
      %p947 = scmp.ne.s32.totalorder %s935, %s936
      %p948 = scmp.eq.s32.totalorder %s128, 1
      %p949 = por %p947, %p948
      %p951 = scmp.ne.s32.totalorder %s936, %s950
      %p952 = scmp.eq.s32.totalorder %s128, 0
      %p953 = por %p951, %p952
      %s955 = sadd.s32 %s954, 1
      %p958 = scmp.eq.s32.totalorder %s122, 1
      %p959 = scmp.ne.s32.totalorder %s954, %s956
      %p960 = scmp.eq.s32.totalorder %s122, 0
      %p961 = por %p959, %p960
      %p962 = scmp.ne.s32.totalorder %s954, %s956
      %p963 = scmp.eq.s32.totalorder %s127, 1
      %p964 = por %p962, %p963
      %p965 = scmp.ne.s32.totalorder %s956, %s957
      %p966 = scmp.eq.s32.totalorder %s127, 0
      %p967 = por %p965, %p966
      %p968 = scmp.ne.s32.totalorder %s956, %s957
      %p969 = scmp.eq.s32.totalorder %s128, 1
      %p970 = por %p968, %p969
      %p972 = scmp.ne.s32.totalorder %s957, %s971
      %p973 = scmp.eq.s32.totalorder %s128, 0
      %p974 = por %p972, %p973
      %s976 = sadd.s32 %s975, 1
      %p979 = scmp.eq.s32.totalorder %s122, 1
      %p980 = scmp.ne.s32.totalorder %s975, %s977
      %p981 = scmp.eq.s32.totalorder %s122, 0
      %p982 = por %p980, %p981
      %p983 = scmp.ne.s32.totalorder %s975, %s977
      %p984 = scmp.eq.s32.totalorder %s127, 1
      %p985 = por %p983, %p984
      %p986 = scmp.ne.s32.totalorder %s977, %s978
      %p987 = scmp.eq.s32.totalorder %s127, 0
      %p988 = por %p986, %p987
      %p989 = scmp.ne.s32.totalorder %s977, %s978
      %p990 = scmp.eq.s32.totalorder %s128, 1
      %p991 = por %p989, %p990
      %p993 = scmp.ne.s32.totalorder %s978, %s992
      %p994 = scmp.eq.s32.totalorder %s128, 0
      %p995 = por %p993, %p994
      %s997 = sadd.s32 %s996, 1
      %p1000 = scmp.eq.s32.totalorder %s122, 1
      %p1001 = scmp.ne.s32.totalorder %s996, %s998
      %p1002 = scmp.eq.s32.totalorder %s122, 0
      %p1003 = por %p1001, %p1002
      %p1004 = scmp.ne.s32.totalorder %s996, %s998
      %p1005 = scmp.eq.s32.totalorder %s127, 1
      %p1006 = por %p1004, %p1005
      %p1007 = scmp.ne.s32.totalorder %s998, %s999
      %p1008 = scmp.eq.s32.totalorder %s127, 0
      %p1009 = por %p1007, %p1008
      %p1010 = scmp.ne.s32.totalorder %s998, %s999
      %p1011 = scmp.eq.s32.totalorder %s128, 1
      %p1012 = por %p1010, %p1011
      %p1014 = scmp.ne.s32.totalorder %s999, %s1013
      %p1015 = scmp.eq.s32.totalorder %s128, 0
      %p1016 = por %p1014, %p1015
      %s1018 = sadd.s32 %s1017, 1
      %p1021 = scmp.eq.s32.totalorder %s122, 1
      %p1022 = scmp.ne.s32.totalorder %s1017, %s1019
      %p1023 = scmp.eq.s32.totalorder %s122, 0
      %p1024 = por %p1022, %p1023
      %p1025 = scmp.ne.s32.totalorder %s1017, %s1019
      %p1026 = scmp.eq.s32.totalorder %s127, 1
      %p1027 = por %p1025, %p1026
      %p1028 = scmp.ne.s32.totalorder %s1019, %s1020
      %p1029 = scmp.eq.s32.totalorder %s127, 0
      %p1030 = por %p1028, %p1029
      %p1031 = scmp.ne.s32.totalorder %s1019, %s1020
      %p1032 = scmp.eq.s32.totalorder %s128, 1
      %p1033 = por %p1031, %p1032
      %p1035 = scmp.ne.s32.totalorder %s1020, %s1034
      %p1036 = scmp.eq.s32.totalorder %s128, 0
      %p1037 = por %p1035, %p1036
      %s1039 = sadd.s32 %s1038, 1
      %p1042 = scmp.eq.s32.totalorder %s122, 1
      %p1043 = scmp.ne.s32.totalorder %s1038, %s1040
      %p1044 = scmp.eq.s32.totalorder %s122, 0
      %p1045 = por %p1043, %p1044
      %p1046 = scmp.ne.s32.totalorder %s1038, %s1040
      %p1047 = scmp.eq.s32.totalorder %s127, 1
      %p1048 = por %p1046, %p1047
      %p1049 = scmp.ne.s32.totalorder %s1040, %s1041
      %p1050 = scmp.eq.s32.totalorder %s127, 0
      %p1051 = por %p1049, %p1050
      %p1052 = scmp.ne.s32.totalorder %s1040, %s1041
      %p1053 = scmp.eq.s32.totalorder %s128, 1
      %p1054 = por %p1052, %p1053
      %p1056 = scmp.ne.s32.totalorder %s1041, %s1055
      %p1057 = scmp.eq.s32.totalorder %s128, 0
      %p1058 = por %p1056, %p1057
      %s1060 = sadd.s32 %s1059, 1
      %p1063 = scmp.eq.s32.totalorder %s122, 1
      %p1064 = scmp.ne.s32.totalorder %s1059, %s1061
      %p1065 = scmp.eq.s32.totalorder %s122, 0
      %p1066 = por %p1064, %p1065
      %p1067 = scmp.ne.s32.totalorder %s1059, %s1061
      %p1068 = scmp.eq.s32.totalorder %s127, 1
      %p1069 = por %p1067, %p1068
      %p1070 = scmp.ne.s32.totalorder %s1061, %s1062
      %p1071 = scmp.eq.s32.totalorder %s127, 0
      %p1072 = por %p1070, %p1071
      %p1073 = scmp.ne.s32.totalorder %s1061, %s1062
      %p1074 = scmp.eq.s32.totalorder %s128, 1
      %p1075 = por %p1073, %p1074
      %p1077 = scmp.ne.s32.totalorder %s1062, %s1076
      %p1078 = scmp.eq.s32.totalorder %s128, 0
      %p1079 = por %p1077, %p1078
      %s1081 = sadd.s32 %s1080, 1
      %p1084 = scmp.eq.s32.totalorder %s122, 1
      %p1085 = scmp.ne.s32.totalorder %s1080, %s1082
      %p1086 = scmp.eq.s32.totalorder %s122, 0
      %p1087 = por %p1085, %p1086
      %p1088 = scmp.ne.s32.totalorder %s1080, %s1082
      %p1089 = scmp.eq.s32.totalorder %s127, 1
      %p1090 = por %p1088, %p1089
      %p1091 = scmp.ne.s32.totalorder %s1082, %s1083
      %p1092 = scmp.eq.s32.totalorder %s127, 0
      %p1093 = por %p1091, %p1092
      %p1094 = scmp.ne.s32.totalorder %s1082, %s1083
      %p1095 = scmp.eq.s32.totalorder %s128, 1
      %p1096 = por %p1094, %p1095
      %p1098 = scmp.ne.s32.totalorder %s1083, %s1097
      %p1099 = scmp.eq.s32.totalorder %s128, 0
      %p1100 = por %p1098, %p1099
      %s1102 = sadd.s32 %s1101, 1
      %p1105 = scmp.eq.s32.totalorder %s122, 1
      %p1106 = scmp.ne.s32.totalorder %s1101, %s1103
      %p1107 = scmp.eq.s32.totalorder %s122, 0
      %p1108 = por %p1106, %p1107
      %p1109 = scmp.ne.s32.totalorder %s1101, %s1103
      %p1110 = scmp.eq.s32.totalorder %s127, 1
      %p1111 = por %p1109, %p1110
      %p1112 = scmp.ne.s32.totalorder %s1103, %s1104
      %p1113 = scmp.eq.s32.totalorder %s127, 0
      %p1114 = por %p1112, %p1113
      %p1115 = scmp.ne.s32.totalorder %s1103, %s1104
      %p1116 = scmp.eq.s32.totalorder %s128, 1
      %p1117 = por %p1115, %p1116
      %p1119 = scmp.ne.s32.totalorder %s1104, %s1118
      %p1120 = scmp.eq.s32.totalorder %s128, 0
      %p1121 = por %p1119, %p1120
      %s1123 = sadd.s32 %s1122, 1
      %p1126 = scmp.eq.s32.totalorder %s122, 1
      %p1127 = scmp.ne.s32.totalorder %s1122, %s1124
      %p1128 = scmp.eq.s32.totalorder %s122, 0
      %p1129 = por %p1127, %p1128
      %p1130 = scmp.ne.s32.totalorder %s1122, %s1124
      %p1131 = scmp.eq.s32.totalorder %s127, 1
      %p1132 = por %p1130, %p1131
      %p1133 = scmp.ne.s32.totalorder %s1124, %s1125
      %p1134 = scmp.eq.s32.totalorder %s127, 0
      %p1135 = por %p1133, %p1134
      %p1136 = scmp.ne.s32.totalorder %s1124, %s1125
      %p1137 = scmp.eq.s32.totalorder %s128, 1
      %p1138 = por %p1136, %p1137
      %p1140 = scmp.ne.s32.totalorder %s1125, %s1139
      %p1141 = scmp.eq.s32.totalorder %s128, 0
      %p1142 = por %p1140, %p1141
      %s1144 = sadd.s32 %s1143, 1
      %p1147 = scmp.eq.s32.totalorder %s122, 1
      %p1148 = scmp.ne.s32.totalorder %s1143, %s1145
      %p1149 = scmp.eq.s32.totalorder %s122, 0
      %p1150 = por %p1148, %p1149
      %p1151 = scmp.ne.s32.totalorder %s1143, %s1145
      %p1152 = scmp.eq.s32.totalorder %s127, 1
      %p1153 = por %p1151, %p1152
      %p1154 = scmp.ne.s32.totalorder %s1145, %s1146
      %p1155 = scmp.eq.s32.totalorder %s127, 0
      %p1156 = por %p1154, %p1155
      %p1157 = scmp.ne.s32.totalorder %s1145, %s1146
      %p1158 = scmp.eq.s32.totalorder %s128, 1
      %p1159 = por %p1157, %p1158
      %p1161 = scmp.ne.s32.totalorder %s1146, %s1160
      %p1162 = scmp.eq.s32.totalorder %s128, 0
      %p1163 = por %p1161, %p1162
      %s1165 = sadd.s32 %s1164, 1
      %p1168 = scmp.eq.s32.totalorder %s122, 1
      %p1169 = scmp.ne.s32.totalorder %s1164, %s1166
      %p1170 = scmp.eq.s32.totalorder %s122, 0
      %p1171 = por %p1169, %p1170
      %p1172 = scmp.ne.s32.totalorder %s1164, %s1166
      %p1173 = scmp.eq.s32.totalorder %s127, 1
      %p1174 = por %p1172, %p1173
      %p1175 = scmp.ne.s32.totalorder %s1166, %s1167
      %p1176 = scmp.eq.s32.totalorder %s127, 0
      %p1177 = por %p1175, %p1176
      %p1178 = scmp.ne.s32.totalorder %s1166, %s1167
      %p1179 = scmp.eq.s32.totalorder %s128, 1
      %p1180 = por %p1178, %p1179
      %p1182 = scmp.ne.s32.totalorder %s1167, %s1181
      %p1183 = scmp.eq.s32.totalorder %s128, 0
      %p1184 = por %p1182, %p1183
      %s1186 = sadd.s32 %s1185, 1
      %p1189 = scmp.eq.s32.totalorder %s122, 1
      %p1190 = scmp.ne.s32.totalorder %s1185, %s1187
      %p1191 = scmp.eq.s32.totalorder %s122, 0
      %p1192 = por %p1190, %p1191
      %p1193 = scmp.ne.s32.totalorder %s1185, %s1187
      %p1194 = scmp.eq.s32.totalorder %s127, 1
      %p1195 = por %p1193, %p1194
      %p1196 = scmp.ne.s32.totalorder %s1187, %s1188
      %p1197 = scmp.eq.s32.totalorder %s127, 0
      %p1198 = por %p1196, %p1197
      %p1199 = scmp.ne.s32.totalorder %s1187, %s1188
      %p1200 = scmp.eq.s32.totalorder %s128, 1
      %p1201 = por %p1199, %p1200
      %p1203 = scmp.ne.s32.totalorder %s1188, %s1202
      %p1204 = scmp.eq.s32.totalorder %s128, 0
      %p1205 = por %p1203, %p1204
      %s1207 = sadd.s32 %s1206, 1
      %p1210 = scmp.eq.s32.totalorder %s122, 1
      %p1211 = scmp.ne.s32.totalorder %s1206, %s1208
      %p1212 = scmp.eq.s32.totalorder %s122, 0
      %p1213 = por %p1211, %p1212
      %p1214 = scmp.ne.s32.totalorder %s1206, %s1208
      %p1215 = scmp.eq.s32.totalorder %s127, 1
      %p1216 = por %p1214, %p1215
      %p1217 = scmp.ne.s32.totalorder %s1208, %s1209
      %p1218 = scmp.eq.s32.totalorder %s127, 0
      %p1219 = por %p1217, %p1218
      %p1220 = scmp.ne.s32.totalorder %s1208, %s1209
      %p1221 = scmp.eq.s32.totalorder %s128, 1
      %p1222 = por %p1220, %p1221
      %p1224 = scmp.ne.s32.totalorder %s1209, %s1223
      %p1225 = scmp.eq.s32.totalorder %s128, 0
      %p1226 = por %p1224, %p1225
      %s1228 = sadd.s32 %s1227, 1
      %p1231 = scmp.eq.s32.totalorder %s122, 1
      %p1232 = scmp.ne.s32.totalorder %s1227, %s1229
      %p1233 = scmp.eq.s32.totalorder %s122, 0
      %p1234 = por %p1232, %p1233
      %p1235 = scmp.ne.s32.totalorder %s1227, %s1229
      %p1236 = scmp.eq.s32.totalorder %s127, 1
      %p1237 = por %p1235, %p1236
      %p1238 = scmp.ne.s32.totalorder %s1229, %s1230
      %p1239 = scmp.eq.s32.totalorder %s127, 0
      %p1240 = por %p1238, %p1239
      %p1241 = scmp.ne.s32.totalorder %s1229, %s1230
      %p1242 = scmp.eq.s32.totalorder %s128, 1
      %p1243 = por %p1241, %p1242
      %p1245 = scmp.ne.s32.totalorder %s1230, %s1244
      %p1246 = scmp.eq.s32.totalorder %s128, 0
      %p1247 = por %p1245, %p1246
      %s1248 = ssub.s32 %s122, %s129
      %p1249 = scmp.eq.s32.totalorder %s1248, 0
      %s1251 = sadd.s32 %s1250, 1
      %s1252 = scalar_select %p1249, %s1250, %s1251
      %p1255 = pneg %p1249
      %p1256 = scmp.eq.s32.totalorder %s122, 1
      %p1257 = por %p1255, %p1256
      %p1258 = scmp.ne.s32.totalorder %s1250, %s1253
      %p1259 = scmp.eq.s32.totalorder %s122, 0
      %p1260 = por %p1258, %p1259
      %p1261 = scmp.ne.s32.totalorder %s1250, %s1253
      %p1262 = scmp.eq.s32.totalorder %s127, 1
      %p1263 = por %p1261, %p1262
      %p1264 = scmp.ne.s32.totalorder %s1253, %s1254
      %p1265 = scmp.eq.s32.totalorder %s127, 0
      %p1266 = por %p1264, %p1265
      %p1267 = scmp.ne.s32.totalorder %s1253, %s1254
      %p1268 = scmp.eq.s32.totalorder %s128, 1
      %p1269 = por %p1267, %p1268
      %p1271 = scmp.ne.s32.totalorder %s1254, %s1270
      %p1272 = scmp.eq.s32.totalorder %s128, 0
      %p1273 = por %p1271, %p1272
      %p1274 = scmp.le.s32.totalorder 1, %s122
      %p1275 = scmp.lt.s32.totalorder %s122, 3
      %p1276 = pnand %p1274, %p1275
      %p1277 = pneg %p1276
      // Predicated region
      $region9: #{modified_convnext_forward.1} parent=5 // pred_check
        _
      $region10: #{modified_convnext_forward.1} parent=5 // pred_check_branch
        %1279 = sbr.rel (%p1276) target = $region12
      $region11: #{modified_convnext_forward.1} parent=5 // pred_region
        %s1280 = ssub.s32 %s122, 1
        // Predicated region
        $region13: #{modified_convnext_forward.1} parent=11 // pred_check
          %p1281 = pneg %p169
        $region14: #{modified_convnext_forward.1} parent=11 // pred_check_branch
          %1283 = sbr.rel (%p1281) target = $region16
        $region15: #{modified_convnext_forward.1} parent=11 // pred_region
          _
        $region16: #{modified_convnext_forward.1} parent=11 // pred_fallthru
          _
        // Predicated region
        $region17: #{modified_convnext_forward.1} parent=11 // pred_check
          %p1284 = pneg %p190
        $region18: #{modified_convnext_forward.1} parent=11 // pred_check_branch
          %1286 = sbr.rel (%p1284) target = $region20
        $region19: #{modified_convnext_forward.1} parent=11 // pred_region
          _
        $region20: #{modified_convnext_forward.1} parent=11 // pred_fallthru
          _
        // Predicated region
        $region21: #{modified_convnext_forward.1} parent=11 // pred_check
          %p1287 = pneg %p211
        $region22: #{modified_convnext_forward.1} parent=11 // pred_check_branch
          %1289 = sbr.rel (%p1287) target = $region24
        $region23: #{modified_convnext_forward.1} parent=11 // pred_region
          _
        $region24: #{modified_convnext_forward.1} parent=11 // pred_fallthru
          _
        // Predicated region
        $region25: #{modified_convnext_forward.1} parent=11 // pred_check
          %p1290 = pneg %p232
        $region26: #{modified_convnext_forward.1} parent=11 // pred_check_branch
          %1292 = sbr.rel (%p1290) target = $region28
        $region27: #{modified_convnext_forward.1} parent=11 // pred_region
          _
        $region28: #{modified_convnext_forward.1} parent=11 // pred_fallthru
          _
        // Predicated region
        $region29: #{modified_convnext_forward.1} parent=11 // pred_check
          %p1293 = pneg %p253
        $region30: #{modified_convnext_forward.1} parent=11 // pred_check_branch
          %1295 = sbr.rel (%p1293) target = $region32
        $region31: #{modified_convnext_forward.1} parent=11 // pred_region
          _
        $region32: #{modified_convnext_forward.1} parent=11 // pred_fallthru
          _
        // Predicated region
        $region33: #{modified_convnext_forward.1} parent=11 // pred_check
          %p1296 = pneg %p274
        $region34: #{modified_convnext_forward.1} parent=11 // pred_check_branch
          %1298 = sbr.rel (%p1296) target = $region36
        $region35: #{modified_convnext_forward.1} parent=11 // pred_region
          _
        $region36: #{modified_convnext_forward.1} parent=11 // pred_fallthru
          _
        // Predicated region
        $region37: #{modified_convnext_forward.1} parent=11 // pred_check
          %p1299 = pneg %p295
        $region38: #{modified_convnext_forward.1} parent=11 // pred_check_branch
          %1301 = sbr.rel (%p1299) target = $region40
        $region39: #{modified_convnext_forward.1} parent=11 // pred_region
          _
        $region40: #{modified_convnext_forward.1} parent=11 // pred_fallthru
          _
        // Predicated region
        $region41: #{modified_convnext_forward.1} parent=11 // pred_check
          %p1302 = pneg %p316
        $region42: #{modified_convnext_forward.1} parent=11 // pred_check_branch
          %1304 = sbr.rel (%p1302) target = $region44
        $region43: #{modified_convnext_forward.1} parent=11 // pred_region
          _
        $region44: #{modified_convnext_forward.1} parent=11 // pred_fallthru
          _
        // Predicated region
        $region45: #{modified_convnext_forward.1} parent=11 // pred_check
          %p1305 = pneg %p337
        $region46: #{modified_convnext_forward.1} parent=11 // pred_check_branch
          %1307 = sbr.rel (%p1305) target = $region48
        $region47: #{modified_convnext_forward.1} parent=11 // pred_region
          _
        $region48: #{modified_convnext_forward.1} parent=11 // pred_fallthru
          _
        // Predicated region
        $region49: #{modified_convnext_forward.1} parent=11 // pred_check
          %p1308 = pneg %p358
        $region50: #{modified_convnext_forward.1} parent=11 // pred_check_branch
          %1310 = sbr.rel (%p1308) target = $region52
        $region51: #{modified_convnext_forward.1} parent=11 // pred_region
          _
        $region52: #{modified_convnext_forward.1} parent=11 // pred_fallthru
          _
        // Predicated region
        $region53: #{modified_convnext_forward.1} parent=11 // pred_check
          %p1311 = pneg %p379
        $region54: #{modified_convnext_forward.1} parent=11 // pred_check_branch
          %1313 = sbr.rel (%p1311) target = $region56
        $region55: #{modified_convnext_forward.1} parent=11 // pred_region
          _
        $region56: #{modified_convnext_forward.1} parent=11 // pred_fallthru
          _
        // Predicated region
        $region57: #{modified_convnext_forward.1} parent=11 // pred_check
          %p1314 = pneg %p400
        $region58: #{modified_convnext_forward.1} parent=11 // pred_check_branch
          %1316 = sbr.rel (%p1314) target = $region60
        $region59: #{modified_convnext_forward.1} parent=11 // pred_region
          _
        $region60: #{modified_convnext_forward.1} parent=11 // pred_fallthru
          _
        // Predicated region
        $region61: #{modified_convnext_forward.1} parent=11 // pred_check
          %p1317 = pneg %p421
        $region62: #{modified_convnext_forward.1} parent=11 // pred_check_branch
          %1319 = sbr.rel (%p1317) target = $region64
        $region63: #{modified_convnext_forward.1} parent=11 // pred_region
          _
        $region64: #{modified_convnext_forward.1} parent=11 // pred_fallthru
          _
        // Predicated region
        $region65: #{modified_convnext_forward.1} parent=11 // pred_check
          %p1320 = pneg %p442
        $region66: #{modified_convnext_forward.1} parent=11 // pred_check_branch
          %1322 = sbr.rel (%p1320) target = $region68
        $region67: #{modified_convnext_forward.1} parent=11 // pred_region
          _
        $region68: #{modified_convnext_forward.1} parent=11 // pred_fallthru
          _
        // Predicated region
        $region69: #{modified_convnext_forward.1} parent=11 // pred_check
          %p1323 = pneg %p463
        $region70: #{modified_convnext_forward.1} parent=11 // pred_check_branch
          %1325 = sbr.rel (%p1323) target = $region72
        $region71: #{modified_convnext_forward.1} parent=11 // pred_region
          _
        $region72: #{modified_convnext_forward.1} parent=11 // pred_fallthru
          _
        // Predicated region
        $region73: #{modified_convnext_forward.1} parent=11 // pred_check
          %p1326 = pneg %p484
        $region74: #{modified_convnext_forward.1} parent=11 // pred_check_branch
          %1328 = sbr.rel (%p1326) target = $region76
        $region75: #{modified_convnext_forward.1} parent=11 // pred_region
          _
        $region76: #{modified_convnext_forward.1} parent=11 // pred_fallthru
          _
        // Predicated region
        $region77: #{modified_convnext_forward.1} parent=11 // pred_check
          %p1329 = pneg %p505
        $region78: #{modified_convnext_forward.1} parent=11 // pred_check_branch
          %1331 = sbr.rel (%p1329) target = $region80
        $region79: #{modified_convnext_forward.1} parent=11 // pred_region
          _
        $region80: #{modified_convnext_forward.1} parent=11 // pred_fallthru
          _
        // Predicated region
        $region81: #{modified_convnext_forward.1} parent=11 // pred_check
          %p1332 = pneg %p526
        $region82: #{modified_convnext_forward.1} parent=11 // pred_check_branch
          %1334 = sbr.rel (%p1332) target = $region84
        $region83: #{modified_convnext_forward.1} parent=11 // pred_region
          _
        $region84: #{modified_convnext_forward.1} parent=11 // pred_fallthru
          _
        // Predicated region
        $region85: #{modified_convnext_forward.1} parent=11 // pred_check
          %p1335 = pneg %p547
        $region86: #{modified_convnext_forward.1} parent=11 // pred_check_branch
          %1337 = sbr.rel (%p1335) target = $region88
        $region87: #{modified_convnext_forward.1} parent=11 // pred_region
          _
        $region88: #{modified_convnext_forward.1} parent=11 // pred_fallthru
          _
        // Predicated region
        $region89: #{modified_convnext_forward.1} parent=11 // pred_check
          %p1338 = pneg %p568
        $region90: #{modified_convnext_forward.1} parent=11 // pred_check_branch
          %1340 = sbr.rel (%p1338) target = $region92
        $region91: #{modified_convnext_forward.1} parent=11 // pred_region
          _
        $region92: #{modified_convnext_forward.1} parent=11 // pred_fallthru
          _
        // Predicated region
        $region93: #{modified_convnext_forward.1} parent=11 // pred_check
          %p1341 = pneg %p589
        $region94: #{modified_convnext_forward.1} parent=11 // pred_check_branch
          %1343 = sbr.rel (%p1341) target = $region96
        $region95: #{modified_convnext_forward.1} parent=11 // pred_region
          _
        $region96: #{modified_convnext_forward.1} parent=11 // pred_fallthru
          _
        // Predicated region
        $region97: #{modified_convnext_forward.1} parent=11 // pred_check
          %p1344 = pneg %p610
        $region98: #{modified_convnext_forward.1} parent=11 // pred_check_branch
          %1346 = sbr.rel (%p1344) target = $region100
        $region99: #{modified_convnext_forward.1} parent=11 // pred_region
          _
        $region100: #{modified_convnext_forward.1} parent=11 // pred_fallthru
          _
        // Predicated region
        $region101: #{modified_convnext_forward.1} parent=11 // pred_check
          %p1347 = pneg %p631
        $region102: #{modified_convnext_forward.1} parent=11 // pred_check_branch
          %1349 = sbr.rel (%p1347) target = $region104
        $region103: #{modified_convnext_forward.1} parent=11 // pred_region
          _
        $region104: #{modified_convnext_forward.1} parent=11 // pred_fallthru
          _
        // Predicated region
        $region105: #{modified_convnext_forward.1} parent=11 // pred_check
          %p1350 = pneg %p652
        $region106: #{modified_convnext_forward.1} parent=11 // pred_check_branch
          %1352 = sbr.rel (%p1350) target = $region108
        $region107: #{modified_convnext_forward.1} parent=11 // pred_region
          _
        $region108: #{modified_convnext_forward.1} parent=11 // pred_fallthru
          _
        // Predicated region
        $region109: #{modified_convnext_forward.1} parent=11 // pred_check
          %p1353 = pneg %p673
        $region110: #{modified_convnext_forward.1} parent=11 // pred_check_branch
          %1355 = sbr.rel (%p1353) target = $region112
        $region111: #{modified_convnext_forward.1} parent=11 // pred_region
          _
        $region112: #{modified_convnext_forward.1} parent=11 // pred_fallthru
          _
        // Predicated region
        $region113: #{modified_convnext_forward.1} parent=11 // pred_check
          %p1356 = pneg %p694
        $region114: #{modified_convnext_forward.1} parent=11 // pred_check_branch
          %1358 = sbr.rel (%p1356) target = $region116
        $region115: #{modified_convnext_forward.1} parent=11 // pred_region
          _
        $region116: #{modified_convnext_forward.1} parent=11 // pred_fallthru
          _
        // Predicated region
        $region117: #{modified_convnext_forward.1} parent=11 // pred_check
          %p1359 = pneg %p715
        $region118: #{modified_convnext_forward.1} parent=11 // pred_check_branch
          %1361 = sbr.rel (%p1359) target = $region120
        $region119: #{modified_convnext_forward.1} parent=11 // pred_region
          _
        $region120: #{modified_convnext_forward.1} parent=11 // pred_fallthru
          _
        // Predicated region
        $region121: #{modified_convnext_forward.1} parent=11 // pred_check
          %p1362 = pneg %p736
        $region122: #{modified_convnext_forward.1} parent=11 // pred_check_branch
          %1364 = sbr.rel (%p1362) target = $region124
        $region123: #{modified_convnext_forward.1} parent=11 // pred_region
          %s1366 = ssub.s32 16, 16
          %1367 = vsyncadd [#allocation4], %s1366
          %s1369 = sshll.u32 [#allocation3], 4
          %s1370 = int_to_ptr.vmem [resolvable:$true] %s1369
          %1372 = dma.hbm_to_vmem [thread:$0]  %s57, 16, %s1370, [#allocation4]
        $region124: #{modified_convnext_forward.1} parent=11 // pred_fallthru
          _
        // Predicated region
        $region125: #{modified_convnext_forward.1} parent=11 // pred_check
          %p1373 = pneg %p757
        $region126: #{modified_convnext_forward.1} parent=11 // pred_check_branch
          %1375 = sbr.rel (%p1373) target = $region128
        $region127: #{modified_convnext_forward.1} parent=11 // pred_region
          %s1377 = ssub.s32 16, 16
          %1378 = vsyncadd [#allocation6], %s1377
          %s1380 = sshll.u32 [#allocation5], 4
          %s1381 = int_to_ptr.vmem [resolvable:$true] %s1380
          %1383 = dma.hbm_to_vmem [thread:$0]  %s59, 16, %s1381, [#allocation6]
        $region128: #{modified_convnext_forward.1} parent=11 // pred_fallthru
          _
        // Predicated region
        $region129: #{modified_convnext_forward.1} parent=11 // pred_check
          %p1384 = pneg %p778
        $region130: #{modified_convnext_forward.1} parent=11 // pred_check_branch
          %1386 = sbr.rel (%p1384) target = $region132
        $region131: #{modified_convnext_forward.1} parent=11 // pred_region
          _
        $region132: #{modified_convnext_forward.1} parent=11 // pred_fallthru
          _
        // Predicated region
        $region133: #{modified_convnext_forward.1} parent=11 // pred_check
          %p1387 = pneg %p799
        $region134: #{modified_convnext_forward.1} parent=11 // pred_check_branch
          %1389 = sbr.rel (%p1387) target = $region136
        $region135: #{modified_convnext_forward.1} parent=11 // pred_region
          _
        $region136: #{modified_convnext_forward.1} parent=11 // pred_fallthru
          _
        // Predicated region
        $region137: #{modified_convnext_forward.1} parent=11 // pred_check
          %p1390 = pneg %p820
        $region138: #{modified_convnext_forward.1} parent=11 // pred_check_branch
          %1392 = sbr.rel (%p1390) target = $region140
        $region139: #{modified_convnext_forward.1} parent=11 // pred_region
          _
        $region140: #{modified_convnext_forward.1} parent=11 // pred_fallthru
          _
        // Predicated region
        $region141: #{modified_convnext_forward.1} parent=11 // pred_check
          %p1393 = pneg %p841
        $region142: #{modified_convnext_forward.1} parent=11 // pred_check_branch
          %1395 = sbr.rel (%p1393) target = $region144
        $region143: #{modified_convnext_forward.1} parent=11 // pred_region
          %s1397 = ssub.s32 16, 16
          %1398 = vsyncadd [#allocation6], %s1397
          %s1400 = sshll.u32 [#allocation7], 4
          %s1401 = int_to_ptr.vmem [resolvable:$true] %s1400
          %1403 = dma.hbm_to_vmem [thread:$0]  %s67, 16, %s1401, [#allocation6]
        $region144: #{modified_convnext_forward.1} parent=11 // pred_fallthru
          _
        // Predicated region
        $region145: #{modified_convnext_forward.1} parent=11 // pred_check
          %p1404 = pneg %p862
        $region146: #{modified_convnext_forward.1} parent=11 // pred_check_branch
          %1406 = sbr.rel (%p1404) target = $region148
        $region147: #{modified_convnext_forward.1} parent=11 // pred_region
          %s1408 = ssub.s32 16, 16
          %1409 = vsyncadd [#allocation9], %s1408
          %s1411 = sshll.u32 [#allocation8], 4
          %s1412 = int_to_ptr.vmem [resolvable:$true] %s1411
          %1414 = dma.hbm_to_vmem [thread:$0]  %s69, 16, %s1412, [#allocation9]
        $region148: #{modified_convnext_forward.1} parent=11 // pred_fallthru
          _
        // Predicated region
        $region149: #{modified_convnext_forward.1} parent=11 // pred_check
          %p1415 = pneg %p883
        $region150: #{modified_convnext_forward.1} parent=11 // pred_check_branch
          %1417 = sbr.rel (%p1415) target = $region152
        $region151: #{modified_convnext_forward.1} parent=11 // pred_region
          %s1419 = ssub.s32 16, 16
          %1420 = vsyncadd [#allocation9], %s1419
          %s1422 = sshll.u32 [#allocation10], 4
          %s1423 = int_to_ptr.vmem [resolvable:$true] %s1422
          %1425 = dma.hbm_to_vmem [thread:$0]  %s71, 16, %s1423, [#allocation9]
        $region152: #{modified_convnext_forward.1} parent=11 // pred_fallthru
          _
        // Predicated region
        $region153: #{modified_convnext_forward.1} parent=11 // pred_check
          %p1426 = pneg %p904
        $region154: #{modified_convnext_forward.1} parent=11 // pred_check_branch
          %1428 = sbr.rel (%p1426) target = $region156
        $region155: #{modified_convnext_forward.1} parent=11 // pred_region
          %s1430 = ssub.s32 16, 16
          %1431 = vsyncadd [#allocation12], %s1430
          %s1433 = sshll.u32 [#allocation11], 4
          %s1434 = int_to_ptr.vmem [resolvable:$true] %s1433
          %1436 = dma.hbm_to_vmem [thread:$0]  %s73, 16, %s1434, [#allocation12]
        $region156: #{modified_convnext_forward.1} parent=11 // pred_fallthru
          _
        // Predicated region
        $region157: #{modified_convnext_forward.1} parent=11 // pred_check
          %p1437 = pneg %p925
        $region158: #{modified_convnext_forward.1} parent=11 // pred_check_branch
          %1439 = sbr.rel (%p1437) target = $region160
        $region159: #{modified_convnext_forward.1} parent=11 // pred_region
          %s1441 = ssub.s32 16, 16
          %1442 = vsyncadd [#allocation12], %s1441
          %s1444 = sshll.u32 [#allocation13], 4
          %s1445 = int_to_ptr.vmem [resolvable:$true] %s1444
          %1447 = dma.hbm_to_vmem [thread:$0]  %s75, 16, %s1445, [#allocation12]
        $region160: #{modified_convnext_forward.1} parent=11 // pred_fallthru
          _
        // Predicated region
        $region161: #{modified_convnext_forward.1} parent=11 // pred_check
          %p1448 = pneg %p946
        $region162: #{modified_convnext_forward.1} parent=11 // pred_check_branch
          %1450 = sbr.rel (%p1448) target = $region164
        $region163: #{modified_convnext_forward.1} parent=11 // pred_region
          _
        $region164: #{modified_convnext_forward.1} parent=11 // pred_fallthru
          _
        // Predicated region
        $region165: #{modified_convnext_forward.1} parent=11 // pred_check
          %p1451 = pneg %p967
        $region166: #{modified_convnext_forward.1} parent=11 // pred_check_branch
          %1453 = sbr.rel (%p1451) target = $region168
        $region167: #{modified_convnext_forward.1} parent=11 // pred_region
          _
        $region168: #{modified_convnext_forward.1} parent=11 // pred_fallthru
          _
        // Predicated region
        $region169: #{modified_convnext_forward.1} parent=11 // pred_check
          %p1454 = pneg %p988
        $region170: #{modified_convnext_forward.1} parent=11 // pred_check_branch
          %1456 = sbr.rel (%p1454) target = $region172
        $region171: #{modified_convnext_forward.1} parent=11 // pred_region
          _
        $region172: #{modified_convnext_forward.1} parent=11 // pred_fallthru
          _
        // Predicated region
        $region173: #{modified_convnext_forward.1} parent=11 // pred_check
          %p1457 = pneg %p1009
        $region174: #{modified_convnext_forward.1} parent=11 // pred_check_branch
          %1459 = sbr.rel (%p1457) target = $region176
        $region175: #{modified_convnext_forward.1} parent=11 // pred_region
          _
        $region176: #{modified_convnext_forward.1} parent=11 // pred_fallthru
          _
        // Predicated region
        $region177: #{modified_convnext_forward.1} parent=11 // pred_check
          %p1460 = pneg %p1030
        $region178: #{modified_convnext_forward.1} parent=11 // pred_check_branch
          %1462 = sbr.rel (%p1460) target = $region180
        $region179: #{modified_convnext_forward.1} parent=11 // pred_region
          %s1464 = ssub.s32 16, 16
          %1465 = vsyncadd [#allocation15], %s1464
          %s1467 = sshll.u32 [#allocation14], 4
          %s1468 = int_to_ptr.vmem [resolvable:$true] %s1467
          %1470 = dma.hbm_to_vmem [thread:$0]  %s85, 16, %s1468, [#allocation15]
        $region180: #{modified_convnext_forward.1} parent=11 // pred_fallthru
          _
        // Predicated region
        $region181: #{modified_convnext_forward.1} parent=11 // pred_check
          %p1471 = pneg %p1051
        $region182: #{modified_convnext_forward.1} parent=11 // pred_check_branch
          %1473 = sbr.rel (%p1471) target = $region184
        $region183: #{modified_convnext_forward.1} parent=11 // pred_region
          _
        $region184: #{modified_convnext_forward.1} parent=11 // pred_fallthru
          _
        // Predicated region
        $region185: #{modified_convnext_forward.1} parent=11 // pred_check
          %p1474 = pneg %p1072
        $region186: #{modified_convnext_forward.1} parent=11 // pred_check_branch
          %1476 = sbr.rel (%p1474) target = $region188
        $region187: #{modified_convnext_forward.1} parent=11 // pred_region
          %s1478 = ssub.s32 16, 16
          %1479 = vsyncadd [#allocation15], %s1478
          %s1481 = sshll.u32 [#allocation16], 4
          %s1482 = int_to_ptr.vmem [resolvable:$true] %s1481
          %1484 = dma.hbm_to_vmem [thread:$0]  %s89, 16, %s1482, [#allocation15]
        $region188: #{modified_convnext_forward.1} parent=11 // pred_fallthru
          _
        // Predicated region
        $region189: #{modified_convnext_forward.1} parent=11 // pred_check
          %p1485 = pneg %p1093
        $region190: #{modified_convnext_forward.1} parent=11 // pred_check_branch
          %1487 = sbr.rel (%p1485) target = $region192
        $region191: #{modified_convnext_forward.1} parent=11 // pred_region
          _
        $region192: #{modified_convnext_forward.1} parent=11 // pred_fallthru
          _
        // Predicated region
        $region193: #{modified_convnext_forward.1} parent=11 // pred_check
          %p1488 = pneg %p1114
        $region194: #{modified_convnext_forward.1} parent=11 // pred_check_branch
          %1490 = sbr.rel (%p1488) target = $region196
        $region195: #{modified_convnext_forward.1} parent=11 // pred_region
          %s1492 = ssub.s32 16, 16
          %1493 = vsyncadd [#allocation18], %s1492
          %s1495 = sshll.u32 [#allocation17], 4
          %s1496 = int_to_ptr.vmem [resolvable:$true] %s1495
          %1498 = dma.hbm_to_vmem [thread:$0]  %s93, 16, %s1496, [#allocation18]
        $region196: #{modified_convnext_forward.1} parent=11 // pred_fallthru
          _
        // Predicated region
        $region197: #{modified_convnext_forward.1} parent=11 // pred_check
          %p1499 = pneg %p1135
        $region198: #{modified_convnext_forward.1} parent=11 // pred_check_branch
          %1501 = sbr.rel (%p1499) target = $region200
        $region199: #{modified_convnext_forward.1} parent=11 // pred_region
          _
        $region200: #{modified_convnext_forward.1} parent=11 // pred_fallthru
          _
        // Predicated region
        $region201: #{modified_convnext_forward.1} parent=11 // pred_check
          %p1502 = pneg %p1156
        $region202: #{modified_convnext_forward.1} parent=11 // pred_check_branch
          %1504 = sbr.rel (%p1502) target = $region204
        $region203: #{modified_convnext_forward.1} parent=11 // pred_region
          %s1506 = ssub.s32 16, 16
          %1507 = vsyncadd [#allocation18], %s1506
          %s1509 = sshll.u32 [#allocation19], 4
          %s1510 = int_to_ptr.vmem [resolvable:$true] %s1509
          %1512 = dma.hbm_to_vmem [thread:$0]  %s97, 16, %s1510, [#allocation18]
        $region204: #{modified_convnext_forward.1} parent=11 // pred_fallthru
          _
        // Predicated region
        $region205: #{modified_convnext_forward.1} parent=11 // pred_check
          %p1513 = pneg %p1177
        $region206: #{modified_convnext_forward.1} parent=11 // pred_check_branch
          %1515 = sbr.rel (%p1513) target = $region208
        $region207: #{modified_convnext_forward.1} parent=11 // pred_region
          _
        $region208: #{modified_convnext_forward.1} parent=11 // pred_fallthru
          _
        // Predicated region
        $region209: #{modified_convnext_forward.1} parent=11 // pred_check
          %p1516 = pneg %p1198
        $region210: #{modified_convnext_forward.1} parent=11 // pred_check_branch
          %1518 = sbr.rel (%p1516) target = $region212
        $region211: #{modified_convnext_forward.1} parent=11 // pred_region
          %s1520 = ssub.s32 16, 16
          %1521 = vsyncadd [#allocation21], %s1520
          %s1523 = sshll.u32 [#allocation20], 4
          %s1524 = int_to_ptr.vmem [resolvable:$true] %s1523
          %1526 = dma.hbm_to_vmem [thread:$0]  %s101, 16, %s1524, [#allocation21]
        $region212: #{modified_convnext_forward.1} parent=11 // pred_fallthru
          _
        // Predicated region
        $region213: #{modified_convnext_forward.1} parent=11 // pred_check
          %p1527 = pneg %p1219
        $region214: #{modified_convnext_forward.1} parent=11 // pred_check_branch
          %1529 = sbr.rel (%p1527) target = $region216
        $region215: #{modified_convnext_forward.1} parent=11 // pred_region
          _
        $region216: #{modified_convnext_forward.1} parent=11 // pred_fallthru
          _
        // Predicated region
        $region217: #{modified_convnext_forward.1} parent=11 // pred_check
          %p1530 = pneg %p1240
        $region218: #{modified_convnext_forward.1} parent=11 // pred_check_branch
          %1532 = sbr.rel (%p1530) target = $region220
        $region219: #{modified_convnext_forward.1} parent=11 // pred_region
          _
        $region220: #{modified_convnext_forward.1} parent=11 // pred_fallthru
          _
      $region12: #{modified_convnext_forward.1} parent=5 // pred_fallthru
        _
      %p1533 = scmp.lt.s32.totalorder %s122, 2
      // Predicated region
      $region221: #{modified_convnext_forward.1} parent=5 // pred_check
        %p1534 = pneg %p1533
      $region222: #{modified_convnext_forward.1} parent=5 // pred_check_branch
        %1536 = sbr.rel (%p1534) target = $region224
      $region223: #{modified_convnext_forward.1} parent=5 // pred_region
        // Predicated region
        $region225: #{modified_convnext_forward.1} parent=223 // pred_check
          %p1537 = pneg %p142
        $region226: #{modified_convnext_forward.1} parent=223 // pred_check_branch
          %1539 = sbr.rel (%p1537) target = $region228
        $region227: #{modified_convnext_forward.1} parent=223 // pred_region
          %p1540 = scmp.lt.s32.totalorder %s122, 1
          %s1541 = scalar_select %p1540, %s122, 1
          %s1542 = smul.addr %s1541, 2
          %s1543 = smul.addr %s1542, 8
          %s1544 = scalar_lea.vmem %s1, %s1543
        $region228: #{modified_convnext_forward.1} parent=223 // pred_fallthru
          _
      $region224: #{modified_convnext_forward.1} parent=5 // pred_fallthru
        _
      %p1545 = scmp.le.s32.totalorder 1, %s122
      %p1546 = scmp.lt.s32.totalorder %s122, 3
      %p1547 = pnand %p1545, %p1546
      %p1548 = pneg %p1547
      // Predicated region
      $region229: #{modified_convnext_forward.1} parent=5 // pred_check
        _
      $region230: #{modified_convnext_forward.1} parent=5 // pred_check_branch
        %1550 = sbr.rel (%p1547) target = $region232
      $region231: #{modified_convnext_forward.1} parent=5 // pred_region
        %s1551 = ssub.s32 %s122, 1
        // Predicated region
        $region233: #{modified_convnext_forward.1} parent=231 // pred_check
          %p1552 = pneg %p736
        $region234: #{modified_convnext_forward.1} parent=231 // pred_check_branch
          %1554 = sbr.rel (%p1552) target = $region236
        $region235: #{modified_convnext_forward.1} parent=231 // pred_region
          %1555 = dma.done [#allocation4], 16
        $region236: #{modified_convnext_forward.1} parent=231 // pred_fallthru
          _
        // Predicated region
        $region237: #{modified_convnext_forward.1} parent=231 // pred_check
          %p1556 = pneg %p757
        $region238: #{modified_convnext_forward.1} parent=231 // pred_check_branch
          %1558 = sbr.rel (%p1556) target = $region240
        $region239: #{modified_convnext_forward.1} parent=231 // pred_region
          %1559 = dma.done [#allocation6], 16
        $region240: #{modified_convnext_forward.1} parent=231 // pred_fallthru
          _
        // Predicated region
        $region241: #{modified_convnext_forward.1} parent=231 // pred_check
          %p1560 = pneg %p841
        $region242: #{modified_convnext_forward.1} parent=231 // pred_check_branch
          %1562 = sbr.rel (%p1560) target = $region244
        $region243: #{modified_convnext_forward.1} parent=231 // pred_region
          %1563 = dma.done [#allocation6], 16
        $region244: #{modified_convnext_forward.1} parent=231 // pred_fallthru
          _
        // Predicated region
        $region245: #{modified_convnext_forward.1} parent=231 // pred_check
          %p1564 = pneg %p862
        $region246: #{modified_convnext_forward.1} parent=231 // pred_check_branch
          %1566 = sbr.rel (%p1564) target = $region248
        $region247: #{modified_convnext_forward.1} parent=231 // pred_region
          %1567 = dma.done [#allocation9], 16
        $region248: #{modified_convnext_forward.1} parent=231 // pred_fallthru
          _
        // Predicated region
        $region249: #{modified_convnext_forward.1} parent=231 // pred_check
          %p1568 = pneg %p883
        $region250: #{modified_convnext_forward.1} parent=231 // pred_check_branch
          %1570 = sbr.rel (%p1568) target = $region252
        $region251: #{modified_convnext_forward.1} parent=231 // pred_region
          %1571 = dma.done [#allocation9], 16
        $region252: #{modified_convnext_forward.1} parent=231 // pred_fallthru
          _
        // Predicated region
        $region253: #{modified_convnext_forward.1} parent=231 // pred_check
          %p1572 = pneg %p904
        $region254: #{modified_convnext_forward.1} parent=231 // pred_check_branch
          %1574 = sbr.rel (%p1572) target = $region256
        $region255: #{modified_convnext_forward.1} parent=231 // pred_region
          %1575 = dma.done [#allocation12], 16
        $region256: #{modified_convnext_forward.1} parent=231 // pred_fallthru
          _
        // Predicated region
        $region257: #{modified_convnext_forward.1} parent=231 // pred_check
          %p1576 = pneg %p925
        $region258: #{modified_convnext_forward.1} parent=231 // pred_check_branch
          %1578 = sbr.rel (%p1576) target = $region260
        $region259: #{modified_convnext_forward.1} parent=231 // pred_region
          %1579 = dma.done [#allocation12], 16
        $region260: #{modified_convnext_forward.1} parent=231 // pred_fallthru
          _
        // Predicated region
        $region261: #{modified_convnext_forward.1} parent=231 // pred_check
          %p1580 = pneg %p1030
        $region262: #{modified_convnext_forward.1} parent=231 // pred_check_branch
          %1582 = sbr.rel (%p1580) target = $region264
        $region263: #{modified_convnext_forward.1} parent=231 // pred_region
          %1583 = dma.done [#allocation15], 16
        $region264: #{modified_convnext_forward.1} parent=231 // pred_fallthru
          _
        // Predicated region
        $region265: #{modified_convnext_forward.1} parent=231 // pred_check
          %p1584 = pneg %p1072
        $region266: #{modified_convnext_forward.1} parent=231 // pred_check_branch
          %1586 = sbr.rel (%p1584) target = $region268
        $region267: #{modified_convnext_forward.1} parent=231 // pred_region
          %1587 = dma.done [#allocation15], 16
        $region268: #{modified_convnext_forward.1} parent=231 // pred_fallthru
          _
        // Predicated region
        $region269: #{modified_convnext_forward.1} parent=231 // pred_check
          %p1588 = pneg %p1114
        $region270: #{modified_convnext_forward.1} parent=231 // pred_check_branch
          %1590 = sbr.rel (%p1588) target = $region272
        $region271: #{modified_convnext_forward.1} parent=231 // pred_region
          %1591 = dma.done [#allocation18], 16
        $region272: #{modified_convnext_forward.1} parent=231 // pred_fallthru
          _
        // Predicated region
        $region273: #{modified_convnext_forward.1} parent=231 // pred_check
          %p1592 = pneg %p1156
        $region274: #{modified_convnext_forward.1} parent=231 // pred_check_branch
          %1594 = sbr.rel (%p1592) target = $region276
        $region275: #{modified_convnext_forward.1} parent=231 // pred_region
          %1595 = dma.done [#allocation18], 16
        $region276: #{modified_convnext_forward.1} parent=231 // pred_fallthru
          _
        // Predicated region
        $region277: #{modified_convnext_forward.1} parent=231 // pred_check
          %p1596 = pneg %p1198
        $region278: #{modified_convnext_forward.1} parent=231 // pred_check_branch
          %1598 = sbr.rel (%p1596) target = $region280
        $region279: #{modified_convnext_forward.1} parent=231 // pred_region
          %1599 = dma.done [#allocation21], 16
        $region280: #{modified_convnext_forward.1} parent=231 // pred_fallthru
          _
        %p1600 = scmp.lt.s32.totalorder %s127, 1
        %s1601 = scalar_select %p1600, %s127, 1
        %s1602 = smul.addr %s1601, 2
        %s1603 = smul.addr %s1602, 8
        %s1604 = scalar_lea.vmem %s1, %s1603
        %p1605 = pneg %p148
        %p1606 = pneg %p145
        %p1607 = pneg %p169
        %p1608 = pneg %p166
        %p1609 = pneg %p190
        %p1610 = pneg %p187
        %p1611 = pneg %p211
        %p1612 = pneg %p208
        %p1613 = pneg %p232
        %p1614 = pneg %p229
        %p1615 = pneg %p253
        %p1616 = pneg %p250
        %p1617 = pneg %p274
        %p1618 = pneg %p271
        %p1619 = pneg %p295
        %p1620 = pneg %p292
        %p1621 = pneg %p316
        %p1622 = pneg %p313
        %p1623 = pneg %p337
        %p1624 = pneg %p334
        %p1625 = pneg %p358
        %p1626 = pneg %p355
        %p1627 = pneg %p379
        %p1628 = pneg %p376
        %p1629 = pneg %p400
        %p1630 = pneg %p397
        %p1631 = pneg %p421
        %p1632 = pneg %p418
        %p1633 = pneg %p442
        %p1634 = pneg %p439
        %p1635 = pneg %p463
        %p1636 = pneg %p460
        %p1637 = pneg %p484
        %p1638 = pneg %p481
        %p1639 = pneg %p505
        %p1640 = pneg %p502
        %p1641 = pneg %p526
        %p1642 = pneg %p523
        %p1643 = pneg %p547
        %p1644 = pneg %p544
        %p1645 = pneg %p568
        %p1646 = pneg %p565
        %p1647 = pneg %p589
        %p1648 = pneg %p586
        %p1649 = pneg %p610
        %p1650 = pneg %p607
        %p1651 = pneg %p631
        %p1652 = pneg %p628
        %p1653 = pneg %p652
        %p1654 = pneg %p649
        %p1655 = pneg %p673
        %p1656 = pneg %p670
        %p1657 = pneg %p694
        %p1658 = pneg %p691
        %p1659 = pneg %p715
        %p1660 = pneg %p712
        %p1661 = pneg %p736
        %p1662 = pneg %p733
        %p1663 = pneg %p757
        %p1664 = pneg %p754
        %p1665 = pneg %p778
        %p1666 = pneg %p775
        %p1667 = pneg %p799
        %p1668 = pneg %p796
        %p1669 = pneg %p820
        %p1670 = pneg %p817
        %p1671 = pneg %p841
        %p1672 = pneg %p838
        %p1673 = pneg %p862
        %p1674 = pneg %p859
        %p1675 = pneg %p883
        %p1676 = pneg %p880
        %p1677 = pneg %p904
        %p1678 = pneg %p901
        %p1679 = pneg %p925
        %p1680 = pneg %p922
        %p1681 = pneg %p946
        %p1682 = pneg %p943
        %p1683 = pneg %p967
        %p1684 = pneg %p964
        %p1685 = pneg %p988
        %p1686 = pneg %p985
        %p1687 = pneg %p1009
        %p1688 = pneg %p1006
        %p1689 = pneg %p1030
        %p1690 = pneg %p1027
        %p1691 = pneg %p1051
        %p1692 = pneg %p1048
        %p1693 = pneg %p1072
        %p1694 = pneg %p1069
        %p1695 = pneg %p1093
        %p1696 = pneg %p1090
        %p1697 = pneg %p1114
        %p1698 = pneg %p1111
        %p1699 = pneg %p1135
        %p1700 = pneg %p1132
        %p1701 = pneg %p1156
        %p1702 = pneg %p1153
        %p1703 = pneg %p1177
        %p1704 = pneg %p1174
        %p1705 = pneg %p1198
        %p1706 = pneg %p1195
        %p1707 = pneg %p1219
        %p1708 = pneg %p1216
        %p1709 = pneg %p1240
        %p1710 = pneg %p1237
        %p1711 = pneg %p1266
        %p1712 = pneg %p1263
        %p1713 = scmp.lt.s32.totalorder %s127, 1
        %s1714 = scalar_select %p1713, %s127, 1
        %s1715 = smul.addr %s1714, 8
        %s1716 = scalar_lea.vmem %s107, %s1715
        %p1717 = scmp.lt.s32.totalorder %s127, 1
        %s1718 = scalar_select %p1717, %s127, 1
        %s1719 = smul.addr %s1718, 2
        %s1720 = smul.addr %s1719, 8
        %s1721 = scalar_lea.vmem %s1, %s1720
        %p1722 = scmp.lt.s32.totalorder %s127, 1
        %s1723 = scalar_select %p1722, %s127, 1
        %s1724 = smul.addr %s1723, 8
        %s1725 = scalar_lea.vmem %s107, %s1724
        %v1726 = vld [vmem:[%s3] sm:$0x1]
        %v1727 = vld [vmem:[%s5] sm:$0x1]
        %v1728 = vld [vmem:[%s7] sm:$0x1]
        %v1729 = vld [vmem:[%s9] sm:$0x1]
        %v1730 = vld [vmem:[%s11] sm:$0x1]
        %v1731 = vld [vmem:[%s13] sm:$0xff]
        %v1732 = vld [vmem:[%s15] sm:$0xff]
        %v1733 = vld [vmem:[%s15 + $0x8] sm:$0xff]
        %v1734 = vld [vmem:[%s15 + $0x10] sm:$0xff]
        %v1735 = vld [vmem:[%s17] sm:$0x7f]
        %v1736 = vld [vmem:[%s19] sm:$0x1]
        %v1737 = vld [vmem:[%s21] sm:$0x1]
        %v1738 = vld [vmem:[%s23] sm:$0x1]
        %v1739 = vld [vmem:[%s25] sm:$0x1]
        %v1740 = vld [vmem:[%s27] sm:$0x1]
        %v1741 = vld [vmem:[%s29] sm:$0xff]
        %v1742 = vld [vmem:[%s29 + $0x8] sm:$0xff]
        %v1743 = vld [vmem:[%s31] sm:$0xff]
        %v1744 = vld [vmem:[%s31 + $0x8] sm:$0xff]
        %v1745 = vld [vmem:[%s31 + $0x10] sm:$0xff]
        %v1746 = vld [vmem:[%s31 + $0x18] sm:$0xff]
        %v1747 = vld [vmem:[%s31 + $0x20] sm:$0xf]
        %v1748 = vld [vmem:[%s33] sm:$0x7f]
        %v1749 = vld [vmem:[%s35] sm:$0x1]
        %v1750 = vld [vmem:[%s37] sm:$0x1]
        %v1751 = vld [vmem:[%s39] sm:$0x1]
        %v1752 = vld [vmem:[%s41] sm:$0x1]
        %v1753 = vld [vmem:[%s43] sm:$0x1]
        %v1754 = vld [vmem:[%s45] sm:$0xff]
        %v1755 = vld [vmem:[%s45 + $0x8] sm:$0xff]
        %v1756 = vld [vmem:[%s45 + $0x10] sm:$0xff]
        %v1757 = vld [vmem:[%s47] sm:$0xff]
        %v1758 = vld [vmem:[%s47 + $0x8] sm:$0xff]
        %v1759 = vld [vmem:[%s47 + $0x10] sm:$0xff]
        %v1760 = vld [vmem:[%s47 + $0x18] sm:$0xff]
        %v1761 = vld [vmem:[%s47 + $0x20] sm:$0xff]
        %v1762 = vld [vmem:[%s47 + $0x28] sm:$0xff]
        %v1763 = vld [vmem:[%s49] sm:$0x7f]
        %v1764 = vld [vmem:[%s51] sm:$0x1]
        %v1765 = vld [vmem:[%s53] sm:$0x1]
        %v1766 = vld [vmem:[%s55] sm:$0x1]
        %v1767 = vld [vmem:[#allocation3] sm:$0x1]
        %v1768 = vld [vmem:[#allocation5] sm:$0x1]
        %v1769 = vld [vmem:[%s61] sm:$0xff]
        %v1770 = vld [vmem:[%s61 + $0x8] sm:$0xff]
        %v1771 = vld [vmem:[%s61 + $0x10] sm:$0xff]
        %v1772 = vld [vmem:[%s61 + $0x18] sm:$0xff]
        %v1773 = vld [vmem:[%s63] sm:$0xff]
        %v1774 = vld [vmem:[%s63 + $0x8] sm:$0xff]
        %v1775 = vld [vmem:[%s63 + $0x10] sm:$0xff]
        %v1776 = vld [vmem:[%s63 + $0x18] sm:$0xff]
        %v1777 = vld [vmem:[%s63 + $0x20] sm:$0xff]
        %v1778 = vld [vmem:[%s63 + $0x28] sm:$0xff]
        %v1779 = vld [vmem:[%s63 + $0x30] sm:$0xff]
        %v1780 = vld [vmem:[%s63 + $0x38] sm:$0xff]
        %v1781 = vld [vmem:[%s63 + $0x40] sm:$0xff]
        %v1782 = vld [vmem:[%s65] sm:$0x7f]
        %v1783 = vld [vmem:[#allocation7] sm:$0x1]
        %v1784 = vld [vmem:[#allocation8] sm:$0x1]
        %v1785 = vld [vmem:[#allocation10] sm:$0x1]
        %v1786 = vld [vmem:[#allocation11] sm:$0x1]
        %v1787 = vld [vmem:[#allocation13] sm:$0x1]
        %v1788 = vld [vmem:[%s77] sm:$0xff]
        %v1789 = vld [vmem:[%s77 + $0x8] sm:$0xff]
        %v1790 = vld [vmem:[%s77 + $0x10] sm:$0xff]
        %v1791 = vld [vmem:[%s77 + $0x18] sm:$0xff]
        %v1792 = vld [vmem:[%s77 + $0x20] sm:$0xff]
        %v1793 = vld [vmem:[%s77 + $0x28] sm:$0xff]
        %v1794 = vld [vmem:[%s79] sm:$0xff]
        %v1795 = vld [vmem:[%s79 + $0x8] sm:$0xff]
        %v1796 = vld [vmem:[%s79 + $0x10] sm:$0xff]
        %v1797 = vld [vmem:[%s79 + $0x18] sm:$0xff]
        %v1798 = vld [vmem:[%s79 + $0x20] sm:$0xff]
        %v1799 = vld [vmem:[%s79 + $0x28] sm:$0xff]
        %v1800 = vld [vmem:[%s79 + $0x30] sm:$0xff]
        %v1801 = vld [vmem:[%s79 + $0x38] sm:$0xff]
        %v1802 = vld [vmem:[%s79 + $0x40] sm:$0xff]
        %v1803 = vld [vmem:[%s79 + $0x48] sm:$0xff]
        %v1804 = vld [vmem:[%s79 + $0x50] sm:$0xff]
        %v1805 = vld [vmem:[%s79 + $0x58] sm:$0xff]
        %v1806 = vld [vmem:[%s81] sm:$0x7f]
        %v1807 = vld [vmem:[%s83] sm:$0x7]
        %v1808 = vld [vmem:[%s83 + $0x4] sm:$0x7]
        %v1809 = vld [vmem:[%s83 + $0x8] sm:$0x7]
        %v1810 = vld [vmem:[#allocation14] sm:$0x1]
        %v1811 = vld [vmem:[%s87] sm:$0xff]
        %v1812 = vld [vmem:[%s87 + $0x8] sm:$0xff]
        %v1813 = vld [vmem:[%s87 + $0x10] sm:$0xff]
        %v1814 = vld [vmem:[#allocation16] sm:$0x1]
        %v1815 = vld [vmem:[%s91] sm:$0xff]
        %v1816 = vld [vmem:[%s91 + $0x8] sm:$0xff]
        %v1817 = vld [vmem:[%s91 + $0x10] sm:$0xff]
        %v1818 = vld [vmem:[%s91 + $0x18] sm:$0xff]
        %v1819 = vld [vmem:[%s91 + $0x20] sm:$0xff]
        %v1820 = vld [vmem:[%s91 + $0x28] sm:$0xff]
        %v1821 = vld [vmem:[#allocation17] sm:$0x1]
        %v1822 = vld [vmem:[%s95] sm:$0xff]
        %v1823 = vld [vmem:[%s95 + $0x8] sm:$0xff]
        %v1824 = vld [vmem:[%s95 + $0x10] sm:$0xff]
        %v1825 = vld [vmem:[%s95 + $0x18] sm:$0xff]
        %v1826 = vld [vmem:[%s95 + $0x20] sm:$0xff]
        %v1827 = vld [vmem:[%s95 + $0x28] sm:$0xff]
        %v1828 = vld [vmem:[%s95 + $0x30] sm:$0xff]
        %v1829 = vld [vmem:[%s95 + $0x38] sm:$0xff]
        %v1830 = vld [vmem:[%s95 + $0x40] sm:$0xff]
        %v1831 = vld [vmem:[#allocation19] sm:$0x1]
        %v1832 = vld [vmem:[%s99] sm:$0xff]
        %v1833 = vld [vmem:[%s99 + $0x8] sm:$0xff]
        %v1834 = vld [vmem:[%s99 + $0x10] sm:$0xff]
        %v1835 = vld [vmem:[%s99 + $0x18] sm:$0xff]
        %v1836 = vld [vmem:[%s99 + $0x20] sm:$0xff]
        %v1837 = vld [vmem:[%s99 + $0x28] sm:$0xff]
        %v1838 = vld [vmem:[%s99 + $0x30] sm:$0xff]
        %v1839 = vld [vmem:[%s99 + $0x38] sm:$0xff]
        %v1840 = vld [vmem:[%s99 + $0x40] sm:$0xff]
        %v1841 = vld [vmem:[%s99 + $0x48] sm:$0xff]
        %v1842 = vld [vmem:[%s99 + $0x50] sm:$0xff]
        %v1843 = vld [vmem:[%s99 + $0x58] sm:$0xff]
        %v1844 = vld [vmem:[#allocation20] sm:$0x1]
        %v1845 = vld [vmem:[%s103] sm:$0xff]
        %v1846 = vld [vmem:[%s103 + $0x8] sm:$0xff]
        %v1847 = vld [vmem:[%s103 + $0x10] sm:$0xff]
        %v1848 = vld [vmem:[%s103 + $0x18] sm:$0xff]
        %v1849 = vld [vmem:[%s103 + $0x20] sm:$0xff]
        %v1850 = vld [vmem:[%s103 + $0x28] sm:$0xff]
        %v1851 = vld [vmem:[%s103 + $0x30] sm:$0xff]
        %v1852 = vld [vmem:[%s103 + $0x38] sm:$0xff]
        %v1853 = vld [vmem:[%s103 + $0x40] sm:$0xff]
        %v1854 = vld [vmem:[%s103 + $0x48] sm:$0xff]
        %v1855 = vld [vmem:[%s103 + $0x50] sm:$0xff]
        %v1856 = vld [vmem:[%s103 + $0x58] sm:$0xff]
        %v1857 = vld [vmem:[%s103 + $0x60] sm:$0xff]
        %v1858 = vld [vmem:[%s103 + $0x68] sm:$0xff]
        %v1859 = vld [vmem:[%s103 + $0x70] sm:$0xff]
        %v1860 = vld [vmem:[%s103 + $0x78] sm:$0xff]
        %v1861 = vld [vmem:[%s103 + $0x80] sm:$0xff]
        %v1862 = vld [vmem:[%s103 + $0x88] sm:$0xff]
        %v1863 = vld [vmem:[#allocation2] sm:$0x1]
        %v1864 = vld [vmem:[%s1721] sm:$0xff]
        %v1865 = vld [vmem:[%s1721 + $0x8] sm:$0xff]
        %v1866 = vrot.slane %v1864, 7
        %v1867 = vrot.slane %v1865, 7
        %v1868 = vlaneseq
        %v1869 = vshrl.u32 %v1868, 7
        %vm1870 = vcmp.lt.s32.totalorder %v1869, 1
        %v1871 = vsel %vm1870, %v1866, %v1867
        %v1872 = vsel %vm1870, %v1867, %v1866
        %v1873 = vadd.s32 %v1869, 8
        %vm1874 = vcmp.ge.s32.totalorder %v1869, 1
        %vm1875 = vcmp.ge.s32.totalorder %v1873, 1
        %v1876 = vsel %vm1874, %v1872, 0.0
        %v1877 = vsel %vm1875, %v1871, 0.0
        %1879 = vset.pattern.permute.xlu0 0
        %1880 = vperm.xlu0 %1879, %v1876
        %v1881 = vpop.permute.xlu0 %1880
        %1884 = vset.pattern.permute.xlu0 0
        %1885 = vperm.xlu0 %1884, %v1877
        %v1886 = vpop.permute.xlu0 %1885
        %v1888 = vlaneseq
        %v1889 = vshrl.u32 %v1888, 7
        %v1890 = vsub.s32 0, %v1889
        %v1891 = vrot.slane %v1807, %v1890
        %v1892 = vmul.f32 %v1881, %v1891
        %v1893 = vmul.f32 %v1886, %v1891
        %v1894 = vadd.f32 %v1892, 0.0
        %v1895 = vadd.f32 %v1893, 0.0
        %1896 = vset.pattern.permute.xlu0 1
        %1897 = vperm.xlu0 %1896, %v1876
        %v1898 = vpop.permute.xlu0 %1897
        %1900 = vset.pattern.permute.xlu0 1
        %1901 = vperm.xlu0 %1900, %v1877
        %v1902 = vpop.permute.xlu0 %1901
        %v1904 = vlaneseq
        %v1905 = vshrl.u32 %v1904, 7
        %v1906 = vsub.s32 1, %v1905
        %v1907 = vrot.slane %v1807, %v1906
        %v1908 = vmul.f32 %v1898, %v1907
        %v1909 = vmul.f32 %v1902, %v1907
        %v1910 = vadd.f32 %v1894, %v1908
        %v1911 = vadd.f32 %v1895, %v1909
        %1912 = vset.pattern.permute.xlu0 2
        %1913 = vperm.xlu0 %1912, %v1876
        %v1914 = vpop.permute.xlu0 %1913
        %1916 = vset.pattern.permute.xlu0 2
        %1917 = vperm.xlu0 %1916, %v1877
        %v1918 = vpop.permute.xlu0 %1917
        %v1920 = vlaneseq
        %v1921 = vshrl.u32 %v1920, 7
        %v1922 = vsub.s32 2, %v1921
        %v1923 = vrot.slane %v1807, %v1922
        %v1924 = vmul.f32 %v1914, %v1923
        %v1925 = vmul.f32 %v1918, %v1923
        %v1926 = vadd.f32 %v1910, %v1924
        %v1927 = vadd.f32 %v1911, %v1925
        %1929 = vset.pattern.permute.xlu0 0
        %1930 = vperm.xlu0 %1929, %v1864
        %v1931 = vpop.permute.xlu0 %1930
        %1934 = vset.pattern.permute.xlu0 0
        %1935 = vperm.xlu0 %1934, %v1865
        %v1936 = vpop.permute.xlu0 %1935
        %v1938 = vlaneseq
        %v1939 = vshrl.u32 %v1938, 7
        %v1940 = vsub.s32 0, %v1939
        %v1941 = vrot.slane %v1808, %v1940
        %v1942 = vmul.f32 %v1931, %v1941
        %v1943 = vmul.f32 %v1936, %v1941
        %v1944 = vadd.f32 %v1926, %v1942
        %v1945 = vadd.f32 %v1927, %v1943
        %1946 = vset.pattern.permute.xlu0 1
        %1947 = vperm.xlu0 %1946, %v1864
        %v1948 = vpop.permute.xlu0 %1947
        %1950 = vset.pattern.permute.xlu0 1
        %1951 = vperm.xlu0 %1950, %v1865
        %v1952 = vpop.permute.xlu0 %1951
        %v1954 = vlaneseq
        %v1955 = vshrl.u32 %v1954, 7
        %v1956 = vsub.s32 1, %v1955
        %v1957 = vrot.slane %v1808, %v1956
        %v1958 = vmul.f32 %v1948, %v1957
        %v1959 = vmul.f32 %v1952, %v1957
        %v1960 = vadd.f32 %v1944, %v1958
        %v1961 = vadd.f32 %v1945, %v1959
        %1962 = vset.pattern.permute.xlu0 2
        %1963 = vperm.xlu0 %1962, %v1864
        %v1964 = vpop.permute.xlu0 %1963
        %1966 = vset.pattern.permute.xlu0 2
        %1967 = vperm.xlu0 %1966, %v1865
        %v1968 = vpop.permute.xlu0 %1967
        %v1970 = vlaneseq
        %v1971 = vshrl.u32 %v1970, 7
        %v1972 = vsub.s32 2, %v1971
        %v1973 = vrot.slane %v1808, %v1972
        %v1974 = vmul.f32 %v1964, %v1973
        %v1975 = vmul.f32 %v1968, %v1973
        %v1976 = vadd.f32 %v1960, %v1974
        %v1977 = vadd.f32 %v1961, %v1975
        %v1978 = vrot.slane %v1864, 1
        %v1979 = vrot.slane %v1865, 1
        %vm1980 = vcmp.lt.s32.totalorder %v1869, 7
        %v1981 = vsel %vm1980, %v1978, %v1979
        %v1982 = vsel %vm1980, %v1979, %v1978
        %vm1983 = vcmp.lt.s32.totalorder %v1869, 15
        %vm1984 = vcmp.lt.s32.totalorder %v1873, 15
        %v1985 = vsel %vm1983, %v1981, 0.0
        %v1986 = vsel %vm1984, %v1982, 0.0
        %1988 = vset.pattern.permute.xlu0 0
        %1989 = vperm.xlu0 %1988, %v1985
        %v1990 = vpop.permute.xlu0 %1989
        %1993 = vset.pattern.permute.xlu0 0
        %1994 = vperm.xlu0 %1993, %v1986
        %v1995 = vpop.permute.xlu0 %1994
        %v1997 = vlaneseq
        %v1998 = vshrl.u32 %v1997, 7
        %v1999 = vsub.s32 0, %v1998
        %v2000 = vrot.slane %v1809, %v1999
        %v2001 = vmul.f32 %v1990, %v2000
        %v2002 = vmul.f32 %v1995, %v2000
        %v2003 = vadd.f32 %v1976, %v2001
        %v2004 = vadd.f32 %v1977, %v2002
        %2005 = vset.pattern.permute.xlu0 1
        %2006 = vperm.xlu0 %2005, %v1985
        %v2007 = vpop.permute.xlu0 %2006
        %2009 = vset.pattern.permute.xlu0 1
        %2010 = vperm.xlu0 %2009, %v1986
        %v2011 = vpop.permute.xlu0 %2010
        %v2013 = vlaneseq
        %v2014 = vshrl.u32 %v2013, 7
        %v2015 = vsub.s32 1, %v2014
        %v2016 = vrot.slane %v1809, %v2015
        %v2017 = vmul.f32 %v2007, %v2016
        %v2018 = vmul.f32 %v2011, %v2016
        %v2019 = vadd.f32 %v2003, %v2017
        %v2020 = vadd.f32 %v2004, %v2018
        %2021 = vset.pattern.permute.xlu0 2
        %2022 = vperm.xlu0 %2021, %v1985
        %v2023 = vpop.permute.xlu0 %2022
        %2025 = vset.pattern.permute.xlu0 2
        %2026 = vperm.xlu0 %2025, %v1986
        %v2027 = vpop.permute.xlu0 %2026
        %v2029 = vlaneseq
        %v2030 = vshrl.u32 %v2029, 7
        %v2031 = vsub.s32 2, %v2030
        %v2032 = vrot.slane %v1809, %v2031
        %v2033 = vmul.f32 %v2023, %v2032
        %v2034 = vmul.f32 %v2027, %v2032
        %v2035 = vadd.f32 %v2019, %v2033
        %v2036 = vadd.f32 %v2020, %v2034
        %v2038 = vlaneseq
        %v2039 = vshrl.u32 %v2038, 7
        %v2040 = vsub.s32 0, %v2039
        %v2041 = vrot.slane %v1810, %v2040
        %v2043 = vadd.f32 %v2035, %v2041
        %v2044 = vadd.f32 %v2036, %v2041
        %v2045 = vrot.slane %v2043, 5
        %v2046 = vrot.slane %v2044, 5
        %vm2047 = vcmp.lt.s32.totalorder %v1869, 3
        %v2048 = vsel %vm2047, %v2045, %v2046
        %v2049 = vsel %vm2047, %v2046, %v2045
        %vm2050 = vcmp.ge.s32.totalorder %v1869, 3
        %vm2051 = vcmp.ge.s32.totalorder %v1873, 3
        %v2052 = vsel %vm2050, %v2049, 0.0
        %v2053 = vsel %vm2051, %v2048, 0.0
        %v2054 = vlaneseq
        %v2055 = vshrl.u32 %v2054, 7
        %v2056 = vsub.s32 0, %v2055
        %v2057 = vrot.slane %v1735, %v2056
        %v2058 = vmul.f32 %v2052, %v2057
        %v2059 = vmul.f32 %v2053, %v2057
        %v2060 = vadd.f32 %v2058, 0.0
        %v2061 = vadd.f32 %v2059, 0.0
        %v2062 = vrot.slane %v2043, 6
        %v2063 = vrot.slane %v2044, 6
        %vm2064 = vcmp.lt.s32.totalorder %v1869, 2
        %v2065 = vsel %vm2064, %v2062, %v2063
        %v2066 = vsel %vm2064, %v2063, %v2062
        %vm2067 = vcmp.ge.s32.totalorder %v1869, 2
        %vm2068 = vcmp.ge.s32.totalorder %v1873, 2
        %v2069 = vsel %vm2067, %v2066, 0.0
        %v2070 = vsel %vm2068, %v2065, 0.0
        %v2071 = vlaneseq
        %v2072 = vshrl.u32 %v2071, 7
        %v2073 = vsub.s32 1, %v2072
        %v2074 = vrot.slane %v1735, %v2073
        %v2075 = vmul.f32 %v2069, %v2074
        %v2076 = vmul.f32 %v2070, %v2074
        %v2077 = vadd.f32 %v2060, %v2075
        %v2078 = vadd.f32 %v2061, %v2076
        %v2079 = vrot.slane %v2043, 7
        %v2080 = vrot.slane %v2044, 7
        %v2081 = vsel %vm1870, %v2079, %v2080
        %v2082 = vsel %vm1870, %v2080, %v2079
        %v2083 = vsel %vm1874, %v2082, 0.0
        %v2084 = vsel %vm1875, %v2081, 0.0
        %v2085 = vlaneseq
        %v2086 = vshrl.u32 %v2085, 7
        %v2087 = vsub.s32 2, %v2086
        %v2088 = vrot.slane %v1735, %v2087
        %v2089 = vmul.f32 %v2083, %v2088
        %v2090 = vmul.f32 %v2084, %v2088
        %v2091 = vadd.f32 %v2077, %v2089
        %v2092 = vadd.f32 %v2078, %v2090
        %v2093 = vlaneseq
        %v2094 = vshrl.u32 %v2093, 7
        %v2095 = vsub.s32 3, %v2094
        %v2096 = vrot.slane %v1735, %v2095
        %v2097 = vmul.f32 %v2043, %v2096
        %v2098 = vmul.f32 %v2044, %v2096
        %v2099 = vadd.f32 %v2091, %v2097
        %v2100 = vadd.f32 %v2092, %v2098
        %v2101 = vrot.slane %v2043, 1
        %v2102 = vrot.slane %v2044, 1
        %v2103 = vsel %vm1980, %v2101, %v2102
        %v2104 = vsel %vm1980, %v2102, %v2101
        %v2105 = vsel %vm1983, %v2103, 0.0
        %v2106 = vsel %vm1984, %v2104, 0.0
        %v2107 = vlaneseq
        %v2108 = vshrl.u32 %v2107, 7
        %v2109 = vsub.s32 4, %v2108
        %v2110 = vrot.slane %v1735, %v2109
        %v2111 = vmul.f32 %v2105, %v2110
        %v2112 = vmul.f32 %v2106, %v2110
        %v2113 = vadd.f32 %v2099, %v2111
        %v2114 = vadd.f32 %v2100, %v2112
        %v2115 = vrot.slane %v2043, 2
        %v2116 = vrot.slane %v2044, 2
        %vm2117 = vcmp.lt.s32.totalorder %v1869, 6
        %v2118 = vsel %vm2117, %v2115, %v2116
        %v2119 = vsel %vm2117, %v2116, %v2115
        %vm2120 = vcmp.lt.s32.totalorder %v1869, 14
        %vm2121 = vcmp.lt.s32.totalorder %v1873, 14
        %v2122 = vsel %vm2120, %v2118, 0.0
        %v2123 = vsel %vm2121, %v2119, 0.0
        %v2124 = vlaneseq
        %v2125 = vshrl.u32 %v2124, 7
        %v2126 = vsub.s32 5, %v2125
        %v2127 = vrot.slane %v1735, %v2126
        %v2128 = vmul.f32 %v2122, %v2127
        %v2129 = vmul.f32 %v2123, %v2127
        %v2130 = vadd.f32 %v2113, %v2128
        %v2131 = vadd.f32 %v2114, %v2129
        %v2132 = vrot.slane %v2043, 3
        %v2133 = vrot.slane %v2044, 3
        %vm2134 = vcmp.lt.s32.totalorder %v1869, 5
        %v2135 = vsel %vm2134, %v2132, %v2133
        %v2136 = vsel %vm2134, %v2133, %v2132
        %vm2137 = vcmp.lt.s32.totalorder %v1869, 13
        %vm2138 = vcmp.lt.s32.totalorder %v1873, 13
        %v2139 = vsel %vm2137, %v2135, 0.0
        %v2140 = vsel %vm2138, %v2136, 0.0
        %v2141 = vlaneseq
        %v2142 = vshrl.u32 %v2141, 7
        %v2143 = vsub.s32 6, %v2142
        %v2144 = vrot.slane %v1735, %v2143
        %v2145 = vmul.f32 %v2139, %v2144
        %v2146 = vmul.f32 %v2140, %v2144
        %v2147 = vadd.f32 %v2130, %v2145
        %v2148 = vadd.f32 %v2131, %v2146
        %v2150 = vlaneseq
        %v2151 = vshrl.u32 %v2150, 7
        %v2152 = vsub.s32 0, %v2151
        %v2153 = vrot.slane %v1728, %v2152
        %v2155 = vadd.f32 %v2147, %v2153
        %v2156 = vadd.f32 %v2148, %v2153
        %vm2157 = vcmask 64512
        %v2158 = vsel %vm2157, %v2155, 0.0
        %2159 = vadd.xlane.f32.xlu0 %v2158
        %v2160 = vpop.xlane.xlu0 %2159
        %v2161 = vsel %vm2157, %v2156, 0.0
        %2162 = vadd.xlane.f32.xlu0 %v2161
        %v2163 = vpop.xlane.xlu0 %2162
        %v2164 = vrcp.pop 8.0
        %v2165 = vmul.f32 %v2160, %v2164
        %v2166 = vmul.f32 %v2163, %v2164
        %v2167 = vsub.f32 %v2155, %v2165
        %v2168 = vsub.f32 %v2156, %v2166
        %v2169 = vmul.f32 %v2167, %v2167
        %v2170 = vmul.f32 %v2168, %v2168
        %v2171 = vsel %vm2157, %v2169, 0.0
        %2172 = vadd.xlane.f32.xlu0 %v2171
        %v2173 = vpop.xlane.xlu0 %2172
        %v2174 = vsel %vm2157, %v2170, 0.0
        %2175 = vadd.xlane.f32.xlu0 %v2174
        %v2176 = vpop.xlane.xlu0 %2175
        %v2177 = vmul.f32 %v2173, %v2164
        %v2178 = vmul.f32 %v2176, %v2164
        %v2179 = vadd.f32 %v2177, 1e-05
        %v2180 = vadd.f32 %v2178, 1e-05
        %v2181 = vrsqrt.pop %v2179
        %v2182 = vrsqrt.pop %v2180
        %v2183 = vmul.f32 %v2167, %v2181
        %v2184 = vmul.f32 %v2168, %v2182
        %v2186 = vlaneseq
        %v2187 = vshrl.u32 %v2186, 7
        %v2188 = vsub.s32 0, %v2187
        %v2189 = vrot.slane %v1730, %v2188
        %v2191 = vmul.f32 %v2183, %v2189
        %v2192 = vmul.f32 %v2184, %v2189
        %v2194 = vlaneseq
        %v2195 = vshrl.u32 %v2194, 7
        %v2196 = vsub.s32 0, %v2195
        %v2197 = vrot.slane %v1729, %v2196
        %v2199 = vadd.f32 %v2191, %v2197
        %v2200 = vadd.f32 %v2192, %v2197
        %v2202 = vlaneseq
        %v2203 = vshrl.u32 %v2202, 7
        %v2204 = vsub.s32 0, %v2203
        %v2205 = vrot.slane %v1726, %v2204
        %v2208 = vsel %vm2157, %v2199, 0
        %v2211 = vsel %vm2157, %v2200, 0
        %2213 = vmatprep.subr.mxu0 0.0
        %2214 = vmatpush1.msra.mxu0 %v1731
        %2215 = vmatprep.subr.mxu0 0.0
        %2216 = vmatpush1.msra.mxu0 0.0
        %2217 = vmatprep.subr.mxu0 0.0
        %2218 = vmatpush1.msra.mxu0 0.0
        %2219 = vmatprep.subr.mxu0 0.0
        %2220 = vmatpush1.msra.mxu0 0.0
        %2221 = vmatprep.subr.mxu0 0.0
        %2222 = vmatpush1.msra.mxu0 0.0
        %2223 = vmatprep.subr.mxu0 0.0
        %2224 = vmatpush1.msra.mxu0 0.0
        %2225 = vmatprep.subr.mxu0 0.0
        %2226 = vmatpush1.msra.mxu0 0.0
        %2227 = vmatprep.subr.mxu0 0.0
        %2228 = vmatpush1.msra.mxu0 0.0
        %2229 = vmatprep.subr.mxu0 0.0
        %2230 = vmatpush1.msra.mxu0 0.0
        %2231 = vmatprep.subr.mxu0 0.0
        %2232 = vmatpush1.msra.mxu0 0.0
        %2233 = vmatprep.subr.mxu0 0.0
        %2234 = vmatpush1.msra.mxu0 0.0
        %2235 = vmatprep.subr.mxu0 0.0
        %2236 = vmatpush1.msra.mxu0 0.0
        %2237 = vmatprep.subr.mxu0 0.0
        %2238 = vmatpush1.msra.mxu0 0.0
        %2239 = vmatprep.subr.mxu0 0.0
        %2240 = vmatpush1.msra.mxu0 0.0
        %2241 = vmatprep.subr.mxu0 0.0
        %2242 = vmatpush1.msra.mxu0 0.0
        %2243 = vmatprep.subr.mxu0 0.0
        %2244 = vmatpush1.msra.mxu0 0.0
        %2245 = vmatprep.subr.mxu0 0.0
        %2246 = vmatpush1.msra.mxu0 0.0
        %2247 = vmatprep.subr.mxu0 0.0
        %2248 = vmatpush1.msra.mxu0 0.0
        %2249 = vmatprep.subr.mxu0 0.0
        %2250 = vmatpush1.msra.mxu0 0.0
        %2251 = vmatprep.subr.mxu0 0.0
        %2252 = vmatpush1.msra.mxu0 0.0
        %2253 = vmatprep.subr.mxu0 0.0
        %2254 = vmatpush1.msra.mxu0 0.0
        %2255 = vmatprep.subr.mxu0 0.0
        %2256 = vmatpush1.msra.mxu0 0.0
        %2257 = vmatprep.subr.mxu0 0.0
        %2258 = vmatpush1.msra.mxu0 0.0
        %2259 = vmatprep.subr.mxu0 0.0
        %2260 = vmatpush1.msra.mxu0 0.0
        %2261 = vmatprep.subr.mxu0 0.0
        %2262 = vmatpush1.msra.mxu0 0.0
        %2263 = vmatprep.subr.mxu0 0.0
        %2264 = vmatpush1.msra.mxu0 0.0
        %2265 = vmatprep.subr.mxu0 0.0
        %2266 = vmatpush1.msra.mxu0 0.0
        %2267 = vmatprep.subr.mxu0 0.0
        %2268 = vmatpush1.msra.mxu0 0.0
        %2269 = vmatprep.subr.mxu0 0.0
        %2270 = vmatpush1.msra.mxu0 0.0
        %2271 = vmatprep.subr.mxu0 0.0
        %2272 = vmatpush1.msra.mxu0 0.0
        %2273 = vmatprep.subr.mxu0 0.0
        %2274 = vmatpush1.msra.mxu0 0.0
        %2275 = vmatprep.subr.mxu0 0.0
        %2276 = vmatpush1.msra.mxu0 0.0
        %2277 = vmatprep.mubr.f32.mxu0 0.0
        %2278 = vmatmul.mubr.f32.gmra.mrb[0].mxu0 %v2208
        %v2279 = vpop.f32.mrb[0].mxu0
        %v2280 = vadd.f32 %v2205, %v2279
        %v2281 = vpop.f32.mrb[0].mxu0
        %2282 = vmatprep.mubr.f32.mxu0 0.0
        %2283 = vmatmul.mubr.f32.gmra.mrb[0].mxu0 %v2211
        %v2284 = vpop.f32.mrb[0].mxu0
        %v2285 = vadd.f32 %v2205, %v2284
        %v2286 = vpop.f32.mrb[0].mxu0
        %2287 = vdwg.mxu0
        %v2288 = vmul.f32 %v2280, 0.5
        %v2289 = vmul.f32 %v2285, 0.5
        %v2290 = vmul.f32 %v2280, 0.70710677
        %v2291 = vmul.f32 %v2285, 0.70710677
        %v2292 = vand.u32 2147483647, %v2290
        %v2293 = vand.u32 2147483647, %v2291
        %v2294 = vmul.f32 %v2292, 0.3275911
        %v2295 = vmul.f32 %v2293, 0.3275911
        %v2296 = vadd.f32 %v2294, 1.0
        %v2297 = vadd.f32 %v2295, 1.0
        %v2298 = vrcp.pop %v2296
        %v2299 = vmul.f32 1.0, %v2298
        %v2300 = vrcp.pop %v2297
        %v2301 = vmul.f32 1.0, %v2300
        %v2302 = vmul.f32 %v2299, 1.0614054
        %v2303 = vmul.f32 %v2301, 1.0614054
        %v2304 = vadd.f32 %v2302, -1.4531521
        %v2305 = vadd.f32 %v2303, -1.4531521
        %v2306 = vmul.f32 %v2304, %v2299
        %v2307 = vmul.f32 %v2305, %v2301
        %v2308 = vadd.f32 %v2306, 1.4214138
        %v2309 = vadd.f32 %v2307, 1.4214138
        %v2310 = vmul.f32 %v2308, %v2299
        %v2311 = vmul.f32 %v2309, %v2301
        %v2312 = vadd.f32 %v2310, -0.28449672
        %v2313 = vadd.f32 %v2311, -0.28449672
        %v2314 = vmul.f32 %v2312, %v2299
        %v2315 = vmul.f32 %v2313, %v2301
        %v2316 = vadd.f32 %v2314, 0.2548296
        %v2317 = vadd.f32 %v2315, 0.2548296
        %v2318 = vmul.f32 %v2316, %v2299
        %v2319 = vmul.f32 %v2317, %v2301
        %v2320 = vsub.f32 0.0, %v2292
        %v2321 = vsub.f32 0.0, %v2293
        %v2322 = vmul.f32 %v2320, %v2292
        %v2323 = vmul.f32 %v2321, %v2293
        %v2324 = vmul.f32 %v2322, 1.442695
        %v2325 = vpow.pop %v2324
        %v2326 = vmul.f32 %v2323, 1.442695
        %v2327 = vpow.pop %v2326
        %v2328 = vmul.f32 %v2318, %v2325
        %v2329 = vmul.f32 %v2319, %v2327
        %v2330 = vsub.f32 1.0, %v2328
        %v2331 = vsub.f32 1.0, %v2329
        %vm2332 = vcmp.ge.f32.partialorder %v2290, 0.0
        %vm2333 = vcmp.ge.f32.partialorder %v2291, 0.0
        %v2334 = vsub.f32 0.0, %v2330
        %v2335 = vsub.f32 0.0, %v2331
        %v2336 = vsel %vm2332, %v2330, %v2334
        %v2337 = vsel %vm2333, %v2331, %v2335
        %v2338 = vadd.f32 %v2336, 1.0
        %v2339 = vadd.f32 %v2337, 1.0
        %v2340 = vmul.f32 %v2288, %v2338
        %v2341 = vmul.f32 %v2289, %v2339
        %v2343 = vlaneseq
        %v2344 = vshrl.u32 %v2343, 7
        %v2345 = vsub.s32 0, %v2344
        %v2346 = vrot.slane %v1727, %v2345
        %vm2348 = vcmask 195584
        %v2350 = vsel %vm2348, %v2340, 0
        %v2353 = vsel %vm2348, %v2341, 0
        %2355 = vmatprep.subr.mxu0 0.0
        %2356 = vmatpush1.msra.mxu0 %v1732
        %2357 = vmatprep.subr.mxu0 0.0
        %2358 = vmatpush1.msra.mxu0 %v1733
        %2359 = vmatprep.subr.mxu0 0.0
        %2360 = vmatpush1.msra.mxu0 %v1734
        %2361 = vmatprep.subr.mxu0 0.0
        %2362 = vmatpush1.msra.mxu0 0.0
        %2363 = vmatprep.subr.mxu0 0.0
        %2364 = vmatpush1.msra.mxu0 0.0
        %2365 = vmatprep.subr.mxu0 0.0
        %2366 = vmatpush1.msra.mxu0 0.0
        %2367 = vmatprep.subr.mxu0 0.0
        %2368 = vmatpush1.msra.mxu0 0.0
        %2369 = vmatprep.subr.mxu0 0.0
        %2370 = vmatpush1.msra.mxu0 0.0
        %2371 = vmatprep.subr.mxu0 0.0
        %2372 = vmatpush1.msra.mxu0 0.0
        %2373 = vmatprep.subr.mxu0 0.0
        %2374 = vmatpush1.msra.mxu0 0.0
        %2375 = vmatprep.subr.mxu0 0.0
        %2376 = vmatpush1.msra.mxu0 0.0
        %2377 = vmatprep.subr.mxu0 0.0
        %2378 = vmatpush1.msra.mxu0 0.0
        %2379 = vmatprep.subr.mxu0 0.0
        %2380 = vmatpush1.msra.mxu0 0.0
        %2381 = vmatprep.subr.mxu0 0.0
        %2382 = vmatpush1.msra.mxu0 0.0
        %2383 = vmatprep.subr.mxu0 0.0
        %2384 = vmatpush1.msra.mxu0 0.0
        %2385 = vmatprep.subr.mxu0 0.0
        %2386 = vmatpush1.msra.mxu0 0.0
        %2387 = vmatprep.subr.mxu0 0.0
        %2388 = vmatpush1.msra.mxu0 0.0
        %2389 = vmatprep.subr.mxu0 0.0
        %2390 = vmatpush1.msra.mxu0 0.0
        %2391 = vmatprep.subr.mxu0 0.0
        %2392 = vmatpush1.msra.mxu0 0.0
        %2393 = vmatprep.subr.mxu0 0.0
        %2394 = vmatpush1.msra.mxu0 0.0
        %2395 = vmatprep.subr.mxu0 0.0
        %2396 = vmatpush1.msra.mxu0 0.0
        %2397 = vmatprep.subr.mxu0 0.0
        %2398 = vmatpush1.msra.mxu0 0.0
        %2399 = vmatprep.subr.mxu0 0.0
        %2400 = vmatpush1.msra.mxu0 0.0
        %2401 = vmatprep.subr.mxu0 0.0
        %2402 = vmatpush1.msra.mxu0 0.0
        %2403 = vmatprep.subr.mxu0 0.0
        %2404 = vmatpush1.msra.mxu0 0.0
        %2405 = vmatprep.subr.mxu0 0.0
        %2406 = vmatpush1.msra.mxu0 0.0
        %2407 = vmatprep.subr.mxu0 0.0
        %2408 = vmatpush1.msra.mxu0 0.0
        %2409 = vmatprep.subr.mxu0 0.0
        %2410 = vmatpush1.msra.mxu0 0.0
        %2411 = vmatprep.subr.mxu0 0.0
        %2412 = vmatpush1.msra.mxu0 0.0
        %2413 = vmatprep.subr.mxu0 0.0
        %2414 = vmatpush1.msra.mxu0 0.0
        %2415 = vmatprep.subr.mxu0 0.0
        %2416 = vmatpush1.msra.mxu0 0.0
        %2417 = vmatprep.subr.mxu0 0.0
        %2418 = vmatpush1.msra.mxu0 0.0
        %2419 = vmatprep.mubr.f32.mxu0 0.0
        %2420 = vmatmul.mubr.f32.gmra.mrb[0].mxu0 %v2350
        %v2421 = vpop.f32.mrb[0].mxu0
        %v2422 = vadd.f32 %v2346, %v2421
        %v2423 = vpop.f32.mrb[0].mxu0
        %2424 = vmatprep.mubr.f32.mxu0 0.0
        %2425 = vmatmul.mubr.f32.gmra.mrb[0].mxu0 %v2353
        %v2426 = vpop.f32.mrb[0].mxu0
        %v2427 = vadd.f32 %v2346, %v2426
        %v2428 = vpop.f32.mrb[0].mxu0
        %2429 = vdwg.mxu0
        %v2430 = vadd.f32 %v2422, %v2043
        %v2431 = vadd.f32 %v2427, %v2044
        %v2432 = vrot.slane %v2430, 7
        %v2433 = vrot.slane %v2431, 7
        %v2434 = vsel %vm1870, %v2432, %v2433
        %v2435 = vsel %vm1870, %v2433, %v2432
        %v2436 = vsel %vm1874, %v2435, 0.0
        %v2437 = vsel %vm1875, %v2434, 0.0
        %v2439 = vsel %vm2157, %v2430, 0
        %v2442 = vsel %vm2157, %v2431, 0
        %2444 = vmatprep.subr.mxu0 0.0
        %2445 = vmatpush1.msra.mxu0 %v1812
        %2446 = vmatprep.subr.mxu0 0.0
        %2447 = vmatpush1.msra.mxu0 0.0
        %2448 = vmatprep.subr.mxu0 0.0
        %2449 = vmatpush1.msra.mxu0 0.0
        %2450 = vmatprep.subr.mxu0 0.0
        %2451 = vmatpush1.msra.mxu0 0.0
        %2452 = vmatprep.subr.mxu0 0.0
        %2453 = vmatpush1.msra.mxu0 0.0
        %2454 = vmatprep.subr.mxu0 0.0
        %2455 = vmatpush1.msra.mxu0 0.0
        %2456 = vmatprep.subr.mxu0 0.0
        %2457 = vmatpush1.msra.mxu0 0.0
        %2458 = vmatprep.subr.mxu0 0.0
        %2459 = vmatpush1.msra.mxu0 0.0
        %2460 = vmatprep.subr.mxu0 0.0
        %2461 = vmatpush1.msra.mxu0 0.0
        %2462 = vmatprep.subr.mxu0 0.0
        %2463 = vmatpush1.msra.mxu0 0.0
        %2464 = vmatprep.subr.mxu0 0.0
        %2465 = vmatpush1.msra.mxu0 0.0
        %2466 = vmatprep.subr.mxu0 0.0
        %2467 = vmatpush1.msra.mxu0 0.0
        %2468 = vmatprep.subr.mxu0 0.0
        %2469 = vmatpush1.msra.mxu0 0.0
        %2470 = vmatprep.subr.mxu0 0.0
        %2471 = vmatpush1.msra.mxu0 0.0
        %2472 = vmatprep.subr.mxu0 0.0
        %2473 = vmatpush1.msra.mxu0 0.0
        %2474 = vmatprep.subr.mxu0 0.0
        %2475 = vmatpush1.msra.mxu0 0.0
        %2476 = vmatprep.subr.mxu0 0.0
        %2477 = vmatpush1.msra.mxu0 0.0
        %2478 = vmatprep.subr.mxu0 0.0
        %2479 = vmatpush1.msra.mxu0 0.0
        %2480 = vmatprep.subr.mxu0 0.0
        %2481 = vmatpush1.msra.mxu0 0.0
        %2482 = vmatprep.subr.mxu0 0.0
        %2483 = vmatpush1.msra.mxu0 0.0
        %2484 = vmatprep.subr.mxu0 0.0
        %2485 = vmatpush1.msra.mxu0 0.0
        %2486 = vmatprep.subr.mxu0 0.0
        %2487 = vmatpush1.msra.mxu0 0.0
        %2488 = vmatprep.subr.mxu0 0.0
        %2489 = vmatpush1.msra.mxu0 0.0
        %2490 = vmatprep.subr.mxu0 0.0
        %2491 = vmatpush1.msra.mxu0 0.0
        %2492 = vmatprep.subr.mxu0 0.0
        %2493 = vmatpush1.msra.mxu0 0.0
        %2494 = vmatprep.subr.mxu0 0.0
        %2495 = vmatpush1.msra.mxu0 0.0
        %2496 = vmatprep.subr.mxu0 0.0
        %2497 = vmatpush1.msra.mxu0 0.0
        %2498 = vmatprep.subr.mxu0 0.0
        %2499 = vmatpush1.msra.mxu0 0.0
        %2500 = vmatprep.subr.mxu0 0.0
        %2501 = vmatpush1.msra.mxu0 0.0
        %2502 = vmatprep.subr.mxu0 0.0
        %2503 = vmatpush1.msra.mxu0 0.0
        %2504 = vmatprep.subr.mxu0 0.0
        %2505 = vmatpush1.msra.mxu0 0.0
        %2506 = vmatprep.subr.mxu0 0.0
        %2507 = vmatpush1.msra.mxu0 0.0
        %2508 = vmatprep.mubr.f32.mxu0 0.0
        %2509 = vmatmul.mubr.f32.gmra.mrb[0].mxu0 %v2439
        %v2510 = vpop.f32.mrb[0].mxu0
        %v2511 = vadd.f32 0.0, %v2510
        %v2512 = vpop.f32.mrb[0].mxu0
        %2513 = vmatprep.mubr.f32.mxu0 0.0
        %2514 = vmatmul.mubr.f32.gmra.mrb[0].mxu0 %v2442
        %v2515 = vpop.f32.mrb[0].mxu0
        %v2516 = vadd.f32 0.0, %v2515
        %v2517 = vpop.f32.mrb[0].mxu0
        %2518 = vdwg.mxu0
        %v2520 = vsel %vm2157, %v2436, 0
        %v2523 = vsel %vm2157, %v2437, 0
        %2525 = vmatprep.subr.mxu0 0.0
        %2526 = vmatpush1.msra.mxu0 %v1811
        %2527 = vmatprep.subr.mxu0 0.0
        %2528 = vmatpush1.msra.mxu0 0.0
        %2529 = vmatprep.subr.mxu0 0.0
        %2530 = vmatpush1.msra.mxu0 0.0
        %2531 = vmatprep.subr.mxu0 0.0
        %2532 = vmatpush1.msra.mxu0 0.0
        %2533 = vmatprep.subr.mxu0 0.0
        %2534 = vmatpush1.msra.mxu0 0.0
        %2535 = vmatprep.subr.mxu0 0.0
        %2536 = vmatpush1.msra.mxu0 0.0
        %2537 = vmatprep.subr.mxu0 0.0
        %2538 = vmatpush1.msra.mxu0 0.0
        %2539 = vmatprep.subr.mxu0 0.0
        %2540 = vmatpush1.msra.mxu0 0.0
        %2541 = vmatprep.subr.mxu0 0.0
        %2542 = vmatpush1.msra.mxu0 0.0
        %2543 = vmatprep.subr.mxu0 0.0
        %2544 = vmatpush1.msra.mxu0 0.0
        %2545 = vmatprep.subr.mxu0 0.0
        %2546 = vmatpush1.msra.mxu0 0.0
        %2547 = vmatprep.subr.mxu0 0.0
        %2548 = vmatpush1.msra.mxu0 0.0
        %2549 = vmatprep.subr.mxu0 0.0
        %2550 = vmatpush1.msra.mxu0 0.0
        %2551 = vmatprep.subr.mxu0 0.0
        %2552 = vmatpush1.msra.mxu0 0.0
        %2553 = vmatprep.subr.mxu0 0.0
        %2554 = vmatpush1.msra.mxu0 0.0
        %2555 = vmatprep.subr.mxu0 0.0
        %2556 = vmatpush1.msra.mxu0 0.0
        %2557 = vmatprep.subr.mxu0 0.0
        %2558 = vmatpush1.msra.mxu0 0.0
        %2559 = vmatprep.subr.mxu0 0.0
        %2560 = vmatpush1.msra.mxu0 0.0
        %2561 = vmatprep.subr.mxu0 0.0
        %2562 = vmatpush1.msra.mxu0 0.0
        %2563 = vmatprep.subr.mxu0 0.0
        %2564 = vmatpush1.msra.mxu0 0.0
        %2565 = vmatprep.subr.mxu0 0.0
        %2566 = vmatpush1.msra.mxu0 0.0
        %2567 = vmatprep.subr.mxu0 0.0
        %2568 = vmatpush1.msra.mxu0 0.0
        %2569 = vmatprep.subr.mxu0 0.0
        %2570 = vmatpush1.msra.mxu0 0.0
        %2571 = vmatprep.subr.mxu0 0.0
        %2572 = vmatpush1.msra.mxu0 0.0
        %2573 = vmatprep.subr.mxu0 0.0
        %2574 = vmatpush1.msra.mxu0 0.0
        %2575 = vmatprep.subr.mxu0 0.0
        %2576 = vmatpush1.msra.mxu0 0.0
        %2577 = vmatprep.subr.mxu0 0.0
        %2578 = vmatpush1.msra.mxu0 0.0
        %2579 = vmatprep.subr.mxu0 0.0
        %2580 = vmatpush1.msra.mxu0 0.0
        %2581 = vmatprep.subr.mxu0 0.0
        %2582 = vmatpush1.msra.mxu0 0.0
        %2583 = vmatprep.subr.mxu0 0.0
        %2584 = vmatpush1.msra.mxu0 0.0
        %2585 = vmatprep.subr.mxu0 0.0
        %2586 = vmatpush1.msra.mxu0 0.0
        %2587 = vmatprep.subr.mxu0 0.0
        %2588 = vmatpush1.msra.mxu0 0.0
        %2589 = vmatprep.mubr.f32.mxu0 0.0
        %2590 = vmatmul.mubr.f32.gmra.mrb[0].mxu0 %v2520
        %v2591 = vpop.f32.mrb[0].mxu0
        %v2592 = vadd.f32 %v2511, %v2591
        %v2593 = vpop.f32.mrb[0].mxu0
        %2594 = vmatprep.mubr.f32.mxu0 0.0
        %2595 = vmatmul.mubr.f32.gmra.mrb[0].mxu0 %v2523
        %v2596 = vpop.f32.mrb[0].mxu0
        %v2597 = vadd.f32 %v2516, %v2596
        %v2598 = vpop.f32.mrb[0].mxu0
        %2599 = vdwg.mxu0
        %v2600 = vrot.slane %v2430, 1
        %v2601 = vrot.slane %v2431, 1
        %v2602 = vsel %vm1980, %v2600, %v2601
        %v2603 = vsel %vm1980, %v2601, %v2600
        %v2604 = vsel %vm1983, %v2602, 0.0
        %v2605 = vsel %vm1984, %v2603, 0.0
        %v2607 = vsel %vm2157, %v2604, 0
        %v2610 = vsel %vm2157, %v2605, 0
        %2612 = vmatprep.subr.mxu0 0.0
        %2613 = vmatpush1.msra.mxu0 %v1813
        %2614 = vmatprep.subr.mxu0 0.0
        %2615 = vmatpush1.msra.mxu0 0.0
        %2616 = vmatprep.subr.mxu0 0.0
        %2617 = vmatpush1.msra.mxu0 0.0
        %2618 = vmatprep.subr.mxu0 0.0
        %2619 = vmatpush1.msra.mxu0 0.0
        %2620 = vmatprep.subr.mxu0 0.0
        %2621 = vmatpush1.msra.mxu0 0.0
        %2622 = vmatprep.subr.mxu0 0.0
        %2623 = vmatpush1.msra.mxu0 0.0
        %2624 = vmatprep.subr.mxu0 0.0
        %2625 = vmatpush1.msra.mxu0 0.0
        %2626 = vmatprep.subr.mxu0 0.0
        %2627 = vmatpush1.msra.mxu0 0.0
        %2628 = vmatprep.subr.mxu0 0.0
        %2629 = vmatpush1.msra.mxu0 0.0
        %2630 = vmatprep.subr.mxu0 0.0
        %2631 = vmatpush1.msra.mxu0 0.0
        %2632 = vmatprep.subr.mxu0 0.0
        %2633 = vmatpush1.msra.mxu0 0.0
        %2634 = vmatprep.subr.mxu0 0.0
        %2635 = vmatpush1.msra.mxu0 0.0
        %2636 = vmatprep.subr.mxu0 0.0
        %2637 = vmatpush1.msra.mxu0 0.0
        %2638 = vmatprep.subr.mxu0 0.0
        %2639 = vmatpush1.msra.mxu0 0.0
        %2640 = vmatprep.subr.mxu0 0.0
        %2641 = vmatpush1.msra.mxu0 0.0
        %2642 = vmatprep.subr.mxu0 0.0
        %2643 = vmatpush1.msra.mxu0 0.0
        %2644 = vmatprep.subr.mxu0 0.0
        %2645 = vmatpush1.msra.mxu0 0.0
        %2646 = vmatprep.subr.mxu0 0.0
        %2647 = vmatpush1.msra.mxu0 0.0
        %2648 = vmatprep.subr.mxu0 0.0
        %2649 = vmatpush1.msra.mxu0 0.0
        %2650 = vmatprep.subr.mxu0 0.0
        %2651 = vmatpush1.msra.mxu0 0.0
        %2652 = vmatprep.subr.mxu0 0.0
        %2653 = vmatpush1.msra.mxu0 0.0
        %2654 = vmatprep.subr.mxu0 0.0
        %2655 = vmatpush1.msra.mxu0 0.0
        %2656 = vmatprep.subr.mxu0 0.0
        %2657 = vmatpush1.msra.mxu0 0.0
        %2658 = vmatprep.subr.mxu0 0.0
        %2659 = vmatpush1.msra.mxu0 0.0
        %2660 = vmatprep.subr.mxu0 0.0
        %2661 = vmatpush1.msra.mxu0 0.0
        %2662 = vmatprep.subr.mxu0 0.0
        %2663 = vmatpush1.msra.mxu0 0.0
        %2664 = vmatprep.subr.mxu0 0.0
        %2665 = vmatpush1.msra.mxu0 0.0
        %2666 = vmatprep.subr.mxu0 0.0
        %2667 = vmatpush1.msra.mxu0 0.0
        %2668 = vmatprep.subr.mxu0 0.0
        %2669 = vmatpush1.msra.mxu0 0.0
        %2670 = vmatprep.subr.mxu0 0.0
        %2671 = vmatpush1.msra.mxu0 0.0
        %2672 = vmatprep.subr.mxu0 0.0
        %2673 = vmatpush1.msra.mxu0 0.0
        %2674 = vmatprep.subr.mxu0 0.0
        %2675 = vmatpush1.msra.mxu0 0.0
        %2676 = vmatprep.mubr.f32.mxu0 0.0
        %2677 = vmatmul.mubr.f32.gmra.mrb[0].mxu0 %v2607
        %v2678 = vpop.f32.mrb[0].mxu0
        %v2679 = vadd.f32 0.0, %v2678
        %v2680 = vpop.f32.mrb[0].mxu0
        %2681 = vmatprep.mubr.f32.mxu0 0.0
        %2682 = vmatmul.mubr.f32.gmra.mrb[0].mxu0 %v2610
        %v2683 = vpop.f32.mrb[0].mxu0
        %v2684 = vadd.f32 0.0, %v2683
        %v2685 = vpop.f32.mrb[0].mxu0
        %2686 = vdwg.mxu0
        %v2687 = vadd.f32 %v2592, %v2679
        %v2688 = vadd.f32 %v2597, %v2684
        %v2690 = vlaneseq
        %v2691 = vshrl.u32 %v2690, 7
        %v2692 = vsub.s32 0, %v2691
        %v2693 = vrot.slane %v1814, %v2692
        %v2695 = vadd.f32 %v2687, %v2693
        %v2696 = vadd.f32 %v2688, %v2693
        %v2697 = vmul.f32 %v2695, 0.5
        %v2698 = vmul.f32 %v2696, 0.5
        %v2699 = vmul.f32 %v2695, 0.70710677
        %v2700 = vmul.f32 %v2696, 0.70710677
        %v2701 = vand.u32 2147483647, %v2699
        %v2702 = vand.u32 2147483647, %v2700
        %v2703 = vmul.f32 %v2701, 0.3275911
        %v2704 = vmul.f32 %v2702, 0.3275911
        %v2705 = vadd.f32 %v2703, 1.0
        %v2706 = vadd.f32 %v2704, 1.0
        %v2707 = vrcp.pop %v2705
        %v2708 = vmul.f32 1.0, %v2707
        %v2709 = vrcp.pop %v2706
        %v2710 = vmul.f32 1.0, %v2709
        %v2711 = vmul.f32 %v2708, 1.0614054
        %v2712 = vmul.f32 %v2710, 1.0614054
        %v2713 = vadd.f32 %v2711, -1.4531521
        %v2714 = vadd.f32 %v2712, -1.4531521
        %v2715 = vmul.f32 %v2713, %v2708
        %v2716 = vmul.f32 %v2714, %v2710
        %v2717 = vadd.f32 %v2715, 1.4214138
        %v2718 = vadd.f32 %v2716, 1.4214138
        %v2719 = vmul.f32 %v2717, %v2708
        %v2720 = vmul.f32 %v2718, %v2710
        %v2721 = vadd.f32 %v2719, -0.28449672
        %v2722 = vadd.f32 %v2720, -0.28449672
        %v2723 = vmul.f32 %v2721, %v2708
        %v2724 = vmul.f32 %v2722, %v2710
        %v2725 = vadd.f32 %v2723, 0.2548296
        %v2726 = vadd.f32 %v2724, 0.2548296
        %v2727 = vmul.f32 %v2725, %v2708
        %v2728 = vmul.f32 %v2726, %v2710
        %v2729 = vsub.f32 0.0, %v2701
        %v2730 = vsub.f32 0.0, %v2702
        %v2731 = vmul.f32 %v2729, %v2701
        %v2732 = vmul.f32 %v2730, %v2702
        %v2733 = vmul.f32 %v2731, 1.442695
        %v2734 = vpow.pop %v2733
        %v2735 = vmul.f32 %v2732, 1.442695
        %v2736 = vpow.pop %v2735
        %v2737 = vmul.f32 %v2727, %v2734
        %v2738 = vmul.f32 %v2728, %v2736
        %v2739 = vsub.f32 1.0, %v2737
        %v2740 = vsub.f32 1.0, %v2738
        %vm2741 = vcmp.ge.f32.partialorder %v2699, 0.0
        %vm2742 = vcmp.ge.f32.partialorder %v2700, 0.0
        %v2743 = vsub.f32 0.0, %v2739
        %v2744 = vsub.f32 0.0, %v2740
        %v2745 = vsel %vm2741, %v2739, %v2743
        %v2746 = vsel %vm2742, %v2740, %v2744
        %v2747 = vadd.f32 %v2745, 1.0
        %v2748 = vadd.f32 %v2746, 1.0
        %v2749 = vmul.f32 %v2697, %v2747
        %v2750 = vmul.f32 %v2698, %v2748
        %v2751 = vrot.slane %v2749, 5
        %v2752 = vrot.slane %v2750, 5
        %v2753 = vsel %vm2047, %v2751, %v2752
        %v2754 = vsel %vm2047, %v2752, %v2751
        %v2755 = vsel %vm2050, %v2754, 0.0
        %v2756 = vsel %vm2051, %v2753, 0.0
        %v2757 = vlaneseq
        %v2758 = vshrl.u32 %v2757, 7
        %v2759 = vsub.s32 0, %v2758
        %v2760 = vrot.slane %v1748, %v2759
        %v2761 = vmul.f32 %v2755, %v2760
        %v2762 = vmul.f32 %v2756, %v2760
        %v2763 = vadd.f32 %v2761, 0.0
        %v2764 = vadd.f32 %v2762, 0.0
        %v2765 = vrot.slane %v2749, 6
        %v2766 = vrot.slane %v2750, 6
        %v2767 = vsel %vm2064, %v2765, %v2766
        %v2768 = vsel %vm2064, %v2766, %v2765
        %v2769 = vsel %vm2067, %v2768, 0.0
        %v2770 = vsel %vm2068, %v2767, 0.0
        %v2771 = vlaneseq
        %v2772 = vshrl.u32 %v2771, 7
        %v2773 = vsub.s32 1, %v2772
        %v2774 = vrot.slane %v1748, %v2773
        %v2775 = vmul.f32 %v2769, %v2774
        %v2776 = vmul.f32 %v2770, %v2774
        %v2777 = vadd.f32 %v2763, %v2775
        %v2778 = vadd.f32 %v2764, %v2776
        %v2779 = vrot.slane %v2749, 7
        %v2780 = vrot.slane %v2750, 7
        %v2781 = vsel %vm1870, %v2779, %v2780
        %v2782 = vsel %vm1870, %v2780, %v2779
        %v2783 = vsel %vm1874, %v2782, 0.0
        %v2784 = vsel %vm1875, %v2781, 0.0
        %v2785 = vlaneseq
        %v2786 = vshrl.u32 %v2785, 7
        %v2787 = vsub.s32 2, %v2786
        %v2788 = vrot.slane %v1748, %v2787
        %v2789 = vmul.f32 %v2783, %v2788
        %v2790 = vmul.f32 %v2784, %v2788
        %v2791 = vadd.f32 %v2777, %v2789
        %v2792 = vadd.f32 %v2778, %v2790
        %v2793 = vlaneseq
        %v2794 = vshrl.u32 %v2793, 7
        %v2795 = vsub.s32 3, %v2794
        %v2796 = vrot.slane %v1748, %v2795
        %v2797 = vmul.f32 %v2749, %v2796
        %v2798 = vmul.f32 %v2750, %v2796
        %v2799 = vadd.f32 %v2791, %v2797
        %v2800 = vadd.f32 %v2792, %v2798
        %v2801 = vrot.slane %v2749, 1
        %v2802 = vrot.slane %v2750, 1
        %v2803 = vsel %vm1980, %v2801, %v2802
        %v2804 = vsel %vm1980, %v2802, %v2801
        %v2805 = vsel %vm1983, %v2803, 0.0
        %v2806 = vsel %vm1984, %v2804, 0.0
        %v2807 = vlaneseq
        %v2808 = vshrl.u32 %v2807, 7
        %v2809 = vsub.s32 4, %v2808
        %v2810 = vrot.slane %v1748, %v2809
        %v2811 = vmul.f32 %v2805, %v2810
        %v2812 = vmul.f32 %v2806, %v2810
        %v2813 = vadd.f32 %v2799, %v2811
        %v2814 = vadd.f32 %v2800, %v2812
        %v2815 = vrot.slane %v2749, 2
        %v2816 = vrot.slane %v2750, 2
        %v2817 = vsel %vm2117, %v2815, %v2816
        %v2818 = vsel %vm2117, %v2816, %v2815
        %v2819 = vsel %vm2120, %v2817, 0.0
        %v2820 = vsel %vm2121, %v2818, 0.0
        %v2821 = vlaneseq
        %v2822 = vshrl.u32 %v2821, 7
        %v2823 = vsub.s32 5, %v2822
        %v2824 = vrot.slane %v1748, %v2823
        %v2825 = vmul.f32 %v2819, %v2824
        %v2826 = vmul.f32 %v2820, %v2824
        %v2827 = vadd.f32 %v2813, %v2825
        %v2828 = vadd.f32 %v2814, %v2826
        %v2829 = vrot.slane %v2749, 3
        %v2830 = vrot.slane %v2750, 3
        %v2831 = vsel %vm2134, %v2829, %v2830
        %v2832 = vsel %vm2134, %v2830, %v2829
        %v2833 = vsel %vm2137, %v2831, 0.0
        %v2834 = vsel %vm2138, %v2832, 0.0
        %v2835 = vlaneseq
        %v2836 = vshrl.u32 %v2835, 7
        %v2837 = vsub.s32 6, %v2836
        %v2838 = vrot.slane %v1748, %v2837
        %v2839 = vmul.f32 %v2833, %v2838
        %v2840 = vmul.f32 %v2834, %v2838
        %v2841 = vadd.f32 %v2827, %v2839
        %v2842 = vadd.f32 %v2828, %v2840
        %v2844 = vlaneseq
        %v2845 = vshrl.u32 %v2844, 7
        %v2846 = vsub.s32 0, %v2845
        %v2847 = vrot.slane %v1738, %v2846
        %v2849 = vadd.f32 %v2841, %v2847
        %v2850 = vadd.f32 %v2842, %v2847
        %vm2851 = vcmask 130048
        %v2852 = vsel %vm2851, %v2849, 0.0
        %2853 = vadd.xlane.f32.xlu0 %v2852
        %v2854 = vpop.xlane.xlu0 %2853
        %v2855 = vsel %vm2851, %v2850, 0.0
        %2856 = vadd.xlane.f32.xlu0 %v2855
        %v2857 = vpop.xlane.xlu0 %2856
        %v2858 = vrcp.pop 16.0
        %v2859 = vmul.f32 %v2854, %v2858
        %v2860 = vmul.f32 %v2857, %v2858
        %v2861 = vsub.f32 %v2849, %v2859
        %v2862 = vsub.f32 %v2850, %v2860
        %v2863 = vmul.f32 %v2861, %v2861
        %v2864 = vmul.f32 %v2862, %v2862
        %v2865 = vsel %vm2851, %v2863, 0.0
        %2866 = vadd.xlane.f32.xlu0 %v2865
        %v2867 = vpop.xlane.xlu0 %2866
        %v2868 = vsel %vm2851, %v2864, 0.0
        %2869 = vadd.xlane.f32.xlu0 %v2868
        %v2870 = vpop.xlane.xlu0 %2869
        %v2871 = vmul.f32 %v2867, %v2858
        %v2872 = vmul.f32 %v2870, %v2858
        %v2873 = vadd.f32 %v2871, 1e-05
        %v2874 = vadd.f32 %v2872, 1e-05
        %v2875 = vrsqrt.pop %v2873
        %v2876 = vrsqrt.pop %v2874
        %v2877 = vmul.f32 %v2861, %v2875
        %v2878 = vmul.f32 %v2862, %v2876
        %v2880 = vlaneseq
        %v2881 = vshrl.u32 %v2880, 7
        %v2882 = vsub.s32 0, %v2881
        %v2883 = vrot.slane %v1740, %v2882
        %v2885 = vmul.f32 %v2877, %v2883
        %v2886 = vmul.f32 %v2878, %v2883
        %v2888 = vlaneseq
        %v2889 = vshrl.u32 %v2888, 7
        %v2890 = vsub.s32 0, %v2889
        %v2891 = vrot.slane %v1739, %v2890
        %v2893 = vadd.f32 %v2885, %v2891
        %v2894 = vadd.f32 %v2886, %v2891
        %v2896 = vlaneseq
        %v2897 = vshrl.u32 %v2896, 7
        %v2898 = vsub.s32 0, %v2897
        %v2899 = vrot.slane %v1736, %v2898
        %v2902 = vsel %vm2851, %v2893, 0
        %v2905 = vsel %vm2851, %v2894, 0
        %2907 = vmatprep.subr.mxu0 0.0
        %2908 = vmatpush1.msra.mxu0 %v1741
        %2909 = vmatprep.subr.mxu0 0.0
        %2910 = vmatpush1.msra.mxu0 %v1742
        %2911 = vmatprep.subr.mxu0 0.0
        %2912 = vmatpush1.msra.mxu0 0.0
        %2913 = vmatprep.subr.mxu0 0.0
        %2914 = vmatpush1.msra.mxu0 0.0
        %2915 = vmatprep.subr.mxu0 0.0
        %2916 = vmatpush1.msra.mxu0 0.0
        %2917 = vmatprep.subr.mxu0 0.0
        %2918 = vmatpush1.msra.mxu0 0.0
        %2919 = vmatprep.subr.mxu0 0.0
        %2920 = vmatpush1.msra.mxu0 0.0
        %2921 = vmatprep.subr.mxu0 0.0
        %2922 = vmatpush1.msra.mxu0 0.0
        %2923 = vmatprep.subr.mxu0 0.0
        %2924 = vmatpush1.msra.mxu0 0.0
        %2925 = vmatprep.subr.mxu0 0.0
        %2926 = vmatpush1.msra.mxu0 0.0
        %2927 = vmatprep.subr.mxu0 0.0
        %2928 = vmatpush1.msra.mxu0 0.0
        %2929 = vmatprep.subr.mxu0 0.0
        %2930 = vmatpush1.msra.mxu0 0.0
        %2931 = vmatprep.subr.mxu0 0.0
        %2932 = vmatpush1.msra.mxu0 0.0
        %2933 = vmatprep.subr.mxu0 0.0
        %2934 = vmatpush1.msra.mxu0 0.0
        %2935 = vmatprep.subr.mxu0 0.0
        %2936 = vmatpush1.msra.mxu0 0.0
        %2937 = vmatprep.subr.mxu0 0.0
        %2938 = vmatpush1.msra.mxu0 0.0
        %2939 = vmatprep.subr.mxu0 0.0
        %2940 = vmatpush1.msra.mxu0 0.0
        %2941 = vmatprep.subr.mxu0 0.0
        %2942 = vmatpush1.msra.mxu0 0.0
        %2943 = vmatprep.subr.mxu0 0.0
        %2944 = vmatpush1.msra.mxu0 0.0
        %2945 = vmatprep.subr.mxu0 0.0
        %2946 = vmatpush1.msra.mxu0 0.0
        %2947 = vmatprep.subr.mxu0 0.0
        %2948 = vmatpush1.msra.mxu0 0.0
        %2949 = vmatprep.subr.mxu0 0.0
        %2950 = vmatpush1.msra.mxu0 0.0
        %2951 = vmatprep.subr.mxu0 0.0
        %2952 = vmatpush1.msra.mxu0 0.0
        %2953 = vmatprep.subr.mxu0 0.0
        %2954 = vmatpush1.msra.mxu0 0.0
        %2955 = vmatprep.subr.mxu0 0.0
        %2956 = vmatpush1.msra.mxu0 0.0
        %2957 = vmatprep.subr.mxu0 0.0
        %2958 = vmatpush1.msra.mxu0 0.0
        %2959 = vmatprep.subr.mxu0 0.0
        %2960 = vmatpush1.msra.mxu0 0.0
        %2961 = vmatprep.subr.mxu0 0.0
        %2962 = vmatpush1.msra.mxu0 0.0
        %2963 = vmatprep.subr.mxu0 0.0
        %2964 = vmatpush1.msra.mxu0 0.0
        %2965 = vmatprep.subr.mxu0 0.0
        %2966 = vmatpush1.msra.mxu0 0.0
        %2967 = vmatprep.subr.mxu0 0.0
        %2968 = vmatpush1.msra.mxu0 0.0
        %2969 = vmatprep.subr.mxu0 0.0
        %2970 = vmatpush1.msra.mxu0 0.0
        %2971 = vmatprep.mubr.f32.mxu0 0.0
        %2972 = vmatmul.mubr.f32.gmra.mrb[0].mxu0 %v2902
        %v2973 = vpop.f32.mrb[0].mxu0
        %v2974 = vadd.f32 %v2899, %v2973
        %v2975 = vpop.f32.mrb[0].mxu0
        %2976 = vmatprep.mubr.f32.mxu0 0.0
        %2977 = vmatmul.mubr.f32.gmra.mrb[0].mxu0 %v2905
        %v2978 = vpop.f32.mrb[0].mxu0
        %v2979 = vadd.f32 %v2899, %v2978
        %v2980 = vpop.f32.mrb[0].mxu0
        %2981 = vdwg.mxu0
        %v2982 = vmul.f32 %v2974, 0.5
        %v2983 = vmul.f32 %v2979, 0.5
        %v2984 = vmul.f32 %v2974, 0.70710677
        %v2985 = vmul.f32 %v2979, 0.70710677
        %v2986 = vand.u32 2147483647, %v2984
        %v2987 = vand.u32 2147483647, %v2985
        %v2988 = vmul.f32 %v2986, 0.3275911
        %v2989 = vmul.f32 %v2987, 0.3275911
        %v2990 = vadd.f32 %v2988, 1.0
        %v2991 = vadd.f32 %v2989, 1.0
        %v2992 = vrcp.pop %v2990
        %v2993 = vmul.f32 1.0, %v2992
        %v2994 = vrcp.pop %v2991
        %v2995 = vmul.f32 1.0, %v2994
        %v2996 = vmul.f32 %v2993, 1.0614054
        %v2997 = vmul.f32 %v2995, 1.0614054
        %v2998 = vadd.f32 %v2996, -1.4531521
        %v2999 = vadd.f32 %v2997, -1.4531521
        %v3000 = vmul.f32 %v2998, %v2993
        %v3001 = vmul.f32 %v2999, %v2995
        %v3002 = vadd.f32 %v3000, 1.4214138
        %v3003 = vadd.f32 %v3001, 1.4214138
        %v3004 = vmul.f32 %v3002, %v2993
        %v3005 = vmul.f32 %v3003, %v2995
        %v3006 = vadd.f32 %v3004, -0.28449672
        %v3007 = vadd.f32 %v3005, -0.28449672
        %v3008 = vmul.f32 %v3006, %v2993
        %v3009 = vmul.f32 %v3007, %v2995
        %v3010 = vadd.f32 %v3008, 0.2548296
        %v3011 = vadd.f32 %v3009, 0.2548296
        %v3012 = vmul.f32 %v3010, %v2993
        %v3013 = vmul.f32 %v3011, %v2995
        %v3014 = vsub.f32 0.0, %v2986
        %v3015 = vsub.f32 0.0, %v2987
        %v3016 = vmul.f32 %v3014, %v2986
        %v3017 = vmul.f32 %v3015, %v2987
        %v3018 = vmul.f32 %v3016, 1.442695
        %v3019 = vpow.pop %v3018
        %v3020 = vmul.f32 %v3017, 1.442695
        %v3021 = vpow.pop %v3020
        %v3022 = vmul.f32 %v3012, %v3019
        %v3023 = vmul.f32 %v3013, %v3021
        %v3024 = vsub.f32 1.0, %v3022
        %v3025 = vsub.f32 1.0, %v3023
        %vm3026 = vcmp.ge.f32.partialorder %v2984, 0.0
        %vm3027 = vcmp.ge.f32.partialorder %v2985, 0.0
        %v3028 = vsub.f32 0.0, %v3024
        %v3029 = vsub.f32 0.0, %v3025
        %v3030 = vsel %vm3026, %v3024, %v3028
        %v3031 = vsel %vm3027, %v3025, %v3029
        %v3032 = vadd.f32 %v3030, 1.0
        %v3033 = vadd.f32 %v3031, 1.0
        %v3034 = vmul.f32 %v2982, %v3032
        %v3035 = vmul.f32 %v2983, %v3033
        %v3037 = vlaneseq
        %v3038 = vshrl.u32 %v3037, 7
        %v3039 = vsub.s32 0, %v3038
        %v3040 = vrot.slane %v1737, %v3039
        %vm3042 = vcmask 293888
        %v3044 = vsel %vm3042, %v3034, 0
        %v3047 = vsel %vm3042, %v3035, 0
        %vm3049 = vcmask 1043456
        %v3051 = vsel %vm3049, %v1747, 0
        %3053 = vmatprep.subr.mxu0 0.0
        %3054 = vmatpush1.msra.mxu0 %v1743
        %3055 = vmatprep.subr.mxu0 0.0
        %3056 = vmatpush1.msra.mxu0 %v1744
        %3057 = vmatprep.subr.mxu0 0.0
        %3058 = vmatpush1.msra.mxu0 %v1745
        %3059 = vmatprep.subr.mxu0 0.0
        %3060 = vmatpush1.msra.mxu0 %v1746
        %3061 = vmatprep.subr.mxu0 0.0
        %3062 = vmatpush1.msra.mxu0 %v3051
        %3063 = vmatprep.subr.mxu0 0.0
        %3064 = vmatpush1.msra.mxu0 0.0
        %3065 = vmatprep.subr.mxu0 0.0
        %3066 = vmatpush1.msra.mxu0 0.0
        %3067 = vmatprep.subr.mxu0 0.0
        %3068 = vmatpush1.msra.mxu0 0.0
        %3069 = vmatprep.subr.mxu0 0.0
        %3070 = vmatpush1.msra.mxu0 0.0
        %3071 = vmatprep.subr.mxu0 0.0
        %3072 = vmatpush1.msra.mxu0 0.0
        %3073 = vmatprep.subr.mxu0 0.0
        %3074 = vmatpush1.msra.mxu0 0.0
        %3075 = vmatprep.subr.mxu0 0.0
        %3076 = vmatpush1.msra.mxu0 0.0
        %3077 = vmatprep.subr.mxu0 0.0
        %3078 = vmatpush1.msra.mxu0 0.0
        %3079 = vmatprep.subr.mxu0 0.0
        %3080 = vmatpush1.msra.mxu0 0.0
        %3081 = vmatprep.subr.mxu0 0.0
        %3082 = vmatpush1.msra.mxu0 0.0
        %3083 = vmatprep.subr.mxu0 0.0
        %3084 = vmatpush1.msra.mxu0 0.0
        %3085 = vmatprep.subr.mxu0 0.0
        %3086 = vmatpush1.msra.mxu0 0.0
        %3087 = vmatprep.subr.mxu0 0.0
        %3088 = vmatpush1.msra.mxu0 0.0
        %3089 = vmatprep.subr.mxu0 0.0
        %3090 = vmatpush1.msra.mxu0 0.0
        %3091 = vmatprep.subr.mxu0 0.0
        %3092 = vmatpush1.msra.mxu0 0.0
        %3093 = vmatprep.subr.mxu0 0.0
        %3094 = vmatpush1.msra.mxu0 0.0
        %3095 = vmatprep.subr.mxu0 0.0
        %3096 = vmatpush1.msra.mxu0 0.0
        %3097 = vmatprep.subr.mxu0 0.0
        %3098 = vmatpush1.msra.mxu0 0.0
        %3099 = vmatprep.subr.mxu0 0.0
        %3100 = vmatpush1.msra.mxu0 0.0
        %3101 = vmatprep.subr.mxu0 0.0
        %3102 = vmatpush1.msra.mxu0 0.0
        %3103 = vmatprep.subr.mxu0 0.0
        %3104 = vmatpush1.msra.mxu0 0.0
        %3105 = vmatprep.subr.mxu0 0.0
        %3106 = vmatpush1.msra.mxu0 0.0
        %3107 = vmatprep.subr.mxu0 0.0
        %3108 = vmatpush1.msra.mxu0 0.0
        %3109 = vmatprep.subr.mxu0 0.0
        %3110 = vmatpush1.msra.mxu0 0.0
        %3111 = vmatprep.subr.mxu0 0.0
        %3112 = vmatpush1.msra.mxu0 0.0
        %3113 = vmatprep.subr.mxu0 0.0
        %3114 = vmatpush1.msra.mxu0 0.0
        %3115 = vmatprep.subr.mxu0 0.0
        %3116 = vmatpush1.msra.mxu0 0.0
        %3117 = vmatprep.mubr.f32.mxu0 0.0
        %3118 = vmatmul.mubr.f32.gmra.mrb[0].mxu0 %v3044
        %v3119 = vpop.f32.mrb[0].mxu0
        %v3120 = vadd.f32 %v3040, %v3119
        %v3121 = vpop.f32.mrb[0].mxu0
        %3122 = vmatprep.mubr.f32.mxu0 0.0
        %3123 = vmatmul.mubr.f32.gmra.mrb[0].mxu0 %v3047
        %v3124 = vpop.f32.mrb[0].mxu0
        %v3125 = vadd.f32 %v3040, %v3124
        %v3126 = vpop.f32.mrb[0].mxu0
        %3127 = vdwg.mxu0
        %v3128 = vadd.f32 %v3120, %v2749
        %v3129 = vadd.f32 %v3125, %v2750
        %v3130 = vrot.slane %v3128, 7
        %v3131 = vrot.slane %v3129, 7
        %v3132 = vsel %vm1870, %v3130, %v3131
        %v3133 = vsel %vm1870, %v3131, %v3130
        %v3134 = vsel %vm1874, %v3133, 0.0
        %v3135 = vsel %vm1875, %v3132, 0.0
        %v3137 = vsel %vm2851, %v3128, 0
        %v3140 = vsel %vm2851, %v3129, 0
        %3142 = vmatprep.subr.mxu0 0.0
        %3143 = vmatpush1.msra.mxu0 %v1817
        %3144 = vmatprep.subr.mxu0 0.0
        %3145 = vmatpush1.msra.mxu0 %v1818
        %3146 = vmatprep.subr.mxu0 0.0
        %3147 = vmatpush1.msra.mxu0 0.0
        %3148 = vmatprep.subr.mxu0 0.0
        %3149 = vmatpush1.msra.mxu0 0.0
        %3150 = vmatprep.subr.mxu0 0.0
        %3151 = vmatpush1.msra.mxu0 0.0
        %3152 = vmatprep.subr.mxu0 0.0
        %3153 = vmatpush1.msra.mxu0 0.0
        %3154 = vmatprep.subr.mxu0 0.0
        %3155 = vmatpush1.msra.mxu0 0.0
        %3156 = vmatprep.subr.mxu0 0.0
        %3157 = vmatpush1.msra.mxu0 0.0
        %3158 = vmatprep.subr.mxu0 0.0
        %3159 = vmatpush1.msra.mxu0 0.0
        %3160 = vmatprep.subr.mxu0 0.0
        %3161 = vmatpush1.msra.mxu0 0.0
        %3162 = vmatprep.subr.mxu0 0.0
        %3163 = vmatpush1.msra.mxu0 0.0
        %3164 = vmatprep.subr.mxu0 0.0
        %3165 = vmatpush1.msra.mxu0 0.0
        %3166 = vmatprep.subr.mxu0 0.0
        %3167 = vmatpush1.msra.mxu0 0.0
        %3168 = vmatprep.subr.mxu0 0.0
        %3169 = vmatpush1.msra.mxu0 0.0
        %3170 = vmatprep.subr.mxu0 0.0
        %3171 = vmatpush1.msra.mxu0 0.0
        %3172 = vmatprep.subr.mxu0 0.0
        %3173 = vmatpush1.msra.mxu0 0.0
        %3174 = vmatprep.subr.mxu0 0.0
        %3175 = vmatpush1.msra.mxu0 0.0
        %3176 = vmatprep.subr.mxu0 0.0
        %3177 = vmatpush1.msra.mxu0 0.0
        %3178 = vmatprep.subr.mxu0 0.0
        %3179 = vmatpush1.msra.mxu0 0.0
        %3180 = vmatprep.subr.mxu0 0.0
        %3181 = vmatpush1.msra.mxu0 0.0
        %3182 = vmatprep.subr.mxu0 0.0
        %3183 = vmatpush1.msra.mxu0 0.0
        %3184 = vmatprep.subr.mxu0 0.0
        %3185 = vmatpush1.msra.mxu0 0.0
        %3186 = vmatprep.subr.mxu0 0.0
        %3187 = vmatpush1.msra.mxu0 0.0
        %3188 = vmatprep.subr.mxu0 0.0
        %3189 = vmatpush1.msra.mxu0 0.0
        %3190 = vmatprep.subr.mxu0 0.0
        %3191 = vmatpush1.msra.mxu0 0.0
        %3192 = vmatprep.subr.mxu0 0.0
        %3193 = vmatpush1.msra.mxu0 0.0
        %3194 = vmatprep.subr.mxu0 0.0
        %3195 = vmatpush1.msra.mxu0 0.0
        %3196 = vmatprep.subr.mxu0 0.0
        %3197 = vmatpush1.msra.mxu0 0.0
        %3198 = vmatprep.subr.mxu0 0.0
        %3199 = vmatpush1.msra.mxu0 0.0
        %3200 = vmatprep.subr.mxu0 0.0
        %3201 = vmatpush1.msra.mxu0 0.0
        %3202 = vmatprep.subr.mxu0 0.0
        %3203 = vmatpush1.msra.mxu0 0.0
        %3204 = vmatprep.subr.mxu0 0.0
        %3205 = vmatpush1.msra.mxu0 0.0
        %3206 = vmatprep.mubr.f32.mxu0 0.0
        %3207 = vmatmul.mubr.f32.gmra.mrb[0].mxu0 %v3137
        %v3208 = vpop.f32.mrb[0].mxu0
        %v3209 = vadd.f32 0.0, %v3208
        %v3210 = vpop.f32.mrb[0].mxu0
        %3211 = vmatprep.mubr.f32.mxu0 0.0
        %3212 = vmatmul.mubr.f32.gmra.mrb[0].mxu0 %v3140
        %v3213 = vpop.f32.mrb[0].mxu0
        %v3214 = vadd.f32 0.0, %v3213
        %v3215 = vpop.f32.mrb[0].mxu0
        %3216 = vdwg.mxu0
        %v3218 = vsel %vm2851, %v3134, 0
        %v3221 = vsel %vm2851, %v3135, 0
        %3223 = vmatprep.subr.mxu0 0.0
        %3224 = vmatpush1.msra.mxu0 %v1815
        %3225 = vmatprep.subr.mxu0 0.0
        %3226 = vmatpush1.msra.mxu0 %v1816
        %3227 = vmatprep.subr.mxu0 0.0
        %3228 = vmatpush1.msra.mxu0 0.0
        %3229 = vmatprep.subr.mxu0 0.0
        %3230 = vmatpush1.msra.mxu0 0.0
        %3231 = vmatprep.subr.mxu0 0.0
        %3232 = vmatpush1.msra.mxu0 0.0
        %3233 = vmatprep.subr.mxu0 0.0
        %3234 = vmatpush1.msra.mxu0 0.0
        %3235 = vmatprep.subr.mxu0 0.0
        %3236 = vmatpush1.msra.mxu0 0.0
        %3237 = vmatprep.subr.mxu0 0.0
        %3238 = vmatpush1.msra.mxu0 0.0
        %3239 = vmatprep.subr.mxu0 0.0
        %3240 = vmatpush1.msra.mxu0 0.0
        %3241 = vmatprep.subr.mxu0 0.0
        %3242 = vmatpush1.msra.mxu0 0.0
        %3243 = vmatprep.subr.mxu0 0.0
        %3244 = vmatpush1.msra.mxu0 0.0
        %3245 = vmatprep.subr.mxu0 0.0
        %3246 = vmatpush1.msra.mxu0 0.0
        %3247 = vmatprep.subr.mxu0 0.0
        %3248 = vmatpush1.msra.mxu0 0.0
        %3249 = vmatprep.subr.mxu0 0.0
        %3250 = vmatpush1.msra.mxu0 0.0
        %3251 = vmatprep.subr.mxu0 0.0
        %3252 = vmatpush1.msra.mxu0 0.0
        %3253 = vmatprep.subr.mxu0 0.0
        %3254 = vmatpush1.msra.mxu0 0.0
        %3255 = vmatprep.subr.mxu0 0.0
        %3256 = vmatpush1.msra.mxu0 0.0
        %3257 = vmatprep.subr.mxu0 0.0
        %3258 = vmatpush1.msra.mxu0 0.0
        %3259 = vmatprep.subr.mxu0 0.0
        %3260 = vmatpush1.msra.mxu0 0.0
        %3261 = vmatprep.subr.mxu0 0.0
        %3262 = vmatpush1.msra.mxu0 0.0
        %3263 = vmatprep.subr.mxu0 0.0
        %3264 = vmatpush1.msra.mxu0 0.0
        %3265 = vmatprep.subr.mxu0 0.0
        %3266 = vmatpush1.msra.mxu0 0.0
        %3267 = vmatprep.subr.mxu0 0.0
        %3268 = vmatpush1.msra.mxu0 0.0
        %3269 = vmatprep.subr.mxu0 0.0
        %3270 = vmatpush1.msra.mxu0 0.0
        %3271 = vmatprep.subr.mxu0 0.0
        %3272 = vmatpush1.msra.mxu0 0.0
        %3273 = vmatprep.subr.mxu0 0.0
        %3274 = vmatpush1.msra.mxu0 0.0
        %3275 = vmatprep.subr.mxu0 0.0
        %3276 = vmatpush1.msra.mxu0 0.0
        %3277 = vmatprep.subr.mxu0 0.0
        %3278 = vmatpush1.msra.mxu0 0.0
        %3279 = vmatprep.subr.mxu0 0.0
        %3280 = vmatpush1.msra.mxu0 0.0
        %3281 = vmatprep.subr.mxu0 0.0
        %3282 = vmatpush1.msra.mxu0 0.0
        %3283 = vmatprep.subr.mxu0 0.0
        %3284 = vmatpush1.msra.mxu0 0.0
        %3285 = vmatprep.subr.mxu0 0.0
        %3286 = vmatpush1.msra.mxu0 0.0
        %3287 = vmatprep.mubr.f32.mxu0 0.0
        %3288 = vmatmul.mubr.f32.gmra.mrb[0].mxu0 %v3218
        %v3289 = vpop.f32.mrb[0].mxu0
        %v3290 = vadd.f32 %v3209, %v3289
        %v3291 = vpop.f32.mrb[0].mxu0
        %3292 = vmatprep.mubr.f32.mxu0 0.0
        %3293 = vmatmul.mubr.f32.gmra.mrb[0].mxu0 %v3221
        %v3294 = vpop.f32.mrb[0].mxu0
        %v3295 = vadd.f32 %v3214, %v3294
        %v3296 = vpop.f32.mrb[0].mxu0
        %3297 = vdwg.mxu0
        %v3298 = vrot.slane %v3128, 1
        %v3299 = vrot.slane %v3129, 1
        %v3300 = vsel %vm1980, %v3298, %v3299
        %v3301 = vsel %vm1980, %v3299, %v3298
        %v3302 = vsel %vm1983, %v3300, 0.0
        %v3303 = vsel %vm1984, %v3301, 0.0
        %v3305 = vsel %vm2851, %v3302, 0
        %v3308 = vsel %vm2851, %v3303, 0
        %3310 = vmatprep.subr.mxu0 0.0
        %3311 = vmatpush1.msra.mxu0 %v1819
        %3312 = vmatprep.subr.mxu0 0.0
        %3313 = vmatpush1.msra.mxu0 %v1820
        %3314 = vmatprep.subr.mxu0 0.0
        %3315 = vmatpush1.msra.mxu0 0.0
        %3316 = vmatprep.subr.mxu0 0.0
        %3317 = vmatpush1.msra.mxu0 0.0
        %3318 = vmatprep.subr.mxu0 0.0
        %3319 = vmatpush1.msra.mxu0 0.0
        %3320 = vmatprep.subr.mxu0 0.0
        %3321 = vmatpush1.msra.mxu0 0.0
        %3322 = vmatprep.subr.mxu0 0.0
        %3323 = vmatpush1.msra.mxu0 0.0
        %3324 = vmatprep.subr.mxu0 0.0
        %3325 = vmatpush1.msra.mxu0 0.0
        %3326 = vmatprep.subr.mxu0 0.0
        %3327 = vmatpush1.msra.mxu0 0.0
        %3328 = vmatprep.subr.mxu0 0.0
        %3329 = vmatpush1.msra.mxu0 0.0
        %3330 = vmatprep.subr.mxu0 0.0
        %3331 = vmatpush1.msra.mxu0 0.0
        %3332 = vmatprep.subr.mxu0 0.0
        %3333 = vmatpush1.msra.mxu0 0.0
        %3334 = vmatprep.subr.mxu0 0.0
        %3335 = vmatpush1.msra.mxu0 0.0
        %3336 = vmatprep.subr.mxu0 0.0
        %3337 = vmatpush1.msra.mxu0 0.0
        %3338 = vmatprep.subr.mxu0 0.0
        %3339 = vmatpush1.msra.mxu0 0.0
        %3340 = vmatprep.subr.mxu0 0.0
        %3341 = vmatpush1.msra.mxu0 0.0
        %3342 = vmatprep.subr.mxu0 0.0
        %3343 = vmatpush1.msra.mxu0 0.0
        %3344 = vmatprep.subr.mxu0 0.0
        %3345 = vmatpush1.msra.mxu0 0.0
        %3346 = vmatprep.subr.mxu0 0.0
        %3347 = vmatpush1.msra.mxu0 0.0
        %3348 = vmatprep.subr.mxu0 0.0
        %3349 = vmatpush1.msra.mxu0 0.0
        %3350 = vmatprep.subr.mxu0 0.0
        %3351 = vmatpush1.msra.mxu0 0.0
        %3352 = vmatprep.subr.mxu0 0.0
        %3353 = vmatpush1.msra.mxu0 0.0
        %3354 = vmatprep.subr.mxu0 0.0
        %3355 = vmatpush1.msra.mxu0 0.0
        %3356 = vmatprep.subr.mxu0 0.0
        %3357 = vmatpush1.msra.mxu0 0.0
        %3358 = vmatprep.subr.mxu0 0.0
        %3359 = vmatpush1.msra.mxu0 0.0
        %3360 = vmatprep.subr.mxu0 0.0
        %3361 = vmatpush1.msra.mxu0 0.0
        %3362 = vmatprep.subr.mxu0 0.0
        %3363 = vmatpush1.msra.mxu0 0.0
        %3364 = vmatprep.subr.mxu0 0.0
        %3365 = vmatpush1.msra.mxu0 0.0
        %3366 = vmatprep.subr.mxu0 0.0
        %3367 = vmatpush1.msra.mxu0 0.0
        %3368 = vmatprep.subr.mxu0 0.0
        %3369 = vmatpush1.msra.mxu0 0.0
        %3370 = vmatprep.subr.mxu0 0.0
        %3371 = vmatpush1.msra.mxu0 0.0
        %3372 = vmatprep.subr.mxu0 0.0
        %3373 = vmatpush1.msra.mxu0 0.0
        %3374 = vmatprep.mubr.f32.mxu0 0.0
        %3375 = vmatmul.mubr.f32.gmra.mrb[0].mxu0 %v3305
        %v3376 = vpop.f32.mrb[0].mxu0
        %v3377 = vadd.f32 0.0, %v3376
        %v3378 = vpop.f32.mrb[0].mxu0
        %3379 = vmatprep.mubr.f32.mxu0 0.0
        %3380 = vmatmul.mubr.f32.gmra.mrb[0].mxu0 %v3308
        %v3381 = vpop.f32.mrb[0].mxu0
        %v3382 = vadd.f32 0.0, %v3381
        %v3383 = vpop.f32.mrb[0].mxu0
        %3384 = vdwg.mxu0
        %v3385 = vadd.f32 %v3290, %v3377
        %v3386 = vadd.f32 %v3295, %v3382
        %v3388 = vlaneseq
        %v3389 = vshrl.u32 %v3388, 7
        %v3390 = vsub.s32 0, %v3389
        %v3391 = vrot.slane %v1821, %v3390
        %v3393 = vadd.f32 %v3385, %v3391
        %v3394 = vadd.f32 %v3386, %v3391
        %v3395 = vmul.f32 %v3393, 0.5
        %v3396 = vmul.f32 %v3394, 0.5
        %v3397 = vmul.f32 %v3393, 0.70710677
        %v3398 = vmul.f32 %v3394, 0.70710677
        %v3399 = vand.u32 2147483647, %v3397
        %v3400 = vand.u32 2147483647, %v3398
        %v3401 = vmul.f32 %v3399, 0.3275911
        %v3402 = vmul.f32 %v3400, 0.3275911
        %v3403 = vadd.f32 %v3401, 1.0
        %v3404 = vadd.f32 %v3402, 1.0
        %v3405 = vrcp.pop %v3403
        %v3406 = vmul.f32 1.0, %v3405
        %v3407 = vrcp.pop %v3404
        %v3408 = vmul.f32 1.0, %v3407
        %v3409 = vmul.f32 %v3406, 1.0614054
        %v3410 = vmul.f32 %v3408, 1.0614054
        %v3411 = vadd.f32 %v3409, -1.4531521
        %v3412 = vadd.f32 %v3410, -1.4531521
        %v3413 = vmul.f32 %v3411, %v3406
        %v3414 = vmul.f32 %v3412, %v3408
        %v3415 = vadd.f32 %v3413, 1.4214138
        %v3416 = vadd.f32 %v3414, 1.4214138
        %v3417 = vmul.f32 %v3415, %v3406
        %v3418 = vmul.f32 %v3416, %v3408
        %v3419 = vadd.f32 %v3417, -0.28449672
        %v3420 = vadd.f32 %v3418, -0.28449672
        %v3421 = vmul.f32 %v3419, %v3406
        %v3422 = vmul.f32 %v3420, %v3408
        %v3423 = vadd.f32 %v3421, 0.2548296
        %v3424 = vadd.f32 %v3422, 0.2548296
        %v3425 = vmul.f32 %v3423, %v3406
        %v3426 = vmul.f32 %v3424, %v3408
        %v3427 = vsub.f32 0.0, %v3399
        %v3428 = vsub.f32 0.0, %v3400
        %v3429 = vmul.f32 %v3427, %v3399
        %v3430 = vmul.f32 %v3428, %v3400
        %v3431 = vmul.f32 %v3429, 1.442695
        %v3432 = vpow.pop %v3431
        %v3433 = vmul.f32 %v3430, 1.442695
        %v3434 = vpow.pop %v3433
        %v3435 = vmul.f32 %v3425, %v3432
        %v3436 = vmul.f32 %v3426, %v3434
        %v3437 = vsub.f32 1.0, %v3435
        %v3438 = vsub.f32 1.0, %v3436
        %vm3439 = vcmp.ge.f32.partialorder %v3397, 0.0
        %vm3440 = vcmp.ge.f32.partialorder %v3398, 0.0
        %v3441 = vsub.f32 0.0, %v3437
        %v3442 = vsub.f32 0.0, %v3438
        %v3443 = vsel %vm3439, %v3437, %v3441
        %v3444 = vsel %vm3440, %v3438, %v3442
        %v3445 = vadd.f32 %v3443, 1.0
        %v3446 = vadd.f32 %v3444, 1.0
        %v3447 = vmul.f32 %v3395, %v3445
        %v3448 = vmul.f32 %v3396, %v3446
        %v3449 = vrot.slane %v3447, 5
        %v3450 = vrot.slane %v3448, 5
        %v3451 = vsel %vm2047, %v3449, %v3450
        %v3452 = vsel %vm2047, %v3450, %v3449
        %v3453 = vsel %vm2050, %v3452, 0.0
        %v3454 = vsel %vm2051, %v3451, 0.0
        %v3455 = vlaneseq
        %v3456 = vshrl.u32 %v3455, 7
        %v3457 = vsub.s32 0, %v3456
        %v3458 = vrot.slane %v1763, %v3457
        %v3459 = vmul.f32 %v3453, %v3458
        %v3460 = vmul.f32 %v3454, %v3458
        %v3461 = vadd.f32 %v3459, 0.0
        %v3462 = vadd.f32 %v3460, 0.0
        %v3463 = vrot.slane %v3447, 6
        %v3464 = vrot.slane %v3448, 6
        %v3465 = vsel %vm2064, %v3463, %v3464
        %v3466 = vsel %vm2064, %v3464, %v3463
        %v3467 = vsel %vm2067, %v3466, 0.0
        %v3468 = vsel %vm2068, %v3465, 0.0
        %v3469 = vlaneseq
        %v3470 = vshrl.u32 %v3469, 7
        %v3471 = vsub.s32 1, %v3470
        %v3472 = vrot.slane %v1763, %v3471
        %v3473 = vmul.f32 %v3467, %v3472
        %v3474 = vmul.f32 %v3468, %v3472
        %v3475 = vadd.f32 %v3461, %v3473
        %v3476 = vadd.f32 %v3462, %v3474
        %v3477 = vrot.slane %v3447, 7
        %v3478 = vrot.slane %v3448, 7
        %v3479 = vsel %vm1870, %v3477, %v3478
        %v3480 = vsel %vm1870, %v3478, %v3477
        %v3481 = vsel %vm1874, %v3480, 0.0
        %v3482 = vsel %vm1875, %v3479, 0.0
        %v3483 = vlaneseq
        %v3484 = vshrl.u32 %v3483, 7
        %v3485 = vsub.s32 2, %v3484
        %v3486 = vrot.slane %v1763, %v3485
        %v3487 = vmul.f32 %v3481, %v3486
        %v3488 = vmul.f32 %v3482, %v3486
        %v3489 = vadd.f32 %v3475, %v3487
        %v3490 = vadd.f32 %v3476, %v3488
        %v3491 = vlaneseq
        %v3492 = vshrl.u32 %v3491, 7
        %v3493 = vsub.s32 3, %v3492
        %v3494 = vrot.slane %v1763, %v3493
        %v3495 = vmul.f32 %v3447, %v3494
        %v3496 = vmul.f32 %v3448, %v3494
        %v3497 = vadd.f32 %v3489, %v3495
        %v3498 = vadd.f32 %v3490, %v3496
        %v3499 = vrot.slane %v3447, 1
        %v3500 = vrot.slane %v3448, 1
        %v3501 = vsel %vm1980, %v3499, %v3500
        %v3502 = vsel %vm1980, %v3500, %v3499
        %v3503 = vsel %vm1983, %v3501, 0.0
        %v3504 = vsel %vm1984, %v3502, 0.0
        %v3505 = vlaneseq
        %v3506 = vshrl.u32 %v3505, 7
        %v3507 = vsub.s32 4, %v3506
        %v3508 = vrot.slane %v1763, %v3507
        %v3509 = vmul.f32 %v3503, %v3508
        %v3510 = vmul.f32 %v3504, %v3508
        %v3511 = vadd.f32 %v3497, %v3509
        %v3512 = vadd.f32 %v3498, %v3510
        %v3513 = vrot.slane %v3447, 2
        %v3514 = vrot.slane %v3448, 2
        %v3515 = vsel %vm2117, %v3513, %v3514
        %v3516 = vsel %vm2117, %v3514, %v3513
        %v3517 = vsel %vm2120, %v3515, 0.0
        %v3518 = vsel %vm2121, %v3516, 0.0
        %v3519 = vlaneseq
        %v3520 = vshrl.u32 %v3519, 7
        %v3521 = vsub.s32 5, %v3520
        %v3522 = vrot.slane %v1763, %v3521
        %v3523 = vmul.f32 %v3517, %v3522
        %v3524 = vmul.f32 %v3518, %v3522
        %v3525 = vadd.f32 %v3511, %v3523
        %v3526 = vadd.f32 %v3512, %v3524
        %v3527 = vrot.slane %v3447, 3
        %v3528 = vrot.slane %v3448, 3
        %v3529 = vsel %vm2134, %v3527, %v3528
        %v3530 = vsel %vm2134, %v3528, %v3527
        %v3531 = vsel %vm2137, %v3529, 0.0
        %v3532 = vsel %vm2138, %v3530, 0.0
        %v3533 = vlaneseq
        %v3534 = vshrl.u32 %v3533, 7
        %v3535 = vsub.s32 6, %v3534
        %v3536 = vrot.slane %v1763, %v3535
        %v3537 = vmul.f32 %v3531, %v3536
        %v3538 = vmul.f32 %v3532, %v3536
        %v3539 = vadd.f32 %v3525, %v3537
        %v3540 = vadd.f32 %v3526, %v3538
        %v3542 = vlaneseq
        %v3543 = vshrl.u32 %v3542, 7
        %v3544 = vsub.s32 0, %v3543
        %v3545 = vrot.slane %v1751, %v3544
        %v3547 = vadd.f32 %v3539, %v3545
        %v3548 = vadd.f32 %v3540, %v3545
        %v3549 = vsel %vm2348, %v3547, 0.0
        %3550 = vadd.xlane.f32.xlu0 %v3549
        %v3551 = vpop.xlane.xlu0 %3550
        %v3552 = vsel %vm2348, %v3548, 0.0
        %3553 = vadd.xlane.f32.xlu0 %v3552
        %v3554 = vpop.xlane.xlu0 %3553
        %v3555 = vrcp.pop 24.0
        %v3556 = vmul.f32 %v3551, %v3555
        %v3557 = vmul.f32 %v3554, %v3555
        %v3558 = vsub.f32 %v3547, %v3556
        %v3559 = vsub.f32 %v3548, %v3557
        %v3560 = vmul.f32 %v3558, %v3558
        %v3561 = vmul.f32 %v3559, %v3559
        %v3562 = vsel %vm2348, %v3560, 0.0
        %3563 = vadd.xlane.f32.xlu0 %v3562
        %v3564 = vpop.xlane.xlu0 %3563
        %v3565 = vsel %vm2348, %v3561, 0.0
        %3566 = vadd.xlane.f32.xlu0 %v3565
        %v3567 = vpop.xlane.xlu0 %3566
        %v3568 = vmul.f32 %v3564, %v3555
        %v3569 = vmul.f32 %v3567, %v3555
        %v3570 = vadd.f32 %v3568, 1e-05
        %v3571 = vadd.f32 %v3569, 1e-05
        %v3572 = vrsqrt.pop %v3570
        %v3573 = vrsqrt.pop %v3571
        %v3574 = vmul.f32 %v3558, %v3572
        %v3575 = vmul.f32 %v3559, %v3573
        %v3577 = vlaneseq
        %v3578 = vshrl.u32 %v3577, 7
        %v3579 = vsub.s32 0, %v3578
        %v3580 = vrot.slane %v1753, %v3579
        %v3582 = vmul.f32 %v3574, %v3580
        %v3583 = vmul.f32 %v3575, %v3580
        %v3585 = vlaneseq
        %v3586 = vshrl.u32 %v3585, 7
        %v3587 = vsub.s32 0, %v3586
        %v3588 = vrot.slane %v1752, %v3587
        %v3590 = vadd.f32 %v3582, %v3588
        %v3591 = vadd.f32 %v3583, %v3588
        %v3593 = vlaneseq
        %v3594 = vshrl.u32 %v3593, 7
        %v3595 = vsub.s32 0, %v3594
        %v3596 = vrot.slane %v1749, %v3595
        %v3599 = vsel %vm2348, %v3590, 0
        %v3602 = vsel %vm2348, %v3591, 0
        %3604 = vmatprep.subr.mxu0 0.0
        %3605 = vmatpush1.msra.mxu0 %v1754
        %3606 = vmatprep.subr.mxu0 0.0
        %3607 = vmatpush1.msra.mxu0 %v1755
        %3608 = vmatprep.subr.mxu0 0.0
        %3609 = vmatpush1.msra.mxu0 %v1756
        %3610 = vmatprep.subr.mxu0 0.0
        %3611 = vmatpush1.msra.mxu0 0.0
        %3612 = vmatprep.subr.mxu0 0.0
        %3613 = vmatpush1.msra.mxu0 0.0
        %3614 = vmatprep.subr.mxu0 0.0
        %3615 = vmatpush1.msra.mxu0 0.0
        %3616 = vmatprep.subr.mxu0 0.0
        %3617 = vmatpush1.msra.mxu0 0.0
        %3618 = vmatprep.subr.mxu0 0.0
        %3619 = vmatpush1.msra.mxu0 0.0
        %3620 = vmatprep.subr.mxu0 0.0
        %3621 = vmatpush1.msra.mxu0 0.0
        %3622 = vmatprep.subr.mxu0 0.0
        %3623 = vmatpush1.msra.mxu0 0.0
        %3624 = vmatprep.subr.mxu0 0.0
        %3625 = vmatpush1.msra.mxu0 0.0
        %3626 = vmatprep.subr.mxu0 0.0
        %3627 = vmatpush1.msra.mxu0 0.0
        %3628 = vmatprep.subr.mxu0 0.0
        %3629 = vmatpush1.msra.mxu0 0.0
        %3630 = vmatprep.subr.mxu0 0.0
        %3631 = vmatpush1.msra.mxu0 0.0
        %3632 = vmatprep.subr.mxu0 0.0
        %3633 = vmatpush1.msra.mxu0 0.0
        %3634 = vmatprep.subr.mxu0 0.0
        %3635 = vmatpush1.msra.mxu0 0.0
        %3636 = vmatprep.subr.mxu0 0.0
        %3637 = vmatpush1.msra.mxu0 0.0
        %3638 = vmatprep.subr.mxu0 0.0
        %3639 = vmatpush1.msra.mxu0 0.0
        %3640 = vmatprep.subr.mxu0 0.0
        %3641 = vmatpush1.msra.mxu0 0.0
        %3642 = vmatprep.subr.mxu0 0.0
        %3643 = vmatpush1.msra.mxu0 0.0
        %3644 = vmatprep.subr.mxu0 0.0
        %3645 = vmatpush1.msra.mxu0 0.0
        %3646 = vmatprep.subr.mxu0 0.0
        %3647 = vmatpush1.msra.mxu0 0.0
        %3648 = vmatprep.subr.mxu0 0.0
        %3649 = vmatpush1.msra.mxu0 0.0
        %3650 = vmatprep.subr.mxu0 0.0
        %3651 = vmatpush1.msra.mxu0 0.0
        %3652 = vmatprep.subr.mxu0 0.0
        %3653 = vmatpush1.msra.mxu0 0.0
        %3654 = vmatprep.subr.mxu0 0.0
        %3655 = vmatpush1.msra.mxu0 0.0
        %3656 = vmatprep.subr.mxu0 0.0
        %3657 = vmatpush1.msra.mxu0 0.0
        %3658 = vmatprep.subr.mxu0 0.0
        %3659 = vmatpush1.msra.mxu0 0.0
        %3660 = vmatprep.subr.mxu0 0.0
        %3661 = vmatpush1.msra.mxu0 0.0
        %3662 = vmatprep.subr.mxu0 0.0
        %3663 = vmatpush1.msra.mxu0 0.0
        %3664 = vmatprep.subr.mxu0 0.0
        %3665 = vmatpush1.msra.mxu0 0.0
        %3666 = vmatprep.subr.mxu0 0.0
        %3667 = vmatpush1.msra.mxu0 0.0
        %3668 = vmatprep.mubr.f32.mxu0 0.0
        %3669 = vmatmul.mubr.f32.gmra.mrb[0].mxu0 %v3599
        %v3670 = vpop.f32.mrb[0].mxu0
        %v3671 = vadd.f32 %v3596, %v3670
        %v3672 = vpop.f32.mrb[0].mxu0
        %3673 = vmatprep.mubr.f32.mxu0 0.0
        %3674 = vmatmul.mubr.f32.gmra.mrb[0].mxu0 %v3602
        %v3675 = vpop.f32.mrb[0].mxu0
        %v3676 = vadd.f32 %v3596, %v3675
        %v3677 = vpop.f32.mrb[0].mxu0
        %3678 = vdwg.mxu0
        %v3679 = vmul.f32 %v3671, 0.5
        %v3680 = vmul.f32 %v3676, 0.5
        %v3681 = vmul.f32 %v3671, 0.70710677
        %v3682 = vmul.f32 %v3676, 0.70710677
        %v3683 = vand.u32 2147483647, %v3681
        %v3684 = vand.u32 2147483647, %v3682
        %v3685 = vmul.f32 %v3683, 0.3275911
        %v3686 = vmul.f32 %v3684, 0.3275911
        %v3687 = vadd.f32 %v3685, 1.0
        %v3688 = vadd.f32 %v3686, 1.0
        %v3689 = vrcp.pop %v3687
        %v3690 = vmul.f32 1.0, %v3689
        %v3691 = vrcp.pop %v3688
        %v3692 = vmul.f32 1.0, %v3691
        %v3693 = vmul.f32 %v3690, 1.0614054
        %v3694 = vmul.f32 %v3692, 1.0614054
        %v3695 = vadd.f32 %v3693, -1.4531521
        %v3696 = vadd.f32 %v3694, -1.4531521
        %v3697 = vmul.f32 %v3695, %v3690
        %v3698 = vmul.f32 %v3696, %v3692
        %v3699 = vadd.f32 %v3697, 1.4214138
        %v3700 = vadd.f32 %v3698, 1.4214138
        %v3701 = vmul.f32 %v3699, %v3690
        %v3702 = vmul.f32 %v3700, %v3692
        %v3703 = vadd.f32 %v3701, -0.28449672
        %v3704 = vadd.f32 %v3702, -0.28449672
        %v3705 = vmul.f32 %v3703, %v3690
        %v3706 = vmul.f32 %v3704, %v3692
        %v3707 = vadd.f32 %v3705, 0.2548296
        %v3708 = vadd.f32 %v3706, 0.2548296
        %v3709 = vmul.f32 %v3707, %v3690
        %v3710 = vmul.f32 %v3708, %v3692
        %v3711 = vsub.f32 0.0, %v3683
        %v3712 = vsub.f32 0.0, %v3684
        %v3713 = vmul.f32 %v3711, %v3683
        %v3714 = vmul.f32 %v3712, %v3684
        %v3715 = vmul.f32 %v3713, 1.442695
        %v3716 = vpow.pop %v3715
        %v3717 = vmul.f32 %v3714, 1.442695
        %v3718 = vpow.pop %v3717
        %v3719 = vmul.f32 %v3709, %v3716
        %v3720 = vmul.f32 %v3710, %v3718
        %v3721 = vsub.f32 1.0, %v3719
        %v3722 = vsub.f32 1.0, %v3720
        %vm3723 = vcmp.ge.f32.partialorder %v3681, 0.0
        %vm3724 = vcmp.ge.f32.partialorder %v3682, 0.0
        %v3725 = vsub.f32 0.0, %v3721
        %v3726 = vsub.f32 0.0, %v3722
        %v3727 = vsel %vm3723, %v3721, %v3725
        %v3728 = vsel %vm3724, %v3722, %v3726
        %v3729 = vadd.f32 %v3727, 1.0
        %v3730 = vadd.f32 %v3728, 1.0
        %v3731 = vmul.f32 %v3679, %v3729
        %v3732 = vmul.f32 %v3680, %v3730
        %v3734 = vlaneseq
        %v3735 = vshrl.u32 %v3734, 7
        %v3736 = vsub.s32 0, %v3735
        %v3737 = vrot.slane %v1750, %v3736
        %vm3739 = vcmask 392192
        %v3741 = vsel %vm3739, %v3731, 0
        %v3744 = vsel %vm3739, %v3732, 0
        %3746 = vmatprep.subr.mxu0 0.0
        %3747 = vmatpush1.msra.mxu0 %v1757
        %3748 = vmatprep.subr.mxu0 0.0
        %3749 = vmatpush1.msra.mxu0 %v1758
        %3750 = vmatprep.subr.mxu0 0.0
        %3751 = vmatpush1.msra.mxu0 %v1759
        %3752 = vmatprep.subr.mxu0 0.0
        %3753 = vmatpush1.msra.mxu0 %v1760
        %3754 = vmatprep.subr.mxu0 0.0
        %3755 = vmatpush1.msra.mxu0 %v1761
        %3756 = vmatprep.subr.mxu0 0.0
        %3757 = vmatpush1.msra.mxu0 %v1762
        %3758 = vmatprep.subr.mxu0 0.0
        %3759 = vmatpush1.msra.mxu0 0.0
        %3760 = vmatprep.subr.mxu0 0.0
        %3761 = vmatpush1.msra.mxu0 0.0
        %3762 = vmatprep.subr.mxu0 0.0
        %3763 = vmatpush1.msra.mxu0 0.0
        %3764 = vmatprep.subr.mxu0 0.0
        %3765 = vmatpush1.msra.mxu0 0.0
        %3766 = vmatprep.subr.mxu0 0.0
        %3767 = vmatpush1.msra.mxu0 0.0
        %3768 = vmatprep.subr.mxu0 0.0
        %3769 = vmatpush1.msra.mxu0 0.0
        %3770 = vmatprep.subr.mxu0 0.0
        %3771 = vmatpush1.msra.mxu0 0.0
        %3772 = vmatprep.subr.mxu0 0.0
        %3773 = vmatpush1.msra.mxu0 0.0
        %3774 = vmatprep.subr.mxu0 0.0
        %3775 = vmatpush1.msra.mxu0 0.0
        %3776 = vmatprep.subr.mxu0 0.0
        %3777 = vmatpush1.msra.mxu0 0.0
        %3778 = vmatprep.subr.mxu0 0.0
        %3779 = vmatpush1.msra.mxu0 0.0
        %3780 = vmatprep.subr.mxu0 0.0
        %3781 = vmatpush1.msra.mxu0 0.0
        %3782 = vmatprep.subr.mxu0 0.0
        %3783 = vmatpush1.msra.mxu0 0.0
        %3784 = vmatprep.subr.mxu0 0.0
        %3785 = vmatpush1.msra.mxu0 0.0
        %3786 = vmatprep.subr.mxu0 0.0
        %3787 = vmatpush1.msra.mxu0 0.0
        %3788 = vmatprep.subr.mxu0 0.0
        %3789 = vmatpush1.msra.mxu0 0.0
        %3790 = vmatprep.subr.mxu0 0.0
        %3791 = vmatpush1.msra.mxu0 0.0
        %3792 = vmatprep.subr.mxu0 0.0
        %3793 = vmatpush1.msra.mxu0 0.0
        %3794 = vmatprep.subr.mxu0 0.0
        %3795 = vmatpush1.msra.mxu0 0.0
        %3796 = vmatprep.subr.mxu0 0.0
        %3797 = vmatpush1.msra.mxu0 0.0
        %3798 = vmatprep.subr.mxu0 0.0
        %3799 = vmatpush1.msra.mxu0 0.0
        %3800 = vmatprep.subr.mxu0 0.0
        %3801 = vmatpush1.msra.mxu0 0.0
        %3802 = vmatprep.subr.mxu0 0.0
        %3803 = vmatpush1.msra.mxu0 0.0
        %3804 = vmatprep.subr.mxu0 0.0
        %3805 = vmatpush1.msra.mxu0 0.0
        %3806 = vmatprep.subr.mxu0 0.0
        %3807 = vmatpush1.msra.mxu0 0.0
        %3808 = vmatprep.subr.mxu0 0.0
        %3809 = vmatpush1.msra.mxu0 0.0
        %3810 = vmatprep.mubr.f32.mxu0 0.0
        %3811 = vmatmul.mubr.f32.gmra.mrb[0].mxu0 %v3741
        %v3812 = vpop.f32.mrb[0].mxu0
        %v3813 = vadd.f32 %v3737, %v3812
        %v3814 = vpop.f32.mrb[0].mxu0
        %3815 = vmatprep.mubr.f32.mxu0 0.0
        %3816 = vmatmul.mubr.f32.gmra.mrb[0].mxu0 %v3744
        %v3817 = vpop.f32.mrb[0].mxu0
        %v3818 = vadd.f32 %v3737, %v3817
        %v3819 = vpop.f32.mrb[0].mxu0
        %3820 = vdwg.mxu0
        %v3821 = vadd.f32 %v3813, %v3447
        %v3822 = vadd.f32 %v3818, %v3448
        %v3823 = vrot.slane %v3821, 7
        %v3824 = vrot.slane %v3822, 7
        %v3825 = vsel %vm1870, %v3823, %v3824
        %v3826 = vsel %vm1870, %v3824, %v3823
        %v3827 = vsel %vm1874, %v3826, 0.0
        %v3828 = vsel %vm1875, %v3825, 0.0
        %v3830 = vsel %vm2348, %v3821, 0
        %v3833 = vsel %vm2348, %v3822, 0
        %3835 = vmatprep.subr.mxu0 0.0
        %3836 = vmatpush1.msra.mxu0 %v1825
        %3837 = vmatprep.subr.mxu0 0.0
        %3838 = vmatpush1.msra.mxu0 %v1826
        %3839 = vmatprep.subr.mxu0 0.0
        %3840 = vmatpush1.msra.mxu0 %v1827
        %3841 = vmatprep.subr.mxu0 0.0
        %3842 = vmatpush1.msra.mxu0 0.0
        %3843 = vmatprep.subr.mxu0 0.0
        %3844 = vmatpush1.msra.mxu0 0.0
        %3845 = vmatprep.subr.mxu0 0.0
        %3846 = vmatpush1.msra.mxu0 0.0
        %3847 = vmatprep.subr.mxu0 0.0
        %3848 = vmatpush1.msra.mxu0 0.0
        %3849 = vmatprep.subr.mxu0 0.0
        %3850 = vmatpush1.msra.mxu0 0.0
        %3851 = vmatprep.subr.mxu0 0.0
        %3852 = vmatpush1.msra.mxu0 0.0
        %3853 = vmatprep.subr.mxu0 0.0
        %3854 = vmatpush1.msra.mxu0 0.0
        %3855 = vmatprep.subr.mxu0 0.0
        %3856 = vmatpush1.msra.mxu0 0.0
        %3857 = vmatprep.subr.mxu0 0.0
        %3858 = vmatpush1.msra.mxu0 0.0
        %3859 = vmatprep.subr.mxu0 0.0
        %3860 = vmatpush1.msra.mxu0 0.0
        %3861 = vmatprep.subr.mxu0 0.0
        %3862 = vmatpush1.msra.mxu0 0.0
        %3863 = vmatprep.subr.mxu0 0.0
        %3864 = vmatpush1.msra.mxu0 0.0
        %3865 = vmatprep.subr.mxu0 0.0
        %3866 = vmatpush1.msra.mxu0 0.0
        %3867 = vmatprep.subr.mxu0 0.0
        %3868 = vmatpush1.msra.mxu0 0.0
        %3869 = vmatprep.subr.mxu0 0.0
        %3870 = vmatpush1.msra.mxu0 0.0
        %3871 = vmatprep.subr.mxu0 0.0
        %3872 = vmatpush1.msra.mxu0 0.0
        %3873 = vmatprep.subr.mxu0 0.0
        %3874 = vmatpush1.msra.mxu0 0.0
        %3875 = vmatprep.subr.mxu0 0.0
        %3876 = vmatpush1.msra.mxu0 0.0
        %3877 = vmatprep.subr.mxu0 0.0
        %3878 = vmatpush1.msra.mxu0 0.0
        %3879 = vmatprep.subr.mxu0 0.0
        %3880 = vmatpush1.msra.mxu0 0.0
        %3881 = vmatprep.subr.mxu0 0.0
        %3882 = vmatpush1.msra.mxu0 0.0
        %3883 = vmatprep.subr.mxu0 0.0
        %3884 = vmatpush1.msra.mxu0 0.0
        %3885 = vmatprep.subr.mxu0 0.0
        %3886 = vmatpush1.msra.mxu0 0.0
        %3887 = vmatprep.subr.mxu0 0.0
        %3888 = vmatpush1.msra.mxu0 0.0
        %3889 = vmatprep.subr.mxu0 0.0
        %3890 = vmatpush1.msra.mxu0 0.0
        %3891 = vmatprep.subr.mxu0 0.0
        %3892 = vmatpush1.msra.mxu0 0.0
        %3893 = vmatprep.subr.mxu0 0.0
        %3894 = vmatpush1.msra.mxu0 0.0
        %3895 = vmatprep.subr.mxu0 0.0
        %3896 = vmatpush1.msra.mxu0 0.0
        %3897 = vmatprep.subr.mxu0 0.0
        %3898 = vmatpush1.msra.mxu0 0.0
        %3899 = vmatprep.mubr.f32.mxu0 0.0
        %3900 = vmatmul.mubr.f32.gmra.mrb[0].mxu0 %v3830
        %v3901 = vpop.f32.mrb[0].mxu0
        %v3902 = vadd.f32 0.0, %v3901
        %v3903 = vpop.f32.mrb[0].mxu0
        %3904 = vmatprep.mubr.f32.mxu0 0.0
        %3905 = vmatmul.mubr.f32.gmra.mrb[0].mxu0 %v3833
        %v3906 = vpop.f32.mrb[0].mxu0
        %v3907 = vadd.f32 0.0, %v3906
        %v3908 = vpop.f32.mrb[0].mxu0
        %3909 = vdwg.mxu0
        %v3911 = vsel %vm2348, %v3827, 0
        %v3914 = vsel %vm2348, %v3828, 0
        %3916 = vmatprep.subr.mxu0 0.0
        %3917 = vmatpush1.msra.mxu0 %v1822
        %3918 = vmatprep.subr.mxu0 0.0
        %3919 = vmatpush1.msra.mxu0 %v1823
        %3920 = vmatprep.subr.mxu0 0.0
        %3921 = vmatpush1.msra.mxu0 %v1824
        %3922 = vmatprep.subr.mxu0 0.0
        %3923 = vmatpush1.msra.mxu0 0.0
        %3924 = vmatprep.subr.mxu0 0.0
        %3925 = vmatpush1.msra.mxu0 0.0
        %3926 = vmatprep.subr.mxu0 0.0
        %3927 = vmatpush1.msra.mxu0 0.0
        %3928 = vmatprep.subr.mxu0 0.0
        %3929 = vmatpush1.msra.mxu0 0.0
        %3930 = vmatprep.subr.mxu0 0.0
        %3931 = vmatpush1.msra.mxu0 0.0
        %3932 = vmatprep.subr.mxu0 0.0
        %3933 = vmatpush1.msra.mxu0 0.0
        %3934 = vmatprep.subr.mxu0 0.0
        %3935 = vmatpush1.msra.mxu0 0.0
        %3936 = vmatprep.subr.mxu0 0.0
        %3937 = vmatpush1.msra.mxu0 0.0
        %3938 = vmatprep.subr.mxu0 0.0
        %3939 = vmatpush1.msra.mxu0 0.0
        %3940 = vmatprep.subr.mxu0 0.0
        %3941 = vmatpush1.msra.mxu0 0.0
        %3942 = vmatprep.subr.mxu0 0.0
        %3943 = vmatpush1.msra.mxu0 0.0
        %3944 = vmatprep.subr.mxu0 0.0
        %3945 = vmatpush1.msra.mxu0 0.0
        %3946 = vmatprep.subr.mxu0 0.0
        %3947 = vmatpush1.msra.mxu0 0.0
        %3948 = vmatprep.subr.mxu0 0.0
        %3949 = vmatpush1.msra.mxu0 0.0
        %3950 = vmatprep.subr.mxu0 0.0
        %3951 = vmatpush1.msra.mxu0 0.0
        %3952 = vmatprep.subr.mxu0 0.0
        %3953 = vmatpush1.msra.mxu0 0.0
        %3954 = vmatprep.subr.mxu0 0.0
        %3955 = vmatpush1.msra.mxu0 0.0
        %3956 = vmatprep.subr.mxu0 0.0
        %3957 = vmatpush1.msra.mxu0 0.0
        %3958 = vmatprep.subr.mxu0 0.0
        %3959 = vmatpush1.msra.mxu0 0.0
        %3960 = vmatprep.subr.mxu0 0.0
        %3961 = vmatpush1.msra.mxu0 0.0
        %3962 = vmatprep.subr.mxu0 0.0
        %3963 = vmatpush1.msra.mxu0 0.0
        %3964 = vmatprep.subr.mxu0 0.0
        %3965 = vmatpush1.msra.mxu0 0.0
        %3966 = vmatprep.subr.mxu0 0.0
        %3967 = vmatpush1.msra.mxu0 0.0
        %3968 = vmatprep.subr.mxu0 0.0
        %3969 = vmatpush1.msra.mxu0 0.0
        %3970 = vmatprep.subr.mxu0 0.0
        %3971 = vmatpush1.msra.mxu0 0.0
        %3972 = vmatprep.subr.mxu0 0.0
        %3973 = vmatpush1.msra.mxu0 0.0
        %3974 = vmatprep.subr.mxu0 0.0
        %3975 = vmatpush1.msra.mxu0 0.0
        %3976 = vmatprep.subr.mxu0 0.0
        %3977 = vmatpush1.msra.mxu0 0.0
        %3978 = vmatprep.subr.mxu0 0.0
        %3979 = vmatpush1.msra.mxu0 0.0
        %3980 = vmatprep.mubr.f32.mxu0 0.0
        %3981 = vmatmul.mubr.f32.gmra.mrb[0].mxu0 %v3911
        %v3982 = vpop.f32.mrb[0].mxu0
        %v3983 = vadd.f32 %v3902, %v3982
        %v3984 = vpop.f32.mrb[0].mxu0
        %3985 = vmatprep.mubr.f32.mxu0 0.0
        %3986 = vmatmul.mubr.f32.gmra.mrb[0].mxu0 %v3914
        %v3987 = vpop.f32.mrb[0].mxu0
        %v3988 = vadd.f32 %v3907, %v3987
        %v3989 = vpop.f32.mrb[0].mxu0
        %3990 = vdwg.mxu0
        %v3991 = vrot.slane %v3821, 1
        %v3992 = vrot.slane %v3822, 1
        %v3993 = vsel %vm1980, %v3991, %v3992
        %v3994 = vsel %vm1980, %v3992, %v3991
        %v3995 = vsel %vm1983, %v3993, 0.0
        %v3996 = vsel %vm1984, %v3994, 0.0
        %v3998 = vsel %vm2348, %v3995, 0
        %v4001 = vsel %vm2348, %v3996, 0
        %4003 = vmatprep.subr.mxu0 0.0
        %4004 = vmatpush1.msra.mxu0 %v1828
        %4005 = vmatprep.subr.mxu0 0.0
        %4006 = vmatpush1.msra.mxu0 %v1829
        %4007 = vmatprep.subr.mxu0 0.0
        %4008 = vmatpush1.msra.mxu0 %v1830
        %4009 = vmatprep.subr.mxu0 0.0
        %4010 = vmatpush1.msra.mxu0 0.0
        %4011 = vmatprep.subr.mxu0 0.0
        %4012 = vmatpush1.msra.mxu0 0.0
        %4013 = vmatprep.subr.mxu0 0.0
        %4014 = vmatpush1.msra.mxu0 0.0
        %4015 = vmatprep.subr.mxu0 0.0
        %4016 = vmatpush1.msra.mxu0 0.0
        %4017 = vmatprep.subr.mxu0 0.0
        %4018 = vmatpush1.msra.mxu0 0.0
        %4019 = vmatprep.subr.mxu0 0.0
        %4020 = vmatpush1.msra.mxu0 0.0
        %4021 = vmatprep.subr.mxu0 0.0
        %4022 = vmatpush1.msra.mxu0 0.0
        %4023 = vmatprep.subr.mxu0 0.0
        %4024 = vmatpush1.msra.mxu0 0.0
        %4025 = vmatprep.subr.mxu0 0.0
        %4026 = vmatpush1.msra.mxu0 0.0
        %4027 = vmatprep.subr.mxu0 0.0
        %4028 = vmatpush1.msra.mxu0 0.0
        %4029 = vmatprep.subr.mxu0 0.0
        %4030 = vmatpush1.msra.mxu0 0.0
        %4031 = vmatprep.subr.mxu0 0.0
        %4032 = vmatpush1.msra.mxu0 0.0
        %4033 = vmatprep.subr.mxu0 0.0
        %4034 = vmatpush1.msra.mxu0 0.0
        %4035 = vmatprep.subr.mxu0 0.0
        %4036 = vmatpush1.msra.mxu0 0.0
        %4037 = vmatprep.subr.mxu0 0.0
        %4038 = vmatpush1.msra.mxu0 0.0
        %4039 = vmatprep.subr.mxu0 0.0
        %4040 = vmatpush1.msra.mxu0 0.0
        %4041 = vmatprep.subr.mxu0 0.0
        %4042 = vmatpush1.msra.mxu0 0.0
        %4043 = vmatprep.subr.mxu0 0.0
        %4044 = vmatpush1.msra.mxu0 0.0
        %4045 = vmatprep.subr.mxu0 0.0
        %4046 = vmatpush1.msra.mxu0 0.0
        %4047 = vmatprep.subr.mxu0 0.0
        %4048 = vmatpush1.msra.mxu0 0.0
        %4049 = vmatprep.subr.mxu0 0.0
        %4050 = vmatpush1.msra.mxu0 0.0
        %4051 = vmatprep.subr.mxu0 0.0
        %4052 = vmatpush1.msra.mxu0 0.0
        %4053 = vmatprep.subr.mxu0 0.0
        %4054 = vmatpush1.msra.mxu0 0.0
        %4055 = vmatprep.subr.mxu0 0.0
        %4056 = vmatpush1.msra.mxu0 0.0
        %4057 = vmatprep.subr.mxu0 0.0
        %4058 = vmatpush1.msra.mxu0 0.0
        %4059 = vmatprep.subr.mxu0 0.0
        %4060 = vmatpush1.msra.mxu0 0.0
        %4061 = vmatprep.subr.mxu0 0.0
        %4062 = vmatpush1.msra.mxu0 0.0
        %4063 = vmatprep.subr.mxu0 0.0
        %4064 = vmatpush1.msra.mxu0 0.0
        %4065 = vmatprep.subr.mxu0 0.0
        %4066 = vmatpush1.msra.mxu0 0.0
        %4067 = vmatprep.mubr.f32.mxu0 0.0
        %4068 = vmatmul.mubr.f32.gmra.mrb[0].mxu0 %v3998
        %v4069 = vpop.f32.mrb[0].mxu0
        %v4070 = vadd.f32 0.0, %v4069
        %v4071 = vpop.f32.mrb[0].mxu0
        %4072 = vmatprep.mubr.f32.mxu0 0.0
        %4073 = vmatmul.mubr.f32.gmra.mrb[0].mxu0 %v4001
        %v4074 = vpop.f32.mrb[0].mxu0
        %v4075 = vadd.f32 0.0, %v4074
        %v4076 = vpop.f32.mrb[0].mxu0
        %4077 = vdwg.mxu0
        %v4078 = vadd.f32 %v3983, %v4070
        %v4079 = vadd.f32 %v3988, %v4075
        %v4081 = vlaneseq
        %v4082 = vshrl.u32 %v4081, 7
        %v4083 = vsub.s32 0, %v4082
        %v4084 = vrot.slane %v1831, %v4083
        %v4086 = vadd.f32 %v4078, %v4084
        %v4087 = vadd.f32 %v4079, %v4084
        %v4088 = vmul.f32 %v4086, 0.5
        %v4089 = vmul.f32 %v4087, 0.5
        %v4090 = vmul.f32 %v4086, 0.70710677
        %v4091 = vmul.f32 %v4087, 0.70710677
        %v4092 = vand.u32 2147483647, %v4090
        %v4093 = vand.u32 2147483647, %v4091
        %v4094 = vmul.f32 %v4092, 0.3275911
        %v4095 = vmul.f32 %v4093, 0.3275911
        %v4096 = vadd.f32 %v4094, 1.0
        %v4097 = vadd.f32 %v4095, 1.0
        %v4098 = vrcp.pop %v4096
        %v4099 = vmul.f32 1.0, %v4098
        %v4100 = vrcp.pop %v4097
        %v4101 = vmul.f32 1.0, %v4100
        %v4102 = vmul.f32 %v4099, 1.0614054
        %v4103 = vmul.f32 %v4101, 1.0614054
        %v4104 = vadd.f32 %v4102, -1.4531521
        %v4105 = vadd.f32 %v4103, -1.4531521
        %v4106 = vmul.f32 %v4104, %v4099
        %v4107 = vmul.f32 %v4105, %v4101
        %v4108 = vadd.f32 %v4106, 1.4214138
        %v4109 = vadd.f32 %v4107, 1.4214138
        %v4110 = vmul.f32 %v4108, %v4099
        %v4111 = vmul.f32 %v4109, %v4101
        %v4112 = vadd.f32 %v4110, -0.28449672
        %v4113 = vadd.f32 %v4111, -0.28449672
        %v4114 = vmul.f32 %v4112, %v4099
        %v4115 = vmul.f32 %v4113, %v4101
        %v4116 = vadd.f32 %v4114, 0.2548296
        %v4117 = vadd.f32 %v4115, 0.2548296
        %v4118 = vmul.f32 %v4116, %v4099
        %v4119 = vmul.f32 %v4117, %v4101
        %v4120 = vsub.f32 0.0, %v4092
        %v4121 = vsub.f32 0.0, %v4093
        %v4122 = vmul.f32 %v4120, %v4092
        %v4123 = vmul.f32 %v4121, %v4093
        %v4124 = vmul.f32 %v4122, 1.442695
        %v4125 = vpow.pop %v4124
        %v4126 = vmul.f32 %v4123, 1.442695
        %v4127 = vpow.pop %v4126
        %v4128 = vmul.f32 %v4118, %v4125
        %v4129 = vmul.f32 %v4119, %v4127
        %v4130 = vsub.f32 1.0, %v4128
        %v4131 = vsub.f32 1.0, %v4129
        %vm4132 = vcmp.ge.f32.partialorder %v4090, 0.0
        %vm4133 = vcmp.ge.f32.partialorder %v4091, 0.0
        %v4134 = vsub.f32 0.0, %v4130
        %v4135 = vsub.f32 0.0, %v4131
        %v4136 = vsel %vm4132, %v4130, %v4134
        %v4137 = vsel %vm4133, %v4131, %v4135
        %v4138 = vadd.f32 %v4136, 1.0
        %v4139 = vadd.f32 %v4137, 1.0
        %v4140 = vmul.f32 %v4088, %v4138
        %v4141 = vmul.f32 %v4089, %v4139
        %v4142 = vrot.slane %v4140, 5
        %v4143 = vrot.slane %v4141, 5
        %v4144 = vsel %vm2047, %v4142, %v4143
        %v4145 = vsel %vm2047, %v4143, %v4142
        %v4146 = vsel %vm2050, %v4145, 0.0
        %v4147 = vsel %vm2051, %v4144, 0.0
        %v4148 = vlaneseq
        %v4149 = vshrl.u32 %v4148, 7
        %v4150 = vsub.s32 0, %v4149
        %v4151 = vrot.slane %v1782, %v4150
        %v4152 = vmul.f32 %v4146, %v4151
        %v4153 = vmul.f32 %v4147, %v4151
        %v4154 = vadd.f32 %v4152, 0.0
        %v4155 = vadd.f32 %v4153, 0.0
        %v4156 = vrot.slane %v4140, 6
        %v4157 = vrot.slane %v4141, 6
        %v4158 = vsel %vm2064, %v4156, %v4157
        %v4159 = vsel %vm2064, %v4157, %v4156
        %v4160 = vsel %vm2067, %v4159, 0.0
        %v4161 = vsel %vm2068, %v4158, 0.0
        %v4162 = vlaneseq
        %v4163 = vshrl.u32 %v4162, 7
        %v4164 = vsub.s32 1, %v4163
        %v4165 = vrot.slane %v1782, %v4164
        %v4166 = vmul.f32 %v4160, %v4165
        %v4167 = vmul.f32 %v4161, %v4165
        %v4168 = vadd.f32 %v4154, %v4166
        %v4169 = vadd.f32 %v4155, %v4167
        %v4170 = vrot.slane %v4140, 7
        %v4171 = vrot.slane %v4141, 7
        %v4172 = vsel %vm1870, %v4170, %v4171
        %v4173 = vsel %vm1870, %v4171, %v4170
        %v4174 = vsel %vm1874, %v4173, 0.0
        %v4175 = vsel %vm1875, %v4172, 0.0
        %v4176 = vlaneseq
        %v4177 = vshrl.u32 %v4176, 7
        %v4178 = vsub.s32 2, %v4177
        %v4179 = vrot.slane %v1782, %v4178
        %v4180 = vmul.f32 %v4174, %v4179
        %v4181 = vmul.f32 %v4175, %v4179
        %v4182 = vadd.f32 %v4168, %v4180
        %v4183 = vadd.f32 %v4169, %v4181
        %v4184 = vlaneseq
        %v4185 = vshrl.u32 %v4184, 7
        %v4186 = vsub.s32 3, %v4185
        %v4187 = vrot.slane %v1782, %v4186
        %v4188 = vmul.f32 %v4140, %v4187
        %v4189 = vmul.f32 %v4141, %v4187
        %v4190 = vadd.f32 %v4182, %v4188
        %v4191 = vadd.f32 %v4183, %v4189
        %v4192 = vrot.slane %v4140, 1
        %v4193 = vrot.slane %v4141, 1
        %v4194 = vsel %vm1980, %v4192, %v4193
        %v4195 = vsel %vm1980, %v4193, %v4192
        %v4196 = vsel %vm1983, %v4194, 0.0
        %v4197 = vsel %vm1984, %v4195, 0.0
        %v4198 = vlaneseq
        %v4199 = vshrl.u32 %v4198, 7
        %v4200 = vsub.s32 4, %v4199
        %v4201 = vrot.slane %v1782, %v4200
        %v4202 = vmul.f32 %v4196, %v4201
        %v4203 = vmul.f32 %v4197, %v4201
        %v4204 = vadd.f32 %v4190, %v4202
        %v4205 = vadd.f32 %v4191, %v4203
        %v4206 = vrot.slane %v4140, 2
        %v4207 = vrot.slane %v4141, 2
        %v4208 = vsel %vm2117, %v4206, %v4207
        %v4209 = vsel %vm2117, %v4207, %v4206
        %v4210 = vsel %vm2120, %v4208, 0.0
        %v4211 = vsel %vm2121, %v4209, 0.0
        %v4212 = vlaneseq
        %v4213 = vshrl.u32 %v4212, 7
        %v4214 = vsub.s32 5, %v4213
        %v4215 = vrot.slane %v1782, %v4214
        %v4216 = vmul.f32 %v4210, %v4215
        %v4217 = vmul.f32 %v4211, %v4215
        %v4218 = vadd.f32 %v4204, %v4216
        %v4219 = vadd.f32 %v4205, %v4217
        %v4220 = vrot.slane %v4140, 3
        %v4221 = vrot.slane %v4141, 3
        %v4222 = vsel %vm2134, %v4220, %v4221
        %v4223 = vsel %vm2134, %v4221, %v4220
        %v4224 = vsel %vm2137, %v4222, 0.0
        %v4225 = vsel %vm2138, %v4223, 0.0
        %v4226 = vlaneseq
        %v4227 = vshrl.u32 %v4226, 7
        %v4228 = vsub.s32 6, %v4227
        %v4229 = vrot.slane %v1782, %v4228
        %v4230 = vmul.f32 %v4224, %v4229
        %v4231 = vmul.f32 %v4225, %v4229
        %v4232 = vadd.f32 %v4218, %v4230
        %v4233 = vadd.f32 %v4219, %v4231
        %v4235 = vlaneseq
        %v4236 = vshrl.u32 %v4235, 7
        %v4237 = vsub.s32 0, %v4236
        %v4238 = vrot.slane %v1766, %v4237
        %v4240 = vadd.f32 %v4232, %v4238
        %v4241 = vadd.f32 %v4233, %v4238
        %vm4242 = vcmask 261120
        %v4243 = vsel %vm4242, %v4240, 0.0
        %4244 = vadd.xlane.f32.xlu0 %v4243
        %v4245 = vpop.xlane.xlu0 %4244
        %v4246 = vsel %vm4242, %v4241, 0.0
        %4247 = vadd.xlane.f32.xlu0 %v4246
        %v4248 = vpop.xlane.xlu0 %4247
        %v4249 = vrcp.pop 32.0
        %v4250 = vmul.f32 %v4245, %v4249
        %v4251 = vmul.f32 %v4248, %v4249
        %v4252 = vsub.f32 %v4240, %v4250
        %v4253 = vsub.f32 %v4241, %v4251
        %v4254 = vmul.f32 %v4252, %v4252
        %v4255 = vmul.f32 %v4253, %v4253
        %v4256 = vsel %vm4242, %v4254, 0.0
        %4257 = vadd.xlane.f32.xlu0 %v4256
        %v4258 = vpop.xlane.xlu0 %4257
        %v4259 = vsel %vm4242, %v4255, 0.0
        %4260 = vadd.xlane.f32.xlu0 %v4259
        %v4261 = vpop.xlane.xlu0 %4260
        %v4262 = vmul.f32 %v4258, %v4249
        %v4263 = vmul.f32 %v4261, %v4249
        %v4264 = vadd.f32 %v4262, 1e-05
        %v4265 = vadd.f32 %v4263, 1e-05
        %v4266 = vrsqrt.pop %v4264
        %v4267 = vrsqrt.pop %v4265
        %v4268 = vmul.f32 %v4252, %v4266
        %v4269 = vmul.f32 %v4253, %v4267
        %v4271 = vlaneseq
        %v4272 = vshrl.u32 %v4271, 7
        %v4273 = vsub.s32 0, %v4272
        %v4274 = vrot.slane %v1768, %v4273
        %v4276 = vmul.f32 %v4268, %v4274
        %v4277 = vmul.f32 %v4269, %v4274
        %v4279 = vlaneseq
        %v4280 = vshrl.u32 %v4279, 7
        %v4281 = vsub.s32 0, %v4280
        %v4282 = vrot.slane %v1767, %v4281
        %v4284 = vadd.f32 %v4276, %v4282
        %v4285 = vadd.f32 %v4277, %v4282
        %v4287 = vlaneseq
        %v4288 = vshrl.u32 %v4287, 7
        %v4289 = vsub.s32 0, %v4288
        %v4290 = vrot.slane %v1764, %v4289
        %v4293 = vsel %vm4242, %v4284, 0
        %v4296 = vsel %vm4242, %v4285, 0
        %4298 = vmatprep.subr.mxu0 0.0
        %4299 = vmatpush1.msra.mxu0 %v1769
        %4300 = vmatprep.subr.mxu0 0.0
        %4301 = vmatpush1.msra.mxu0 %v1770
        %4302 = vmatprep.subr.mxu0 0.0
        %4303 = vmatpush1.msra.mxu0 %v1771
        %4304 = vmatprep.subr.mxu0 0.0
        %4305 = vmatpush1.msra.mxu0 %v1772
        %4306 = vmatprep.subr.mxu0 0.0
        %4307 = vmatpush1.msra.mxu0 0.0
        %4308 = vmatprep.subr.mxu0 0.0
        %4309 = vmatpush1.msra.mxu0 0.0
        %4310 = vmatprep.subr.mxu0 0.0
        %4311 = vmatpush1.msra.mxu0 0.0
        %4312 = vmatprep.subr.mxu0 0.0
        %4313 = vmatpush1.msra.mxu0 0.0
        %4314 = vmatprep.subr.mxu0 0.0
        %4315 = vmatpush1.msra.mxu0 0.0
        %4316 = vmatprep.subr.mxu0 0.0
        %4317 = vmatpush1.msra.mxu0 0.0
        %4318 = vmatprep.subr.mxu0 0.0
        %4319 = vmatpush1.msra.mxu0 0.0
        %4320 = vmatprep.subr.mxu0 0.0
        %4321 = vmatpush1.msra.mxu0 0.0
        %4322 = vmatprep.subr.mxu0 0.0
        %4323 = vmatpush1.msra.mxu0 0.0
        %4324 = vmatprep.subr.mxu0 0.0
        %4325 = vmatpush1.msra.mxu0 0.0
        %4326 = vmatprep.subr.mxu0 0.0
        %4327 = vmatpush1.msra.mxu0 0.0
        %4328 = vmatprep.subr.mxu0 0.0
        %4329 = vmatpush1.msra.mxu0 0.0
        %4330 = vmatprep.subr.mxu0 0.0
        %4331 = vmatpush1.msra.mxu0 0.0
        %4332 = vmatprep.subr.mxu0 0.0
        %4333 = vmatpush1.msra.mxu0 0.0
        %4334 = vmatprep.subr.mxu0 0.0
        %4335 = vmatpush1.msra.mxu0 0.0
        %4336 = vmatprep.subr.mxu0 0.0
        %4337 = vmatpush1.msra.mxu0 0.0
        %4338 = vmatprep.subr.mxu0 0.0
        %4339 = vmatpush1.msra.mxu0 0.0
        %4340 = vmatprep.subr.mxu0 0.0
        %4341 = vmatpush1.msra.mxu0 0.0
        %4342 = vmatprep.subr.mxu0 0.0
        %4343 = vmatpush1.msra.mxu0 0.0
        %4344 = vmatprep.subr.mxu0 0.0
        %4345 = vmatpush1.msra.mxu0 0.0
        %4346 = vmatprep.subr.mxu0 0.0
        %4347 = vmatpush1.msra.mxu0 0.0
        %4348 = vmatprep.subr.mxu0 0.0
        %4349 = vmatpush1.msra.mxu0 0.0
        %4350 = vmatprep.subr.mxu0 0.0
        %4351 = vmatpush1.msra.mxu0 0.0
        %4352 = vmatprep.subr.mxu0 0.0
        %4353 = vmatpush1.msra.mxu0 0.0
        %4354 = vmatprep.subr.mxu0 0.0
        %4355 = vmatpush1.msra.mxu0 0.0
        %4356 = vmatprep.subr.mxu0 0.0
        %4357 = vmatpush1.msra.mxu0 0.0
        %4358 = vmatprep.subr.mxu0 0.0
        %4359 = vmatpush1.msra.mxu0 0.0
        %4360 = vmatprep.subr.mxu0 0.0
        %4361 = vmatpush1.msra.mxu0 0.0
        %4362 = vmatprep.mubr.f32.mxu0 0.0
        %4363 = vmatmul.mubr.f32.gmra.mrb[0].mxu0 %v4293
        %v4364 = vpop.f32.mrb[0].mxu0
        %v4365 = vadd.f32 %v4290, %v4364
        %v4366 = vpop.f32.mrb[0].mxu0
        %4367 = vmatprep.mubr.f32.mxu0 0.0
        %4368 = vmatmul.mubr.f32.gmra.mrb[0].mxu0 %v4296
        %v4369 = vpop.f32.mrb[0].mxu0
        %v4370 = vadd.f32 %v4290, %v4369
        %v4371 = vpop.f32.mrb[0].mxu0
        %4372 = vdwg.mxu0
        %v4373 = vmul.f32 %v4365, 0.5
        %v4374 = vmul.f32 %v4370, 0.5
        %v4375 = vmul.f32 %v4365, 0.70710677
        %v4376 = vmul.f32 %v4370, 0.70710677
        %v4377 = vand.u32 2147483647, %v4375
        %v4378 = vand.u32 2147483647, %v4376
        %v4379 = vmul.f32 %v4377, 0.3275911
        %v4380 = vmul.f32 %v4378, 0.3275911
        %v4381 = vadd.f32 %v4379, 1.0
        %v4382 = vadd.f32 %v4380, 1.0
        %v4383 = vrcp.pop %v4381
        %v4384 = vmul.f32 1.0, %v4383
        %v4385 = vrcp.pop %v4382
        %v4386 = vmul.f32 1.0, %v4385
        %v4387 = vmul.f32 %v4384, 1.0614054
        %v4388 = vmul.f32 %v4386, 1.0614054
        %v4389 = vadd.f32 %v4387, -1.4531521
        %v4390 = vadd.f32 %v4388, -1.4531521
        %v4391 = vmul.f32 %v4389, %v4384
        %v4392 = vmul.f32 %v4390, %v4386
        %v4393 = vadd.f32 %v4391, 1.4214138
        %v4394 = vadd.f32 %v4392, 1.4214138
        %v4395 = vmul.f32 %v4393, %v4384
        %v4396 = vmul.f32 %v4394, %v4386
        %v4397 = vadd.f32 %v4395, -0.28449672
        %v4398 = vadd.f32 %v4396, -0.28449672
        %v4399 = vmul.f32 %v4397, %v4384
        %v4400 = vmul.f32 %v4398, %v4386
        %v4401 = vadd.f32 %v4399, 0.2548296
        %v4402 = vadd.f32 %v4400, 0.2548296
        %v4403 = vmul.f32 %v4401, %v4384
        %v4404 = vmul.f32 %v4402, %v4386
        %v4405 = vsub.f32 0.0, %v4377
        %v4406 = vsub.f32 0.0, %v4378
        %v4407 = vmul.f32 %v4405, %v4377
        %v4408 = vmul.f32 %v4406, %v4378
        %v4409 = vmul.f32 %v4407, 1.442695
        %v4410 = vpow.pop %v4409
        %v4411 = vmul.f32 %v4408, 1.442695
        %v4412 = vpow.pop %v4411
        %v4413 = vmul.f32 %v4403, %v4410
        %v4414 = vmul.f32 %v4404, %v4412
        %v4415 = vsub.f32 1.0, %v4413
        %v4416 = vsub.f32 1.0, %v4414
        %vm4417 = vcmp.ge.f32.partialorder %v4375, 0.0
        %vm4418 = vcmp.ge.f32.partialorder %v4376, 0.0
        %v4419 = vsub.f32 0.0, %v4415
        %v4420 = vsub.f32 0.0, %v4416
        %v4421 = vsel %vm4417, %v4415, %v4419
        %v4422 = vsel %vm4418, %v4416, %v4420
        %v4423 = vadd.f32 %v4421, 1.0
        %v4424 = vadd.f32 %v4422, 1.0
        %v4425 = vmul.f32 %v4373, %v4423
        %v4426 = vmul.f32 %v4374, %v4424
        %v4428 = vlaneseq
        %v4429 = vshrl.u32 %v4428, 7
        %v4430 = vsub.s32 0, %v4429
        %v4431 = vrot.slane %v1765, %v4430
        %vm4433 = vcmask 588800
        %v4435 = vsel %vm4433, %v4425, 0
        %v4438 = vsel %vm4433, %v4426, 0
        %4440 = vmatprep.subr.mxu0 0.0
        %4441 = vmatpush1.msra.mxu0 %v1773
        %4442 = vmatprep.subr.mxu0 0.0
        %4443 = vmatpush1.msra.mxu0 %v1774
        %4444 = vmatprep.subr.mxu0 0.0
        %4445 = vmatpush1.msra.mxu0 %v1775
        %4446 = vmatprep.subr.mxu0 0.0
        %4447 = vmatpush1.msra.mxu0 %v1776
        %4448 = vmatprep.subr.mxu0 0.0
        %4449 = vmatpush1.msra.mxu0 %v1777
        %4450 = vmatprep.subr.mxu0 0.0
        %4451 = vmatpush1.msra.mxu0 %v1778
        %4452 = vmatprep.subr.mxu0 0.0
        %4453 = vmatpush1.msra.mxu0 %v1779
        %4454 = vmatprep.subr.mxu0 0.0
        %4455 = vmatpush1.msra.mxu0 %v1780
        %4456 = vmatprep.subr.mxu0 0.0
        %4457 = vmatpush1.msra.mxu0 %v1781
        %4458 = vmatprep.subr.mxu0 0.0
        %4459 = vmatpush1.msra.mxu0 0.0
        %4460 = vmatprep.subr.mxu0 0.0
        %4461 = vmatpush1.msra.mxu0 0.0
        %4462 = vmatprep.subr.mxu0 0.0
        %4463 = vmatpush1.msra.mxu0 0.0
        %4464 = vmatprep.subr.mxu0 0.0
        %4465 = vmatpush1.msra.mxu0 0.0
        %4466 = vmatprep.subr.mxu0 0.0
        %4467 = vmatpush1.msra.mxu0 0.0
        %4468 = vmatprep.subr.mxu0 0.0
        %4469 = vmatpush1.msra.mxu0 0.0
        %4470 = vmatprep.subr.mxu0 0.0
        %4471 = vmatpush1.msra.mxu0 0.0
        %4472 = vmatprep.subr.mxu0 0.0
        %4473 = vmatpush1.msra.mxu0 0.0
        %4474 = vmatprep.subr.mxu0 0.0
        %4475 = vmatpush1.msra.mxu0 0.0
        %4476 = vmatprep.subr.mxu0 0.0
        %4477 = vmatpush1.msra.mxu0 0.0
        %4478 = vmatprep.subr.mxu0 0.0
        %4479 = vmatpush1.msra.mxu0 0.0
        %4480 = vmatprep.subr.mxu0 0.0
        %4481 = vmatpush1.msra.mxu0 0.0
        %4482 = vmatprep.subr.mxu0 0.0
        %4483 = vmatpush1.msra.mxu0 0.0
        %4484 = vmatprep.subr.mxu0 0.0
        %4485 = vmatpush1.msra.mxu0 0.0
        %4486 = vmatprep.subr.mxu0 0.0
        %4487 = vmatpush1.msra.mxu0 0.0
        %4488 = vmatprep.subr.mxu0 0.0
        %4489 = vmatpush1.msra.mxu0 0.0
        %4490 = vmatprep.subr.mxu0 0.0
        %4491 = vmatpush1.msra.mxu0 0.0
        %4492 = vmatprep.subr.mxu0 0.0
        %4493 = vmatpush1.msra.mxu0 0.0
        %4494 = vmatprep.subr.mxu0 0.0
        %4495 = vmatpush1.msra.mxu0 0.0
        %4496 = vmatprep.subr.mxu0 0.0
        %4497 = vmatpush1.msra.mxu0 0.0
        %4498 = vmatprep.subr.mxu0 0.0
        %4499 = vmatpush1.msra.mxu0 0.0
        %4500 = vmatprep.subr.mxu0 0.0
        %4501 = vmatpush1.msra.mxu0 0.0
        %4502 = vmatprep.subr.mxu0 0.0
        %4503 = vmatpush1.msra.mxu0 0.0
        %4504 = vmatprep.mubr.f32.mxu0 0.0
        %4505 = vmatmul.mubr.f32.gmra.mrb[0].mxu0 %v4435
        %v4506 = vpop.f32.mrb[0].mxu0
        %v4507 = vadd.f32 %v4431, %v4506
        %v4508 = vpop.f32.mrb[0].mxu0
        %4509 = vmatprep.mubr.f32.mxu0 0.0
        %4510 = vmatmul.mubr.f32.gmra.mrb[0].mxu0 %v4438
        %v4511 = vpop.f32.mrb[0].mxu0
        %v4512 = vadd.f32 %v4431, %v4511
        %v4513 = vpop.f32.mrb[0].mxu0
        %4514 = vdwg.mxu0
        %v4515 = vadd.f32 %v4507, %v4140
        %v4516 = vadd.f32 %v4512, %v4141
        %v4517 = vrot.slane %v4515, 7
        %v4518 = vrot.slane %v4516, 7
        %v4519 = vsel %vm1870, %v4517, %v4518
        %v4520 = vsel %vm1870, %v4518, %v4517
        %v4521 = vsel %vm1874, %v4520, 0.0
        %v4522 = vsel %vm1875, %v4519, 0.0
        %v4524 = vsel %vm4242, %v4515, 0
        %v4527 = vsel %vm4242, %v4516, 0
        %4529 = vmatprep.subr.mxu0 0.0
        %4530 = vmatpush1.msra.mxu0 %v1836
        %4531 = vmatprep.subr.mxu0 0.0
        %4532 = vmatpush1.msra.mxu0 %v1837
        %4533 = vmatprep.subr.mxu0 0.0
        %4534 = vmatpush1.msra.mxu0 %v1838
        %4535 = vmatprep.subr.mxu0 0.0
        %4536 = vmatpush1.msra.mxu0 %v1839
        %4537 = vmatprep.subr.mxu0 0.0
        %4538 = vmatpush1.msra.mxu0 0.0
        %4539 = vmatprep.subr.mxu0 0.0
        %4540 = vmatpush1.msra.mxu0 0.0
        %4541 = vmatprep.subr.mxu0 0.0
        %4542 = vmatpush1.msra.mxu0 0.0
        %4543 = vmatprep.subr.mxu0 0.0
        %4544 = vmatpush1.msra.mxu0 0.0
        %4545 = vmatprep.subr.mxu0 0.0
        %4546 = vmatpush1.msra.mxu0 0.0
        %4547 = vmatprep.subr.mxu0 0.0
        %4548 = vmatpush1.msra.mxu0 0.0
        %4549 = vmatprep.subr.mxu0 0.0
        %4550 = vmatpush1.msra.mxu0 0.0
        %4551 = vmatprep.subr.mxu0 0.0
        %4552 = vmatpush1.msra.mxu0 0.0
        %4553 = vmatprep.subr.mxu0 0.0
        %4554 = vmatpush1.msra.mxu0 0.0
        %4555 = vmatprep.subr.mxu0 0.0
        %4556 = vmatpush1.msra.mxu0 0.0
        %4557 = vmatprep.subr.mxu0 0.0
        %4558 = vmatpush1.msra.mxu0 0.0
        %4559 = vmatprep.subr.mxu0 0.0
        %4560 = vmatpush1.msra.mxu0 0.0
        %4561 = vmatprep.subr.mxu0 0.0
        %4562 = vmatpush1.msra.mxu0 0.0
        %4563 = vmatprep.subr.mxu0 0.0
        %4564 = vmatpush1.msra.mxu0 0.0
        %4565 = vmatprep.subr.mxu0 0.0
        %4566 = vmatpush1.msra.mxu0 0.0
        %4567 = vmatprep.subr.mxu0 0.0
        %4568 = vmatpush1.msra.mxu0 0.0
        %4569 = vmatprep.subr.mxu0 0.0
        %4570 = vmatpush1.msra.mxu0 0.0
        %4571 = vmatprep.subr.mxu0 0.0
        %4572 = vmatpush1.msra.mxu0 0.0
        %4573 = vmatprep.subr.mxu0 0.0
        %4574 = vmatpush1.msra.mxu0 0.0
        %4575 = vmatprep.subr.mxu0 0.0
        %4576 = vmatpush1.msra.mxu0 0.0
        %4577 = vmatprep.subr.mxu0 0.0
        %4578 = vmatpush1.msra.mxu0 0.0
        %4579 = vmatprep.subr.mxu0 0.0
        %4580 = vmatpush1.msra.mxu0 0.0
        %4581 = vmatprep.subr.mxu0 0.0
        %4582 = vmatpush1.msra.mxu0 0.0
        %4583 = vmatprep.subr.mxu0 0.0
        %4584 = vmatpush1.msra.mxu0 0.0
        %4585 = vmatprep.subr.mxu0 0.0
        %4586 = vmatpush1.msra.mxu0 0.0
        %4587 = vmatprep.subr.mxu0 0.0
        %4588 = vmatpush1.msra.mxu0 0.0
        %4589 = vmatprep.subr.mxu0 0.0
        %4590 = vmatpush1.msra.mxu0 0.0
        %4591 = vmatprep.subr.mxu0 0.0
        %4592 = vmatpush1.msra.mxu0 0.0
        %4593 = vmatprep.mubr.f32.mxu0 0.0
        %4594 = vmatmul.mubr.f32.gmra.mrb[0].mxu0 %v4524
        %v4595 = vpop.f32.mrb[0].mxu0
        %v4596 = vadd.f32 0.0, %v4595
        %v4597 = vpop.f32.mrb[0].mxu0
        %4598 = vmatprep.mubr.f32.mxu0 0.0
        %4599 = vmatmul.mubr.f32.gmra.mrb[0].mxu0 %v4527
        %v4600 = vpop.f32.mrb[0].mxu0
        %v4601 = vadd.f32 0.0, %v4600
        %v4602 = vpop.f32.mrb[0].mxu0
        %4603 = vdwg.mxu0
        %v4605 = vsel %vm4242, %v4521, 0
        %v4608 = vsel %vm4242, %v4522, 0
        %4610 = vmatprep.subr.mxu0 0.0
        %4611 = vmatpush1.msra.mxu0 %v1832
        %4612 = vmatprep.subr.mxu0 0.0
        %4613 = vmatpush1.msra.mxu0 %v1833
        %4614 = vmatprep.subr.mxu0 0.0
        %4615 = vmatpush1.msra.mxu0 %v1834
        %4616 = vmatprep.subr.mxu0 0.0
        %4617 = vmatpush1.msra.mxu0 %v1835
        %4618 = vmatprep.subr.mxu0 0.0
        %4619 = vmatpush1.msra.mxu0 0.0
        %4620 = vmatprep.subr.mxu0 0.0
        %4621 = vmatpush1.msra.mxu0 0.0
        %4622 = vmatprep.subr.mxu0 0.0
        %4623 = vmatpush1.msra.mxu0 0.0
        %4624 = vmatprep.subr.mxu0 0.0
        %4625 = vmatpush1.msra.mxu0 0.0
        %4626 = vmatprep.subr.mxu0 0.0
        %4627 = vmatpush1.msra.mxu0 0.0
        %4628 = vmatprep.subr.mxu0 0.0
        %4629 = vmatpush1.msra.mxu0 0.0
        %4630 = vmatprep.subr.mxu0 0.0
        %4631 = vmatpush1.msra.mxu0 0.0
        %4632 = vmatprep.subr.mxu0 0.0
        %4633 = vmatpush1.msra.mxu0 0.0
        %4634 = vmatprep.subr.mxu0 0.0
        %4635 = vmatpush1.msra.mxu0 0.0
        %4636 = vmatprep.subr.mxu0 0.0
        %4637 = vmatpush1.msra.mxu0 0.0
        %4638 = vmatprep.subr.mxu0 0.0
        %4639 = vmatpush1.msra.mxu0 0.0
        %4640 = vmatprep.subr.mxu0 0.0
        %4641 = vmatpush1.msra.mxu0 0.0
        %4642 = vmatprep.subr.mxu0 0.0
        %4643 = vmatpush1.msra.mxu0 0.0
        %4644 = vmatprep.subr.mxu0 0.0
        %4645 = vmatpush1.msra.mxu0 0.0
        %4646 = vmatprep.subr.mxu0 0.0
        %4647 = vmatpush1.msra.mxu0 0.0
        %4648 = vmatprep.subr.mxu0 0.0
        %4649 = vmatpush1.msra.mxu0 0.0
        %4650 = vmatprep.subr.mxu0 0.0
        %4651 = vmatpush1.msra.mxu0 0.0
        %4652 = vmatprep.subr.mxu0 0.0
        %4653 = vmatpush1.msra.mxu0 0.0
        %4654 = vmatprep.subr.mxu0 0.0
        %4655 = vmatpush1.msra.mxu0 0.0
        %4656 = vmatprep.subr.mxu0 0.0
        %4657 = vmatpush1.msra.mxu0 0.0
        %4658 = vmatprep.subr.mxu0 0.0
        %4659 = vmatpush1.msra.mxu0 0.0
        %4660 = vmatprep.subr.mxu0 0.0
        %4661 = vmatpush1.msra.mxu0 0.0
        %4662 = vmatprep.subr.mxu0 0.0
        %4663 = vmatpush1.msra.mxu0 0.0
        %4664 = vmatprep.subr.mxu0 0.0
        %4665 = vmatpush1.msra.mxu0 0.0
        %4666 = vmatprep.subr.mxu0 0.0
        %4667 = vmatpush1.msra.mxu0 0.0
        %4668 = vmatprep.subr.mxu0 0.0
        %4669 = vmatpush1.msra.mxu0 0.0
        %4670 = vmatprep.subr.mxu0 0.0
        %4671 = vmatpush1.msra.mxu0 0.0
        %4672 = vmatprep.subr.mxu0 0.0
        %4673 = vmatpush1.msra.mxu0 0.0
        %4674 = vmatprep.mubr.f32.mxu0 0.0
        %4675 = vmatmul.mubr.f32.gmra.mrb[0].mxu0 %v4605
        %v4676 = vpop.f32.mrb[0].mxu0
        %v4677 = vadd.f32 %v4596, %v4676
        %v4678 = vpop.f32.mrb[0].mxu0
        %4679 = vmatprep.mubr.f32.mxu0 0.0
        %4680 = vmatmul.mubr.f32.gmra.mrb[0].mxu0 %v4608
        %v4681 = vpop.f32.mrb[0].mxu0
        %v4682 = vadd.f32 %v4601, %v4681
        %v4683 = vpop.f32.mrb[0].mxu0
        %4684 = vdwg.mxu0
        %v4685 = vrot.slane %v4515, 1
        %v4686 = vrot.slane %v4516, 1
        %v4687 = vsel %vm1980, %v4685, %v4686
        %v4688 = vsel %vm1980, %v4686, %v4685
        %v4689 = vsel %vm1983, %v4687, 0.0
        %v4690 = vsel %vm1984, %v4688, 0.0
        %v4692 = vsel %vm4242, %v4689, 0
        %v4695 = vsel %vm4242, %v4690, 0
        %4697 = vmatprep.subr.mxu0 0.0
        %4698 = vmatpush1.msra.mxu0 %v1840
        %4699 = vmatprep.subr.mxu0 0.0
        %4700 = vmatpush1.msra.mxu0 %v1841
        %4701 = vmatprep.subr.mxu0 0.0
        %4702 = vmatpush1.msra.mxu0 %v1842
        %4703 = vmatprep.subr.mxu0 0.0
        %4704 = vmatpush1.msra.mxu0 %v1843
        %4705 = vmatprep.subr.mxu0 0.0
        %4706 = vmatpush1.msra.mxu0 0.0
        %4707 = vmatprep.subr.mxu0 0.0
        %4708 = vmatpush1.msra.mxu0 0.0
        %4709 = vmatprep.subr.mxu0 0.0
        %4710 = vmatpush1.msra.mxu0 0.0
        %4711 = vmatprep.subr.mxu0 0.0
        %4712 = vmatpush1.msra.mxu0 0.0
        %4713 = vmatprep.subr.mxu0 0.0
        %4714 = vmatpush1.msra.mxu0 0.0
        %4715 = vmatprep.subr.mxu0 0.0
        %4716 = vmatpush1.msra.mxu0 0.0
        %4717 = vmatprep.subr.mxu0 0.0
        %4718 = vmatpush1.msra.mxu0 0.0
        %4719 = vmatprep.subr.mxu0 0.0
        %4720 = vmatpush1.msra.mxu0 0.0
        %4721 = vmatprep.subr.mxu0 0.0
        %4722 = vmatpush1.msra.mxu0 0.0
        %4723 = vmatprep.subr.mxu0 0.0
        %4724 = vmatpush1.msra.mxu0 0.0
        %4725 = vmatprep.subr.mxu0 0.0
        %4726 = vmatpush1.msra.mxu0 0.0
        %4727 = vmatprep.subr.mxu0 0.0
        %4728 = vmatpush1.msra.mxu0 0.0
        %4729 = vmatprep.subr.mxu0 0.0
        %4730 = vmatpush1.msra.mxu0 0.0
        %4731 = vmatprep.subr.mxu0 0.0
        %4732 = vmatpush1.msra.mxu0 0.0
        %4733 = vmatprep.subr.mxu0 0.0
        %4734 = vmatpush1.msra.mxu0 0.0
        %4735 = vmatprep.subr.mxu0 0.0
        %4736 = vmatpush1.msra.mxu0 0.0
        %4737 = vmatprep.subr.mxu0 0.0
        %4738 = vmatpush1.msra.mxu0 0.0
        %4739 = vmatprep.subr.mxu0 0.0
        %4740 = vmatpush1.msra.mxu0 0.0
        %4741 = vmatprep.subr.mxu0 0.0
        %4742 = vmatpush1.msra.mxu0 0.0
        %4743 = vmatprep.subr.mxu0 0.0
        %4744 = vmatpush1.msra.mxu0 0.0
        %4745 = vmatprep.subr.mxu0 0.0
        %4746 = vmatpush1.msra.mxu0 0.0
        %4747 = vmatprep.subr.mxu0 0.0
        %4748 = vmatpush1.msra.mxu0 0.0
        %4749 = vmatprep.subr.mxu0 0.0
        %4750 = vmatpush1.msra.mxu0 0.0
        %4751 = vmatprep.subr.mxu0 0.0
        %4752 = vmatpush1.msra.mxu0 0.0
        %4753 = vmatprep.subr.mxu0 0.0
        %4754 = vmatpush1.msra.mxu0 0.0
        %4755 = vmatprep.subr.mxu0 0.0
        %4756 = vmatpush1.msra.mxu0 0.0
        %4757 = vmatprep.subr.mxu0 0.0
        %4758 = vmatpush1.msra.mxu0 0.0
        %4759 = vmatprep.subr.mxu0 0.0
        %4760 = vmatpush1.msra.mxu0 0.0
        %4761 = vmatprep.mubr.f32.mxu0 0.0
        %4762 = vmatmul.mubr.f32.gmra.mrb[0].mxu0 %v4692
        %v4763 = vpop.f32.mrb[0].mxu0
        %v4764 = vadd.f32 0.0, %v4763
        %v4765 = vpop.f32.mrb[0].mxu0
        %4766 = vmatprep.mubr.f32.mxu0 0.0
        %4767 = vmatmul.mubr.f32.gmra.mrb[0].mxu0 %v4695
        %v4768 = vpop.f32.mrb[0].mxu0
        %v4769 = vadd.f32 0.0, %v4768
        %v4770 = vpop.f32.mrb[0].mxu0
        %4771 = vdwg.mxu0
        %v4772 = vadd.f32 %v4677, %v4764
        %v4773 = vadd.f32 %v4682, %v4769
        %v4775 = vlaneseq
        %v4776 = vshrl.u32 %v4775, 7
        %v4777 = vsub.s32 0, %v4776
        %v4778 = vrot.slane %v1844, %v4777
        %v4780 = vadd.f32 %v4772, %v4778
        %v4781 = vadd.f32 %v4773, %v4778
        %v4782 = vmul.f32 %v4780, 0.5
        %v4783 = vmul.f32 %v4781, 0.5
        %v4784 = vmul.f32 %v4780, 0.70710677
        %v4785 = vmul.f32 %v4781, 0.70710677
        %v4786 = vand.u32 2147483647, %v4784
        %v4787 = vand.u32 2147483647, %v4785
        %v4788 = vmul.f32 %v4786, 0.3275911
        %v4789 = vmul.f32 %v4787, 0.3275911
        %v4790 = vadd.f32 %v4788, 1.0
        %v4791 = vadd.f32 %v4789, 1.0
        %v4792 = vrcp.pop %v4790
        %v4793 = vmul.f32 1.0, %v4792
        %v4794 = vrcp.pop %v4791
        %v4795 = vmul.f32 1.0, %v4794
        %v4796 = vmul.f32 %v4793, 1.0614054
        %v4797 = vmul.f32 %v4795, 1.0614054
        %v4798 = vadd.f32 %v4796, -1.4531521
        %v4799 = vadd.f32 %v4797, -1.4531521
        %v4800 = vmul.f32 %v4798, %v4793
        %v4801 = vmul.f32 %v4799, %v4795
        %v4802 = vadd.f32 %v4800, 1.4214138
        %v4803 = vadd.f32 %v4801, 1.4214138
        %v4804 = vmul.f32 %v4802, %v4793
        %v4805 = vmul.f32 %v4803, %v4795
        %v4806 = vadd.f32 %v4804, -0.28449672
        %v4807 = vadd.f32 %v4805, -0.28449672
        %v4808 = vmul.f32 %v4806, %v4793
        %v4809 = vmul.f32 %v4807, %v4795
        %v4810 = vadd.f32 %v4808, 0.2548296
        %v4811 = vadd.f32 %v4809, 0.2548296
        %v4812 = vmul.f32 %v4810, %v4793
        %v4813 = vmul.f32 %v4811, %v4795
        %v4814 = vsub.f32 0.0, %v4786
        %v4815 = vsub.f32 0.0, %v4787
        %v4816 = vmul.f32 %v4814, %v4786
        %v4817 = vmul.f32 %v4815, %v4787
        %v4818 = vmul.f32 %v4816, 1.442695
        %v4819 = vpow.pop %v4818
        %v4820 = vmul.f32 %v4817, 1.442695
        %v4821 = vpow.pop %v4820
        %v4822 = vmul.f32 %v4812, %v4819
        %v4823 = vmul.f32 %v4813, %v4821
        %v4824 = vsub.f32 1.0, %v4822
        %v4825 = vsub.f32 1.0, %v4823
        %vm4826 = vcmp.ge.f32.partialorder %v4784, 0.0
        %vm4827 = vcmp.ge.f32.partialorder %v4785, 0.0
        %v4828 = vsub.f32 0.0, %v4824
        %v4829 = vsub.f32 0.0, %v4825
        %v4830 = vsel %vm4826, %v4824, %v4828
        %v4831 = vsel %vm4827, %v4825, %v4829
        %v4832 = vadd.f32 %v4830, 1.0
        %v4833 = vadd.f32 %v4831, 1.0
        %v4834 = vmul.f32 %v4782, %v4832
        %v4835 = vmul.f32 %v4783, %v4833
        %v4836 = vrot.slane %v4834, 5
        %v4837 = vrot.slane %v4835, 5
        %v4838 = vsel %vm2047, %v4836, %v4837
        %v4839 = vsel %vm2047, %v4837, %v4836
        %v4840 = vsel %vm2050, %v4839, 0.0
        %v4841 = vsel %vm2051, %v4838, 0.0
        %v4842 = vlaneseq
        %v4843 = vshrl.u32 %v4842, 7
        %v4844 = vsub.s32 0, %v4843
        %v4845 = vrot.slane %v1806, %v4844
        %v4846 = vmul.f32 %v4840, %v4845
        %v4847 = vmul.f32 %v4841, %v4845
        %v4848 = vadd.f32 %v4846, 0.0
        %v4849 = vadd.f32 %v4847, 0.0
        %v4850 = vrot.slane %v4834, 6
        %v4851 = vrot.slane %v4835, 6
        %v4852 = vsel %vm2064, %v4850, %v4851
        %v4853 = vsel %vm2064, %v4851, %v4850
        %v4854 = vsel %vm2067, %v4853, 0.0
        %v4855 = vsel %vm2068, %v4852, 0.0
        %v4856 = vlaneseq
        %v4857 = vshrl.u32 %v4856, 7
        %v4858 = vsub.s32 1, %v4857
        %v4859 = vrot.slane %v1806, %v4858
        %v4860 = vmul.f32 %v4854, %v4859
        %v4861 = vmul.f32 %v4855, %v4859
        %v4862 = vadd.f32 %v4848, %v4860
        %v4863 = vadd.f32 %v4849, %v4861
        %v4864 = vrot.slane %v4834, 7
        %v4865 = vrot.slane %v4835, 7
        %v4866 = vsel %vm1870, %v4864, %v4865
        %v4867 = vsel %vm1870, %v4865, %v4864
        %v4868 = vsel %vm1874, %v4867, 0.0
        %v4869 = vsel %vm1875, %v4866, 0.0
        %v4870 = vlaneseq
        %v4871 = vshrl.u32 %v4870, 7
        %v4872 = vsub.s32 2, %v4871
        %v4873 = vrot.slane %v1806, %v4872
        %v4874 = vmul.f32 %v4868, %v4873
        %v4875 = vmul.f32 %v4869, %v4873
        %v4876 = vadd.f32 %v4862, %v4874
        %v4877 = vadd.f32 %v4863, %v4875
        %v4878 = vlaneseq
        %v4879 = vshrl.u32 %v4878, 7
        %v4880 = vsub.s32 3, %v4879
        %v4881 = vrot.slane %v1806, %v4880
        %v4882 = vmul.f32 %v4834, %v4881
        %v4883 = vmul.f32 %v4835, %v4881
        %v4884 = vadd.f32 %v4876, %v4882
        %v4885 = vadd.f32 %v4877, %v4883
        %v4886 = vrot.slane %v4834, 1
        %v4887 = vrot.slane %v4835, 1
        %v4888 = vsel %vm1980, %v4886, %v4887
        %v4889 = vsel %vm1980, %v4887, %v4886
        %v4890 = vsel %vm1983, %v4888, 0.0
        %v4891 = vsel %vm1984, %v4889, 0.0
        %v4892 = vlaneseq
        %v4893 = vshrl.u32 %v4892, 7
        %v4894 = vsub.s32 4, %v4893
        %v4895 = vrot.slane %v1806, %v4894
        %v4896 = vmul.f32 %v4890, %v4895
        %v4897 = vmul.f32 %v4891, %v4895
        %v4898 = vadd.f32 %v4884, %v4896
        %v4899 = vadd.f32 %v4885, %v4897
        %v4900 = vrot.slane %v4834, 2
        %v4901 = vrot.slane %v4835, 2
        %v4902 = vsel %vm2117, %v4900, %v4901
        %v4903 = vsel %vm2117, %v4901, %v4900
        %v4904 = vsel %vm2120, %v4902, 0.0
        %v4905 = vsel %vm2121, %v4903, 0.0
        %v4906 = vlaneseq
        %v4907 = vshrl.u32 %v4906, 7
        %v4908 = vsub.s32 5, %v4907
        %v4909 = vrot.slane %v1806, %v4908
        %v4910 = vmul.f32 %v4904, %v4909
        %v4911 = vmul.f32 %v4905, %v4909
        %v4912 = vadd.f32 %v4898, %v4910
        %v4913 = vadd.f32 %v4899, %v4911
        %v4914 = vrot.slane %v4834, 3
        %v4915 = vrot.slane %v4835, 3
        %v4916 = vsel %vm2134, %v4914, %v4915
        %v4917 = vsel %vm2134, %v4915, %v4914
        %v4918 = vsel %vm2137, %v4916, 0.0
        %v4919 = vsel %vm2138, %v4917, 0.0
        %v4920 = vlaneseq
        %v4921 = vshrl.u32 %v4920, 7
        %v4922 = vsub.s32 6, %v4921
        %v4923 = vrot.slane %v1806, %v4922
        %v4924 = vmul.f32 %v4918, %v4923
        %v4925 = vmul.f32 %v4919, %v4923
        %v4926 = vadd.f32 %v4912, %v4924
        %v4927 = vadd.f32 %v4913, %v4925
        %v4929 = vlaneseq
        %v4930 = vshrl.u32 %v4929, 7
        %v4931 = vsub.s32 0, %v4930
        %v4932 = vrot.slane %v1785, %v4931
        %v4934 = vadd.f32 %v4926, %v4932
        %v4935 = vadd.f32 %v4927, %v4932
        %v4936 = vsel %vm3739, %v4934, 0.0
        %4937 = vadd.xlane.f32.xlu0 %v4936
        %v4938 = vpop.xlane.xlu0 %4937
        %v4939 = vsel %vm3739, %v4935, 0.0
        %4940 = vadd.xlane.f32.xlu0 %v4939
        %v4941 = vpop.xlane.xlu0 %4940
        %v4942 = vrcp.pop 48.0
        %v4943 = vmul.f32 %v4938, %v4942
        %v4944 = vmul.f32 %v4941, %v4942
        %v4945 = vsub.f32 %v4934, %v4943
        %v4946 = vsub.f32 %v4935, %v4944
        %v4947 = vmul.f32 %v4945, %v4945
        %v4948 = vmul.f32 %v4946, %v4946
        %v4949 = vsel %vm3739, %v4947, 0.0
        %4950 = vadd.xlane.f32.xlu0 %v4949
        %v4951 = vpop.xlane.xlu0 %4950
        %v4952 = vsel %vm3739, %v4948, 0.0
        %4953 = vadd.xlane.f32.xlu0 %v4952
        %v4954 = vpop.xlane.xlu0 %4953
        %v4955 = vmul.f32 %v4951, %v4942
        %v4956 = vmul.f32 %v4954, %v4942
        %v4957 = vadd.f32 %v4955, 1e-05
        %v4958 = vadd.f32 %v4956, 1e-05
        %v4959 = vrsqrt.pop %v4957
        %v4960 = vrsqrt.pop %v4958
        %v4961 = vmul.f32 %v4945, %v4959
        %v4962 = vmul.f32 %v4946, %v4960
        %v4964 = vlaneseq
        %v4965 = vshrl.u32 %v4964, 7
        %v4966 = vsub.s32 0, %v4965
        %v4967 = vrot.slane %v1787, %v4966
        %v4969 = vmul.f32 %v4961, %v4967
        %v4970 = vmul.f32 %v4962, %v4967
        %v4972 = vlaneseq
        %v4973 = vshrl.u32 %v4972, 7
        %v4974 = vsub.s32 0, %v4973
        %v4975 = vrot.slane %v1786, %v4974
        %v4977 = vadd.f32 %v4969, %v4975
        %v4978 = vadd.f32 %v4970, %v4975
        %v4980 = vlaneseq
        %v4981 = vshrl.u32 %v4980, 7
        %v4982 = vsub.s32 0, %v4981
        %v4983 = vrot.slane %v1783, %v4982
        %v4986 = vsel %vm3739, %v4977, 0
        %v4989 = vsel %vm3739, %v4978, 0
        %4991 = vmatprep.subr.mxu0 0.0
        %4992 = vmatpush1.msra.mxu0 %v1788
        %4993 = vmatprep.subr.mxu0 0.0
        %4994 = vmatpush1.msra.mxu0 %v1789
        %4995 = vmatprep.subr.mxu0 0.0
        %4996 = vmatpush1.msra.mxu0 %v1790
        %4997 = vmatprep.subr.mxu0 0.0
        %4998 = vmatpush1.msra.mxu0 %v1791
        %4999 = vmatprep.subr.mxu0 0.0
        %5000 = vmatpush1.msra.mxu0 %v1792
        %5001 = vmatprep.subr.mxu0 0.0
        %5002 = vmatpush1.msra.mxu0 %v1793
        %5003 = vmatprep.subr.mxu0 0.0
        %5004 = vmatpush1.msra.mxu0 0.0
        %5005 = vmatprep.subr.mxu0 0.0
        %5006 = vmatpush1.msra.mxu0 0.0
        %5007 = vmatprep.subr.mxu0 0.0
        %5008 = vmatpush1.msra.mxu0 0.0
        %5009 = vmatprep.subr.mxu0 0.0
        %5010 = vmatpush1.msra.mxu0 0.0
        %5011 = vmatprep.subr.mxu0 0.0
        %5012 = vmatpush1.msra.mxu0 0.0
        %5013 = vmatprep.subr.mxu0 0.0
        %5014 = vmatpush1.msra.mxu0 0.0
        %5015 = vmatprep.subr.mxu0 0.0
        %5016 = vmatpush1.msra.mxu0 0.0
        %5017 = vmatprep.subr.mxu0 0.0
        %5018 = vmatpush1.msra.mxu0 0.0
        %5019 = vmatprep.subr.mxu0 0.0
        %5020 = vmatpush1.msra.mxu0 0.0
        %5021 = vmatprep.subr.mxu0 0.0
        %5022 = vmatpush1.msra.mxu0 0.0
        %5023 = vmatprep.subr.mxu0 0.0
        %5024 = vmatpush1.msra.mxu0 0.0
        %5025 = vmatprep.subr.mxu0 0.0
        %5026 = vmatpush1.msra.mxu0 0.0
        %5027 = vmatprep.subr.mxu0 0.0
        %5028 = vmatpush1.msra.mxu0 0.0
        %5029 = vmatprep.subr.mxu0 0.0
        %5030 = vmatpush1.msra.mxu0 0.0
        %5031 = vmatprep.subr.mxu0 0.0
        %5032 = vmatpush1.msra.mxu0 0.0
        %5033 = vmatprep.subr.mxu0 0.0
        %5034 = vmatpush1.msra.mxu0 0.0
        %5035 = vmatprep.subr.mxu0 0.0
        %5036 = vmatpush1.msra.mxu0 0.0
        %5037 = vmatprep.subr.mxu0 0.0
        %5038 = vmatpush1.msra.mxu0 0.0
        %5039 = vmatprep.subr.mxu0 0.0
        %5040 = vmatpush1.msra.mxu0 0.0
        %5041 = vmatprep.subr.mxu0 0.0
        %5042 = vmatpush1.msra.mxu0 0.0
        %5043 = vmatprep.subr.mxu0 0.0
        %5044 = vmatpush1.msra.mxu0 0.0
        %5045 = vmatprep.subr.mxu0 0.0
        %5046 = vmatpush1.msra.mxu0 0.0
        %5047 = vmatprep.subr.mxu0 0.0
        %5048 = vmatpush1.msra.mxu0 0.0
        %5049 = vmatprep.subr.mxu0 0.0
        %5050 = vmatpush1.msra.mxu0 0.0
        %5051 = vmatprep.subr.mxu0 0.0
        %5052 = vmatpush1.msra.mxu0 0.0
        %5053 = vmatprep.subr.mxu0 0.0
        %5054 = vmatpush1.msra.mxu0 0.0
        %5055 = vmatprep.mubr.f32.mxu0 0.0
        %5056 = vmatmul.mubr.f32.gmra.mrb[0].mxu0 %v4986
        %v5057 = vpop.f32.mrb[0].mxu0
        %v5058 = vadd.f32 %v4983, %v5057
        %v5059 = vpop.f32.mrb[0].mxu0
        %5060 = vmatprep.mubr.f32.mxu0 0.0
        %5061 = vmatmul.mubr.f32.gmra.mrb[0].mxu0 %v4989
        %v5062 = vpop.f32.mrb[0].mxu0
        %v5063 = vadd.f32 %v4983, %v5062
        %v5064 = vpop.f32.mrb[0].mxu0
        %5065 = vdwg.mxu0
        %v5066 = vmul.f32 %v5058, 0.5
        %v5067 = vmul.f32 %v5063, 0.5
        %v5068 = vmul.f32 %v5058, 0.70710677
        %v5069 = vmul.f32 %v5063, 0.70710677
        %v5070 = vand.u32 2147483647, %v5068
        %v5071 = vand.u32 2147483647, %v5069
        %v5072 = vmul.f32 %v5070, 0.3275911
        %v5073 = vmul.f32 %v5071, 0.3275911
        %v5074 = vadd.f32 %v5072, 1.0
        %v5075 = vadd.f32 %v5073, 1.0
        %v5076 = vrcp.pop %v5074
        %v5077 = vmul.f32 1.0, %v5076
        %v5078 = vrcp.pop %v5075
        %v5079 = vmul.f32 1.0, %v5078
        %v5080 = vmul.f32 %v5077, 1.0614054
        %v5081 = vmul.f32 %v5079, 1.0614054
        %v5082 = vadd.f32 %v5080, -1.4531521
        %v5083 = vadd.f32 %v5081, -1.4531521
        %v5084 = vmul.f32 %v5082, %v5077
        %v5085 = vmul.f32 %v5083, %v5079
        %v5086 = vadd.f32 %v5084, 1.4214138
        %v5087 = vadd.f32 %v5085, 1.4214138
        %v5088 = vmul.f32 %v5086, %v5077
        %v5089 = vmul.f32 %v5087, %v5079
        %v5090 = vadd.f32 %v5088, -0.28449672
        %v5091 = vadd.f32 %v5089, -0.28449672
        %v5092 = vmul.f32 %v5090, %v5077
        %v5093 = vmul.f32 %v5091, %v5079
        %v5094 = vadd.f32 %v5092, 0.2548296
        %v5095 = vadd.f32 %v5093, 0.2548296
        %v5096 = vmul.f32 %v5094, %v5077
        %v5097 = vmul.f32 %v5095, %v5079
        %v5098 = vsub.f32 0.0, %v5070
        %v5099 = vsub.f32 0.0, %v5071
        %v5100 = vmul.f32 %v5098, %v5070
        %v5101 = vmul.f32 %v5099, %v5071
        %v5102 = vmul.f32 %v5100, 1.442695
        %v5103 = vpow.pop %v5102
        %v5104 = vmul.f32 %v5101, 1.442695
        %v5105 = vpow.pop %v5104
        %v5106 = vmul.f32 %v5096, %v5103
        %v5107 = vmul.f32 %v5097, %v5105
        %v5108 = vsub.f32 1.0, %v5106
        %v5109 = vsub.f32 1.0, %v5107
        %vm5110 = vcmp.ge.f32.partialorder %v5068, 0.0
        %vm5111 = vcmp.ge.f32.partialorder %v5069, 0.0
        %v5112 = vsub.f32 0.0, %v5108
        %v5113 = vsub.f32 0.0, %v5109
        %v5114 = vsel %vm5110, %v5108, %v5112
        %v5115 = vsel %vm5111, %v5109, %v5113
        %v5116 = vadd.f32 %v5114, 1.0
        %v5117 = vadd.f32 %v5115, 1.0
        %v5118 = vmul.f32 %v5066, %v5116
        %v5119 = vmul.f32 %v5067, %v5117
        %v5121 = vlaneseq
        %v5122 = vshrl.u32 %v5121, 7
        %v5123 = vsub.s32 0, %v5122
        %v5124 = vrot.slane %v1784, %v5123
        %vm5126 = vcmask 785408
        %v5128 = vsel %vm5126, %v5118, 0
        %v5131 = vsel %vm5126, %v5119, 0
        %5133 = vmatprep.subr.mxu0 0.0
        %5134 = vmatpush1.msra.mxu0 %v1794
        %5135 = vmatprep.subr.mxu0 0.0
        %5136 = vmatpush1.msra.mxu0 %v1795
        %5137 = vmatprep.subr.mxu0 0.0
        %5138 = vmatpush1.msra.mxu0 %v1796
        %5139 = vmatprep.subr.mxu0 0.0
        %5140 = vmatpush1.msra.mxu0 %v1797
        %5141 = vmatprep.subr.mxu0 0.0
        %5142 = vmatpush1.msra.mxu0 %v1798
        %5143 = vmatprep.subr.mxu0 0.0
        %5144 = vmatpush1.msra.mxu0 %v1799
        %5145 = vmatprep.subr.mxu0 0.0
        %5146 = vmatpush1.msra.mxu0 %v1800
        %5147 = vmatprep.subr.mxu0 0.0
        %5148 = vmatpush1.msra.mxu0 %v1801
        %5149 = vmatprep.subr.mxu0 0.0
        %5150 = vmatpush1.msra.mxu0 %v1802
        %5151 = vmatprep.subr.mxu0 0.0
        %5152 = vmatpush1.msra.mxu0 %v1803
        %5153 = vmatprep.subr.mxu0 0.0
        %5154 = vmatpush1.msra.mxu0 %v1804
        %5155 = vmatprep.subr.mxu0 0.0
        %5156 = vmatpush1.msra.mxu0 %v1805
        %5157 = vmatprep.subr.mxu0 0.0
        %5158 = vmatpush1.msra.mxu0 0.0
        %5159 = vmatprep.subr.mxu0 0.0
        %5160 = vmatpush1.msra.mxu0 0.0
        %5161 = vmatprep.subr.mxu0 0.0
        %5162 = vmatpush1.msra.mxu0 0.0
        %5163 = vmatprep.subr.mxu0 0.0
        %5164 = vmatpush1.msra.mxu0 0.0
        %5165 = vmatprep.subr.mxu0 0.0
        %5166 = vmatpush1.msra.mxu0 0.0
        %5167 = vmatprep.subr.mxu0 0.0
        %5168 = vmatpush1.msra.mxu0 0.0
        %5169 = vmatprep.subr.mxu0 0.0
        %5170 = vmatpush1.msra.mxu0 0.0
        %5171 = vmatprep.subr.mxu0 0.0
        %5172 = vmatpush1.msra.mxu0 0.0
        %5173 = vmatprep.subr.mxu0 0.0
        %5174 = vmatpush1.msra.mxu0 0.0
        %5175 = vmatprep.subr.mxu0 0.0
        %5176 = vmatpush1.msra.mxu0 0.0
        %5177 = vmatprep.subr.mxu0 0.0
        %5178 = vmatpush1.msra.mxu0 0.0
        %5179 = vmatprep.subr.mxu0 0.0
        %5180 = vmatpush1.msra.mxu0 0.0
        %5181 = vmatprep.subr.mxu0 0.0
        %5182 = vmatpush1.msra.mxu0 0.0
        %5183 = vmatprep.subr.mxu0 0.0
        %5184 = vmatpush1.msra.mxu0 0.0
        %5185 = vmatprep.subr.mxu0 0.0
        %5186 = vmatpush1.msra.mxu0 0.0
        %5187 = vmatprep.subr.mxu0 0.0
        %5188 = vmatpush1.msra.mxu0 0.0
        %5189 = vmatprep.subr.mxu0 0.0
        %5190 = vmatpush1.msra.mxu0 0.0
        %5191 = vmatprep.subr.mxu0 0.0
        %5192 = vmatpush1.msra.mxu0 0.0
        %5193 = vmatprep.subr.mxu0 0.0
        %5194 = vmatpush1.msra.mxu0 0.0
        %5195 = vmatprep.subr.mxu0 0.0
        %5196 = vmatpush1.msra.mxu0 0.0
        %5197 = vmatprep.mubr.f32.mxu0 0.0
        %5198 = vmatmul.mubr.f32.gmra.mrb[0].mxu0 %v5128
        %v5199 = vpop.f32.mrb[0].mxu0
        %v5200 = vadd.f32 %v5124, %v5199
        %v5201 = vpop.f32.mrb[0].mxu0
        %5202 = vmatprep.mubr.f32.mxu0 0.0
        %5203 = vmatmul.mubr.f32.gmra.mrb[0].mxu0 %v5131
        %v5204 = vpop.f32.mrb[0].mxu0
        %v5205 = vadd.f32 %v5124, %v5204
        %v5206 = vpop.f32.mrb[0].mxu0
        %5207 = vdwg.mxu0
        %v5208 = vadd.f32 %v5200, %v4834
        %v5209 = vadd.f32 %v5205, %v4835
        %v5210 = vrot.slane %v5208, 7
        %v5211 = vrot.slane %v5209, 7
        %v5212 = vsel %vm1870, %v5210, %v5211
        %v5213 = vsel %vm1870, %v5211, %v5210
        %v5214 = vsel %vm1874, %v5213, 0.0
        %v5215 = vsel %vm1875, %v5212, 0.0
        %v5217 = vsel %vm3739, %v5208, 0
        %v5220 = vsel %vm3739, %v5209, 0
        %5222 = vmatprep.subr.mxu0 0.0
        %5223 = vmatpush1.msra.mxu0 %v1851
        %5224 = vmatprep.subr.mxu0 0.0
        %5225 = vmatpush1.msra.mxu0 %v1852
        %5226 = vmatprep.subr.mxu0 0.0
        %5227 = vmatpush1.msra.mxu0 %v1853
        %5228 = vmatprep.subr.mxu0 0.0
        %5229 = vmatpush1.msra.mxu0 %v1854
        %5230 = vmatprep.subr.mxu0 0.0
        %5231 = vmatpush1.msra.mxu0 %v1855
        %5232 = vmatprep.subr.mxu0 0.0
        %5233 = vmatpush1.msra.mxu0 %v1856
        %5234 = vmatprep.subr.mxu0 0.0
        %5235 = vmatpush1.msra.mxu0 0.0
        %5236 = vmatprep.subr.mxu0 0.0
        %5237 = vmatpush1.msra.mxu0 0.0
        %5238 = vmatprep.subr.mxu0 0.0
        %5239 = vmatpush1.msra.mxu0 0.0
        %5240 = vmatprep.subr.mxu0 0.0
        %5241 = vmatpush1.msra.mxu0 0.0
        %5242 = vmatprep.subr.mxu0 0.0
        %5243 = vmatpush1.msra.mxu0 0.0
        %5244 = vmatprep.subr.mxu0 0.0
        %5245 = vmatpush1.msra.mxu0 0.0
        %5246 = vmatprep.subr.mxu0 0.0
        %5247 = vmatpush1.msra.mxu0 0.0
        %5248 = vmatprep.subr.mxu0 0.0
        %5249 = vmatpush1.msra.mxu0 0.0
        %5250 = vmatprep.subr.mxu0 0.0
        %5251 = vmatpush1.msra.mxu0 0.0
        %5252 = vmatprep.subr.mxu0 0.0
        %5253 = vmatpush1.msra.mxu0 0.0
        %5254 = vmatprep.subr.mxu0 0.0
        %5255 = vmatpush1.msra.mxu0 0.0
        %5256 = vmatprep.subr.mxu0 0.0
        %5257 = vmatpush1.msra.mxu0 0.0
        %5258 = vmatprep.subr.mxu0 0.0
        %5259 = vmatpush1.msra.mxu0 0.0
        %5260 = vmatprep.subr.mxu0 0.0
        %5261 = vmatpush1.msra.mxu0 0.0
        %5262 = vmatprep.subr.mxu0 0.0
        %5263 = vmatpush1.msra.mxu0 0.0
        %5264 = vmatprep.subr.mxu0 0.0
        %5265 = vmatpush1.msra.mxu0 0.0
        %5266 = vmatprep.subr.mxu0 0.0
        %5267 = vmatpush1.msra.mxu0 0.0
        %5268 = vmatprep.subr.mxu0 0.0
        %5269 = vmatpush1.msra.mxu0 0.0
        %5270 = vmatprep.subr.mxu0 0.0
        %5271 = vmatpush1.msra.mxu0 0.0
        %5272 = vmatprep.subr.mxu0 0.0
        %5273 = vmatpush1.msra.mxu0 0.0
        %5274 = vmatprep.subr.mxu0 0.0
        %5275 = vmatpush1.msra.mxu0 0.0
        %5276 = vmatprep.subr.mxu0 0.0
        %5277 = vmatpush1.msra.mxu0 0.0
        %5278 = vmatprep.subr.mxu0 0.0
        %5279 = vmatpush1.msra.mxu0 0.0
        %5280 = vmatprep.subr.mxu0 0.0
        %5281 = vmatpush1.msra.mxu0 0.0
        %5282 = vmatprep.subr.mxu0 0.0
        %5283 = vmatpush1.msra.mxu0 0.0
        %5284 = vmatprep.subr.mxu0 0.0
        %5285 = vmatpush1.msra.mxu0 0.0
        %5286 = vmatprep.mubr.f32.mxu0 0.0
        %5287 = vmatmul.mubr.f32.gmra.mrb[0].mxu0 %v5217
        %v5288 = vpop.f32.mrb[0].mxu0
        %v5289 = vadd.f32 0.0, %v5288
        %v5290 = vpop.f32.mrb[0].mxu0
        %5291 = vmatprep.mubr.f32.mxu0 0.0
        %5292 = vmatmul.mubr.f32.gmra.mrb[0].mxu0 %v5220
        %v5293 = vpop.f32.mrb[0].mxu0
        %v5294 = vadd.f32 0.0, %v5293
        %v5295 = vpop.f32.mrb[0].mxu0
        %5296 = vdwg.mxu0
        %v5298 = vsel %vm3739, %v5214, 0
        %v5301 = vsel %vm3739, %v5215, 0
        %5303 = vmatprep.subr.mxu0 0.0
        %5304 = vmatpush1.msra.mxu0 %v1845
        %5305 = vmatprep.subr.mxu0 0.0
        %5306 = vmatpush1.msra.mxu0 %v1846
        %5307 = vmatprep.subr.mxu0 0.0
        %5308 = vmatpush1.msra.mxu0 %v1847
        %5309 = vmatprep.subr.mxu0 0.0
        %5310 = vmatpush1.msra.mxu0 %v1848
        %5311 = vmatprep.subr.mxu0 0.0
        %5312 = vmatpush1.msra.mxu0 %v1849
        %5313 = vmatprep.subr.mxu0 0.0
        %5314 = vmatpush1.msra.mxu0 %v1850
        %5315 = vmatprep.subr.mxu0 0.0
        %5316 = vmatpush1.msra.mxu0 0.0
        %5317 = vmatprep.subr.mxu0 0.0
        %5318 = vmatpush1.msra.mxu0 0.0
        %5319 = vmatprep.subr.mxu0 0.0
        %5320 = vmatpush1.msra.mxu0 0.0
        %5321 = vmatprep.subr.mxu0 0.0
        %5322 = vmatpush1.msra.mxu0 0.0
        %5323 = vmatprep.subr.mxu0 0.0
        %5324 = vmatpush1.msra.mxu0 0.0
        %5325 = vmatprep.subr.mxu0 0.0
        %5326 = vmatpush1.msra.mxu0 0.0
        %5327 = vmatprep.subr.mxu0 0.0
        %5328 = vmatpush1.msra.mxu0 0.0
        %5329 = vmatprep.subr.mxu0 0.0
        %5330 = vmatpush1.msra.mxu0 0.0
        %5331 = vmatprep.subr.mxu0 0.0
        %5332 = vmatpush1.msra.mxu0 0.0
        %5333 = vmatprep.subr.mxu0 0.0
        %5334 = vmatpush1.msra.mxu0 0.0
        %5335 = vmatprep.subr.mxu0 0.0
        %5336 = vmatpush1.msra.mxu0 0.0
        %5337 = vmatprep.subr.mxu0 0.0
        %5338 = vmatpush1.msra.mxu0 0.0
        %5339 = vmatprep.subr.mxu0 0.0
        %5340 = vmatpush1.msra.mxu0 0.0
        %5341 = vmatprep.subr.mxu0 0.0
        %5342 = vmatpush1.msra.mxu0 0.0
        %5343 = vmatprep.subr.mxu0 0.0
        %5344 = vmatpush1.msra.mxu0 0.0
        %5345 = vmatprep.subr.mxu0 0.0
        %5346 = vmatpush1.msra.mxu0 0.0
        %5347 = vmatprep.subr.mxu0 0.0
        %5348 = vmatpush1.msra.mxu0 0.0
        %5349 = vmatprep.subr.mxu0 0.0
        %5350 = vmatpush1.msra.mxu0 0.0
        %5351 = vmatprep.subr.mxu0 0.0
        %5352 = vmatpush1.msra.mxu0 0.0
        %5353 = vmatprep.subr.mxu0 0.0
        %5354 = vmatpush1.msra.mxu0 0.0
        %5355 = vmatprep.subr.mxu0 0.0
        %5356 = vmatpush1.msra.mxu0 0.0
        %5357 = vmatprep.subr.mxu0 0.0
        %5358 = vmatpush1.msra.mxu0 0.0
        %5359 = vmatprep.subr.mxu0 0.0
        %5360 = vmatpush1.msra.mxu0 0.0
        %5361 = vmatprep.subr.mxu0 0.0
        %5362 = vmatpush1.msra.mxu0 0.0
        %5363 = vmatprep.subr.mxu0 0.0
        %5364 = vmatpush1.msra.mxu0 0.0
        %5365 = vmatprep.subr.mxu0 0.0
        %5366 = vmatpush1.msra.mxu0 0.0
        %5367 = vmatprep.mubr.f32.mxu0 0.0
        %5368 = vmatmul.mubr.f32.gmra.mrb[0].mxu0 %v5298
        %v5369 = vpop.f32.mrb[0].mxu0
        %v5370 = vadd.f32 %v5289, %v5369
        %v5371 = vpop.f32.mrb[0].mxu0
        %5372 = vmatprep.mubr.f32.mxu0 0.0
        %5373 = vmatmul.mubr.f32.gmra.mrb[0].mxu0 %v5301
        %v5374 = vpop.f32.mrb[0].mxu0
        %v5375 = vadd.f32 %v5294, %v5374
        %v5376 = vpop.f32.mrb[0].mxu0
        %5377 = vdwg.mxu0
        %v5378 = vrot.slane %v5208, 1
        %v5379 = vrot.slane %v5209, 1
        %v5380 = vsel %vm1980, %v5378, %v5379
        %v5381 = vsel %vm1980, %v5379, %v5378
        %v5382 = vsel %vm1983, %v5380, 0.0
        %v5383 = vsel %vm1984, %v5381, 0.0
        %v5385 = vsel %vm3739, %v5382, 0
        %v5388 = vsel %vm3739, %v5383, 0
        %5390 = vmatprep.subr.mxu0 0.0
        %5391 = vmatpush1.msra.mxu0 %v1857
        %5392 = vmatprep.subr.mxu0 0.0
        %5393 = vmatpush1.msra.mxu0 %v1858
        %5394 = vmatprep.subr.mxu0 0.0
        %5395 = vmatpush1.msra.mxu0 %v1859
        %5396 = vmatprep.subr.mxu0 0.0
        %5397 = vmatpush1.msra.mxu0 %v1860
        %5398 = vmatprep.subr.mxu0 0.0
        %5399 = vmatpush1.msra.mxu0 %v1861
        %5400 = vmatprep.subr.mxu0 0.0
        %5401 = vmatpush1.msra.mxu0 %v1862
        %5402 = vmatprep.subr.mxu0 0.0
        %5403 = vmatpush1.msra.mxu0 0.0
        %5404 = vmatprep.subr.mxu0 0.0
        %5405 = vmatpush1.msra.mxu0 0.0
        %5406 = vmatprep.subr.mxu0 0.0
        %5407 = vmatpush1.msra.mxu0 0.0
        %5408 = vmatprep.subr.mxu0 0.0
        %5409 = vmatpush1.msra.mxu0 0.0
        %5410 = vmatprep.subr.mxu0 0.0
        %5411 = vmatpush1.msra.mxu0 0.0
        %5412 = vmatprep.subr.mxu0 0.0
        %5413 = vmatpush1.msra.mxu0 0.0
        %5414 = vmatprep.subr.mxu0 0.0
        %5415 = vmatpush1.msra.mxu0 0.0
        %5416 = vmatprep.subr.mxu0 0.0
        %5417 = vmatpush1.msra.mxu0 0.0
        %5418 = vmatprep.subr.mxu0 0.0
        %5419 = vmatpush1.msra.mxu0 0.0
        %5420 = vmatprep.subr.mxu0 0.0
        %5421 = vmatpush1.msra.mxu0 0.0
        %5422 = vmatprep.subr.mxu0 0.0
        %5423 = vmatpush1.msra.mxu0 0.0
        %5424 = vmatprep.subr.mxu0 0.0
        %5425 = vmatpush1.msra.mxu0 0.0
        %5426 = vmatprep.subr.mxu0 0.0
        %5427 = vmatpush1.msra.mxu0 0.0
        %5428 = vmatprep.subr.mxu0 0.0
        %5429 = vmatpush1.msra.mxu0 0.0
        %5430 = vmatprep.subr.mxu0 0.0
        %5431 = vmatpush1.msra.mxu0 0.0
        %5432 = vmatprep.subr.mxu0 0.0
        %5433 = vmatpush1.msra.mxu0 0.0
        %5434 = vmatprep.subr.mxu0 0.0
        %5435 = vmatpush1.msra.mxu0 0.0
        %5436 = vmatprep.subr.mxu0 0.0
        %5437 = vmatpush1.msra.mxu0 0.0
        %5438 = vmatprep.subr.mxu0 0.0
        %5439 = vmatpush1.msra.mxu0 0.0
        %5440 = vmatprep.subr.mxu0 0.0
        %5441 = vmatpush1.msra.mxu0 0.0
        %5442 = vmatprep.subr.mxu0 0.0
        %5443 = vmatpush1.msra.mxu0 0.0
        %5444 = vmatprep.subr.mxu0 0.0
        %5445 = vmatpush1.msra.mxu0 0.0
        %5446 = vmatprep.subr.mxu0 0.0
        %5447 = vmatpush1.msra.mxu0 0.0
        %5448 = vmatprep.subr.mxu0 0.0
        %5449 = vmatpush1.msra.mxu0 0.0
        %5450 = vmatprep.subr.mxu0 0.0
        %5451 = vmatpush1.msra.mxu0 0.0
        %5452 = vmatprep.subr.mxu0 0.0
        %5453 = vmatpush1.msra.mxu0 0.0
        %5454 = vmatprep.mubr.f32.mxu0 0.0
        %5455 = vmatmul.mubr.f32.gmra.mrb[0].mxu0 %v5385
        %v5456 = vpop.f32.mrb[0].mxu0
        %v5457 = vadd.f32 0.0, %v5456
        %v5458 = vpop.f32.mrb[0].mxu0
        %5459 = vmatprep.mubr.f32.mxu0 0.0
        %5460 = vmatmul.mubr.f32.gmra.mrb[0].mxu0 %v5388
        %v5461 = vpop.f32.mrb[0].mxu0
        %v5462 = vadd.f32 0.0, %v5461
        %v5463 = vpop.f32.mrb[0].mxu0
        %5464 = vdwg.mxu0
        %v5465 = vadd.f32 %v5370, %v5457
        %v5466 = vadd.f32 %v5375, %v5462
        %v5468 = vlaneseq
        %v5469 = vshrl.u32 %v5468, 7
        %v5470 = vsub.s32 0, %v5469
        %v5471 = vrot.slane %v1863, %v5470
        %v5473 = vadd.f32 %v5465, %v5471
        %v5474 = vadd.f32 %v5466, %v5471
        %v5475 = vmul.f32 %v5473, 0.5
        %v5476 = vmul.f32 %v5474, 0.5
        %v5477 = vmul.f32 %v5473, 0.70710677
        %v5478 = vmul.f32 %v5474, 0.70710677
        %v5479 = vand.u32 2147483647, %v5477
        %v5480 = vand.u32 2147483647, %v5478
        %v5481 = vmul.f32 %v5479, 0.3275911
        %v5482 = vmul.f32 %v5480, 0.3275911
        %v5483 = vadd.f32 %v5481, 1.0
        %v5484 = vadd.f32 %v5482, 1.0
        %v5485 = vrcp.pop %v5483
        %v5486 = vmul.f32 1.0, %v5485
        %v5487 = vrcp.pop %v5484
        %v5488 = vmul.f32 1.0, %v5487
        %v5489 = vmul.f32 %v5486, 1.0614054
        %v5490 = vmul.f32 %v5488, 1.0614054
        %v5491 = vadd.f32 %v5489, -1.4531521
        %v5492 = vadd.f32 %v5490, -1.4531521
        %v5493 = vmul.f32 %v5491, %v5486
        %v5494 = vmul.f32 %v5492, %v5488
        %v5495 = vadd.f32 %v5493, 1.4214138
        %v5496 = vadd.f32 %v5494, 1.4214138
        %v5497 = vmul.f32 %v5495, %v5486
        %v5498 = vmul.f32 %v5496, %v5488
        %v5499 = vadd.f32 %v5497, -0.28449672
        %v5500 = vadd.f32 %v5498, -0.28449672
        %v5501 = vmul.f32 %v5499, %v5486
        %v5502 = vmul.f32 %v5500, %v5488
        %v5503 = vadd.f32 %v5501, 0.2548296
        %v5504 = vadd.f32 %v5502, 0.2548296
        %v5505 = vmul.f32 %v5503, %v5486
        %v5506 = vmul.f32 %v5504, %v5488
        %v5507 = vsub.f32 0.0, %v5479
        %v5508 = vsub.f32 0.0, %v5480
        %v5509 = vmul.f32 %v5507, %v5479
        %v5510 = vmul.f32 %v5508, %v5480
        %v5511 = vmul.f32 %v5509, 1.442695
        %v5512 = vpow.pop %v5511
        %v5513 = vmul.f32 %v5510, 1.442695
        %v5514 = vpow.pop %v5513
        %v5515 = vmul.f32 %v5505, %v5512
        %v5516 = vmul.f32 %v5506, %v5514
        %v5517 = vsub.f32 1.0, %v5515
        %v5518 = vsub.f32 1.0, %v5516
        %vm5519 = vcmp.ge.f32.partialorder %v5477, 0.0
        %vm5520 = vcmp.ge.f32.partialorder %v5478, 0.0
        %v5521 = vsub.f32 0.0, %v5517
        %v5522 = vsub.f32 0.0, %v5518
        %v5523 = vsel %vm5519, %v5517, %v5521
        %v5524 = vsel %vm5520, %v5518, %v5522
        %v5525 = vadd.f32 %v5523, 1.0
        %v5526 = vadd.f32 %v5524, 1.0
        %v5527 = vmul.f32 %v5475, %v5525
        %v5528 = vmul.f32 %v5476, %v5526
        %vm5529 = vcmask 7168
        %v5530 = vsel %vm5529, %v5527, 0.0
        %v5531 = vsel %vm5529, %v5528, 0.0
        %v5532 = vadd.f32 %v5530, %v5531
        %v5533 = vrot.slane %v5532, 4
        %v5534 = vadd.f32 %v5532, %v5533
        %v5535 = vrot.slane %v5534, 2
        %v5536 = vadd.f32 %v5534, %v5535
        %v5537 = vrot.slane %v5536, 1
        %v5538 = vadd.f32 %v5536, %v5537
        %v5539 = vmul.f32 %v5538, %v2858
        %5541 = vset.pattern.permute.xlu0 0
        %5542 = vperm.xlu0 %5541, %v5539
        %v5543 = vpop.permute.xlu0 %5542
        %5545 = vst [vmem:[%s1725] sm:$0xff] %v5543
        %p5546 = scmp.lt.s32.totalorder %s127, 1
        %s5547 = scalar_select %p5546, %s127, 1
        %s5548 = smul.addr %s5547, 8
        %s5549 = scalar_lea.vmem %s107, %s5548
        // Predicated region
        $region281: #{modified_convnext_forward.1} parent=231 // pred_check
          %p5550 = pneg %p1263
        $region282: #{modified_convnext_forward.1} parent=231 // pred_check_branch
          %5552 = sbr.rel (%p5550) target = $region284
        $region283: #{modified_convnext_forward.1} parent=231 // pred_region
          _
        $region284: #{modified_convnext_forward.1} parent=231 // pred_fallthru
          _
      $region232: #{modified_convnext_forward.1} parent=5 // pred_fallthru
        _
      %p5553 = scmp.le.s32.totalorder 2, %s122
      // Predicated region
      $region285: #{modified_convnext_forward.1} parent=5 // pred_check
        %p5554 = pneg %p5553
      $region286: #{modified_convnext_forward.1} parent=5 // pred_check_branch
        %5556 = sbr.rel (%p5554) target = $region288
      $region287: #{modified_convnext_forward.1} parent=5 // pred_region
        %s5557 = ssub.s32 %s122, 2
        // Predicated region
        $region289: #{modified_convnext_forward.1} parent=287 // pred_check
          %p5558 = pneg %p1269
        $region290: #{modified_convnext_forward.1} parent=287 // pred_check_branch
          %5560 = sbr.rel (%p5558) target = $region292
        $region291: #{modified_convnext_forward.1} parent=287 // pred_region
          %p5561 = scmp.lt.s32.totalorder %s128, 1
          %s5562 = scalar_select %p5561, %s128, 1
          %s5563 = smul.addr %s5562, 8
          %s5564 = scalar_lea.vmem %s107, %s5563
        $region292: #{modified_convnext_forward.1} parent=287 // pred_fallthru
          _
      $region288: #{modified_convnext_forward.1} parent=5 // pred_fallthru
        _
    $region6: #{modified_convnext_forward.1} parent=1 // loop_footer
      %s126 = sadd.s32 1, %s122
    $region7: #{modified_convnext_forward.1} parent=1 // loop_footer_branch
      %121 = sbr.rel target = $region3
    $region8: #{modified_convnext_forward.1} parent=1 // loop_exit
      _
    %5565 = vsyncpa [#allocation4], 1
    %s5566 = scalar_lea.sflag [#allocation4], 1
    %5567 = vsyncpa %s5566, 1
    %5568 = vsyncpa [#allocation6], 1
    %5569 = vsyncpa [#allocation9], 1
    %5570 = vsyncpa [#allocation12], 1
    %5571 = vsyncpa [#allocation15], 1
    %5572 = vsyncpa [#allocation18], 1
    %5573 = vsyncpa [#allocation21], 1

</llo_original>
